<compile_context>
chip_gen: v7x
topology: tpu7x:2x2x1
jax: 0.10.0
libtpu: 0.0.40
codegen_flags: <defaults>
</compile_context>

<pallas_src>
import functools

import numpy as np
import jax
import jax.numpy as jnp
from jax.experimental import pallas as pl
from jax.experimental.pallas import tpu as pltpu


# ---------------------------------------------------------------------------
# Pallas kernel
# ---------------------------------------------------------------------------
def _lstm_cell(gates, c_prev, hidden):
    """PyTorch gate order [i, f, g, o]; gates: (Bp, 4H)."""
    i = jax.nn.sigmoid(gates[:, 0 * hidden:1 * hidden])
    f = jax.nn.sigmoid(gates[:, 1 * hidden:2 * hidden])
    g = jnp.tanh(gates[:, 2 * hidden:3 * hidden])
    o = jax.nn.sigmoid(gates[:, 3 * hidden:4 * hidden])
    c = f * c_prev + i * g
    h = o * jnp.tanh(c)
    return h, c


def _fused_bilstm_fc_kernel(*refs, seq_len, hidden, batch_pad, num_layers):
    """Fused 2-direction multi-layer LSTM + FC.

    refs layout:
      [0]                 x_ref   : (T, Bp, D)        time-major embedded input
      [1 + 4*l .. +3]     per layer l: w_ih (D_in, 8H)  [fwd 4H | bwd 4H]
                                       w_hh_f (H, 4H), w_hh_b (H, 4H)
                                       bias  (1, 8H)    (b_ih + b_hh, fwd|bwd)
      [1 + 4*L]           wfc_ref : (T, 2H, Cp)       FC weight re-indexed (t, c, class)
      [2 + 4*L]           bfc_ref : (1, Cp)
      [3 + 4*L]           out_ref : (Bp, Cp)
      [4 + 4*L]           y_sc    : (T, Bp, 2H)       VMEM scratch, inter-layer acts
    """
    T, H, Bp = seq_len, hidden, batch_pad
    G = 4 * H

    x_ref = refs[0]
    layer_refs = refs[1:1 + 4 * num_layers]
    wfc_ref = refs[1 + 4 * num_layers]
    bfc_ref = refs[2 + 4 * num_layers]
    out_ref = refs[3 + 4 * num_layers]
    y_sc = refs[4 + 4 * num_layers]

    Cp = out_ref.shape[-1]
    wfc = wfc_ref[...]                                          # (T, 2H, Cp)
    acc = jnp.zeros((Bp, Cp), jnp.float32) + bfc_ref[...]       # logits accumulator

    layer_in = x_ref[...].astype(jnp.float32)                   # (T, Bp, D_in)

    for l in range(num_layers):
        wih_ref, whhf_ref, whhb_ref, b_ref = layer_refs[4 * l:4 * l + 4]
        d_in = layer_in.shape[-1]

        # Hoisted input projection: one MXU matmul for all timesteps & both dirs.
        gx = (jnp.dot(layer_in.reshape(T * Bp, d_in), wih_ref[...],
                      preferred_element_type=jnp.float32)
              + b_ref[...]).reshape(T, Bp, 2 * G)               # (T, Bp, 8H)

        whh_f = whhf_ref[...]                                   # (H, 4H)
        whh_b = whhb_ref[...]                                   # (H, 4H)
        is_last = (l == num_layers - 1)

        h_f = jnp.zeros((Bp, H), jnp.float32)
        c_f = jnp.zeros((Bp, H), jnp.float32)
        h_b = jnp.zeros((Bp, H), jnp.float32)
        c_b = jnp.zeros((Bp, H), jnp.float32)

        for i in range(T):                  # fully unrolled: T is small & static
            tf, tb = i, T - 1 - i
            g_f = gx[tf, :, :G] + jnp.dot(h_f, whh_f,
                                          preferred_element_type=jnp.float32)
            g_b = gx[tb, :, G:] + jnp.dot(h_b, whh_b,
                                          preferred_element_type=jnp.float32)
            h_f, c_f = _lstm_cell(g_f, c_f, H)
            h_b, c_b = _lstm_cell(g_b, c_b, H)
            if is_last:
                # Fused FC: logits += h_t · Wfc[t]  (no activation transpose needed).
                acc = acc + jnp.dot(h_f, wfc[tf, :H, :],
                                    preferred_element_type=jnp.float32)
                acc = acc + jnp.dot(h_b, wfc[tb, H:, :],
                                    preferred_element_type=jnp.float32)
            else:
                y_sc[tf, :, :H] = h_f
                y_sc[tb, :, H:] = h_b

        if not is_last:
            layer_in = y_sc[...]                                # (T, Bp, 2H)

    out_ref[...] = acc.astype(out_ref.dtype)


# ---------------------------------------------------------------------------
# Parameter packing + wrapper
# ---------------------------------------------------------------------------
def pack_params(params, seq_len, class_size):
    """One-time re-layout of the PyTorch-style parameters for the fused kernel."""
    H = params["lstm"][0]["fwd"]["w_hh"].shape[0]
    T = seq_len
    Cp = ((class_size + 127) // 128) * 128

    layers = []
    for layer_p in params["lstm"]:
        f, b = layer_p["fwd"], layer_p["bwd"]
        layers.append({
            "w_ih": jnp.concatenate([f["w_ih"], b["w_ih"]], axis=1),   # (D_in, 8H)
            "w_hh_f": f["w_hh"],                                       # (H, 4H)
            "w_hh_b": b["w_hh"],                                       # (H, 4H)
            "bias": jnp.concatenate([f["bias"], b["bias"]], axis=1),   # (1, 8H)
        })

    # PyTorch flattens (B, 2H, T) row-major => flat row index = c*T + t.
    # Re-index the FC weight once so time-major activations can contract directly:
    # wfc[t, c, :] = fc_w_t[c*T + t, :]
    wfc = params["fc_w_t"].reshape(2 * H, T, class_size).transpose(1, 0, 2)
    wfc = jnp.pad(wfc, ((0, 0), (0, 0), (0, Cp - class_size)))          # (T, 2H, Cp)
    bfc = jnp.pad(params["fc_b"], ((0, 0), (0, Cp - class_size)))        # (1, Cp)

    return {"embedding": params["embedding"], "layers": layers,
            "wfc": wfc, "bfc": bfc}


@functools.partial(jax.jit, static_argnames=("hidden", "class_size", "num_layers"))
def forward_pallas(packed, token_ids, *, hidden, class_size, num_layers):
    """token_ids: (B, T) int32 -> logits (B, class_size)."""
    B, T = token_ids.shape
    H = hidden
    Bp = ((B + 7) // 8) * 8                   # pad batch to a full sublane group
    Cp = packed["bfc"].shape[-1]

    # Embedding lookup (tiny gather kept in plain JAX).
    emb = packed["embedding"][token_ids]                      # (B, T, D)
    x = jnp.transpose(emb, (1, 0, 2)).astype(jnp.float32)     # (T, B, D) time-major
    if Bp > B:
        x = jnp.pad(x, ((0, 0), (0, Bp - B), (0, 0)))

    args = [x]
    for lp in packed["layers"]:
        args += [lp["w_ih"], lp["w_hh_f"], lp["w_hh_b"], lp["bias"]]
    args += [packed["wfc"], packed["bfc"]]

    kern = functools.partial(_fused_bilstm_fc_kernel, seq_len=T, hidden=H,
                             batch_pad=Bp, num_layers=num_layers)
    logits = pl.pallas_call(
        kern,
        out_shape=jax.ShapeDtypeStruct((Bp, Cp), jnp.float32),
        in_specs=[pl.BlockSpec(memory_space=pltpu.MemorySpace.VMEM)] * len(args),
        out_specs=pl.BlockSpec(memory_space=pltpu.MemorySpace.VMEM),
        scratch_shapes=[pltpu.VMEM((T, Bp, 2 * H), jnp.float32)],
    )(*args)
    return logits[:B, :class_size]


# ---------------------------------------------------------------------------
# Model parameters (shapes mirror the PyTorch module)
# ---------------------------------------------------------------------------
def init_params(key, *, vocab_size, embedding_dim, hidden_size, num_layers,
                class_size, seq_len):
    params = {}
    k_emb, key = jax.random.split(key)
    params["embedding"] = jax.random.normal(
        k_emb, (vocab_size, embedding_dim), jnp.float32)

    kscale = 1.0 / np.sqrt(hidden_size)
    params["lstm"] = []
    in_size = embedding_dim
    for _ in range(num_layers):
        layer_p = {}
        for direction in ("fwd", "bwd"):
            kw1, kw2, kb1, kb2, key = jax.random.split(key, 5)
            # Stored pre-transposed: (in, 4H) / (H, 4H); gate order [i, f, g, o].
            w_ih = jax.random.uniform(kw1, (in_size, 4 * hidden_size),
                                      jnp.float32, -kscale, kscale)
            w_hh = jax.random.uniform(kw2, (hidden_size, 4 * hidden_size),
                                      jnp.float32, -kscale, kscale)
            b_ih = jax.random.uniform(kb1, (4 * hidden_size,),
                                      jnp.float32, -kscale, kscale)
            b_hh = jax.random.uniform(kb2, (4 * hidden_size,),
                                      jnp.float32, -kscale, kscale)
            layer_p[direction] = {
                "w_ih": w_ih, "w_hh": w_hh,
                "bias": (b_ih + b_hh).reshape(1, 4 * hidden_size),
            }
        params["lstm"].append(layer_p)
        in_size = 2 * hidden_size

    fc_in = 2 * hidden_size * seq_len
    fscale = 1.0 / np.sqrt(fc_in)
    kfw, kfb, key = jax.random.split(key, 3)
    params["fc_w_t"] = jax.random.uniform(kfw, (fc_in, class_size),
                                          jnp.float32, -fscale, fscale)
    params["fc_b"] = jax.random.uniform(kfb, (1, class_size),
                                        jnp.float32, -fscale, fscale)
    return params


# ---------------------------------------------------------------------------
# Pure-JAX reference (PyTorch semantics, for correctness check)
# ---------------------------------------------------------------------------
def _lstm_dir_ref(x_tbd, w_ih, w_hh, bias, reverse):
    T, B, _ = x_tbd.shape
    H = w_hh.shape[0]
    h = jnp.zeros((B, H), jnp.float32)
    c = jnp.zeros((B, H), jnp.float32)
    outs = [None] * T
    order = range(T - 1, -1, -1) if reverse else range(T)
    for t in order:
        gates = x_tbd[t] @ w_ih + h @ w_hh + bias
        i = jax.nn.sigmoid(gates[:, :H])
        f = jax.nn.sigmoid(gates[:, H:2 * H])
        g = jnp.tanh(gates[:, 2 * H:3 * H])
        o = jax.nn.sigmoid(gates[:, 3 * H:4 * H])
        c = f * c + i * g
        h = o * jnp.tanh(c)
        outs[t] = h
    return jnp.stack(outs, axis=0)


def forward_ref(params, token_ids):
    B, T = token_ids.shape
    emb = params["embedding"][token_ids]
    x = jnp.transpose(emb, (1, 0, 2)).astype(jnp.float32)
    for layer_p in params["lstm"]:
        h_f = _lstm_dir_ref(x, layer_p["fwd"]["w_ih"], layer_p["fwd"]["w_hh"],
                            layer_p["fwd"]["bias"], reverse=False)
        h_b = _lstm_dir_ref(x, layer_p["bwd"]["w_ih"], layer_p["bwd"]["w_hh"],
                            layer_p["bwd"]["bias"], reverse=True)
        x = jnp.concatenate([h_f, h_b], axis=-1)
    flat = jnp.transpose(x, (1, 2, 0)).reshape(B, -1)       # (B, 2H, T) -> (B, 2H*T)
    return flat @ params["fc_w_t"] + params["fc_b"]


# ---------------------------------------------------------------------------
if __name__ == "__main__":
    # Small shapes consistent with the module:
    #   feature_lengths = [8, 1] -> text column index 0, max_sequence_len = 8
    B = 2
    T = 8                 # max_sequence_len
    EMB_DIM = 32          # embedding_dim
    HIDDEN = 32           # hidden_size (75 in the paper; 32 for a small test)
    NUM_LAYERS = 2
    CLASS_SIZE = 4
    VOCAB = 50            # embed_vocab_size

    key = jax.random.PRNGKey(0)
    k_params, k_ids = jax.random.split(key)

    params = init_params(k_params, vocab_size=VOCAB, embedding_dim=EMB_DIM,
                         hidden_size=HIDDEN, num_layers=NUM_LAYERS,
                         class_size=CLASS_SIZE, seq_len=T)
    packed = pack_params(params, seq_len=T, class_size=CLASS_SIZE)

    token_ids = jax.random.randint(k_ids, (B, T), 0, VOCAB, dtype=jnp.int32)

    out = jax.block_until_ready(
        forward_pallas(packed, token_ids, hidden=HIDDEN,
                       class_size=CLASS_SIZE, num_layers=NUM_LAYERS))
    ref = jax.block_until_ready(forward_ref(params, token_ids))

    assert out.shape == (B, CLASS_SIZE), out.shape
    np.testing.assert_allclose(np.asarray(out), np.asarray(ref),
                               rtol=1e-4, atol=1e-4)
    print("KERNEL_OK")
</pallas_src>

<mosaic_0001>
module attributes {stable_mosaic.version = 11 : i64} {
  func.func @_fused_bilstm_fc_kernel(%arg0: memref<8x8x32xf32, #tpu.memory_space<vmem>>, %arg1: memref<32x256xf32, #tpu.memory_space<vmem>>, %arg2: memref<32x128xf32, #tpu.memory_space<vmem>>, %arg3: memref<32x128xf32, #tpu.memory_space<vmem>>, %arg4: memref<1x256xf32, #tpu.memory_space<vmem>>, %arg5: memref<64x256xf32, #tpu.memory_space<vmem>>, %arg6: memref<32x128xf32, #tpu.memory_space<vmem>>, %arg7: memref<32x128xf32, #tpu.memory_space<vmem>>, %arg8: memref<1x256xf32, #tpu.memory_space<vmem>>, %arg9: memref<8x64x128xf32, #tpu.memory_space<vmem>>, %arg10: memref<1x128xf32, #tpu.memory_space<vmem>>, %arg11: memref<8x128xf32, #tpu.memory_space<vmem>>, %arg12: memref<8x8x64xf32, #tpu.memory_space<vmem>>) attributes {dimension_semantics = [], scalar_prefetch = 0 : i64, scratch_operands = 1 : i64, tpu.core_type = #tpu.core_type<tc>} {
    %c0 = arith.constant 0 : index
    %c0_0 = arith.constant 0 : index
    %c0_1 = arith.constant 0 : index
    %0 = vector.load %arg9[%c0, %c0_0, %c0_1] : memref<8x64x128xf32, #tpu.memory_space<vmem>>, vector<8x64x128xf32>
    %cst = arith.constant 0.000000e+00 : f32
    %1 = vector.broadcast %cst : f32 to vector<8x128xf32>
    %c0_2 = arith.constant 0 : index
    %c0_3 = arith.constant 0 : index
    %2 = vector.load %arg10[%c0_2, %c0_3] : memref<1x128xf32, #tpu.memory_space<vmem>>, vector<1x128xf32>
    %3 = vector.broadcast %2 : vector<1x128xf32> to vector<8x128xf32>
    %4 = arith.addf %1, %3 : vector<8x128xf32>
    %c0_4 = arith.constant 0 : index
    %c0_5 = arith.constant 0 : index
    %c0_6 = arith.constant 0 : index
    %5 = vector.load %arg0[%c0_4, %c0_5, %c0_6] : memref<8x8x32xf32, #tpu.memory_space<vmem>>, vector<8x8x32xf32>
    %6 = vector.shape_cast %5 : vector<8x8x32xf32> to vector<64x32xf32>
    %c0_7 = arith.constant 0 : index
    %c0_8 = arith.constant 0 : index
    %7 = vector.load %arg1[%c0_7, %c0_8] : memref<32x256xf32, #tpu.memory_space<vmem>>, vector<32x256xf32>
    %cst_9 = arith.constant dense<0.000000e+00> : vector<64x256xf32>
    %8 = tpu.matmul %6, %7, %cst_9 {dimension_numbers = #tpu.dot_dimension_numbers<[1], [0], [0], [1], [0, 0, 1, 1], [], []>} : vector<64x32xf32>, vector<32x256xf32>, vector<64x256xf32> -> vector<64x256xf32>
    %c0_10 = arith.constant 0 : index
    %c0_11 = arith.constant 0 : index
    %9 = vector.load %arg4[%c0_10, %c0_11] : memref<1x256xf32, #tpu.memory_space<vmem>>, vector<1x256xf32>
    %10 = vector.broadcast %9 : vector<1x256xf32> to vector<64x256xf32>
    %11 = arith.addf %8, %10 : vector<64x256xf32>
    %12 = vector.shape_cast %11 : vector<64x256xf32> to vector<8x8x256xf32>
    %c0_12 = arith.constant 0 : index
    %c0_13 = arith.constant 0 : index
    %13 = vector.load %arg2[%c0_12, %c0_13] : memref<32x128xf32, #tpu.memory_space<vmem>>, vector<32x128xf32>
    %c0_14 = arith.constant 0 : index
    %c0_15 = arith.constant 0 : index
    %14 = vector.load %arg3[%c0_14, %c0_15] : memref<32x128xf32, #tpu.memory_space<vmem>>, vector<32x128xf32>
    %cst_16 = arith.constant 0.000000e+00 : f32
    %15 = vector.broadcast %cst_16 : f32 to vector<8x32xf32>
    %cst_17 = arith.constant 0.000000e+00 : f32
    %16 = vector.broadcast %cst_17 : f32 to vector<8x32xf32>
    %cst_18 = arith.constant 0.000000e+00 : f32
    %17 = vector.broadcast %cst_18 : f32 to vector<8x32xf32>
    %cst_19 = arith.constant 0.000000e+00 : f32
    %18 = vector.broadcast %cst_19 : f32 to vector<8x32xf32>
    %19 = vector.extract_strided_slice %12 {offsets = [0, 0, 0], sizes = [1, 8, 128], strides = [1, 1, 1]} : vector<8x8x256xf32> to vector<1x8x128xf32>
    %20 = vector.shape_cast %19 : vector<1x8x128xf32> to vector<8x128xf32>
    %cst_20 = arith.constant dense<0.000000e+00> : vector<8x128xf32>
    %21 = tpu.matmul %15, %13, %cst_20 {dimension_numbers = #tpu.dot_dimension_numbers<[1], [0], [0], [1], [0, 0, 1, 1], [], []>} : vector<8x32xf32>, vector<32x128xf32>, vector<8x128xf32> -> vector<8x128xf32>
    %22 = arith.addf %20, %21 : vector<8x128xf32>
    %23 = vector.extract_strided_slice %12 {offsets = [7, 0, 128], sizes = [1, 8, 128], strides = [1, 1, 1]} : vector<8x8x256xf32> to vector<1x8x128xf32>
    %24 = vector.shape_cast %23 : vector<1x8x128xf32> to vector<8x128xf32>
    %cst_21 = arith.constant dense<0.000000e+00> : vector<8x128xf32>
    %25 = tpu.matmul %17, %14, %cst_21 {dimension_numbers = #tpu.dot_dimension_numbers<[1], [0], [0], [1], [0, 0, 1, 1], [], []>} : vector<8x32xf32>, vector<32x128xf32>, vector<8x128xf32> -> vector<8x128xf32>
    %26 = arith.addf %24, %25 : vector<8x128xf32>
    %27 = vector.extract_strided_slice %22 {offsets = [0, 0], sizes = [8, 32], strides = [1, 1]} : vector<8x128xf32> to vector<8x32xf32>
    %28 = arith.negf %27 : vector<8x32xf32>
    %29 = math.exp %28 : vector<8x32xf32>
    %cst_22 = arith.constant 1.000000e+00 : f32
    %30 = vector.broadcast %cst_22 : f32 to vector<8x32xf32>
    %31 = arith.addf %30, %29 : vector<8x32xf32>
    %32 = arith.divf %30, %31 : vector<8x32xf32>
    %33 = vector.extract_strided_slice %22 {offsets = [0, 32], sizes = [8, 32], strides = [1, 1]} : vector<8x128xf32> to vector<8x32xf32>
    %34 = arith.negf %33 : vector<8x32xf32>
    %35 = math.exp %34 : vector<8x32xf32>
    %cst_23 = arith.constant 1.000000e+00 : f32
    %36 = vector.broadcast %cst_23 : f32 to vector<8x32xf32>
    %37 = arith.addf %36, %35 : vector<8x32xf32>
    %38 = arith.divf %36, %37 : vector<8x32xf32>
    %39 = vector.extract_strided_slice %22 {offsets = [0, 64], sizes = [8, 32], strides = [1, 1]} : vector<8x128xf32> to vector<8x32xf32>
    %40 = math.tanh %39 : vector<8x32xf32>
    %41 = vector.extract_strided_slice %22 {offsets = [0, 96], sizes = [8, 32], strides = [1, 1]} : vector<8x128xf32> to vector<8x32xf32>
    %42 = arith.negf %41 : vector<8x32xf32>
    %43 = math.exp %42 : vector<8x32xf32>
    %cst_24 = arith.constant 1.000000e+00 : f32
    %44 = vector.broadcast %cst_24 : f32 to vector<8x32xf32>
    %45 = arith.addf %44, %43 : vector<8x32xf32>
    %46 = arith.divf %44, %45 : vector<8x32xf32>
    %47 = arith.mulf %38, %16 : vector<8x32xf32>
    %48 = arith.mulf %32, %40 : vector<8x32xf32>
    %49 = arith.addf %47, %48 : vector<8x32xf32>
    %50 = math.tanh %49 : vector<8x32xf32>
    %51 = arith.mulf %46, %50 : vector<8x32xf32>
    %52 = vector.extract_strided_slice %26 {offsets = [0, 0], sizes = [8, 32], strides = [1, 1]} : vector<8x128xf32> to vector<8x32xf32>
    %53 = arith.negf %52 : vector<8x32xf32>
    %54 = math.exp %53 : vector<8x32xf32>
    %cst_25 = arith.constant 1.000000e+00 : f32
    %55 = vector.broadcast %cst_25 : f32 to vector<8x32xf32>
    %56 = arith.addf %55, %54 : vector<8x32xf32>
    %57 = arith.divf %55, %56 : vector<8x32xf32>
    %58 = vector.extract_strided_slice %26 {offsets = [0, 32], sizes = [8, 32], strides = [1, 1]} : vector<8x128xf32> to vector<8x32xf32>
    %59 = arith.negf %58 : vector<8x32xf32>
    %60 = math.exp %59 : vector<8x32xf32>
    %cst_26 = arith.constant 1.000000e+00 : f32
    %61 = vector.broadcast %cst_26 : f32 to vector<8x32xf32>
    %62 = arith.addf %61, %60 : vector<8x32xf32>
    %63 = arith.divf %61, %62 : vector<8x32xf32>
    %64 = vector.extract_strided_slice %26 {offsets = [0, 64], sizes = [8, 32], strides = [1, 1]} : vector<8x128xf32> to vector<8x32xf32>
    %65 = math.tanh %64 : vector<8x32xf32>
    %66 = vector.extract_strided_slice %26 {offsets = [0, 96], sizes = [8, 32], strides = [1, 1]} : vector<8x128xf32> to vector<8x32xf32>
    %67 = arith.negf %66 : vector<8x32xf32>
    %68 = math.exp %67 : vector<8x32xf32>
    %cst_27 = arith.constant 1.000000e+00 : f32
    %69 = vector.broadcast %cst_27 : f32 to vector<8x32xf32>
    %70 = arith.addf %69, %68 : vector<8x32xf32>
    %71 = arith.divf %69, %70 : vector<8x32xf32>
    %72 = arith.mulf %63, %18 : vector<8x32xf32>
    %73 = arith.mulf %57, %65 : vector<8x32xf32>
    %74 = arith.addf %72, %73 : vector<8x32xf32>
    %75 = math.tanh %74 : vector<8x32xf32>
    %76 = arith.mulf %71, %75 : vector<8x32xf32>
    %c0_28 = arith.constant 0 : index
    %c0_29 = arith.constant 0 : index
    %c0_30 = arith.constant 0 : index
    %77 = vector.load %arg12[%c0_28, %c0_29, %c0_30] : memref<8x8x64xf32, #tpu.memory_space<vmem>>, vector<1x8x32xf32>
    %78 = vector.shape_cast %77 : vector<1x8x32xf32> to vector<8x32xf32>
    %79 = vector.shape_cast %51 : vector<8x32xf32> to vector<1x8x32xf32>
    tpu.vector_store %arg12[%c0_28, %c0_29, %c0_30], %79 {strides = array<i32>} : memref<8x8x64xf32, #tpu.memory_space<vmem>>, vector<1x8x32xf32>,
    %c7 = arith.constant 7 : index
    %c0_31 = arith.constant 0 : index
    %c32 = arith.constant 32 : index
    %80 = vector.load %arg12[%c7, %c0_31, %c32] : memref<8x8x64xf32, #tpu.memory_space<vmem>>, vector<1x8x32xf32>
    %81 = vector.shape_cast %80 : vector<1x8x32xf32> to vector<8x32xf32>
    %82 = vector.shape_cast %76 : vector<8x32xf32> to vector<1x8x32xf32>
    tpu.vector_store %arg12[%c7, %c0_31, %c32], %82 {strides = array<i32>} : memref<8x8x64xf32, #tpu.memory_space<vmem>>, vector<1x8x32xf32>,
    %83 = vector.extract_strided_slice %12 {offsets = [1, 0, 0], sizes = [1, 8, 128], strides = [1, 1, 1]} : vector<8x8x256xf32> to vector<1x8x128xf32>
    %84 = vector.shape_cast %83 : vector<1x8x128xf32> to vector<8x128xf32>
    %cst_32 = arith.constant dense<0.000000e+00> : vector<8x128xf32>
    %85 = tpu.matmul %51, %13, %cst_32 {dimension_numbers = #tpu.dot_dimension_numbers<[1], [0], [0], [1], [0, 0, 1, 1], [], []>} : vector<8x32xf32>, vector<32x128xf32>, vector<8x128xf32> -> vector<8x128xf32>
    %86 = arith.addf %84, %85 : vector<8x128xf32>
    %87 = vector.extract_strided_slice %12 {offsets = [6, 0, 128], sizes = [1, 8, 128], strides = [1, 1, 1]} : vector<8x8x256xf32> to vector<1x8x128xf32>
    %88 = vector.shape_cast %87 : vector<1x8x128xf32> to vector<8x128xf32>
    %cst_33 = arith.constant dense<0.000000e+00> : vector<8x128xf32>
    %89 = tpu.matmul %76, %14, %cst_33 {dimension_numbers = #tpu.dot_dimension_numbers<[1], [0], [0], [1], [0, 0, 1, 1], [], []>} : vector<8x32xf32>, vector<32x128xf32>, vector<8x128xf32> -> vector<8x128xf32>
    %90 = arith.addf %88, %89 : vector<8x128xf32>
    %91 = vector.extract_strided_slice %86 {offsets = [0, 0], sizes = [8, 32], strides = [1, 1]} : vector<8x128xf32> to vector<8x32xf32>
    %92 = arith.negf %91 : vector<8x32xf32>
    %93 = math.exp %92 : vector<8x32xf32>
    %cst_34 = arith.constant 1.000000e+00 : f32
    %94 = vector.broadcast %cst_34 : f32 to vector<8x32xf32>
    %95 = arith.addf %94, %93 : vector<8x32xf32>
    %96 = arith.divf %94, %95 : vector<8x32xf32>
    %97 = vector.extract_strided_slice %86 {offsets = [0, 32], sizes = [8, 32], strides = [1, 1]} : vector<8x128xf32> to vector<8x32xf32>
    %98 = arith.negf %97 : vector<8x32xf32>
    %99 = math.exp %98 : vector<8x32xf32>
    %cst_35 = arith.constant 1.000000e+00 : f32
    %100 = vector.broadcast %cst_35 : f32 to vector<8x32xf32>
    %101 = arith.addf %100, %99 : vector<8x32xf32>
    %102 = arith.divf %100, %101 : vector<8x32xf32>
    %103 = vector.extract_strided_slice %86 {offsets = [0, 64], sizes = [8, 32], strides = [1, 1]} : vector<8x128xf32> to vector<8x32xf32>
    %104 = math.tanh %103 : vector<8x32xf32>
    %105 = vector.extract_strided_slice %86 {offsets = [0, 96], sizes = [8, 32], strides = [1, 1]} : vector<8x128xf32> to vector<8x32xf32>
    %106 = arith.negf %105 : vector<8x32xf32>
    %107 = math.exp %106 : vector<8x32xf32>
    %cst_36 = arith.constant 1.000000e+00 : f32
    %108 = vector.broadcast %cst_36 : f32 to vector<8x32xf32>
    %109 = arith.addf %108, %107 : vector<8x32xf32>
    %110 = arith.divf %108, %109 : vector<8x32xf32>
    %111 = arith.mulf %102, %49 : vector<8x32xf32>
    %112 = arith.mulf %96, %104 : vector<8x32xf32>
    %113 = arith.addf %111, %112 : vector<8x32xf32>
    %114 = math.tanh %113 : vector<8x32xf32>
    %115 = arith.mulf %110, %114 : vector<8x32xf32>
    %116 = vector.extract_strided_slice %90 {offsets = [0, 0], sizes = [8, 32], strides = [1, 1]} : vector<8x128xf32> to vector<8x32xf32>
    %117 = arith.negf %116 : vector<8x32xf32>
    %118 = math.exp %117 : vector<8x32xf32>
    %cst_37 = arith.constant 1.000000e+00 : f32
    %119 = vector.broadcast %cst_37 : f32 to vector<8x32xf32>
    %120 = arith.addf %119, %118 : vector<8x32xf32>
    %121 = arith.divf %119, %120 : vector<8x32xf32>
    %122 = vector.extract_strided_slice %90 {offsets = [0, 32], sizes = [8, 32], strides = [1, 1]} : vector<8x128xf32> to vector<8x32xf32>
    %123 = arith.negf %122 : vector<8x32xf32>
    %124 = math.exp %123 : vector<8x32xf32>
    %cst_38 = arith.constant 1.000000e+00 : f32
    %125 = vector.broadcast %cst_38 : f32 to vector<8x32xf32>
    %126 = arith.addf %125, %124 : vector<8x32xf32>
    %127 = arith.divf %125, %126 : vector<8x32xf32>
    %128 = vector.extract_strided_slice %90 {offsets = [0, 64], sizes = [8, 32], strides = [1, 1]} : vector<8x128xf32> to vector<8x32xf32>
    %129 = math.tanh %128 : vector<8x32xf32>
    %130 = vector.extract_strided_slice %90 {offsets = [0, 96], sizes = [8, 32], strides = [1, 1]} : vector<8x128xf32> to vector<8x32xf32>
    %131 = arith.negf %130 : vector<8x32xf32>
    %132 = math.exp %131 : vector<8x32xf32>
    %cst_39 = arith.constant 1.000000e+00 : f32
    %133 = vector.broadcast %cst_39 : f32 to vector<8x32xf32>
    %134 = arith.addf %133, %132 : vector<8x32xf32>
    %135 = arith.divf %133, %134 : vector<8x32xf32>
    %136 = arith.mulf %127, %74 : vector<8x32xf32>
    %137 = arith.mulf %121, %129 : vector<8x32xf32>
    %138 = arith.addf %136, %137 : vector<8x32xf32>
    %139 = math.tanh %138 : vector<8x32xf32>
    %140 = arith.mulf %135, %139 : vector<8x32xf32>
    %c1 = arith.constant 1 : index
    %c0_40 = arith.constant 0 : index
    %c0_41 = arith.constant 0 : index
    %141 = vector.load %arg12[%c1, %c0_40, %c0_41] : memref<8x8x64xf32, #tpu.memory_space<vmem>>, vector<1x8x32xf32>
    %142 = vector.shape_cast %141 : vector<1x8x32xf32> to vector<8x32xf32>
    %143 = vector.shape_cast %115 : vector<8x32xf32> to vector<1x8x32xf32>
    tpu.vector_store %arg12[%c1, %c0_40, %c0_41], %143 {strides = array<i32>} : memref<8x8x64xf32, #tpu.memory_space<vmem>>, vector<1x8x32xf32>,
    %c6 = arith.constant 6 : index
    %c0_42 = arith.constant 0 : index
    %c32_43 = arith.constant 32 : index
    %144 = vector.load %arg12[%c6, %c0_42, %c32_43] : memref<8x8x64xf32, #tpu.memory_space<vmem>>, vector<1x8x32xf32>
    %145 = vector.shape_cast %144 : vector<1x8x32xf32> to vector<8x32xf32>
    %146 = vector.shape_cast %140 : vector<8x32xf32> to vector<1x8x32xf32>
    tpu.vector_store %arg12[%c6, %c0_42, %c32_43], %146 {strides = array<i32>} : memref<8x8x64xf32, #tpu.memory_space<vmem>>, vector<1x8x32xf32>,
    %147 = vector.extract_strided_slice %12 {offsets = [2, 0, 0], sizes = [1, 8, 128], strides = [1, 1, 1]} : vector<8x8x256xf32> to vector<1x8x128xf32>
    %148 = vector.shape_cast %147 : vector<1x8x128xf32> to vector<8x128xf32>
    %cst_44 = arith.constant dense<0.000000e+00> : vector<8x128xf32>
    %149 = tpu.matmul %115, %13, %cst_44 {dimension_numbers = #tpu.dot_dimension_numbers<[1], [0], [0], [1], [0, 0, 1, 1], [], []>} : vector<8x32xf32>, vector<32x128xf32>, vector<8x128xf32> -> vector<8x128xf32>
    %150 = arith.addf %148, %149 : vector<8x128xf32>
    %151 = vector.extract_strided_slice %12 {offsets = [5, 0, 128], sizes = [1, 8, 128], strides = [1, 1, 1]} : vector<8x8x256xf32> to vector<1x8x128xf32>
    %152 = vector.shape_cast %151 : vector<1x8x128xf32> to vector<8x128xf32>
    %cst_45 = arith.constant dense<0.000000e+00> : vector<8x128xf32>
    %153 = tpu.matmul %140, %14, %cst_45 {dimension_numbers = #tpu.dot_dimension_numbers<[1], [0], [0], [1], [0, 0, 1, 1], [], []>} : vector<8x32xf32>, vector<32x128xf32>, vector<8x128xf32> -> vector<8x128xf32>
    %154 = arith.addf %152, %153 : vector<8x128xf32>
    %155 = vector.extract_strided_slice %150 {offsets = [0, 0], sizes = [8, 32], strides = [1, 1]} : vector<8x128xf32> to vector<8x32xf32>
    %156 = arith.negf %155 : vector<8x32xf32>
    %157 = math.exp %156 : vector<8x32xf32>
    %cst_46 = arith.constant 1.000000e+00 : f32
    %158 = vector.broadcast %cst_46 : f32 to vector<8x32xf32>
    %159 = arith.addf %158, %157 : vector<8x32xf32>
    %160 = arith.divf %158, %159 : vector<8x32xf32>
    %161 = vector.extract_strided_slice %150 {offsets = [0, 32], sizes = [8, 32], strides = [1, 1]} : vector<8x128xf32> to vector<8x32xf32>
    %162 = arith.negf %161 : vector<8x32xf32>
    %163 = math.exp %162 : vector<8x32xf32>
    %cst_47 = arith.constant 1.000000e+00 : f32
    %164 = vector.broadcast %cst_47 : f32 to vector<8x32xf32>
    %165 = arith.addf %164, %163 : vector<8x32xf32>
    %166 = arith.divf %164, %165 : vector<8x32xf32>
    %167 = vector.extract_strided_slice %150 {offsets = [0, 64], sizes = [8, 32], strides = [1, 1]} : vector<8x128xf32> to vector<8x32xf32>
    %168 = math.tanh %167 : vector<8x32xf32>
    %169 = vector.extract_strided_slice %150 {offsets = [0, 96], sizes = [8, 32], strides = [1, 1]} : vector<8x128xf32> to vector<8x32xf32>
    %170 = arith.negf %169 : vector<8x32xf32>
    %171 = math.exp %170 : vector<8x32xf32>
    %cst_48 = arith.constant 1.000000e+00 : f32
    %172 = vector.broadcast %cst_48 : f32 to vector<8x32xf32>
    %173 = arith.addf %172, %171 : vector<8x32xf32>
    %174 = arith.divf %172, %173 : vector<8x32xf32>
    %175 = arith.mulf %166, %113 : vector<8x32xf32>
    %176 = arith.mulf %160, %168 : vector<8x32xf32>
    %177 = arith.addf %175, %176 : vector<8x32xf32>
    %178 = math.tanh %177 : vector<8x32xf32>
    %179 = arith.mulf %174, %178 : vector<8x32xf32>
    %180 = vector.extract_strided_slice %154 {offsets = [0, 0], sizes = [8, 32], strides = [1, 1]} : vector<8x128xf32> to vector<8x32xf32>
    %181 = arith.negf %180 : vector<8x32xf32>
    %182 = math.exp %181 : vector<8x32xf32>
    %cst_49 = arith.constant 1.000000e+00 : f32
    %183 = vector.broadcast %cst_49 : f32 to vector<8x32xf32>
    %184 = arith.addf %183, %182 : vector<8x32xf32>
    %185 = arith.divf %183, %184 : vector<8x32xf32>
    %186 = vector.extract_strided_slice %154 {offsets = [0, 32], sizes = [8, 32], strides = [1, 1]} : vector<8x128xf32> to vector<8x32xf32>
    %187 = arith.negf %186 : vector<8x32xf32>
    %188 = math.exp %187 : vector<8x32xf32>
    %cst_50 = arith.constant 1.000000e+00 : f32
    %189 = vector.broadcast %cst_50 : f32 to vector<8x32xf32>
    %190 = arith.addf %189, %188 : vector<8x32xf32>
    %191 = arith.divf %189, %190 : vector<8x32xf32>
    %192 = vector.extract_strided_slice %154 {offsets = [0, 64], sizes = [8, 32], strides = [1, 1]} : vector<8x128xf32> to vector<8x32xf32>
    %193 = math.tanh %192 : vector<8x32xf32>
    %194 = vector.extract_strided_slice %154 {offsets = [0, 96], sizes = [8, 32], strides = [1, 1]} : vector<8x128xf32> to vector<8x32xf32>
    %195 = arith.negf %194 : vector<8x32xf32>
    %196 = math.exp %195 : vector<8x32xf32>
    %cst_51 = arith.constant 1.000000e+00 : f32
    %197 = vector.broadcast %cst_51 : f32 to vector<8x32xf32>
    %198 = arith.addf %197, %196 : vector<8x32xf32>
    %199 = arith.divf %197, %198 : vector<8x32xf32>
    %200 = arith.mulf %191, %138 : vector<8x32xf32>
    %201 = arith.mulf %185, %193 : vector<8x32xf32>
    %202 = arith.addf %200, %201 : vector<8x32xf32>
    %203 = math.tanh %202 : vector<8x32xf32>
    %204 = arith.mulf %199, %203 : vector<8x32xf32>
    %c2 = arith.constant 2 : index
    %c0_52 = arith.constant 0 : index
    %c0_53 = arith.constant 0 : index
    %205 = vector.load %arg12[%c2, %c0_52, %c0_53] : memref<8x8x64xf32, #tpu.memory_space<vmem>>, vector<1x8x32xf32>
    %206 = vector.shape_cast %205 : vector<1x8x32xf32> to vector<8x32xf32>
    %207 = vector.shape_cast %179 : vector<8x32xf32> to vector<1x8x32xf32>
    tpu.vector_store %arg12[%c2, %c0_52, %c0_53], %207 {strides = array<i32>} : memref<8x8x64xf32, #tpu.memory_space<vmem>>, vector<1x8x32xf32>,
    %c5 = arith.constant 5 : index
    %c0_54 = arith.constant 0 : index
    %c32_55 = arith.constant 32 : index
    %208 = vector.load %arg12[%c5, %c0_54, %c32_55] : memref<8x8x64xf32, #tpu.memory_space<vmem>>, vector<1x8x32xf32>
    %209 = vector.shape_cast %208 : vector<1x8x32xf32> to vector<8x32xf32>
    %210 = vector.shape_cast %204 : vector<8x32xf32> to vector<1x8x32xf32>
    tpu.vector_store %arg12[%c5, %c0_54, %c32_55], %210 {strides = array<i32>} : memref<8x8x64xf32, #tpu.memory_space<vmem>>, vector<1x8x32xf32>,
    %211 = vector.extract_strided_slice %12 {offsets = [3, 0, 0], sizes = [1, 8, 128], strides = [1, 1, 1]} : vector<8x8x256xf32> to vector<1x8x128xf32>
    %212 = vector.shape_cast %211 : vector<1x8x128xf32> to vector<8x128xf32>
    %cst_56 = arith.constant dense<0.000000e+00> : vector<8x128xf32>
    %213 = tpu.matmul %179, %13, %cst_56 {dimension_numbers = #tpu.dot_dimension_numbers<[1], [0], [0], [1], [0, 0, 1, 1], [], []>} : vector<8x32xf32>, vector<32x128xf32>, vector<8x128xf32> -> vector<8x128xf32>
    %214 = arith.addf %212, %213 : vector<8x128xf32>
    %215 = vector.extract_strided_slice %12 {offsets = [4, 0, 128], sizes = [1, 8, 128], strides = [1, 1, 1]} : vector<8x8x256xf32> to vector<1x8x128xf32>
    %216 = vector.shape_cast %215 : vector<1x8x128xf32> to vector<8x128xf32>
    %cst_57 = arith.constant dense<0.000000e+00> : vector<8x128xf32>
    %217 = tpu.matmul %204, %14, %cst_57 {dimension_numbers = #tpu.dot_dimension_numbers<[1], [0], [0], [1], [0, 0, 1, 1], [], []>} : vector<8x32xf32>, vector<32x128xf32>, vector<8x128xf32> -> vector<8x128xf32>
    %218 = arith.addf %216, %217 : vector<8x128xf32>
    %219 = vector.extract_strided_slice %214 {offsets = [0, 0], sizes = [8, 32], strides = [1, 1]} : vector<8x128xf32> to vector<8x32xf32>
    %220 = arith.negf %219 : vector<8x32xf32>
    %221 = math.exp %220 : vector<8x32xf32>
    %cst_58 = arith.constant 1.000000e+00 : f32
    %222 = vector.broadcast %cst_58 : f32 to vector<8x32xf32>
    %223 = arith.addf %222, %221 : vector<8x32xf32>
    %224 = arith.divf %222, %223 : vector<8x32xf32>
    %225 = vector.extract_strided_slice %214 {offsets = [0, 32], sizes = [8, 32], strides = [1, 1]} : vector<8x128xf32> to vector<8x32xf32>
    %226 = arith.negf %225 : vector<8x32xf32>
    %227 = math.exp %226 : vector<8x32xf32>
    %cst_59 = arith.constant 1.000000e+00 : f32
    %228 = vector.broadcast %cst_59 : f32 to vector<8x32xf32>
    %229 = arith.addf %228, %227 : vector<8x32xf32>
    %230 = arith.divf %228, %229 : vector<8x32xf32>
    %231 = vector.extract_strided_slice %214 {offsets = [0, 64], sizes = [8, 32], strides = [1, 1]} : vector<8x128xf32> to vector<8x32xf32>
    %232 = math.tanh %231 : vector<8x32xf32>
    %233 = vector.extract_strided_slice %214 {offsets = [0, 96], sizes = [8, 32], strides = [1, 1]} : vector<8x128xf32> to vector<8x32xf32>
    %234 = arith.negf %233 : vector<8x32xf32>
    %235 = math.exp %234 : vector<8x32xf32>
    %cst_60 = arith.constant 1.000000e+00 : f32
    %236 = vector.broadcast %cst_60 : f32 to vector<8x32xf32>
    %237 = arith.addf %236, %235 : vector<8x32xf32>
    %238 = arith.divf %236, %237 : vector<8x32xf32>
    %239 = arith.mulf %230, %177 : vector<8x32xf32>
    %240 = arith.mulf %224, %232 : vector<8x32xf32>
    %241 = arith.addf %239, %240 : vector<8x32xf32>
    %242 = math.tanh %241 : vector<8x32xf32>
    %243 = arith.mulf %238, %242 : vector<8x32xf32>
    %244 = vector.extract_strided_slice %218 {offsets = [0, 0], sizes = [8, 32], strides = [1, 1]} : vector<8x128xf32> to vector<8x32xf32>
    %245 = arith.negf %244 : vector<8x32xf32>
    %246 = math.exp %245 : vector<8x32xf32>
    %cst_61 = arith.constant 1.000000e+00 : f32
    %247 = vector.broadcast %cst_61 : f32 to vector<8x32xf32>
    %248 = arith.addf %247, %246 : vector<8x32xf32>
    %249 = arith.divf %247, %248 : vector<8x32xf32>
    %250 = vector.extract_strided_slice %218 {offsets = [0, 32], sizes = [8, 32], strides = [1, 1]} : vector<8x128xf32> to vector<8x32xf32>
    %251 = arith.negf %250 : vector<8x32xf32>
    %252 = math.exp %251 : vector<8x32xf32>
    %cst_62 = arith.constant 1.000000e+00 : f32
    %253 = vector.broadcast %cst_62 : f32 to vector<8x32xf32>
    %254 = arith.addf %253, %252 : vector<8x32xf32>
    %255 = arith.divf %253, %254 : vector<8x32xf32>
    %256 = vector.extract_strided_slice %218 {offsets = [0, 64], sizes = [8, 32], strides = [1, 1]} : vector<8x128xf32> to vector<8x32xf32>
    %257 = math.tanh %256 : vector<8x32xf32>
    %258 = vector.extract_strided_slice %218 {offsets = [0, 96], sizes = [8, 32], strides = [1, 1]} : vector<8x128xf32> to vector<8x32xf32>
    %259 = arith.negf %258 : vector<8x32xf32>
    %260 = math.exp %259 : vector<8x32xf32>
    %cst_63 = arith.constant 1.000000e+00 : f32
    %261 = vector.broadcast %cst_63 : f32 to vector<8x32xf32>
    %262 = arith.addf %261, %260 : vector<8x32xf32>
    %263 = arith.divf %261, %262 : vector<8x32xf32>
    %264 = arith.mulf %255, %202 : vector<8x32xf32>
    %265 = arith.mulf %249, %257 : vector<8x32xf32>
    %266 = arith.addf %264, %265 : vector<8x32xf32>
    %267 = math.tanh %266 : vector<8x32xf32>
    %268 = arith.mulf %263, %267 : vector<8x32xf32>
    %c3 = arith.constant 3 : index
    %c0_64 = arith.constant 0 : index
    %c0_65 = arith.constant 0 : index
    %269 = vector.load %arg12[%c3, %c0_64, %c0_65] : memref<8x8x64xf32, #tpu.memory_space<vmem>>, vector<1x8x32xf32>
    %270 = vector.shape_cast %269 : vector<1x8x32xf32> to vector<8x32xf32>
    %271 = vector.shape_cast %243 : vector<8x32xf32> to vector<1x8x32xf32>
    tpu.vector_store %arg12[%c3, %c0_64, %c0_65], %271 {strides = array<i32>} : memref<8x8x64xf32, #tpu.memory_space<vmem>>, vector<1x8x32xf32>,
    %c4 = arith.constant 4 : index
    %c0_66 = arith.constant 0 : index
    %c32_67 = arith.constant 32 : index
    %272 = vector.load %arg12[%c4, %c0_66, %c32_67] : memref<8x8x64xf32, #tpu.memory_space<vmem>>, vector<1x8x32xf32>
    %273 = vector.shape_cast %272 : vector<1x8x32xf32> to vector<8x32xf32>
    %274 = vector.shape_cast %268 : vector<8x32xf32> to vector<1x8x32xf32>
    tpu.vector_store %arg12[%c4, %c0_66, %c32_67], %274 {strides = array<i32>} : memref<8x8x64xf32, #tpu.memory_space<vmem>>, vector<1x8x32xf32>,
    %275 = vector.extract_strided_slice %12 {offsets = [4, 0, 0], sizes = [1, 8, 128], strides = [1, 1, 1]} : vector<8x8x256xf32> to vector<1x8x128xf32>
    %276 = vector.shape_cast %275 : vector<1x8x128xf32> to vector<8x128xf32>
    %cst_68 = arith.constant dense<0.000000e+00> : vector<8x128xf32>
    %277 = tpu.matmul %243, %13, %cst_68 {dimension_numbers = #tpu.dot_dimension_numbers<[1], [0], [0], [1], [0, 0, 1, 1], [], []>} : vector<8x32xf32>, vector<32x128xf32>, vector<8x128xf32> -> vector<8x128xf32>
    %278 = arith.addf %276, %277 : vector<8x128xf32>
    %279 = vector.extract_strided_slice %12 {offsets = [3, 0, 128], sizes = [1, 8, 128], strides = [1, 1, 1]} : vector<8x8x256xf32> to vector<1x8x128xf32>
    %280 = vector.shape_cast %279 : vector<1x8x128xf32> to vector<8x128xf32>
    %cst_69 = arith.constant dense<0.000000e+00> : vector<8x128xf32>
    %281 = tpu.matmul %268, %14, %cst_69 {dimension_numbers = #tpu.dot_dimension_numbers<[1], [0], [0], [1], [0, 0, 1, 1], [], []>} : vector<8x32xf32>, vector<32x128xf32>, vector<8x128xf32> -> vector<8x128xf32>
    %282 = arith.addf %280, %281 : vector<8x128xf32>
    %283 = vector.extract_strided_slice %278 {offsets = [0, 0], sizes = [8, 32], strides = [1, 1]} : vector<8x128xf32> to vector<8x32xf32>
    %284 = arith.negf %283 : vector<8x32xf32>
    %285 = math.exp %284 : vector<8x32xf32>
    %cst_70 = arith.constant 1.000000e+00 : f32
    %286 = vector.broadcast %cst_70 : f32 to vector<8x32xf32>
    %287 = arith.addf %286, %285 : vector<8x32xf32>
    %288 = arith.divf %286, %287 : vector<8x32xf32>
    %289 = vector.extract_strided_slice %278 {offsets = [0, 32], sizes = [8, 32], strides = [1, 1]} : vector<8x128xf32> to vector<8x32xf32>
    %290 = arith.negf %289 : vector<8x32xf32>
    %291 = math.exp %290 : vector<8x32xf32>
    %cst_71 = arith.constant 1.000000e+00 : f32
    %292 = vector.broadcast %cst_71 : f32 to vector<8x32xf32>
    %293 = arith.addf %292, %291 : vector<8x32xf32>
    %294 = arith.divf %292, %293 : vector<8x32xf32>
    %295 = vector.extract_strided_slice %278 {offsets = [0, 64], sizes = [8, 32], strides = [1, 1]} : vector<8x128xf32> to vector<8x32xf32>
    %296 = math.tanh %295 : vector<8x32xf32>
    %297 = vector.extract_strided_slice %278 {offsets = [0, 96], sizes = [8, 32], strides = [1, 1]} : vector<8x128xf32> to vector<8x32xf32>
    %298 = arith.negf %297 : vector<8x32xf32>
    %299 = math.exp %298 : vector<8x32xf32>
    %cst_72 = arith.constant 1.000000e+00 : f32
    %300 = vector.broadcast %cst_72 : f32 to vector<8x32xf32>
    %301 = arith.addf %300, %299 : vector<8x32xf32>
    %302 = arith.divf %300, %301 : vector<8x32xf32>
    %303 = arith.mulf %294, %241 : vector<8x32xf32>
    %304 = arith.mulf %288, %296 : vector<8x32xf32>
    %305 = arith.addf %303, %304 : vector<8x32xf32>
    %306 = math.tanh %305 : vector<8x32xf32>
    %307 = arith.mulf %302, %306 : vector<8x32xf32>
    %308 = vector.extract_strided_slice %282 {offsets = [0, 0], sizes = [8, 32], strides = [1, 1]} : vector<8x128xf32> to vector<8x32xf32>
    %309 = arith.negf %308 : vector<8x32xf32>
    %310 = math.exp %309 : vector<8x32xf32>
    %cst_73 = arith.constant 1.000000e+00 : f32
    %311 = vector.broadcast %cst_73 : f32 to vector<8x32xf32>
    %312 = arith.addf %311, %310 : vector<8x32xf32>
    %313 = arith.divf %311, %312 : vector<8x32xf32>
    %314 = vector.extract_strided_slice %282 {offsets = [0, 32], sizes = [8, 32], strides = [1, 1]} : vector<8x128xf32> to vector<8x32xf32>
    %315 = arith.negf %314 : vector<8x32xf32>
    %316 = math.exp %315 : vector<8x32xf32>
    %cst_74 = arith.constant 1.000000e+00 : f32
    %317 = vector.broadcast %cst_74 : f32 to vector<8x32xf32>
    %318 = arith.addf %317, %316 : vector<8x32xf32>
    %319 = arith.divf %317, %318 : vector<8x32xf32>
    %320 = vector.extract_strided_slice %282 {offsets = [0, 64], sizes = [8, 32], strides = [1, 1]} : vector<8x128xf32> to vector<8x32xf32>
    %321 = math.tanh %320 : vector<8x32xf32>
    %322 = vector.extract_strided_slice %282 {offsets = [0, 96], sizes = [8, 32], strides = [1, 1]} : vector<8x128xf32> to vector<8x32xf32>
    %323 = arith.negf %322 : vector<8x32xf32>
    %324 = math.exp %323 : vector<8x32xf32>
    %cst_75 = arith.constant 1.000000e+00 : f32
    %325 = vector.broadcast %cst_75 : f32 to vector<8x32xf32>
    %326 = arith.addf %325, %324 : vector<8x32xf32>
    %327 = arith.divf %325, %326 : vector<8x32xf32>
    %328 = arith.mulf %319, %266 : vector<8x32xf32>
    %329 = arith.mulf %313, %321 : vector<8x32xf32>
    %330 = arith.addf %328, %329 : vector<8x32xf32>
    %331 = math.tanh %330 : vector<8x32xf32>
    %332 = arith.mulf %327, %331 : vector<8x32xf32>
    %c4_76 = arith.constant 4 : index
    %c0_77 = arith.constant 0 : index
    %c0_78 = arith.constant 0 : index
    %333 = vector.load %arg12[%c4_76, %c0_77, %c0_78] : memref<8x8x64xf32, #tpu.memory_space<vmem>>, vector<1x8x32xf32>
    %334 = vector.shape_cast %333 : vector<1x8x32xf32> to vector<8x32xf32>
    %335 = vector.shape_cast %307 : vector<8x32xf32> to vector<1x8x32xf32>
    tpu.vector_store %arg12[%c4_76, %c0_77, %c0_78], %335 {strides = array<i32>} : memref<8x8x64xf32, #tpu.memory_space<vmem>>, vector<1x8x32xf32>,
    %c3_79 = arith.constant 3 : index
    %c0_80 = arith.constant 0 : index
    %c32_81 = arith.constant 32 : index
    %336 = vector.load %arg12[%c3_79, %c0_80, %c32_81] : memref<8x8x64xf32, #tpu.memory_space<vmem>>, vector<1x8x32xf32>
    %337 = vector.shape_cast %336 : vector<1x8x32xf32> to vector<8x32xf32>
    %338 = vector.shape_cast %332 : vector<8x32xf32> to vector<1x8x32xf32>
    tpu.vector_store %arg12[%c3_79, %c0_80, %c32_81], %338 {strides = array<i32>} : memref<8x8x64xf32, #tpu.memory_space<vmem>>, vector<1x8x32xf32>,
    %339 = vector.extract_strided_slice %12 {offsets = [5, 0, 0], sizes = [1, 8, 128], strides = [1, 1, 1]} : vector<8x8x256xf32> to vector<1x8x128xf32>
    %340 = vector.shape_cast %339 : vector<1x8x128xf32> to vector<8x128xf32>
    %cst_82 = arith.constant dense<0.000000e+00> : vector<8x128xf32>
    %341 = tpu.matmul %307, %13, %cst_82 {dimension_numbers = #tpu.dot_dimension_numbers<[1], [0], [0], [1], [0, 0, 1, 1], [], []>} : vector<8x32xf32>, vector<32x128xf32>, vector<8x128xf32> -> vector<8x128xf32>
    %342 = arith.addf %340, %341 : vector<8x128xf32>
    %343 = vector.extract_strided_slice %12 {offsets = [2, 0, 128], sizes = [1, 8, 128], strides = [1, 1, 1]} : vector<8x8x256xf32> to vector<1x8x128xf32>
    %344 = vector.shape_cast %343 : vector<1x8x128xf32> to vector<8x128xf32>
    %cst_83 = arith.constant dense<0.000000e+00> : vector<8x128xf32>
    %345 = tpu.matmul %332, %14, %cst_83 {dimension_numbers = #tpu.dot_dimension_numbers<[1], [0], [0], [1], [0, 0, 1, 1], [], []>} : vector<8x32xf32>, vector<32x128xf32>, vector<8x128xf32> -> vector<8x128xf32>
    %346 = arith.addf %344, %345 : vector<8x128xf32>
    %347 = vector.extract_strided_slice %342 {offsets = [0, 0], sizes = [8, 32], strides = [1, 1]} : vector<8x128xf32> to vector<8x32xf32>
    %348 = arith.negf %347 : vector<8x32xf32>
    %349 = math.exp %348 : vector<8x32xf32>
    %cst_84 = arith.constant 1.000000e+00 : f32
    %350 = vector.broadcast %cst_84 : f32 to vector<8x32xf32>
    %351 = arith.addf %350, %349 : vector<8x32xf32>
    %352 = arith.divf %350, %351 : vector<8x32xf32>
    %353 = vector.extract_strided_slice %342 {offsets = [0, 32], sizes = [8, 32], strides = [1, 1]} : vector<8x128xf32> to vector<8x32xf32>
    %354 = arith.negf %353 : vector<8x32xf32>
    %355 = math.exp %354 : vector<8x32xf32>
    %cst_85 = arith.constant 1.000000e+00 : f32
    %356 = vector.broadcast %cst_85 : f32 to vector<8x32xf32>
    %357 = arith.addf %356, %355 : vector<8x32xf32>
    %358 = arith.divf %356, %357 : vector<8x32xf32>
    %359 = vector.extract_strided_slice %342 {offsets = [0, 64], sizes = [8, 32], strides = [1, 1]} : vector<8x128xf32> to vector<8x32xf32>
    %360 = math.tanh %359 : vector<8x32xf32>
    %361 = vector.extract_strided_slice %342 {offsets = [0, 96], sizes = [8, 32], strides = [1, 1]} : vector<8x128xf32> to vector<8x32xf32>
    %362 = arith.negf %361 : vector<8x32xf32>
    %363 = math.exp %362 : vector<8x32xf32>
    %cst_86 = arith.constant 1.000000e+00 : f32
    %364 = vector.broadcast %cst_86 : f32 to vector<8x32xf32>
    %365 = arith.addf %364, %363 : vector<8x32xf32>
    %366 = arith.divf %364, %365 : vector<8x32xf32>
    %367 = arith.mulf %358, %305 : vector<8x32xf32>
    %368 = arith.mulf %352, %360 : vector<8x32xf32>
    %369 = arith.addf %367, %368 : vector<8x32xf32>
    %370 = math.tanh %369 : vector<8x32xf32>
    %371 = arith.mulf %366, %370 : vector<8x32xf32>
    %372 = vector.extract_strided_slice %346 {offsets = [0, 0], sizes = [8, 32], strides = [1, 1]} : vector<8x128xf32> to vector<8x32xf32>
    %373 = arith.negf %372 : vector<8x32xf32>
    %374 = math.exp %373 : vector<8x32xf32>
    %cst_87 = arith.constant 1.000000e+00 : f32
    %375 = vector.broadcast %cst_87 : f32 to vector<8x32xf32>
    %376 = arith.addf %375, %374 : vector<8x32xf32>
    %377 = arith.divf %375, %376 : vector<8x32xf32>
    %378 = vector.extract_strided_slice %346 {offsets = [0, 32], sizes = [8, 32], strides = [1, 1]} : vector<8x128xf32> to vector<8x32xf32>
    %379 = arith.negf %378 : vector<8x32xf32>
    %380 = math.exp %379 : vector<8x32xf32>
    %cst_88 = arith.constant 1.000000e+00 : f32
    %381 = vector.broadcast %cst_88 : f32 to vector<8x32xf32>
    %382 = arith.addf %381, %380 : vector<8x32xf32>
    %383 = arith.divf %381, %382 : vector<8x32xf32>
    %384 = vector.extract_strided_slice %346 {offsets = [0, 64], sizes = [8, 32], strides = [1, 1]} : vector<8x128xf32> to vector<8x32xf32>
    %385 = math.tanh %384 : vector<8x32xf32>
    %386 = vector.extract_strided_slice %346 {offsets = [0, 96], sizes = [8, 32], strides = [1, 1]} : vector<8x128xf32> to vector<8x32xf32>
    %387 = arith.negf %386 : vector<8x32xf32>
    %388 = math.exp %387 : vector<8x32xf32>
    %cst_89 = arith.constant 1.000000e+00 : f32
    %389 = vector.broadcast %cst_89 : f32 to vector<8x32xf32>
    %390 = arith.addf %389, %388 : vector<8x32xf32>
    %391 = arith.divf %389, %390 : vector<8x32xf32>
    %392 = arith.mulf %383, %330 : vector<8x32xf32>
    %393 = arith.mulf %377, %385 : vector<8x32xf32>
    %394 = arith.addf %392, %393 : vector<8x32xf32>
    %395 = math.tanh %394 : vector<8x32xf32>
    %396 = arith.mulf %391, %395 : vector<8x32xf32>
    %c5_90 = arith.constant 5 : index
    %c0_91 = arith.constant 0 : index
    %c0_92 = arith.constant 0 : index
    %397 = vector.load %arg12[%c5_90, %c0_91, %c0_92] : memref<8x8x64xf32, #tpu.memory_space<vmem>>, vector<1x8x32xf32>
    %398 = vector.shape_cast %397 : vector<1x8x32xf32> to vector<8x32xf32>
    %399 = vector.shape_cast %371 : vector<8x32xf32> to vector<1x8x32xf32>
    tpu.vector_store %arg12[%c5_90, %c0_91, %c0_92], %399 {strides = array<i32>} : memref<8x8x64xf32, #tpu.memory_space<vmem>>, vector<1x8x32xf32>,
    %c2_93 = arith.constant 2 : index
    %c0_94 = arith.constant 0 : index
    %c32_95 = arith.constant 32 : index
    %400 = vector.load %arg12[%c2_93, %c0_94, %c32_95] : memref<8x8x64xf32, #tpu.memory_space<vmem>>, vector<1x8x32xf32>
    %401 = vector.shape_cast %400 : vector<1x8x32xf32> to vector<8x32xf32>
    %402 = vector.shape_cast %396 : vector<8x32xf32> to vector<1x8x32xf32>
    tpu.vector_store %arg12[%c2_93, %c0_94, %c32_95], %402 {strides = array<i32>} : memref<8x8x64xf32, #tpu.memory_space<vmem>>, vector<1x8x32xf32>,
    %403 = vector.extract_strided_slice %12 {offsets = [6, 0, 0], sizes = [1, 8, 128], strides = [1, 1, 1]} : vector<8x8x256xf32> to vector<1x8x128xf32>
    %404 = vector.shape_cast %403 : vector<1x8x128xf32> to vector<8x128xf32>
    %cst_96 = arith.constant dense<0.000000e+00> : vector<8x128xf32>
    %405 = tpu.matmul %371, %13, %cst_96 {dimension_numbers = #tpu.dot_dimension_numbers<[1], [0], [0], [1], [0, 0, 1, 1], [], []>} : vector<8x32xf32>, vector<32x128xf32>, vector<8x128xf32> -> vector<8x128xf32>
    %406 = arith.addf %404, %405 : vector<8x128xf32>
    %407 = vector.extract_strided_slice %12 {offsets = [1, 0, 128], sizes = [1, 8, 128], strides = [1, 1, 1]} : vector<8x8x256xf32> to vector<1x8x128xf32>
    %408 = vector.shape_cast %407 : vector<1x8x128xf32> to vector<8x128xf32>
    %cst_97 = arith.constant dense<0.000000e+00> : vector<8x128xf32>
    %409 = tpu.matmul %396, %14, %cst_97 {dimension_numbers = #tpu.dot_dimension_numbers<[1], [0], [0], [1], [0, 0, 1, 1], [], []>} : vector<8x32xf32>, vector<32x128xf32>, vector<8x128xf32> -> vector<8x128xf32>
    %410 = arith.addf %408, %409 : vector<8x128xf32>
    %411 = vector.extract_strided_slice %406 {offsets = [0, 0], sizes = [8, 32], strides = [1, 1]} : vector<8x128xf32> to vector<8x32xf32>
    %412 = arith.negf %411 : vector<8x32xf32>
    %413 = math.exp %412 : vector<8x32xf32>
    %cst_98 = arith.constant 1.000000e+00 : f32
    %414 = vector.broadcast %cst_98 : f32 to vector<8x32xf32>
    %415 = arith.addf %414, %413 : vector<8x32xf32>
    %416 = arith.divf %414, %415 : vector<8x32xf32>
    %417 = vector.extract_strided_slice %406 {offsets = [0, 32], sizes = [8, 32], strides = [1, 1]} : vector<8x128xf32> to vector<8x32xf32>
    %418 = arith.negf %417 : vector<8x32xf32>
    %419 = math.exp %418 : vector<8x32xf32>
    %cst_99 = arith.constant 1.000000e+00 : f32
    %420 = vector.broadcast %cst_99 : f32 to vector<8x32xf32>
    %421 = arith.addf %420, %419 : vector<8x32xf32>
    %422 = arith.divf %420, %421 : vector<8x32xf32>
    %423 = vector.extract_strided_slice %406 {offsets = [0, 64], sizes = [8, 32], strides = [1, 1]} : vector<8x128xf32> to vector<8x32xf32>
    %424 = math.tanh %423 : vector<8x32xf32>
    %425 = vector.extract_strided_slice %406 {offsets = [0, 96], sizes = [8, 32], strides = [1, 1]} : vector<8x128xf32> to vector<8x32xf32>
    %426 = arith.negf %425 : vector<8x32xf32>
    %427 = math.exp %426 : vector<8x32xf32>
    %cst_100 = arith.constant 1.000000e+00 : f32
    %428 = vector.broadcast %cst_100 : f32 to vector<8x32xf32>
    %429 = arith.addf %428, %427 : vector<8x32xf32>
    %430 = arith.divf %428, %429 : vector<8x32xf32>
    %431 = arith.mulf %422, %369 : vector<8x32xf32>
    %432 = arith.mulf %416, %424 : vector<8x32xf32>
    %433 = arith.addf %431, %432 : vector<8x32xf32>
    %434 = math.tanh %433 : vector<8x32xf32>
    %435 = arith.mulf %430, %434 : vector<8x32xf32>
    %436 = vector.extract_strided_slice %410 {offsets = [0, 0], sizes = [8, 32], strides = [1, 1]} : vector<8x128xf32> to vector<8x32xf32>
    %437 = arith.negf %436 : vector<8x32xf32>
    %438 = math.exp %437 : vector<8x32xf32>
    %cst_101 = arith.constant 1.000000e+00 : f32
    %439 = vector.broadcast %cst_101 : f32 to vector<8x32xf32>
    %440 = arith.addf %439, %438 : vector<8x32xf32>
    %441 = arith.divf %439, %440 : vector<8x32xf32>
    %442 = vector.extract_strided_slice %410 {offsets = [0, 32], sizes = [8, 32], strides = [1, 1]} : vector<8x128xf32> to vector<8x32xf32>
    %443 = arith.negf %442 : vector<8x32xf32>
    %444 = math.exp %443 : vector<8x32xf32>
    %cst_102 = arith.constant 1.000000e+00 : f32
    %445 = vector.broadcast %cst_102 : f32 to vector<8x32xf32>
    %446 = arith.addf %445, %444 : vector<8x32xf32>
    %447 = arith.divf %445, %446 : vector<8x32xf32>
    %448 = vector.extract_strided_slice %410 {offsets = [0, 64], sizes = [8, 32], strides = [1, 1]} : vector<8x128xf32> to vector<8x32xf32>
    %449 = math.tanh %448 : vector<8x32xf32>
    %450 = vector.extract_strided_slice %410 {offsets = [0, 96], sizes = [8, 32], strides = [1, 1]} : vector<8x128xf32> to vector<8x32xf32>
    %451 = arith.negf %450 : vector<8x32xf32>
    %452 = math.exp %451 : vector<8x32xf32>
    %cst_103 = arith.constant 1.000000e+00 : f32
    %453 = vector.broadcast %cst_103 : f32 to vector<8x32xf32>
    %454 = arith.addf %453, %452 : vector<8x32xf32>
    %455 = arith.divf %453, %454 : vector<8x32xf32>
    %456 = arith.mulf %447, %394 : vector<8x32xf32>
    %457 = arith.mulf %441, %449 : vector<8x32xf32>
    %458 = arith.addf %456, %457 : vector<8x32xf32>
    %459 = math.tanh %458 : vector<8x32xf32>
    %460 = arith.mulf %455, %459 : vector<8x32xf32>
    %c6_104 = arith.constant 6 : index
    %c0_105 = arith.constant 0 : index
    %c0_106 = arith.constant 0 : index
    %461 = vector.load %arg12[%c6_104, %c0_105, %c0_106] : memref<8x8x64xf32, #tpu.memory_space<vmem>>, vector<1x8x32xf32>
    %462 = vector.shape_cast %461 : vector<1x8x32xf32> to vector<8x32xf32>
    %463 = vector.shape_cast %435 : vector<8x32xf32> to vector<1x8x32xf32>
    tpu.vector_store %arg12[%c6_104, %c0_105, %c0_106], %463 {strides = array<i32>} : memref<8x8x64xf32, #tpu.memory_space<vmem>>, vector<1x8x32xf32>,
    %c1_107 = arith.constant 1 : index
    %c0_108 = arith.constant 0 : index
    %c32_109 = arith.constant 32 : index
    %464 = vector.load %arg12[%c1_107, %c0_108, %c32_109] : memref<8x8x64xf32, #tpu.memory_space<vmem>>, vector<1x8x32xf32>
    %465 = vector.shape_cast %464 : vector<1x8x32xf32> to vector<8x32xf32>
    %466 = vector.shape_cast %460 : vector<8x32xf32> to vector<1x8x32xf32>
    tpu.vector_store %arg12[%c1_107, %c0_108, %c32_109], %466 {strides = array<i32>} : memref<8x8x64xf32, #tpu.memory_space<vmem>>, vector<1x8x32xf32>,
    %467 = vector.extract_strided_slice %12 {offsets = [7, 0, 0], sizes = [1, 8, 128], strides = [1, 1, 1]} : vector<8x8x256xf32> to vector<1x8x128xf32>
    %468 = vector.shape_cast %467 : vector<1x8x128xf32> to vector<8x128xf32>
    %cst_110 = arith.constant dense<0.000000e+00> : vector<8x128xf32>
    %469 = tpu.matmul %435, %13, %cst_110 {dimension_numbers = #tpu.dot_dimension_numbers<[1], [0], [0], [1], [0, 0, 1, 1], [], []>} : vector<8x32xf32>, vector<32x128xf32>, vector<8x128xf32> -> vector<8x128xf32>
    %470 = arith.addf %468, %469 : vector<8x128xf32>
    %471 = vector.extract_strided_slice %12 {offsets = [0, 0, 128], sizes = [1, 8, 128], strides = [1, 1, 1]} : vector<8x8x256xf32> to vector<1x8x128xf32>
    %472 = vector.shape_cast %471 : vector<1x8x128xf32> to vector<8x128xf32>
    %cst_111 = arith.constant dense<0.000000e+00> : vector<8x128xf32>
    %473 = tpu.matmul %460, %14, %cst_111 {dimension_numbers = #tpu.dot_dimension_numbers<[1], [0], [0], [1], [0, 0, 1, 1], [], []>} : vector<8x32xf32>, vector<32x128xf32>, vector<8x128xf32> -> vector<8x128xf32>
    %474 = arith.addf %472, %473 : vector<8x128xf32>
    %475 = vector.extract_strided_slice %470 {offsets = [0, 0], sizes = [8, 32], strides = [1, 1]} : vector<8x128xf32> to vector<8x32xf32>
    %476 = arith.negf %475 : vector<8x32xf32>
    %477 = math.exp %476 : vector<8x32xf32>
    %cst_112 = arith.constant 1.000000e+00 : f32
    %478 = vector.broadcast %cst_112 : f32 to vector<8x32xf32>
    %479 = arith.addf %478, %477 : vector<8x32xf32>
    %480 = arith.divf %478, %479 : vector<8x32xf32>
    %481 = vector.extract_strided_slice %470 {offsets = [0, 32], sizes = [8, 32], strides = [1, 1]} : vector<8x128xf32> to vector<8x32xf32>
    %482 = arith.negf %481 : vector<8x32xf32>
    %483 = math.exp %482 : vector<8x32xf32>
    %cst_113 = arith.constant 1.000000e+00 : f32
    %484 = vector.broadcast %cst_113 : f32 to vector<8x32xf32>
    %485 = arith.addf %484, %483 : vector<8x32xf32>
    %486 = arith.divf %484, %485 : vector<8x32xf32>
    %487 = vector.extract_strided_slice %470 {offsets = [0, 64], sizes = [8, 32], strides = [1, 1]} : vector<8x128xf32> to vector<8x32xf32>
    %488 = math.tanh %487 : vector<8x32xf32>
    %489 = vector.extract_strided_slice %470 {offsets = [0, 96], sizes = [8, 32], strides = [1, 1]} : vector<8x128xf32> to vector<8x32xf32>
    %490 = arith.negf %489 : vector<8x32xf32>
    %491 = math.exp %490 : vector<8x32xf32>
    %cst_114 = arith.constant 1.000000e+00 : f32
    %492 = vector.broadcast %cst_114 : f32 to vector<8x32xf32>
    %493 = arith.addf %492, %491 : vector<8x32xf32>
    %494 = arith.divf %492, %493 : vector<8x32xf32>
    %495 = arith.mulf %486, %433 : vector<8x32xf32>
    %496 = arith.mulf %480, %488 : vector<8x32xf32>
    %497 = arith.addf %495, %496 : vector<8x32xf32>
    %498 = math.tanh %497 : vector<8x32xf32>
    %499 = arith.mulf %494, %498 : vector<8x32xf32>
    %500 = vector.extract_strided_slice %474 {offsets = [0, 0], sizes = [8, 32], strides = [1, 1]} : vector<8x128xf32> to vector<8x32xf32>
    %501 = arith.negf %500 : vector<8x32xf32>
    %502 = math.exp %501 : vector<8x32xf32>
    %cst_115 = arith.constant 1.000000e+00 : f32
    %503 = vector.broadcast %cst_115 : f32 to vector<8x32xf32>
    %504 = arith.addf %503, %502 : vector<8x32xf32>
    %505 = arith.divf %503, %504 : vector<8x32xf32>
    %506 = vector.extract_strided_slice %474 {offsets = [0, 32], sizes = [8, 32], strides = [1, 1]} : vector<8x128xf32> to vector<8x32xf32>
    %507 = arith.negf %506 : vector<8x32xf32>
    %508 = math.exp %507 : vector<8x32xf32>
    %cst_116 = arith.constant 1.000000e+00 : f32
    %509 = vector.broadcast %cst_116 : f32 to vector<8x32xf32>
    %510 = arith.addf %509, %508 : vector<8x32xf32>
    %511 = arith.divf %509, %510 : vector<8x32xf32>
    %512 = vector.extract_strided_slice %474 {offsets = [0, 64], sizes = [8, 32], strides = [1, 1]} : vector<8x128xf32> to vector<8x32xf32>
    %513 = math.tanh %512 : vector<8x32xf32>
    %514 = vector.extract_strided_slice %474 {offsets = [0, 96], sizes = [8, 32], strides = [1, 1]} : vector<8x128xf32> to vector<8x32xf32>
    %515 = arith.negf %514 : vector<8x32xf32>
    %516 = math.exp %515 : vector<8x32xf32>
    %cst_117 = arith.constant 1.000000e+00 : f32
    %517 = vector.broadcast %cst_117 : f32 to vector<8x32xf32>
    %518 = arith.addf %517, %516 : vector<8x32xf32>
    %519 = arith.divf %517, %518 : vector<8x32xf32>
    %520 = arith.mulf %511, %458 : vector<8x32xf32>
    %521 = arith.mulf %505, %513 : vector<8x32xf32>
    %522 = arith.addf %520, %521 : vector<8x32xf32>
    %523 = math.tanh %522 : vector<8x32xf32>
    %524 = arith.mulf %519, %523 : vector<8x32xf32>
    %c7_118 = arith.constant 7 : index
    %c0_119 = arith.constant 0 : index
    %c0_120 = arith.constant 0 : index
    %525 = vector.load %arg12[%c7_118, %c0_119, %c0_120] : memref<8x8x64xf32, #tpu.memory_space<vmem>>, vector<1x8x32xf32>
    %526 = vector.shape_cast %525 : vector<1x8x32xf32> to vector<8x32xf32>
    %527 = vector.shape_cast %499 : vector<8x32xf32> to vector<1x8x32xf32>
    tpu.vector_store %arg12[%c7_118, %c0_119, %c0_120], %527 {strides = array<i32>} : memref<8x8x64xf32, #tpu.memory_space<vmem>>, vector<1x8x32xf32>,
    %c0_121 = arith.constant 0 : index
    %c0_122 = arith.constant 0 : index
    %c32_123 = arith.constant 32 : index
    %528 = vector.load %arg12[%c0_121, %c0_122, %c32_123] : memref<8x8x64xf32, #tpu.memory_space<vmem>>, vector<1x8x32xf32>
    %529 = vector.shape_cast %528 : vector<1x8x32xf32> to vector<8x32xf32>
    %530 = vector.shape_cast %524 : vector<8x32xf32> to vector<1x8x32xf32>
    tpu.vector_store %arg12[%c0_121, %c0_122, %c32_123], %530 {strides = array<i32>} : memref<8x8x64xf32, #tpu.memory_space<vmem>>, vector<1x8x32xf32>,
    %c0_124 = arith.constant 0 : index
    %c0_125 = arith.constant 0 : index
    %c0_126 = arith.constant 0 : index
    %531 = vector.load %arg12[%c0_124, %c0_125, %c0_126] : memref<8x8x64xf32, #tpu.memory_space<vmem>>, vector<8x8x64xf32>
    %532 = vector.shape_cast %531 : vector<8x8x64xf32> to vector<64x64xf32>
    %c0_127 = arith.constant 0 : index
    %c0_128 = arith.constant 0 : index
    %533 = vector.load %arg5[%c0_127, %c0_128] : memref<64x256xf32, #tpu.memory_space<vmem>>, vector<64x256xf32>
    %cst_129 = arith.constant dense<0.000000e+00> : vector<64x256xf32>
    %534 = tpu.matmul %532, %533, %cst_129 {dimension_numbers = #tpu.dot_dimension_numbers<[1], [0], [0], [1], [0, 0, 1, 1], [], []>} : vector<64x64xf32>, vector<64x256xf32>, vector<64x256xf32> -> vector<64x256xf32>
    %c0_130 = arith.constant 0 : index
    %c0_131 = arith.constant 0 : index
    %535 = vector.load %arg8[%c0_130, %c0_131] : memref<1x256xf32, #tpu.memory_space<vmem>>, vector<1x256xf32>
    %536 = vector.broadcast %535 : vector<1x256xf32> to vector<64x256xf32>
    %537 = arith.addf %534, %536 : vector<64x256xf32>
    %538 = vector.shape_cast %537 : vector<64x256xf32> to vector<8x8x256xf32>
    %c0_132 = arith.constant 0 : index
    %c0_133 = arith.constant 0 : index
    %539 = vector.load %arg6[%c0_132, %c0_133] : memref<32x128xf32, #tpu.memory_space<vmem>>, vector<32x128xf32>
    %c0_134 = arith.constant 0 : index
    %c0_135 = arith.constant 0 : index
    %540 = vector.load %arg7[%c0_134, %c0_135] : memref<32x128xf32, #tpu.memory_space<vmem>>, vector<32x128xf32>
    %cst_136 = arith.constant 0.000000e+00 : f32
    %541 = vector.broadcast %cst_136 : f32 to vector<8x32xf32>
    %cst_137 = arith.constant 0.000000e+00 : f32
    %542 = vector.broadcast %cst_137 : f32 to vector<8x32xf32>
    %cst_138 = arith.constant 0.000000e+00 : f32
    %543 = vector.broadcast %cst_138 : f32 to vector<8x32xf32>
    %cst_139 = arith.constant 0.000000e+00 : f32
    %544 = vector.broadcast %cst_139 : f32 to vector<8x32xf32>
    %545 = vector.extract_strided_slice %538 {offsets = [0, 0, 0], sizes = [1, 8, 128], strides = [1, 1, 1]} : vector<8x8x256xf32> to vector<1x8x128xf32>
    %546 = vector.shape_cast %545 : vector<1x8x128xf32> to vector<8x128xf32>
    %cst_140 = arith.constant dense<0.000000e+00> : vector<8x128xf32>
    %547 = tpu.matmul %541, %539, %cst_140 {dimension_numbers = #tpu.dot_dimension_numbers<[1], [0], [0], [1], [0, 0, 1, 1], [], []>} : vector<8x32xf32>, vector<32x128xf32>, vector<8x128xf32> -> vector<8x128xf32>
    %548 = arith.addf %546, %547 : vector<8x128xf32>
    %549 = vector.extract_strided_slice %538 {offsets = [7, 0, 128], sizes = [1, 8, 128], strides = [1, 1, 1]} : vector<8x8x256xf32> to vector<1x8x128xf32>
    %550 = vector.shape_cast %549 : vector<1x8x128xf32> to vector<8x128xf32>
    %cst_141 = arith.constant dense<0.000000e+00> : vector<8x128xf32>
    %551 = tpu.matmul %543, %540, %cst_141 {dimension_numbers = #tpu.dot_dimension_numbers<[1], [0], [0], [1], [0, 0, 1, 1], [], []>} : vector<8x32xf32>, vector<32x128xf32>, vector<8x128xf32> -> vector<8x128xf32>
    %552 = arith.addf %550, %551 : vector<8x128xf32>
    %553 = vector.extract_strided_slice %548 {offsets = [0, 0], sizes = [8, 32], strides = [1, 1]} : vector<8x128xf32> to vector<8x32xf32>
    %554 = arith.negf %553 : vector<8x32xf32>
    %555 = math.exp %554 : vector<8x32xf32>
    %cst_142 = arith.constant 1.000000e+00 : f32
    %556 = vector.broadcast %cst_142 : f32 to vector<8x32xf32>
    %557 = arith.addf %556, %555 : vector<8x32xf32>
    %558 = arith.divf %556, %557 : vector<8x32xf32>
    %559 = vector.extract_strided_slice %548 {offsets = [0, 32], sizes = [8, 32], strides = [1, 1]} : vector<8x128xf32> to vector<8x32xf32>
    %560 = arith.negf %559 : vector<8x32xf32>
    %561 = math.exp %560 : vector<8x32xf32>
    %cst_143 = arith.constant 1.000000e+00 : f32
    %562 = vector.broadcast %cst_143 : f32 to vector<8x32xf32>
    %563 = arith.addf %562, %561 : vector<8x32xf32>
    %564 = arith.divf %562, %563 : vector<8x32xf32>
    %565 = vector.extract_strided_slice %548 {offsets = [0, 64], sizes = [8, 32], strides = [1, 1]} : vector<8x128xf32> to vector<8x32xf32>
    %566 = math.tanh %565 : vector<8x32xf32>
    %567 = vector.extract_strided_slice %548 {offsets = [0, 96], sizes = [8, 32], strides = [1, 1]} : vector<8x128xf32> to vector<8x32xf32>
    %568 = arith.negf %567 : vector<8x32xf32>
    %569 = math.exp %568 : vector<8x32xf32>
    %cst_144 = arith.constant 1.000000e+00 : f32
    %570 = vector.broadcast %cst_144 : f32 to vector<8x32xf32>
    %571 = arith.addf %570, %569 : vector<8x32xf32>
    %572 = arith.divf %570, %571 : vector<8x32xf32>
    %573 = arith.mulf %564, %542 : vector<8x32xf32>
    %574 = arith.mulf %558, %566 : vector<8x32xf32>
    %575 = arith.addf %573, %574 : vector<8x32xf32>
    %576 = math.tanh %575 : vector<8x32xf32>
    %577 = arith.mulf %572, %576 : vector<8x32xf32>
    %578 = vector.extract_strided_slice %552 {offsets = [0, 0], sizes = [8, 32], strides = [1, 1]} : vector<8x128xf32> to vector<8x32xf32>
    %579 = arith.negf %578 : vector<8x32xf32>
    %580 = math.exp %579 : vector<8x32xf32>
    %cst_145 = arith.constant 1.000000e+00 : f32
    %581 = vector.broadcast %cst_145 : f32 to vector<8x32xf32>
    %582 = arith.addf %581, %580 : vector<8x32xf32>
    %583 = arith.divf %581, %582 : vector<8x32xf32>
    %584 = vector.extract_strided_slice %552 {offsets = [0, 32], sizes = [8, 32], strides = [1, 1]} : vector<8x128xf32> to vector<8x32xf32>
    %585 = arith.negf %584 : vector<8x32xf32>
    %586 = math.exp %585 : vector<8x32xf32>
    %cst_146 = arith.constant 1.000000e+00 : f32
    %587 = vector.broadcast %cst_146 : f32 to vector<8x32xf32>
    %588 = arith.addf %587, %586 : vector<8x32xf32>
    %589 = arith.divf %587, %588 : vector<8x32xf32>
    %590 = vector.extract_strided_slice %552 {offsets = [0, 64], sizes = [8, 32], strides = [1, 1]} : vector<8x128xf32> to vector<8x32xf32>
    %591 = math.tanh %590 : vector<8x32xf32>
    %592 = vector.extract_strided_slice %552 {offsets = [0, 96], sizes = [8, 32], strides = [1, 1]} : vector<8x128xf32> to vector<8x32xf32>
    %593 = arith.negf %592 : vector<8x32xf32>
    %594 = math.exp %593 : vector<8x32xf32>
    %cst_147 = arith.constant 1.000000e+00 : f32
    %595 = vector.broadcast %cst_147 : f32 to vector<8x32xf32>
    %596 = arith.addf %595, %594 : vector<8x32xf32>
    %597 = arith.divf %595, %596 : vector<8x32xf32>
    %598 = arith.mulf %589, %544 : vector<8x32xf32>
    %599 = arith.mulf %583, %591 : vector<8x32xf32>
    %600 = arith.addf %598, %599 : vector<8x32xf32>
    %601 = math.tanh %600 : vector<8x32xf32>
    %602 = arith.mulf %597, %601 : vector<8x32xf32>
    %603 = vector.extract_strided_slice %0 {offsets = [0, 0, 0], sizes = [1, 32, 128], strides = [1, 1, 1]} : vector<8x64x128xf32> to vector<1x32x128xf32>
    %604 = vector.shape_cast %603 : vector<1x32x128xf32> to vector<32x128xf32>
    %cst_148 = arith.constant dense<0.000000e+00> : vector<8x128xf32>
    %605 = tpu.matmul %577, %604, %cst_148 {dimension_numbers = #tpu.dot_dimension_numbers<[1], [0], [0], [1], [0, 0, 1, 1], [], []>} : vector<8x32xf32>, vector<32x128xf32>, vector<8x128xf32> -> vector<8x128xf32>
    %606 = arith.addf %4, %605 : vector<8x128xf32>
    %607 = vector.extract_strided_slice %0 {offsets = [7, 32, 0], sizes = [1, 32, 128], strides = [1, 1, 1]} : vector<8x64x128xf32> to vector<1x32x128xf32>
    %608 = vector.shape_cast %607 : vector<1x32x128xf32> to vector<32x128xf32>
    %cst_149 = arith.constant dense<0.000000e+00> : vector<8x128xf32>
    %609 = tpu.matmul %602, %608, %cst_149 {dimension_numbers = #tpu.dot_dimension_numbers<[1], [0], [0], [1], [0, 0, 1, 1], [], []>} : vector<8x32xf32>, vector<32x128xf32>, vector<8x128xf32> -> vector<8x128xf32>
    %610 = arith.addf %606, %609 : vector<8x128xf32>
    %611 = vector.extract_strided_slice %538 {offsets = [1, 0, 0], sizes = [1, 8, 128], strides = [1, 1, 1]} : vector<8x8x256xf32> to vector<1x8x128xf32>
    %612 = vector.shape_cast %611 : vector<1x8x128xf32> to vector<8x128xf32>
    %cst_150 = arith.constant dense<0.000000e+00> : vector<8x128xf32>
    %613 = tpu.matmul %577, %539, %cst_150 {dimension_numbers = #tpu.dot_dimension_numbers<[1], [0], [0], [1], [0, 0, 1, 1], [], []>} : vector<8x32xf32>, vector<32x128xf32>, vector<8x128xf32> -> vector<8x128xf32>
    %614 = arith.addf %612, %613 : vector<8x128xf32>
    %615 = vector.extract_strided_slice %538 {offsets = [6, 0, 128], sizes = [1, 8, 128], strides = [1, 1, 1]} : vector<8x8x256xf32> to vector<1x8x128xf32>
    %616 = vector.shape_cast %615 : vector<1x8x128xf32> to vector<8x128xf32>
    %cst_151 = arith.constant dense<0.000000e+00> : vector<8x128xf32>
    %617 = tpu.matmul %602, %540, %cst_151 {dimension_numbers = #tpu.dot_dimension_numbers<[1], [0], [0], [1], [0, 0, 1, 1], [], []>} : vector<8x32xf32>, vector<32x128xf32>, vector<8x128xf32> -> vector<8x128xf32>
    %618 = arith.addf %616, %617 : vector<8x128xf32>
    %619 = vector.extract_strided_slice %614 {offsets = [0, 0], sizes = [8, 32], strides = [1, 1]} : vector<8x128xf32> to vector<8x32xf32>
    %620 = arith.negf %619 : vector<8x32xf32>
    %621 = math.exp %620 : vector<8x32xf32>
    %cst_152 = arith.constant 1.000000e+00 : f32
    %622 = vector.broadcast %cst_152 : f32 to vector<8x32xf32>
    %623 = arith.addf %622, %621 : vector<8x32xf32>
    %624 = arith.divf %622, %623 : vector<8x32xf32>
    %625 = vector.extract_strided_slice %614 {offsets = [0, 32], sizes = [8, 32], strides = [1, 1]} : vector<8x128xf32> to vector<8x32xf32>
    %626 = arith.negf %625 : vector<8x32xf32>
    %627 = math.exp %626 : vector<8x32xf32>
    %cst_153 = arith.constant 1.000000e+00 : f32
    %628 = vector.broadcast %cst_153 : f32 to vector<8x32xf32>
    %629 = arith.addf %628, %627 : vector<8x32xf32>
    %630 = arith.divf %628, %629 : vector<8x32xf32>
    %631 = vector.extract_strided_slice %614 {offsets = [0, 64], sizes = [8, 32], strides = [1, 1]} : vector<8x128xf32> to vector<8x32xf32>
    %632 = math.tanh %631 : vector<8x32xf32>
    %633 = vector.extract_strided_slice %614 {offsets = [0, 96], sizes = [8, 32], strides = [1, 1]} : vector<8x128xf32> to vector<8x32xf32>
    %634 = arith.negf %633 : vector<8x32xf32>
    %635 = math.exp %634 : vector<8x32xf32>
    %cst_154 = arith.constant 1.000000e+00 : f32
    %636 = vector.broadcast %cst_154 : f32 to vector<8x32xf32>
    %637 = arith.addf %636, %635 : vector<8x32xf32>
    %638 = arith.divf %636, %637 : vector<8x32xf32>
    %639 = arith.mulf %630, %575 : vector<8x32xf32>
    %640 = arith.mulf %624, %632 : vector<8x32xf32>
    %641 = arith.addf %639, %640 : vector<8x32xf32>
    %642 = math.tanh %641 : vector<8x32xf32>
    %643 = arith.mulf %638, %642 : vector<8x32xf32>
    %644 = vector.extract_strided_slice %618 {offsets = [0, 0], sizes = [8, 32], strides = [1, 1]} : vector<8x128xf32> to vector<8x32xf32>
    %645 = arith.negf %644 : vector<8x32xf32>
    %646 = math.exp %645 : vector<8x32xf32>
    %cst_155 = arith.constant 1.000000e+00 : f32
    %647 = vector.broadcast %cst_155 : f32 to vector<8x32xf32>
    %648 = arith.addf %647, %646 : vector<8x32xf32>
    %649 = arith.divf %647, %648 : vector<8x32xf32>
    %650 = vector.extract_strided_slice %618 {offsets = [0, 32], sizes = [8, 32], strides = [1, 1]} : vector<8x128xf32> to vector<8x32xf32>
    %651 = arith.negf %650 : vector<8x32xf32>
    %652 = math.exp %651 : vector<8x32xf32>
    %cst_156 = arith.constant 1.000000e+00 : f32
    %653 = vector.broadcast %cst_156 : f32 to vector<8x32xf32>
    %654 = arith.addf %653, %652 : vector<8x32xf32>
    %655 = arith.divf %653, %654 : vector<8x32xf32>
    %656 = vector.extract_strided_slice %618 {offsets = [0, 64], sizes = [8, 32], strides = [1, 1]} : vector<8x128xf32> to vector<8x32xf32>
    %657 = math.tanh %656 : vector<8x32xf32>
    %658 = vector.extract_strided_slice %618 {offsets = [0, 96], sizes = [8, 32], strides = [1, 1]} : vector<8x128xf32> to vector<8x32xf32>
    %659 = arith.negf %658 : vector<8x32xf32>
    %660 = math.exp %659 : vector<8x32xf32>
    %cst_157 = arith.constant 1.000000e+00 : f32
    %661 = vector.broadcast %cst_157 : f32 to vector<8x32xf32>
    %662 = arith.addf %661, %660 : vector<8x32xf32>
    %663 = arith.divf %661, %662 : vector<8x32xf32>
    %664 = arith.mulf %655, %600 : vector<8x32xf32>
    %665 = arith.mulf %649, %657 : vector<8x32xf32>
    %666 = arith.addf %664, %665 : vector<8x32xf32>
    %667 = math.tanh %666 : vector<8x32xf32>
    %668 = arith.mulf %663, %667 : vector<8x32xf32>
    %669 = vector.extract_strided_slice %0 {offsets = [1, 0, 0], sizes = [1, 32, 128], strides = [1, 1, 1]} : vector<8x64x128xf32> to vector<1x32x128xf32>
    %670 = vector.shape_cast %669 : vector<1x32x128xf32> to vector<32x128xf32>
    %cst_158 = arith.constant dense<0.000000e+00> : vector<8x128xf32>
    %671 = tpu.matmul %643, %670, %cst_158 {dimension_numbers = #tpu.dot_dimension_numbers<[1], [0], [0], [1], [0, 0, 1, 1], [], []>} : vector<8x32xf32>, vector<32x128xf32>, vector<8x128xf32> -> vector<8x128xf32>
    %672 = arith.addf %610, %671 : vector<8x128xf32>
    %673 = vector.extract_strided_slice %0 {offsets = [6, 32, 0], sizes = [1, 32, 128], strides = [1, 1, 1]} : vector<8x64x128xf32> to vector<1x32x128xf32>
    %674 = vector.shape_cast %673 : vector<1x32x128xf32> to vector<32x128xf32>
    %cst_159 = arith.constant dense<0.000000e+00> : vector<8x128xf32>
    %675 = tpu.matmul %668, %674, %cst_159 {dimension_numbers = #tpu.dot_dimension_numbers<[1], [0], [0], [1], [0, 0, 1, 1], [], []>} : vector<8x32xf32>, vector<32x128xf32>, vector<8x128xf32> -> vector<8x128xf32>
    %676 = arith.addf %672, %675 : vector<8x128xf32>
    %677 = vector.extract_strided_slice %538 {offsets = [2, 0, 0], sizes = [1, 8, 128], strides = [1, 1, 1]} : vector<8x8x256xf32> to vector<1x8x128xf32>
    %678 = vector.shape_cast %677 : vector<1x8x128xf32> to vector<8x128xf32>
    %cst_160 = arith.constant dense<0.000000e+00> : vector<8x128xf32>
    %679 = tpu.matmul %643, %539, %cst_160 {dimension_numbers = #tpu.dot_dimension_numbers<[1], [0], [0], [1], [0, 0, 1, 1], [], []>} : vector<8x32xf32>, vector<32x128xf32>, vector<8x128xf32> -> vector<8x128xf32>
    %680 = arith.addf %678, %679 : vector<8x128xf32>
    %681 = vector.extract_strided_slice %538 {offsets = [5, 0, 128], sizes = [1, 8, 128], strides = [1, 1, 1]} : vector<8x8x256xf32> to vector<1x8x128xf32>
    %682 = vector.shape_cast %681 : vector<1x8x128xf32> to vector<8x128xf32>
    %cst_161 = arith.constant dense<0.000000e+00> : vector<8x128xf32>
    %683 = tpu.matmul %668, %540, %cst_161 {dimension_numbers = #tpu.dot_dimension_numbers<[1], [0], [0], [1], [0, 0, 1, 1], [], []>} : vector<8x32xf32>, vector<32x128xf32>, vector<8x128xf32> -> vector<8x128xf32>
    %684 = arith.addf %682, %683 : vector<8x128xf32>
    %685 = vector.extract_strided_slice %680 {offsets = [0, 0], sizes = [8, 32], strides = [1, 1]} : vector<8x128xf32> to vector<8x32xf32>
    %686 = arith.negf %685 : vector<8x32xf32>
    %687 = math.exp %686 : vector<8x32xf32>
    %cst_162 = arith.constant 1.000000e+00 : f32
    %688 = vector.broadcast %cst_162 : f32 to vector<8x32xf32>
    %689 = arith.addf %688, %687 : vector<8x32xf32>
    %690 = arith.divf %688, %689 : vector<8x32xf32>
    %691 = vector.extract_strided_slice %680 {offsets = [0, 32], sizes = [8, 32], strides = [1, 1]} : vector<8x128xf32> to vector<8x32xf32>
    %692 = arith.negf %691 : vector<8x32xf32>
    %693 = math.exp %692 : vector<8x32xf32>
    %cst_163 = arith.constant 1.000000e+00 : f32
    %694 = vector.broadcast %cst_163 : f32 to vector<8x32xf32>
    %695 = arith.addf %694, %693 : vector<8x32xf32>
    %696 = arith.divf %694, %695 : vector<8x32xf32>
    %697 = vector.extract_strided_slice %680 {offsets = [0, 64], sizes = [8, 32], strides = [1, 1]} : vector<8x128xf32> to vector<8x32xf32>
    %698 = math.tanh %697 : vector<8x32xf32>
    %699 = vector.extract_strided_slice %680 {offsets = [0, 96], sizes = [8, 32], strides = [1, 1]} : vector<8x128xf32> to vector<8x32xf32>
    %700 = arith.negf %699 : vector<8x32xf32>
    %701 = math.exp %700 : vector<8x32xf32>
    %cst_164 = arith.constant 1.000000e+00 : f32
    %702 = vector.broadcast %cst_164 : f32 to vector<8x32xf32>
    %703 = arith.addf %702, %701 : vector<8x32xf32>
    %704 = arith.divf %702, %703 : vector<8x32xf32>
    %705 = arith.mulf %696, %641 : vector<8x32xf32>
    %706 = arith.mulf %690, %698 : vector<8x32xf32>
    %707 = arith.addf %705, %706 : vector<8x32xf32>
    %708 = math.tanh %707 : vector<8x32xf32>
    %709 = arith.mulf %704, %708 : vector<8x32xf32>
    %710 = vector.extract_strided_slice %684 {offsets = [0, 0], sizes = [8, 32], strides = [1, 1]} : vector<8x128xf32> to vector<8x32xf32>
    %711 = arith.negf %710 : vector<8x32xf32>
    %712 = math.exp %711 : vector<8x32xf32>
    %cst_165 = arith.constant 1.000000e+00 : f32
    %713 = vector.broadcast %cst_165 : f32 to vector<8x32xf32>
    %714 = arith.addf %713, %712 : vector<8x32xf32>
    %715 = arith.divf %713, %714 : vector<8x32xf32>
    %716 = vector.extract_strided_slice %684 {offsets = [0, 32], sizes = [8, 32], strides = [1, 1]} : vector<8x128xf32> to vector<8x32xf32>
    %717 = arith.negf %716 : vector<8x32xf32>
    %718 = math.exp %717 : vector<8x32xf32>
    %cst_166 = arith.constant 1.000000e+00 : f32
    %719 = vector.broadcast %cst_166 : f32 to vector<8x32xf32>
    %720 = arith.addf %719, %718 : vector<8x32xf32>
    %721 = arith.divf %719, %720 : vector<8x32xf32>
    %722 = vector.extract_strided_slice %684 {offsets = [0, 64], sizes = [8, 32], strides = [1, 1]} : vector<8x128xf32> to vector<8x32xf32>
    %723 = math.tanh %722 : vector<8x32xf32>
    %724 = vector.extract_strided_slice %684 {offsets = [0, 96], sizes = [8, 32], strides = [1, 1]} : vector<8x128xf32> to vector<8x32xf32>
    %725 = arith.negf %724 : vector<8x32xf32>
    %726 = math.exp %725 : vector<8x32xf32>
    %cst_167 = arith.constant 1.000000e+00 : f32
    %727 = vector.broadcast %cst_167 : f32 to vector<8x32xf32>
    %728 = arith.addf %727, %726 : vector<8x32xf32>
    %729 = arith.divf %727, %728 : vector<8x32xf32>
    %730 = arith.mulf %721, %666 : vector<8x32xf32>
    %731 = arith.mulf %715, %723 : vector<8x32xf32>
    %732 = arith.addf %730, %731 : vector<8x32xf32>
    %733 = math.tanh %732 : vector<8x32xf32>
    %734 = arith.mulf %729, %733 : vector<8x32xf32>
    %735 = vector.extract_strided_slice %0 {offsets = [2, 0, 0], sizes = [1, 32, 128], strides = [1, 1, 1]} : vector<8x64x128xf32> to vector<1x32x128xf32>
    %736 = vector.shape_cast %735 : vector<1x32x128xf32> to vector<32x128xf32>
    %cst_168 = arith.constant dense<0.000000e+00> : vector<8x128xf32>
    %737 = tpu.matmul %709, %736, %cst_168 {dimension_numbers = #tpu.dot_dimension_numbers<[1], [0], [0], [1], [0, 0, 1, 1], [], []>} : vector<8x32xf32>, vector<32x128xf32>, vector<8x128xf32> -> vector<8x128xf32>
    %738 = arith.addf %676, %737 : vector<8x128xf32>
    %739 = vector.extract_strided_slice %0 {offsets = [5, 32, 0], sizes = [1, 32, 128], strides = [1, 1, 1]} : vector<8x64x128xf32> to vector<1x32x128xf32>
    %740 = vector.shape_cast %739 : vector<1x32x128xf32> to vector<32x128xf32>
    %cst_169 = arith.constant dense<0.000000e+00> : vector<8x128xf32>
    %741 = tpu.matmul %734, %740, %cst_169 {dimension_numbers = #tpu.dot_dimension_numbers<[1], [0], [0], [1], [0, 0, 1, 1], [], []>} : vector<8x32xf32>, vector<32x128xf32>, vector<8x128xf32> -> vector<8x128xf32>
    %742 = arith.addf %738, %741 : vector<8x128xf32>
    %743 = vector.extract_strided_slice %538 {offsets = [3, 0, 0], sizes = [1, 8, 128], strides = [1, 1, 1]} : vector<8x8x256xf32> to vector<1x8x128xf32>
    %744 = vector.shape_cast %743 : vector<1x8x128xf32> to vector<8x128xf32>
    %cst_170 = arith.constant dense<0.000000e+00> : vector<8x128xf32>
    %745 = tpu.matmul %709, %539, %cst_170 {dimension_numbers = #tpu.dot_dimension_numbers<[1], [0], [0], [1], [0, 0, 1, 1], [], []>} : vector<8x32xf32>, vector<32x128xf32>, vector<8x128xf32> -> vector<8x128xf32>
    %746 = arith.addf %744, %745 : vector<8x128xf32>
    %747 = vector.extract_strided_slice %538 {offsets = [4, 0, 128], sizes = [1, 8, 128], strides = [1, 1, 1]} : vector<8x8x256xf32> to vector<1x8x128xf32>
    %748 = vector.shape_cast %747 : vector<1x8x128xf32> to vector<8x128xf32>
    %cst_171 = arith.constant dense<0.000000e+00> : vector<8x128xf32>
    %749 = tpu.matmul %734, %540, %cst_171 {dimension_numbers = #tpu.dot_dimension_numbers<[1], [0], [0], [1], [0, 0, 1, 1], [], []>} : vector<8x32xf32>, vector<32x128xf32>, vector<8x128xf32> -> vector<8x128xf32>
    %750 = arith.addf %748, %749 : vector<8x128xf32>
    %751 = vector.extract_strided_slice %746 {offsets = [0, 0], sizes = [8, 32], strides = [1, 1]} : vector<8x128xf32> to vector<8x32xf32>
    %752 = arith.negf %751 : vector<8x32xf32>
    %753 = math.exp %752 : vector<8x32xf32>
    %cst_172 = arith.constant 1.000000e+00 : f32
    %754 = vector.broadcast %cst_172 : f32 to vector<8x32xf32>
    %755 = arith.addf %754, %753 : vector<8x32xf32>
    %756 = arith.divf %754, %755 : vector<8x32xf32>
    %757 = vector.extract_strided_slice %746 {offsets = [0, 32], sizes = [8, 32], strides = [1, 1]} : vector<8x128xf32> to vector<8x32xf32>
    %758 = arith.negf %757 : vector<8x32xf32>
    %759 = math.exp %758 : vector<8x32xf32>
    %cst_173 = arith.constant 1.000000e+00 : f32
    %760 = vector.broadcast %cst_173 : f32 to vector<8x32xf32>
    %761 = arith.addf %760, %759 : vector<8x32xf32>
    %762 = arith.divf %760, %761 : vector<8x32xf32>
    %763 = vector.extract_strided_slice %746 {offsets = [0, 64], sizes = [8, 32], strides = [1, 1]} : vector<8x128xf32> to vector<8x32xf32>
    %764 = math.tanh %763 : vector<8x32xf32>
    %765 = vector.extract_strided_slice %746 {offsets = [0, 96], sizes = [8, 32], strides = [1, 1]} : vector<8x128xf32> to vector<8x32xf32>
    %766 = arith.negf %765 : vector<8x32xf32>
    %767 = math.exp %766 : vector<8x32xf32>
    %cst_174 = arith.constant 1.000000e+00 : f32
    %768 = vector.broadcast %cst_174 : f32 to vector<8x32xf32>
    %769 = arith.addf %768, %767 : vector<8x32xf32>
    %770 = arith.divf %768, %769 : vector<8x32xf32>
    %771 = arith.mulf %762, %707 : vector<8x32xf32>
    %772 = arith.mulf %756, %764 : vector<8x32xf32>
    %773 = arith.addf %771, %772 : vector<8x32xf32>
    %774 = math.tanh %773 : vector<8x32xf32>
    %775 = arith.mulf %770, %774 : vector<8x32xf32>
    %776 = vector.extract_strided_slice %750 {offsets = [0, 0], sizes = [8, 32], strides = [1, 1]} : vector<8x128xf32> to vector<8x32xf32>
    %777 = arith.negf %776 : vector<8x32xf32>
    %778 = math.exp %777 : vector<8x32xf32>
    %cst_175 = arith.constant 1.000000e+00 : f32
    %779 = vector.broadcast %cst_175 : f32 to vector<8x32xf32>
    %780 = arith.addf %779, %778 : vector<8x32xf32>
    %781 = arith.divf %779, %780 : vector<8x32xf32>
    %782 = vector.extract_strided_slice %750 {offsets = [0, 32], sizes = [8, 32], strides = [1, 1]} : vector<8x128xf32> to vector<8x32xf32>
    %783 = arith.negf %782 : vector<8x32xf32>
    %784 = math.exp %783 : vector<8x32xf32>
    %cst_176 = arith.constant 1.000000e+00 : f32
    %785 = vector.broadcast %cst_176 : f32 to vector<8x32xf32>
    %786 = arith.addf %785, %784 : vector<8x32xf32>
    %787 = arith.divf %785, %786 : vector<8x32xf32>
    %788 = vector.extract_strided_slice %750 {offsets = [0, 64], sizes = [8, 32], strides = [1, 1]} : vector<8x128xf32> to vector<8x32xf32>
    %789 = math.tanh %788 : vector<8x32xf32>
    %790 = vector.extract_strided_slice %750 {offsets = [0, 96], sizes = [8, 32], strides = [1, 1]} : vector<8x128xf32> to vector<8x32xf32>
    %791 = arith.negf %790 : vector<8x32xf32>
    %792 = math.exp %791 : vector<8x32xf32>
    %cst_177 = arith.constant 1.000000e+00 : f32
    %793 = vector.broadcast %cst_177 : f32 to vector<8x32xf32>
    %794 = arith.addf %793, %792 : vector<8x32xf32>
    %795 = arith.divf %793, %794 : vector<8x32xf32>
    %796 = arith.mulf %787, %732 : vector<8x32xf32>
    %797 = arith.mulf %781, %789 : vector<8x32xf32>
    %798 = arith.addf %796, %797 : vector<8x32xf32>
    %799 = math.tanh %798 : vector<8x32xf32>
    %800 = arith.mulf %795, %799 : vector<8x32xf32>
    %801 = vector.extract_strided_slice %0 {offsets = [3, 0, 0], sizes = [1, 32, 128], strides = [1, 1, 1]} : vector<8x64x128xf32> to vector<1x32x128xf32>
    %802 = vector.shape_cast %801 : vector<1x32x128xf32> to vector<32x128xf32>
    %cst_178 = arith.constant dense<0.000000e+00> : vector<8x128xf32>
    %803 = tpu.matmul %775, %802, %cst_178 {dimension_numbers = #tpu.dot_dimension_numbers<[1], [0], [0], [1], [0, 0, 1, 1], [], []>} : vector<8x32xf32>, vector<32x128xf32>, vector<8x128xf32> -> vector<8x128xf32>
    %804 = arith.addf %742, %803 : vector<8x128xf32>
    %805 = vector.extract_strided_slice %0 {offsets = [4, 32, 0], sizes = [1, 32, 128], strides = [1, 1, 1]} : vector<8x64x128xf32> to vector<1x32x128xf32>
    %806 = vector.shape_cast %805 : vector<1x32x128xf32> to vector<32x128xf32>
    %cst_179 = arith.constant dense<0.000000e+00> : vector<8x128xf32>
    %807 = tpu.matmul %800, %806, %cst_179 {dimension_numbers = #tpu.dot_dimension_numbers<[1], [0], [0], [1], [0, 0, 1, 1], [], []>} : vector<8x32xf32>, vector<32x128xf32>, vector<8x128xf32> -> vector<8x128xf32>
    %808 = arith.addf %804, %807 : vector<8x128xf32>
    %809 = vector.extract_strided_slice %538 {offsets = [4, 0, 0], sizes = [1, 8, 128], strides = [1, 1, 1]} : vector<8x8x256xf32> to vector<1x8x128xf32>
    %810 = vector.shape_cast %809 : vector<1x8x128xf32> to vector<8x128xf32>
    %cst_180 = arith.constant dense<0.000000e+00> : vector<8x128xf32>
    %811 = tpu.matmul %775, %539, %cst_180 {dimension_numbers = #tpu.dot_dimension_numbers<[1], [0], [0], [1], [0, 0, 1, 1], [], []>} : vector<8x32xf32>, vector<32x128xf32>, vector<8x128xf32> -> vector<8x128xf32>
    %812 = arith.addf %810, %811 : vector<8x128xf32>
    %813 = vector.extract_strided_slice %538 {offsets = [3, 0, 128], sizes = [1, 8, 128], strides = [1, 1, 1]} : vector<8x8x256xf32> to vector<1x8x128xf32>
    %814 = vector.shape_cast %813 : vector<1x8x128xf32> to vector<8x128xf32>
    %cst_181 = arith.constant dense<0.000000e+00> : vector<8x128xf32>
    %815 = tpu.matmul %800, %540, %cst_181 {dimension_numbers = #tpu.dot_dimension_numbers<[1], [0], [0], [1], [0, 0, 1, 1], [], []>} : vector<8x32xf32>, vector<32x128xf32>, vector<8x128xf32> -> vector<8x128xf32>
    %816 = arith.addf %814, %815 : vector<8x128xf32>
    %817 = vector.extract_strided_slice %812 {offsets = [0, 0], sizes = [8, 32], strides = [1, 1]} : vector<8x128xf32> to vector<8x32xf32>
    %818 = arith.negf %817 : vector<8x32xf32>
    %819 = math.exp %818 : vector<8x32xf32>
    %cst_182 = arith.constant 1.000000e+00 : f32
    %820 = vector.broadcast %cst_182 : f32 to vector<8x32xf32>
    %821 = arith.addf %820, %819 : vector<8x32xf32>
    %822 = arith.divf %820, %821 : vector<8x32xf32>
    %823 = vector.extract_strided_slice %812 {offsets = [0, 32], sizes = [8, 32], strides = [1, 1]} : vector<8x128xf32> to vector<8x32xf32>
    %824 = arith.negf %823 : vector<8x32xf32>
    %825 = math.exp %824 : vector<8x32xf32>
    %cst_183 = arith.constant 1.000000e+00 : f32
    %826 = vector.broadcast %cst_183 : f32 to vector<8x32xf32>
    %827 = arith.addf %826, %825 : vector<8x32xf32>
    %828 = arith.divf %826, %827 : vector<8x32xf32>
    %829 = vector.extract_strided_slice %812 {offsets = [0, 64], sizes = [8, 32], strides = [1, 1]} : vector<8x128xf32> to vector<8x32xf32>
    %830 = math.tanh %829 : vector<8x32xf32>
    %831 = vector.extract_strided_slice %812 {offsets = [0, 96], sizes = [8, 32], strides = [1, 1]} : vector<8x128xf32> to vector<8x32xf32>
    %832 = arith.negf %831 : vector<8x32xf32>
    %833 = math.exp %832 : vector<8x32xf32>
    %cst_184 = arith.constant 1.000000e+00 : f32
    %834 = vector.broadcast %cst_184 : f32 to vector<8x32xf32>
    %835 = arith.addf %834, %833 : vector<8x32xf32>
    %836 = arith.divf %834, %835 : vector<8x32xf32>
    %837 = arith.mulf %828, %773 : vector<8x32xf32>
    %838 = arith.mulf %822, %830 : vector<8x32xf32>
    %839 = arith.addf %837, %838 : vector<8x32xf32>
    %840 = math.tanh %839 : vector<8x32xf32>
    %841 = arith.mulf %836, %840 : vector<8x32xf32>
    %842 = vector.extract_strided_slice %816 {offsets = [0, 0], sizes = [8, 32], strides = [1, 1]} : vector<8x128xf32> to vector<8x32xf32>
    %843 = arith.negf %842 : vector<8x32xf32>
    %844 = math.exp %843 : vector<8x32xf32>
    %cst_185 = arith.constant 1.000000e+00 : f32
    %845 = vector.broadcast %cst_185 : f32 to vector<8x32xf32>
    %846 = arith.addf %845, %844 : vector<8x32xf32>
    %847 = arith.divf %845, %846 : vector<8x32xf32>
    %848 = vector.extract_strided_slice %816 {offsets = [0, 32], sizes = [8, 32], strides = [1, 1]} : vector<8x128xf32> to vector<8x32xf32>
    %849 = arith.negf %848 : vector<8x32xf32>
    %850 = math.exp %849 : vector<8x32xf32>
    %cst_186 = arith.constant 1.000000e+00 : f32
    %851 = vector.broadcast %cst_186 : f32 to vector<8x32xf32>
    %852 = arith.addf %851, %850 : vector<8x32xf32>
    %853 = arith.divf %851, %852 : vector<8x32xf32>
    %854 = vector.extract_strided_slice %816 {offsets = [0, 64], sizes = [8, 32], strides = [1, 1]} : vector<8x128xf32> to vector<8x32xf32>
    %855 = math.tanh %854 : vector<8x32xf32>
    %856 = vector.extract_strided_slice %816 {offsets = [0, 96], sizes = [8, 32], strides = [1, 1]} : vector<8x128xf32> to vector<8x32xf32>
    %857 = arith.negf %856 : vector<8x32xf32>
    %858 = math.exp %857 : vector<8x32xf32>
    %cst_187 = arith.constant 1.000000e+00 : f32
    %859 = vector.broadcast %cst_187 : f32 to vector<8x32xf32>
    %860 = arith.addf %859, %858 : vector<8x32xf32>
    %861 = arith.divf %859, %860 : vector<8x32xf32>
    %862 = arith.mulf %853, %798 : vector<8x32xf32>
    %863 = arith.mulf %847, %855 : vector<8x32xf32>
    %864 = arith.addf %862, %863 : vector<8x32xf32>
    %865 = math.tanh %864 : vector<8x32xf32>
    %866 = arith.mulf %861, %865 : vector<8x32xf32>
    %867 = vector.extract_strided_slice %0 {offsets = [4, 0, 0], sizes = [1, 32, 128], strides = [1, 1, 1]} : vector<8x64x128xf32> to vector<1x32x128xf32>
    %868 = vector.shape_cast %867 : vector<1x32x128xf32> to vector<32x128xf32>
    %cst_188 = arith.constant dense<0.000000e+00> : vector<8x128xf32>
    %869 = tpu.matmul %841, %868, %cst_188 {dimension_numbers = #tpu.dot_dimension_numbers<[1], [0], [0], [1], [0, 0, 1, 1], [], []>} : vector<8x32xf32>, vector<32x128xf32>, vector<8x128xf32> -> vector<8x128xf32>
    %870 = arith.addf %808, %869 : vector<8x128xf32>
    %871 = vector.extract_strided_slice %0 {offsets = [3, 32, 0], sizes = [1, 32, 128], strides = [1, 1, 1]} : vector<8x64x128xf32> to vector<1x32x128xf32>
    %872 = vector.shape_cast %871 : vector<1x32x128xf32> to vector<32x128xf32>
    %cst_189 = arith.constant dense<0.000000e+00> : vector<8x128xf32>
    %873 = tpu.matmul %866, %872, %cst_189 {dimension_numbers = #tpu.dot_dimension_numbers<[1], [0], [0], [1], [0, 0, 1, 1], [], []>} : vector<8x32xf32>, vector<32x128xf32>, vector<8x128xf32> -> vector<8x128xf32>
    %874 = arith.addf %870, %873 : vector<8x128xf32>
    %875 = vector.extract_strided_slice %538 {offsets = [5, 0, 0], sizes = [1, 8, 128], strides = [1, 1, 1]} : vector<8x8x256xf32> to vector<1x8x128xf32>
    %876 = vector.shape_cast %875 : vector<1x8x128xf32> to vector<8x128xf32>
    %cst_190 = arith.constant dense<0.000000e+00> : vector<8x128xf32>
    %877 = tpu.matmul %841, %539, %cst_190 {dimension_numbers = #tpu.dot_dimension_numbers<[1], [0], [0], [1], [0, 0, 1, 1], [], []>} : vector<8x32xf32>, vector<32x128xf32>, vector<8x128xf32> -> vector<8x128xf32>
    %878 = arith.addf %876, %877 : vector<8x128xf32>
    %879 = vector.extract_strided_slice %538 {offsets = [2, 0, 128], sizes = [1, 8, 128], strides = [1, 1, 1]} : vector<8x8x256xf32> to vector<1x8x128xf32>
    %880 = vector.shape_cast %879 : vector<1x8x128xf32> to vector<8x128xf32>
    %cst_191 = arith.constant dense<0.000000e+00> : vector<8x128xf32>
    %881 = tpu.matmul %866, %540, %cst_191 {dimension_numbers = #tpu.dot_dimension_numbers<[1], [0], [0], [1], [0, 0, 1, 1], [], []>} : vector<8x32xf32>, vector<32x128xf32>, vector<8x128xf32> -> vector<8x128xf32>
    %882 = arith.addf %880, %881 : vector<8x128xf32>
    %883 = vector.extract_strided_slice %878 {offsets = [0, 0], sizes = [8, 32], strides = [1, 1]} : vector<8x128xf32> to vector<8x32xf32>
    %884 = arith.negf %883 : vector<8x32xf32>
    %885 = math.exp %884 : vector<8x32xf32>
    %cst_192 = arith.constant 1.000000e+00 : f32
    %886 = vector.broadcast %cst_192 : f32 to vector<8x32xf32>
    %887 = arith.addf %886, %885 : vector<8x32xf32>
    %888 = arith.divf %886, %887 : vector<8x32xf32>
    %889 = vector.extract_strided_slice %878 {offsets = [0, 32], sizes = [8, 32], strides = [1, 1]} : vector<8x128xf32> to vector<8x32xf32>
    %890 = arith.negf %889 : vector<8x32xf32>
    %891 = math.exp %890 : vector<8x32xf32>
    %cst_193 = arith.constant 1.000000e+00 : f32
    %892 = vector.broadcast %cst_193 : f32 to vector<8x32xf32>
    %893 = arith.addf %892, %891 : vector<8x32xf32>
    %894 = arith.divf %892, %893 : vector<8x32xf32>
    %895 = vector.extract_strided_slice %878 {offsets = [0, 64], sizes = [8, 32], strides = [1, 1]} : vector<8x128xf32> to vector<8x32xf32>
    %896 = math.tanh %895 : vector<8x32xf32>
    %897 = vector.extract_strided_slice %878 {offsets = [0, 96], sizes = [8, 32], strides = [1, 1]} : vector<8x128xf32> to vector<8x32xf32>
    %898 = arith.negf %897 : vector<8x32xf32>
    %899 = math.exp %898 : vector<8x32xf32>
    %cst_194 = arith.constant 1.000000e+00 : f32
    %900 = vector.broadcast %cst_194 : f32 to vector<8x32xf32>
    %901 = arith.addf %900, %899 : vector<8x32xf32>
    %902 = arith.divf %900, %901 : vector<8x32xf32>
    %903 = arith.mulf %894, %839 : vector<8x32xf32>
    %904 = arith.mulf %888, %896 : vector<8x32xf32>
    %905 = arith.addf %903, %904 : vector<8x32xf32>
    %906 = math.tanh %905 : vector<8x32xf32>
    %907 = arith.mulf %902, %906 : vector<8x32xf32>
    %908 = vector.extract_strided_slice %882 {offsets = [0, 0], sizes = [8, 32], strides = [1, 1]} : vector<8x128xf32> to vector<8x32xf32>
    %909 = arith.negf %908 : vector<8x32xf32>
    %910 = math.exp %909 : vector<8x32xf32>
    %cst_195 = arith.constant 1.000000e+00 : f32
    %911 = vector.broadcast %cst_195 : f32 to vector<8x32xf32>
    %912 = arith.addf %911, %910 : vector<8x32xf32>
    %913 = arith.divf %911, %912 : vector<8x32xf32>
    %914 = vector.extract_strided_slice %882 {offsets = [0, 32], sizes = [8, 32], strides = [1, 1]} : vector<8x128xf32> to vector<8x32xf32>
    %915 = arith.negf %914 : vector<8x32xf32>
    %916 = math.exp %915 : vector<8x32xf32>
    %cst_196 = arith.constant 1.000000e+00 : f32
    %917 = vector.broadcast %cst_196 : f32 to vector<8x32xf32>
    %918 = arith.addf %917, %916 : vector<8x32xf32>
    %919 = arith.divf %917, %918 : vector<8x32xf32>
    %920 = vector.extract_strided_slice %882 {offsets = [0, 64], sizes = [8, 32], strides = [1, 1]} : vector<8x128xf32> to vector<8x32xf32>
    %921 = math.tanh %920 : vector<8x32xf32>
    %922 = vector.extract_strided_slice %882 {offsets = [0, 96], sizes = [8, 32], strides = [1, 1]} : vector<8x128xf32> to vector<8x32xf32>
    %923 = arith.negf %922 : vector<8x32xf32>
    %924 = math.exp %923 : vector<8x32xf32>
    %cst_197 = arith.constant 1.000000e+00 : f32
    %925 = vector.broadcast %cst_197 : f32 to vector<8x32xf32>
    %926 = arith.addf %925, %924 : vector<8x32xf32>
    %927 = arith.divf %925, %926 : vector<8x32xf32>
    %928 = arith.mulf %919, %864 : vector<8x32xf32>
    %929 = arith.mulf %913, %921 : vector<8x32xf32>
    %930 = arith.addf %928, %929 : vector<8x32xf32>
    %931 = math.tanh %930 : vector<8x32xf32>
    %932 = arith.mulf %927, %931 : vector<8x32xf32>
    %933 = vector.extract_strided_slice %0 {offsets = [5, 0, 0], sizes = [1, 32, 128], strides = [1, 1, 1]} : vector<8x64x128xf32> to vector<1x32x128xf32>
    %934 = vector.shape_cast %933 : vector<1x32x128xf32> to vector<32x128xf32>
    %cst_198 = arith.constant dense<0.000000e+00> : vector<8x128xf32>
    %935 = tpu.matmul %907, %934, %cst_198 {dimension_numbers = #tpu.dot_dimension_numbers<[1], [0], [0], [1], [0, 0, 1, 1], [], []>} : vector<8x32xf32>, vector<32x128xf32>, vector<8x128xf32> -> vector<8x128xf32>
    %936 = arith.addf %874, %935 : vector<8x128xf32>
    %937 = vector.extract_strided_slice %0 {offsets = [2, 32, 0], sizes = [1, 32, 128], strides = [1, 1, 1]} : vector<8x64x128xf32> to vector<1x32x128xf32>
    %938 = vector.shape_cast %937 : vector<1x32x128xf32> to vector<32x128xf32>
    %cst_199 = arith.constant dense<0.000000e+00> : vector<8x128xf32>
    %939 = tpu.matmul %932, %938, %cst_199 {dimension_numbers = #tpu.dot_dimension_numbers<[1], [0], [0], [1], [0, 0, 1, 1], [], []>} : vector<8x32xf32>, vector<32x128xf32>, vector<8x128xf32> -> vector<8x128xf32>
    %940 = arith.addf %936, %939 : vector<8x128xf32>
    %941 = vector.extract_strided_slice %538 {offsets = [6, 0, 0], sizes = [1, 8, 128], strides = [1, 1, 1]} : vector<8x8x256xf32> to vector<1x8x128xf32>
    %942 = vector.shape_cast %941 : vector<1x8x128xf32> to vector<8x128xf32>
    %cst_200 = arith.constant dense<0.000000e+00> : vector<8x128xf32>
    %943 = tpu.matmul %907, %539, %cst_200 {dimension_numbers = #tpu.dot_dimension_numbers<[1], [0], [0], [1], [0, 0, 1, 1], [], []>} : vector<8x32xf32>, vector<32x128xf32>, vector<8x128xf32> -> vector<8x128xf32>
    %944 = arith.addf %942, %943 : vector<8x128xf32>
    %945 = vector.extract_strided_slice %538 {offsets = [1, 0, 128], sizes = [1, 8, 128], strides = [1, 1, 1]} : vector<8x8x256xf32> to vector<1x8x128xf32>
    %946 = vector.shape_cast %945 : vector<1x8x128xf32> to vector<8x128xf32>
    %cst_201 = arith.constant dense<0.000000e+00> : vector<8x128xf32>
    %947 = tpu.matmul %932, %540, %cst_201 {dimension_numbers = #tpu.dot_dimension_numbers<[1], [0], [0], [1], [0, 0, 1, 1], [], []>} : vector<8x32xf32>, vector<32x128xf32>, vector<8x128xf32> -> vector<8x128xf32>
    %948 = arith.addf %946, %947 : vector<8x128xf32>
    %949 = vector.extract_strided_slice %944 {offsets = [0, 0], sizes = [8, 32], strides = [1, 1]} : vector<8x128xf32> to vector<8x32xf32>
    %950 = arith.negf %949 : vector<8x32xf32>
    %951 = math.exp %950 : vector<8x32xf32>
    %cst_202 = arith.constant 1.000000e+00 : f32
    %952 = vector.broadcast %cst_202 : f32 to vector<8x32xf32>
    %953 = arith.addf %952, %951 : vector<8x32xf32>
    %954 = arith.divf %952, %953 : vector<8x32xf32>
    %955 = vector.extract_strided_slice %944 {offsets = [0, 32], sizes = [8, 32], strides = [1, 1]} : vector<8x128xf32> to vector<8x32xf32>
    %956 = arith.negf %955 : vector<8x32xf32>
    %957 = math.exp %956 : vector<8x32xf32>
    %cst_203 = arith.constant 1.000000e+00 : f32
    %958 = vector.broadcast %cst_203 : f32 to vector<8x32xf32>
    %959 = arith.addf %958, %957 : vector<8x32xf32>
    %960 = arith.divf %958, %959 : vector<8x32xf32>
    %961 = vector.extract_strided_slice %944 {offsets = [0, 64], sizes = [8, 32], strides = [1, 1]} : vector<8x128xf32> to vector<8x32xf32>
    %962 = math.tanh %961 : vector<8x32xf32>
    %963 = vector.extract_strided_slice %944 {offsets = [0, 96], sizes = [8, 32], strides = [1, 1]} : vector<8x128xf32> to vector<8x32xf32>
    %964 = arith.negf %963 : vector<8x32xf32>
    %965 = math.exp %964 : vector<8x32xf32>
    %cst_204 = arith.constant 1.000000e+00 : f32
    %966 = vector.broadcast %cst_204 : f32 to vector<8x32xf32>
    %967 = arith.addf %966, %965 : vector<8x32xf32>
    %968 = arith.divf %966, %967 : vector<8x32xf32>
    %969 = arith.mulf %960, %905 : vector<8x32xf32>
    %970 = arith.mulf %954, %962 : vector<8x32xf32>
    %971 = arith.addf %969, %970 : vector<8x32xf32>
    %972 = math.tanh %971 : vector<8x32xf32>
    %973 = arith.mulf %968, %972 : vector<8x32xf32>
    %974 = vector.extract_strided_slice %948 {offsets = [0, 0], sizes = [8, 32], strides = [1, 1]} : vector<8x128xf32> to vector<8x32xf32>
    %975 = arith.negf %974 : vector<8x32xf32>
    %976 = math.exp %975 : vector<8x32xf32>
    %cst_205 = arith.constant 1.000000e+00 : f32
    %977 = vector.broadcast %cst_205 : f32 to vector<8x32xf32>
    %978 = arith.addf %977, %976 : vector<8x32xf32>
    %979 = arith.divf %977, %978 : vector<8x32xf32>
    %980 = vector.extract_strided_slice %948 {offsets = [0, 32], sizes = [8, 32], strides = [1, 1]} : vector<8x128xf32> to vector<8x32xf32>
    %981 = arith.negf %980 : vector<8x32xf32>
    %982 = math.exp %981 : vector<8x32xf32>
    %cst_206 = arith.constant 1.000000e+00 : f32
    %983 = vector.broadcast %cst_206 : f32 to vector<8x32xf32>
    %984 = arith.addf %983, %982 : vector<8x32xf32>
    %985 = arith.divf %983, %984 : vector<8x32xf32>
    %986 = vector.extract_strided_slice %948 {offsets = [0, 64], sizes = [8, 32], strides = [1, 1]} : vector<8x128xf32> to vector<8x32xf32>
    %987 = math.tanh %986 : vector<8x32xf32>
    %988 = vector.extract_strided_slice %948 {offsets = [0, 96], sizes = [8, 32], strides = [1, 1]} : vector<8x128xf32> to vector<8x32xf32>
    %989 = arith.negf %988 : vector<8x32xf32>
    %990 = math.exp %989 : vector<8x32xf32>
    %cst_207 = arith.constant 1.000000e+00 : f32
    %991 = vector.broadcast %cst_207 : f32 to vector<8x32xf32>
    %992 = arith.addf %991, %990 : vector<8x32xf32>
    %993 = arith.divf %991, %992 : vector<8x32xf32>
    %994 = arith.mulf %985, %930 : vector<8x32xf32>
    %995 = arith.mulf %979, %987 : vector<8x32xf32>
    %996 = arith.addf %994, %995 : vector<8x32xf32>
    %997 = math.tanh %996 : vector<8x32xf32>
    %998 = arith.mulf %993, %997 : vector<8x32xf32>
    %999 = vector.extract_strided_slice %0 {offsets = [6, 0, 0], sizes = [1, 32, 128], strides = [1, 1, 1]} : vector<8x64x128xf32> to vector<1x32x128xf32>
    %1000 = vector.shape_cast %999 : vector<1x32x128xf32> to vector<32x128xf32>
    %cst_208 = arith.constant dense<0.000000e+00> : vector<8x128xf32>
    %1001 = tpu.matmul %973, %1000, %cst_208 {dimension_numbers = #tpu.dot_dimension_numbers<[1], [0], [0], [1], [0, 0, 1, 1], [], []>} : vector<8x32xf32>, vector<32x128xf32>, vector<8x128xf32> -> vector<8x128xf32>
    %1002 = arith.addf %940, %1001 : vector<8x128xf32>
    %1003 = vector.extract_strided_slice %0 {offsets = [1, 32, 0], sizes = [1, 32, 128], strides = [1, 1, 1]} : vector<8x64x128xf32> to vector<1x32x128xf32>
    %1004 = vector.shape_cast %1003 : vector<1x32x128xf32> to vector<32x128xf32>
    %cst_209 = arith.constant dense<0.000000e+00> : vector<8x128xf32>
    %1005 = tpu.matmul %998, %1004, %cst_209 {dimension_numbers = #tpu.dot_dimension_numbers<[1], [0], [0], [1], [0, 0, 1, 1], [], []>} : vector<8x32xf32>, vector<32x128xf32>, vector<8x128xf32> -> vector<8x128xf32>
    %1006 = arith.addf %1002, %1005 : vector<8x128xf32>
    %1007 = vector.extract_strided_slice %538 {offsets = [7, 0, 0], sizes = [1, 8, 128], strides = [1, 1, 1]} : vector<8x8x256xf32> to vector<1x8x128xf32>
    %1008 = vector.shape_cast %1007 : vector<1x8x128xf32> to vector<8x128xf32>
    %cst_210 = arith.constant dense<0.000000e+00> : vector<8x128xf32>
    %1009 = tpu.matmul %973, %539, %cst_210 {dimension_numbers = #tpu.dot_dimension_numbers<[1], [0], [0], [1], [0, 0, 1, 1], [], []>} : vector<8x32xf32>, vector<32x128xf32>, vector<8x128xf32> -> vector<8x128xf32>
    %1010 = arith.addf %1008, %1009 : vector<8x128xf32>
    %1011 = vector.extract_strided_slice %538 {offsets = [0, 0, 128], sizes = [1, 8, 128], strides = [1, 1, 1]} : vector<8x8x256xf32> to vector<1x8x128xf32>
    %1012 = vector.shape_cast %1011 : vector<1x8x128xf32> to vector<8x128xf32>
    %cst_211 = arith.constant dense<0.000000e+00> : vector<8x128xf32>
    %1013 = tpu.matmul %998, %540, %cst_211 {dimension_numbers = #tpu.dot_dimension_numbers<[1], [0], [0], [1], [0, 0, 1, 1], [], []>} : vector<8x32xf32>, vector<32x128xf32>, vector<8x128xf32> -> vector<8x128xf32>
    %1014 = arith.addf %1012, %1013 : vector<8x128xf32>
    %1015 = vector.extract_strided_slice %1010 {offsets = [0, 0], sizes = [8, 32], strides = [1, 1]} : vector<8x128xf32> to vector<8x32xf32>
    %1016 = arith.negf %1015 : vector<8x32xf32>
    %1017 = math.exp %1016 : vector<8x32xf32>
    %cst_212 = arith.constant 1.000000e+00 : f32
    %1018 = vector.broadcast %cst_212 : f32 to vector<8x32xf32>
    %1019 = arith.addf %1018, %1017 : vector<8x32xf32>
    %1020 = arith.divf %1018, %1019 : vector<8x32xf32>
    %1021 = vector.extract_strided_slice %1010 {offsets = [0, 32], sizes = [8, 32], strides = [1, 1]} : vector<8x128xf32> to vector<8x32xf32>
    %1022 = arith.negf %1021 : vector<8x32xf32>
    %1023 = math.exp %1022 : vector<8x32xf32>
    %cst_213 = arith.constant 1.000000e+00 : f32
    %1024 = vector.broadcast %cst_213 : f32 to vector<8x32xf32>
    %1025 = arith.addf %1024, %1023 : vector<8x32xf32>
    %1026 = arith.divf %1024, %1025 : vector<8x32xf32>
    %1027 = vector.extract_strided_slice %1010 {offsets = [0, 64], sizes = [8, 32], strides = [1, 1]} : vector<8x128xf32> to vector<8x32xf32>
    %1028 = math.tanh %1027 : vector<8x32xf32>
    %1029 = vector.extract_strided_slice %1010 {offsets = [0, 96], sizes = [8, 32], strides = [1, 1]} : vector<8x128xf32> to vector<8x32xf32>
    %1030 = arith.negf %1029 : vector<8x32xf32>
    %1031 = math.exp %1030 : vector<8x32xf32>
    %cst_214 = arith.constant 1.000000e+00 : f32
    %1032 = vector.broadcast %cst_214 : f32 to vector<8x32xf32>
    %1033 = arith.addf %1032, %1031 : vector<8x32xf32>
    %1034 = arith.divf %1032, %1033 : vector<8x32xf32>
    %1035 = arith.mulf %1026, %971 : vector<8x32xf32>
    %1036 = arith.mulf %1020, %1028 : vector<8x32xf32>
    %1037 = arith.addf %1035, %1036 : vector<8x32xf32>
    %1038 = math.tanh %1037 : vector<8x32xf32>
    %1039 = arith.mulf %1034, %1038 : vector<8x32xf32>
    %1040 = vector.extract_strided_slice %1014 {offsets = [0, 0], sizes = [8, 32], strides = [1, 1]} : vector<8x128xf32> to vector<8x32xf32>
    %1041 = arith.negf %1040 : vector<8x32xf32>
    %1042 = math.exp %1041 : vector<8x32xf32>
    %cst_215 = arith.constant 1.000000e+00 : f32
    %1043 = vector.broadcast %cst_215 : f32 to vector<8x32xf32>
    %1044 = arith.addf %1043, %1042 : vector<8x32xf32>
    %1045 = arith.divf %1043, %1044 : vector<8x32xf32>
    %1046 = vector.extract_strided_slice %1014 {offsets = [0, 32], sizes = [8, 32], strides = [1, 1]} : vector<8x128xf32> to vector<8x32xf32>
    %1047 = arith.negf %1046 : vector<8x32xf32>
    %1048 = math.exp %1047 : vector<8x32xf32>
    %cst_216 = arith.constant 1.000000e+00 : f32
    %1049 = vector.broadcast %cst_216 : f32 to vector<8x32xf32>
    %1050 = arith.addf %1049, %1048 : vector<8x32xf32>
    %1051 = arith.divf %1049, %1050 : vector<8x32xf32>
    %1052 = vector.extract_strided_slice %1014 {offsets = [0, 64], sizes = [8, 32], strides = [1, 1]} : vector<8x128xf32> to vector<8x32xf32>
    %1053 = math.tanh %1052 : vector<8x32xf32>
    %1054 = vector.extract_strided_slice %1014 {offsets = [0, 96], sizes = [8, 32], strides = [1, 1]} : vector<8x128xf32> to vector<8x32xf32>
    %1055 = arith.negf %1054 : vector<8x32xf32>
    %1056 = math.exp %1055 : vector<8x32xf32>
    %cst_217 = arith.constant 1.000000e+00 : f32
    %1057 = vector.broadcast %cst_217 : f32 to vector<8x32xf32>
    %1058 = arith.addf %1057, %1056 : vector<8x32xf32>
    %1059 = arith.divf %1057, %1058 : vector<8x32xf32>
    %1060 = arith.mulf %1051, %996 : vector<8x32xf32>
    %1061 = arith.mulf %1045, %1053 : vector<8x32xf32>
    %1062 = arith.addf %1060, %1061 : vector<8x32xf32>
    %1063 = math.tanh %1062 : vector<8x32xf32>
    %1064 = arith.mulf %1059, %1063 : vector<8x32xf32>
    %1065 = vector.extract_strided_slice %0 {offsets = [7, 0, 0], sizes = [1, 32, 128], strides = [1, 1, 1]} : vector<8x64x128xf32> to vector<1x32x128xf32>
    %1066 = vector.shape_cast %1065 : vector<1x32x128xf32> to vector<32x128xf32>
    %cst_218 = arith.constant dense<0.000000e+00> : vector<8x128xf32>
    %1067 = tpu.matmul %1039, %1066, %cst_218 {dimension_numbers = #tpu.dot_dimension_numbers<[1], [0], [0], [1], [0, 0, 1, 1], [], []>} : vector<8x32xf32>, vector<32x128xf32>, vector<8x128xf32> -> vector<8x128xf32>
    %1068 = arith.addf %1006, %1067 : vector<8x128xf32>
    %1069 = vector.extract_strided_slice %0 {offsets = [0, 32, 0], sizes = [1, 32, 128], strides = [1, 1, 1]} : vector<8x64x128xf32> to vector<1x32x128xf32>
    %1070 = vector.shape_cast %1069 : vector<1x32x128xf32> to vector<32x128xf32>
    %cst_219 = arith.constant dense<0.000000e+00> : vector<8x128xf32>
    %1071 = tpu.matmul %1064, %1070, %cst_219 {dimension_numbers = #tpu.dot_dimension_numbers<[1], [0], [0], [1], [0, 0, 1, 1], [], []>} : vector<8x32xf32>, vector<32x128xf32>, vector<8x128xf32> -> vector<8x128xf32>
    %1072 = arith.addf %1068, %1071 : vector<8x128xf32>
    %c0_220 = arith.constant 0 : index
    %c0_221 = arith.constant 0 : index
    %1073 = vector.load %arg11[%c0_220, %c0_221] : memref<8x128xf32, #tpu.memory_space<vmem>>, vector<8x128xf32>
    tpu.vector_store %arg11[%c0_220, %c0_221], %1072 {strides = array<i32>} : memref<8x128xf32, #tpu.memory_space<vmem>>, vector<8x128xf32>,
    return
  }
}

</mosaic_0001>

<llo_original>
// kernel: forward_pallas.1
$region0: #{forward_pallas.1}
  #allocation0 [shape = 'u32[]', space=smem, size = 0x4, offset = 0x4, fixed_abs, tag = 'smem constant byte address 0x4 - core index']
  #allocation1 [shape = 'u32[144,128]{1,0:T(1,128)}', space=vmem, size = 0x12000, scoped, tag = 'internal scratch']
  #allocation2 [shape = 'f32[8,8,64]{2,1,0:T(8,128)}', space=vmem, size = 0x8000, scoped, tag = 'scratch operand']
  %s0 = inlined_call_operand.vmem [shape: f32[8,8,32], index: 0, kind: input, shape index: {}]
  %s1 = inlined_call_operand.vmem [shape: f32[32,256], index: 1, kind: input, shape index: {}]
  %s2 = inlined_call_operand.vmem [shape: f32[32,128], index: 2, kind: input, shape index: {}]
  %s3 = inlined_call_operand.vmem [shape: f32[32,128], index: 3, kind: input, shape index: {}]
  %s4 = inlined_call_operand.vmem [shape: f32[1,256], index: 4, kind: input, shape index: {}]
  %s5 = inlined_call_operand.vmem [shape: f32[64,256], index: 5, kind: input, shape index: {}]
  %s6 = inlined_call_operand.vmem [shape: f32[32,128], index: 6, kind: input, shape index: {}]
  %s7 = inlined_call_operand.vmem [shape: f32[32,128], index: 7, kind: input, shape index: {}]
  %s8 = inlined_call_operand.vmem [shape: f32[1,256], index: 8, kind: input, shape index: {}]
  %s9 = inlined_call_operand.hbm [shape: f32[8,64,128], index: 9, kind: input, shape index: {}]
  %s10 = inlined_call_operand.vmem [shape: f32[1,128], index: 10, kind: input, shape index: {}]
  %s11 = inlined_call_operand.vmem [shape: f32[8,128], index: 11, kind: output, shape index: {}]
  %s12 = sld [smem:[#allocation0]]
  $region58: #{forward_pallas.1} parent=0
    _
  %s14 = ssub.s32 1, %s12
  %s15 = scalar_select 0, %s14, %s12
  $region1: #{forward_pallas.1} parent=0
    #allocation3 [shape = 'u8[262144]{0}', space=vmem, size = 0x40000, scoped, tag = 'input window, operand 9, single buffered']
    #allocation4 [shape = 's32[1]{0}', space=sflag, size = 0x4, scoped, tag = 'scoped memory for forward_pallas.1']
    %16 = vsyncpa [#allocation4], 0
    // Predicated region
    $region2: #{forward_pallas.1} parent=1 // pred_check
      _
    $region3: #{forward_pallas.1} parent=1 // pred_check_branch
      %18 = sbr.rel (0) target = $region5
    $region4: #{forward_pallas.1} parent=1 // pred_region
      _
    $region5: #{forward_pallas.1} parent=1 // pred_fallthru
      _
    // Predicated region
    $region6: #{forward_pallas.1} parent=1 // pred_check
      _
    $region7: #{forward_pallas.1} parent=1 // pred_check_branch
      %20 = sbr.rel (0) target = $region9
    $region8: #{forward_pallas.1} parent=1 // pred_region
      _
    $region9: #{forward_pallas.1} parent=1 // pred_fallthru
      _
    // Predicated region
    $region10: #{forward_pallas.1} parent=1 // pred_check
      _
    $region11: #{forward_pallas.1} parent=1 // pred_check_branch
      %22 = sbr.rel (0) target = $region13
    $region12: #{forward_pallas.1} parent=1 // pred_region
      _
    $region13: #{forward_pallas.1} parent=1 // pred_fallthru
      _
    // Predicated region
    $region14: #{forward_pallas.1} parent=1 // pred_check
      _
    $region15: #{forward_pallas.1} parent=1 // pred_check_branch
      %24 = sbr.rel (0) target = $region17
    $region16: #{forward_pallas.1} parent=1 // pred_region
      _
    $region17: #{forward_pallas.1} parent=1 // pred_fallthru
      _
    // Predicated region
    $region18: #{forward_pallas.1} parent=1 // pred_check
      _
    $region19: #{forward_pallas.1} parent=1 // pred_check_branch
      %26 = sbr.rel (0) target = $region21
    $region20: #{forward_pallas.1} parent=1 // pred_region
      _
    $region21: #{forward_pallas.1} parent=1 // pred_fallthru
      _
    // Predicated region
    $region22: #{forward_pallas.1} parent=1 // pred_check
      _
    $region23: #{forward_pallas.1} parent=1 // pred_check_branch
      %28 = sbr.rel (0) target = $region25
    $region24: #{forward_pallas.1} parent=1 // pred_region
      _
    $region25: #{forward_pallas.1} parent=1 // pred_fallthru
      _
    // Predicated region
    $region26: #{forward_pallas.1} parent=1 // pred_check
      _
    $region27: #{forward_pallas.1} parent=1 // pred_check_branch
      %30 = sbr.rel (0) target = $region29
    $region28: #{forward_pallas.1} parent=1 // pred_region
      _
    $region29: #{forward_pallas.1} parent=1 // pred_fallthru
      _
    // Predicated region
    $region30: #{forward_pallas.1} parent=1 // pred_check
      _
    $region31: #{forward_pallas.1} parent=1 // pred_check_branch
      %32 = sbr.rel (0) target = $region33
    $region32: #{forward_pallas.1} parent=1 // pred_region
      _
    $region33: #{forward_pallas.1} parent=1 // pred_fallthru
      _
    // Predicated region
    $region34: #{forward_pallas.1} parent=1 // pred_check
      _
    $region35: #{forward_pallas.1} parent=1 // pred_check_branch
      %34 = sbr.rel (0) target = $region37
    $region36: #{forward_pallas.1} parent=1 // pred_region
      _
    $region37: #{forward_pallas.1} parent=1 // pred_fallthru
      _
    // Predicated region
    $region38: #{forward_pallas.1} parent=1 // pred_check
      _
    $region39: #{forward_pallas.1} parent=1 // pred_check_branch
      %36 = sbr.rel (0) target = $region41
    $region40: #{forward_pallas.1} parent=1 // pred_region
      %s38 = ssub.s32 8192, 8192
      %39 = vsyncadd [#allocation4], %s38
      %s40 = sshll.u32 [#allocation3], 4
      %s41 = int_to_ptr.vmem [resolvable:$true] %s40
      %46 = dma.hbm_to_vmem [thread:$0]  %s9, 8192, %s41, [#allocation4], 128, 128, 8
    $region41: #{forward_pallas.1} parent=1 // pred_fallthru
      _
    // Predicated region
    $region42: #{forward_pallas.1} parent=1 // pred_check
      _
    $region43: #{forward_pallas.1} parent=1 // pred_check_branch
      %48 = sbr.rel (0) target = $region45
    $region44: #{forward_pallas.1} parent=1 // pred_region
      _
    $region45: #{forward_pallas.1} parent=1 // pred_fallthru
      _
    // Predicated region
    $region46: #{forward_pallas.1} parent=1 // pred_check
      _
    $region47: #{forward_pallas.1} parent=1 // pred_check_branch
      %50 = sbr.rel (0) target = $region49
    $region48: #{forward_pallas.1} parent=1 // pred_region
      %51 = dma.done [#allocation4], 8192
    $region49: #{forward_pallas.1} parent=1 // pred_fallthru
      _
    %v52 = vld [vmem:[#allocation3] sm:$0xff]
    %v53 = vld [vmem:[#allocation3 + $0x8] sm:$0xff]
    %v54 = vld [vmem:[#allocation3 + $0x10] sm:$0xff]
    %v55 = vld [vmem:[#allocation3 + $0x18] sm:$0xff]
    %v56 = vld [vmem:[#allocation3 + $0x20] sm:$0xff]
    %v57 = vld [vmem:[#allocation3 + $0x28] sm:$0xff]
    %v58 = vld [vmem:[#allocation3 + $0x30] sm:$0xff]
    %v59 = vld [vmem:[#allocation3 + $0x38] sm:$0xff]
    %v60 = vld [vmem:[#allocation3 + $0x40] sm:$0xff]
    %v61 = vld [vmem:[#allocation3 + $0x48] sm:$0xff]
    %v62 = vld [vmem:[#allocation3 + $0x50] sm:$0xff]
    %v63 = vld [vmem:[#allocation3 + $0x58] sm:$0xff]
    %v64 = vld [vmem:[#allocation3 + $0x60] sm:$0xff]
    %v65 = vld [vmem:[#allocation3 + $0x68] sm:$0xff]
    %v66 = vld [vmem:[#allocation3 + $0x70] sm:$0xff]
    %v67 = vld [vmem:[#allocation3 + $0x78] sm:$0xff]
    %v68 = vld [vmem:[#allocation3 + $0x80] sm:$0xff]
    %v69 = vld [vmem:[#allocation3 + $0x88] sm:$0xff]
    %v70 = vld [vmem:[#allocation3 + $0x90] sm:$0xff]
    %v71 = vld [vmem:[#allocation3 + $0x98] sm:$0xff]
    %v72 = vld [vmem:[#allocation3 + $0xa0] sm:$0xff]
    %v73 = vld [vmem:[#allocation3 + $0xa8] sm:$0xff]
    %v74 = vld [vmem:[#allocation3 + $0xb0] sm:$0xff]
    %v75 = vld [vmem:[#allocation3 + $0xb8] sm:$0xff]
    %v76 = vld [vmem:[#allocation3 + $0xc0] sm:$0xff]
    %v77 = vld [vmem:[#allocation3 + $0xc8] sm:$0xff]
    %v78 = vld [vmem:[#allocation3 + $0xd0] sm:$0xff]
    %v79 = vld [vmem:[#allocation3 + $0xd8] sm:$0xff]
    %v80 = vld [vmem:[#allocation3 + $0xe0] sm:$0xff]
    %v81 = vld [vmem:[#allocation3 + $0xe8] sm:$0xff]
    %v82 = vld [vmem:[#allocation3 + $0xf0] sm:$0xff]
    %v83 = vld [vmem:[#allocation3 + $0xf8] sm:$0xff]
    %v84 = vld [vmem:[#allocation3 + $0x100] sm:$0xff]
    %v85 = vld [vmem:[#allocation3 + $0x108] sm:$0xff]
    %v86 = vld [vmem:[#allocation3 + $0x110] sm:$0xff]
    %v87 = vld [vmem:[#allocation3 + $0x118] sm:$0xff]
    %v88 = vld [vmem:[#allocation3 + $0x120] sm:$0xff]
    %v89 = vld [vmem:[#allocation3 + $0x128] sm:$0xff]
    %v90 = vld [vmem:[#allocation3 + $0x130] sm:$0xff]
    %v91 = vld [vmem:[#allocation3 + $0x138] sm:$0xff]
    %v92 = vld [vmem:[#allocation3 + $0x140] sm:$0xff]
    %v93 = vld [vmem:[#allocation3 + $0x148] sm:$0xff]
    %v94 = vld [vmem:[#allocation3 + $0x150] sm:$0xff]
    %v95 = vld [vmem:[#allocation3 + $0x158] sm:$0xff]
    %v96 = vld [vmem:[#allocation3 + $0x160] sm:$0xff]
    %v97 = vld [vmem:[#allocation3 + $0x168] sm:$0xff]
    %v98 = vld [vmem:[#allocation3 + $0x170] sm:$0xff]
    %v99 = vld [vmem:[#allocation3 + $0x178] sm:$0xff]
    %v100 = vld [vmem:[#allocation3 + $0x180] sm:$0xff]
    %v101 = vld [vmem:[#allocation3 + $0x188] sm:$0xff]
    %v102 = vld [vmem:[#allocation3 + $0x190] sm:$0xff]
    %v103 = vld [vmem:[#allocation3 + $0x198] sm:$0xff]
    %v104 = vld [vmem:[#allocation3 + $0x1a0] sm:$0xff]
    %v105 = vld [vmem:[#allocation3 + $0x1a8] sm:$0xff]
    %v106 = vld [vmem:[#allocation3 + $0x1b0] sm:$0xff]
    %v107 = vld [vmem:[#allocation3 + $0x1b8] sm:$0xff]
    %v108 = vld [vmem:[#allocation3 + $0x1c0] sm:$0xff]
    %v109 = vld [vmem:[#allocation3 + $0x1c8] sm:$0xff]
    %v110 = vld [vmem:[#allocation3 + $0x1d0] sm:$0xff]
    %v111 = vld [vmem:[#allocation3 + $0x1d8] sm:$0xff]
    %v112 = vld [vmem:[#allocation3 + $0x1e0] sm:$0xff]
    %v113 = vld [vmem:[#allocation3 + $0x1e8] sm:$0xff]
    %v114 = vld [vmem:[#allocation3 + $0x1f0] sm:$0xff]
    %v115 = vld [vmem:[#allocation3 + $0x1f8] sm:$0xff]
    %v116 = vld [vmem:[%s10] sm:$0x1]
    %v118 = vlaneseq
    %v119 = vshrl.u32 %v118, 7
    %v120 = vsub.s32 0, %v119
    %v121 = vrot.slane %v116, %v120
    %v123 = vadd.f32 %v121, 0.0
    %v124 = vld [vmem:[%s0] sm:$0xff]
    %v125 = vld [vmem:[%s0 + $0x8] sm:$0xff]
    %v126 = vld [vmem:[%s0 + $0x10] sm:$0xff]
    %v127 = vld [vmem:[%s0 + $0x18] sm:$0xff]
    %v128 = vld [vmem:[%s0 + $0x20] sm:$0xff]
    %v129 = vld [vmem:[%s0 + $0x28] sm:$0xff]
    %v130 = vld [vmem:[%s0 + $0x30] sm:$0xff]
    %v131 = vld [vmem:[%s0 + $0x38] sm:$0xff]
    %v132 = vld [vmem:[%s1] sm:$0xff]
    %v133 = vld [vmem:[%s1 + $0x8] sm:$0xff]
    %v134 = vld [vmem:[%s1 + $0x10] sm:$0xff]
    %v135 = vld [vmem:[%s1 + $0x18] sm:$0xff]
    %v136 = vld [vmem:[%s1 + $0x20] sm:$0xff]
    %v137 = vld [vmem:[%s1 + $0x28] sm:$0xff]
    %v138 = vld [vmem:[%s1 + $0x30] sm:$0xff]
    %v139 = vld [vmem:[%s1 + $0x38] sm:$0xff]
    %v140 = vld [vmem:[%s4] sm:$0x3]
    %v142 = vlaneseq
    %v143 = vshrl.u32 %v142, 7
    %v144 = vsub.s32 0, %v143
    %v145 = vrot.slane %v140, %v144
    %v146 = vlaneseq
    %v147 = vshrl.u32 %v146, 7
    %v148 = vsub.s32 1, %v147
    %v149 = vrot.slane %v140, %v148
    %vm152 = vcmask 261120
    %v154 = vsel %vm152, %v124, 0
    %v157 = vsel %vm152, %v125, 0
    %v160 = vsel %vm152, %v126, 0
    %v163 = vsel %vm152, %v127, 0
    %v166 = vsel %vm152, %v128, 0
    %v169 = vsel %vm152, %v129, 0
    %v172 = vsel %vm152, %v130, 0
    %v175 = vsel %vm152, %v131, 0
    %177 = vmatprep.subr.mxu0 %v133
    %178 = vmatpush1.msra.mxu0 %v132
    %179 = vmatprep.subr.mxu0 %v135
    %180 = vmatpush1.msra.mxu0 %v134
    %181 = vmatprep.subr.mxu0 %v137
    %182 = vmatpush1.msra.mxu0 %v136
    %183 = vmatprep.subr.mxu0 %v139
    %184 = vmatpush1.msra.mxu0 %v138
    %185 = vmatprep.subr.mxu0 0.0
    %186 = vmatpush1.msra.mxu0 0.0
    %187 = vmatprep.subr.mxu0 0.0
    %188 = vmatpush1.msra.mxu0 0.0
    %189 = vmatprep.subr.mxu0 0.0
    %190 = vmatpush1.msra.mxu0 0.0
    %191 = vmatprep.subr.mxu0 0.0
    %192 = vmatpush1.msra.mxu0 0.0
    %193 = vmatprep.subr.mxu0 0.0
    %194 = vmatpush1.msra.mxu0 0.0
    %195 = vmatprep.subr.mxu0 0.0
    %196 = vmatpush1.msra.mxu0 0.0
    %197 = vmatprep.subr.mxu0 0.0
    %198 = vmatpush1.msra.mxu0 0.0
    %199 = vmatprep.subr.mxu0 0.0
    %200 = vmatpush1.msra.mxu0 0.0
    %201 = vmatprep.subr.mxu0 0.0
    %202 = vmatpush1.msra.mxu0 0.0
    %203 = vmatprep.subr.mxu0 0.0
    %204 = vmatpush1.msra.mxu0 0.0
    %205 = vmatprep.subr.mxu0 0.0
    %206 = vmatpush1.msra.mxu0 0.0
    %207 = vmatprep.subr.mxu0 0.0
    %208 = vmatpush1.msra.mxu0 0.0
    %209 = vmatprep.subr.mxu0 0.0
    %210 = vmatpush1.msra.mxu0 0.0
    %211 = vmatprep.subr.mxu0 0.0
    %212 = vmatpush1.msra.mxu0 0.0
    %213 = vmatprep.subr.mxu0 0.0
    %214 = vmatpush1.msra.mxu0 0.0
    %215 = vmatprep.subr.mxu0 0.0
    %216 = vmatpush1.msra.mxu0 0.0
    %217 = vmatprep.subr.mxu0 0.0
    %218 = vmatpush1.msra.mxu0 0.0
    %219 = vmatprep.subr.mxu0 0.0
    %220 = vmatpush1.msra.mxu0 0.0
    %221 = vmatprep.subr.mxu0 0.0
    %222 = vmatpush1.msra.mxu0 0.0
    %223 = vmatprep.subr.mxu0 0.0
    %224 = vmatpush1.msra.mxu0 0.0
    %225 = vmatprep.subr.mxu0 0.0
    %226 = vmatpush1.msra.mxu0 0.0
    %227 = vmatprep.subr.mxu0 0.0
    %228 = vmatpush1.msra.mxu0 0.0
    %229 = vmatprep.subr.mxu0 0.0
    %230 = vmatpush1.msra.mxu0 0.0
    %231 = vmatprep.subr.mxu0 0.0
    %232 = vmatpush1.msra.mxu0 0.0
    %233 = vmatprep.subr.mxu0 0.0
    %234 = vmatpush1.msra.mxu0 0.0
    %235 = vmatprep.subr.mxu0 0.0
    %236 = vmatpush1.msra.mxu0 0.0
    %237 = vmatprep.subr.mxu0 0.0
    %238 = vmatpush1.msra.mxu0 0.0
    %239 = vmatprep.subr.mxu0 0.0
    %240 = vmatpush1.msra.mxu0 0.0
    %241 = vmatprep.mubr.f32.mxu0 0.0
    %242 = vmatmul.mubr.f32.gmra.mrb[0].mxu0 %v154
    %v243 = vpop.f32.mrb[0].mxu0
    %v244 = vadd.f32 %v145, %v243
    %v245 = vpop.f32.mrb[0].mxu0
    %v246 = vadd.f32 %v149, %v245
    %247 = vmatprep.mubr.f32.mxu0 0.0
    %248 = vmatmul.mubr.f32.gmra.mrb[0].mxu0 %v157
    %v249 = vpop.f32.mrb[0].mxu0
    %v250 = vadd.f32 %v145, %v249
    %v251 = vpop.f32.mrb[0].mxu0
    %v252 = vadd.f32 %v149, %v251
    %253 = vmatprep.mubr.f32.mxu0 0.0
    %254 = vmatmul.mubr.f32.gmra.mrb[0].mxu0 %v160
    %v255 = vpop.f32.mrb[0].mxu0
    %v256 = vadd.f32 %v145, %v255
    %v257 = vpop.f32.mrb[0].mxu0
    %v258 = vadd.f32 %v149, %v257
    %259 = vmatprep.mubr.f32.mxu0 0.0
    %260 = vmatmul.mubr.f32.gmra.mrb[0].mxu0 %v163
    %v261 = vpop.f32.mrb[0].mxu0
    %v262 = vadd.f32 %v145, %v261
    %v263 = vpop.f32.mrb[0].mxu0
    %v264 = vadd.f32 %v149, %v263
    %265 = vmatprep.mubr.f32.mxu0 0.0
    %266 = vmatmul.mubr.f32.gmra.mrb[0].mxu0 %v166
    %v267 = vpop.f32.mrb[0].mxu0
    %v268 = vadd.f32 %v145, %v267
    %v269 = vpop.f32.mrb[0].mxu0
    %v270 = vadd.f32 %v149, %v269
    %271 = vmatprep.mubr.f32.mxu0 0.0
    %272 = vmatmul.mubr.f32.gmra.mrb[0].mxu0 %v169
    %v273 = vpop.f32.mrb[0].mxu0
    %v274 = vadd.f32 %v145, %v273
    %v275 = vpop.f32.mrb[0].mxu0
    %v276 = vadd.f32 %v149, %v275
    %277 = vmatprep.mubr.f32.mxu0 0.0
    %278 = vmatmul.mubr.f32.gmra.mrb[0].mxu0 %v172
    %v279 = vpop.f32.mrb[0].mxu0
    %v280 = vadd.f32 %v145, %v279
    %v281 = vpop.f32.mrb[0].mxu0
    %v282 = vadd.f32 %v149, %v281
    %283 = vmatprep.mubr.f32.mxu0 0.0
    %284 = vmatmul.mubr.f32.gmra.mrb[0].mxu0 %v175
    %v285 = vpop.f32.mrb[0].mxu0
    %v286 = vadd.f32 %v145, %v285
    %v287 = vpop.f32.mrb[0].mxu0
    %v288 = vadd.f32 %v149, %v287
    %289 = vdwg.mxu0
    %v290 = vld [vmem:[%s2] sm:$0xff]
    %v291 = vld [vmem:[%s2 + $0x8] sm:$0xff]
    %v292 = vld [vmem:[%s2 + $0x10] sm:$0xff]
    %v293 = vld [vmem:[%s2 + $0x18] sm:$0xff]
    %v294 = vld [vmem:[%s3] sm:$0xff]
    %v295 = vld [vmem:[%s3 + $0x8] sm:$0xff]
    %v296 = vld [vmem:[%s3 + $0x10] sm:$0xff]
    %v297 = vld [vmem:[%s3 + $0x18] sm:$0xff]
    %v299 = vsel %vm152, 0.0, 0
    %301 = vmatprep.subr.mxu0 0.0
    %302 = vmatpush1.msra.mxu0 %v290
    %303 = vmatprep.subr.mxu0 0.0
    %304 = vmatpush1.msra.mxu0 %v291
    %305 = vmatprep.subr.mxu0 0.0
    %306 = vmatpush1.msra.mxu0 %v292
    %307 = vmatprep.subr.mxu0 0.0
    %308 = vmatpush1.msra.mxu0 %v293
    %309 = vmatprep.subr.mxu0 0.0
    %310 = vmatpush1.msra.mxu0 0.0
    %311 = vmatprep.subr.mxu0 0.0
    %312 = vmatpush1.msra.mxu0 0.0
    %313 = vmatprep.subr.mxu0 0.0
    %314 = vmatpush1.msra.mxu0 0.0
    %315 = vmatprep.subr.mxu0 0.0
    %316 = vmatpush1.msra.mxu0 0.0
    %317 = vmatprep.subr.mxu0 0.0
    %318 = vmatpush1.msra.mxu0 0.0
    %319 = vmatprep.subr.mxu0 0.0
    %320 = vmatpush1.msra.mxu0 0.0
    %321 = vmatprep.subr.mxu0 0.0
    %322 = vmatpush1.msra.mxu0 0.0
    %323 = vmatprep.subr.mxu0 0.0
    %324 = vmatpush1.msra.mxu0 0.0
    %325 = vmatprep.subr.mxu0 0.0
    %326 = vmatpush1.msra.mxu0 0.0
    %327 = vmatprep.subr.mxu0 0.0
    %328 = vmatpush1.msra.mxu0 0.0
    %329 = vmatprep.subr.mxu0 0.0
    %330 = vmatpush1.msra.mxu0 0.0
    %331 = vmatprep.subr.mxu0 0.0
    %332 = vmatpush1.msra.mxu0 0.0
    %333 = vmatprep.subr.mxu0 0.0
    %334 = vmatpush1.msra.mxu0 0.0
    %335 = vmatprep.subr.mxu0 0.0
    %336 = vmatpush1.msra.mxu0 0.0
    %337 = vmatprep.subr.mxu0 0.0
    %338 = vmatpush1.msra.mxu0 0.0
    %339 = vmatprep.subr.mxu0 0.0
    %340 = vmatpush1.msra.mxu0 0.0
    %341 = vmatprep.subr.mxu0 0.0
    %342 = vmatpush1.msra.mxu0 0.0
    %343 = vmatprep.subr.mxu0 0.0
    %344 = vmatpush1.msra.mxu0 0.0
    %345 = vmatprep.subr.mxu0 0.0
    %346 = vmatpush1.msra.mxu0 0.0
    %347 = vmatprep.subr.mxu0 0.0
    %348 = vmatpush1.msra.mxu0 0.0
    %349 = vmatprep.subr.mxu0 0.0
    %350 = vmatpush1.msra.mxu0 0.0
    %351 = vmatprep.subr.mxu0 0.0
    %352 = vmatpush1.msra.mxu0 0.0
    %353 = vmatprep.subr.mxu0 0.0
    %354 = vmatpush1.msra.mxu0 0.0
    %355 = vmatprep.subr.mxu0 0.0
    %356 = vmatpush1.msra.mxu0 0.0
    %357 = vmatprep.subr.mxu0 0.0
    %358 = vmatpush1.msra.mxu0 0.0
    %359 = vmatprep.subr.mxu0 0.0
    %360 = vmatpush1.msra.mxu0 0.0
    %361 = vmatprep.subr.mxu0 0.0
    %362 = vmatpush1.msra.mxu0 0.0
    %363 = vmatprep.subr.mxu0 0.0
    %364 = vmatpush1.msra.mxu0 0.0
    %365 = vmatprep.mubr.f32.mxu0 0.0
    %366 = vmatmul.mubr.f32.gmra.mrb[0].mxu0 %v299
    %v367 = vpop.f32.mrb[0].mxu0
    %v368 = vadd.f32 0.0, %v367
    %v369 = vpop.f32.mrb[0].mxu0
    %370 = vdwg.mxu0
    %v371 = vadd.f32 %v244, %v368
    %372 = vmatprep.subr.mxu0 0.0
    %373 = vmatpush1.msra.mxu0 %v294
    %374 = vmatprep.subr.mxu0 0.0
    %375 = vmatpush1.msra.mxu0 %v295
    %376 = vmatprep.subr.mxu0 0.0
    %377 = vmatpush1.msra.mxu0 %v296
    %378 = vmatprep.subr.mxu0 0.0
    %379 = vmatpush1.msra.mxu0 %v297
    %380 = vmatprep.subr.mxu0 0.0
    %381 = vmatpush1.msra.mxu0 0.0
    %382 = vmatprep.subr.mxu0 0.0
    %383 = vmatpush1.msra.mxu0 0.0
    %384 = vmatprep.subr.mxu0 0.0
    %385 = vmatpush1.msra.mxu0 0.0
    %386 = vmatprep.subr.mxu0 0.0
    %387 = vmatpush1.msra.mxu0 0.0
    %388 = vmatprep.subr.mxu0 0.0
    %389 = vmatpush1.msra.mxu0 0.0
    %390 = vmatprep.subr.mxu0 0.0
    %391 = vmatpush1.msra.mxu0 0.0
    %392 = vmatprep.subr.mxu0 0.0
    %393 = vmatpush1.msra.mxu0 0.0
    %394 = vmatprep.subr.mxu0 0.0
    %395 = vmatpush1.msra.mxu0 0.0
    %396 = vmatprep.subr.mxu0 0.0
    %397 = vmatpush1.msra.mxu0 0.0
    %398 = vmatprep.subr.mxu0 0.0
    %399 = vmatpush1.msra.mxu0 0.0
    %400 = vmatprep.subr.mxu0 0.0
    %401 = vmatpush1.msra.mxu0 0.0
    %402 = vmatprep.subr.mxu0 0.0
    %403 = vmatpush1.msra.mxu0 0.0
    %404 = vmatprep.subr.mxu0 0.0
    %405 = vmatpush1.msra.mxu0 0.0
    %406 = vmatprep.subr.mxu0 0.0
    %407 = vmatpush1.msra.mxu0 0.0
    %408 = vmatprep.subr.mxu0 0.0
    %409 = vmatpush1.msra.mxu0 0.0
    %410 = vmatprep.subr.mxu0 0.0
    %411 = vmatpush1.msra.mxu0 0.0
    %412 = vmatprep.subr.mxu0 0.0
    %413 = vmatpush1.msra.mxu0 0.0
    %414 = vmatprep.subr.mxu0 0.0
    %415 = vmatpush1.msra.mxu0 0.0
    %416 = vmatprep.subr.mxu0 0.0
    %417 = vmatpush1.msra.mxu0 0.0
    %418 = vmatprep.subr.mxu0 0.0
    %419 = vmatpush1.msra.mxu0 0.0
    %420 = vmatprep.subr.mxu0 0.0
    %421 = vmatpush1.msra.mxu0 0.0
    %422 = vmatprep.subr.mxu0 0.0
    %423 = vmatpush1.msra.mxu0 0.0
    %424 = vmatprep.subr.mxu0 0.0
    %425 = vmatpush1.msra.mxu0 0.0
    %426 = vmatprep.subr.mxu0 0.0
    %427 = vmatpush1.msra.mxu0 0.0
    %428 = vmatprep.subr.mxu0 0.0
    %429 = vmatpush1.msra.mxu0 0.0
    %430 = vmatprep.subr.mxu0 0.0
    %431 = vmatpush1.msra.mxu0 0.0
    %432 = vmatprep.subr.mxu0 0.0
    %433 = vmatpush1.msra.mxu0 0.0
    %434 = vmatprep.subr.mxu0 0.0
    %435 = vmatpush1.msra.mxu0 0.0
    %436 = vmatprep.mubr.f32.mxu0 0.0
    %437 = vmatmul.mubr.f32.gmra.mrb[0].mxu0 %v299
    %v438 = vpop.f32.mrb[0].mxu0
    %v439 = vadd.f32 0.0, %v438
    %v440 = vpop.f32.mrb[0].mxu0
    %441 = vdwg.mxu0
    %v442 = vadd.f32 %v288, %v439
    %v443 = vxor.u32 %v371, 2147483648
    %v444 = vmul.f32 %v443, 1.442695
    %v445 = vpow.pop %v444
    %v446 = vadd.f32 %v445, 1.0
    %v447 = vrcp.pop %v446
    %v448 = vmul.f32 1.0, %v447
    %v449 = vtanh.pop %v371
    %v450 = vmul.f32 %v448, 0.0
    %452 = vrot.lane.b32.xlu0 %v449, 64
    %v453 = vpop.permute.xlu0 %452
    %v455 = vmul.f32 %v448, %v453
    %457 = vrot.lane.b32.xlu0 %v455, 32
    %v458 = vpop.permute.xlu0 %457
    %v460 = vadd.f32 %v450, %v458
    %v461 = vtanh.pop %v460
    %463 = vrot.lane.b32.xlu0 %v461, 64
    %v464 = vpop.permute.xlu0 %463
    %v466 = vmul.f32 %v448, %v464
    %v467 = vxor.u32 %v442, 2147483648
    %v468 = vmul.f32 %v467, 1.442695
    %v469 = vpow.pop %v468
    %v470 = vadd.f32 %v469, 1.0
    %v471 = vrcp.pop %v470
    %v472 = vmul.f32 1.0, %v471
    %v473 = vtanh.pop %v442
    %v474 = vmul.f32 %v472, 0.0
    %476 = vrot.lane.b32.xlu0 %v473, 64
    %v477 = vpop.permute.xlu0 %476
    %v479 = vmul.f32 %v472, %v477
    %481 = vrot.lane.b32.xlu0 %v479, 32
    %v482 = vpop.permute.xlu0 %481
    %v484 = vadd.f32 %v474, %v482
    %v485 = vtanh.pop %v484
    %487 = vrot.lane.b32.xlu0 %v485, 64
    %v488 = vpop.permute.xlu0 %487
    %v490 = vmul.f32 %v472, %v488
    %492 = vrot.lane.b32.xlu0 %v466, 32
    %v493 = vpop.permute.xlu0 %492
    %495 = vst.msk [vmem:[#allocation2] sm:$0xff] %vm152, %v493
    %497 = vrot.lane.b32.xlu0 %v490, 64
    %v498 = vpop.permute.xlu0 %497
    %s500 = scalar_lea.vmem [#allocation2], 56
    %vm501 = vcmask 523520
    %502 = vst.msk [vmem:[%s500] sm:$0xff] %vm501, %v498
    %v503 = vsel %vm152, %v493, 0
    %505 = vmatprep.subr.mxu0 0.0
    %506 = vmatpush1.msra.mxu0 %v290
    %507 = vmatprep.subr.mxu0 0.0
    %508 = vmatpush1.msra.mxu0 %v291
    %509 = vmatprep.subr.mxu0 0.0
    %510 = vmatpush1.msra.mxu0 %v292
    %511 = vmatprep.subr.mxu0 0.0
    %512 = vmatpush1.msra.mxu0 %v293
    %513 = vmatprep.subr.mxu0 0.0
    %514 = vmatpush1.msra.mxu0 0.0
    %515 = vmatprep.subr.mxu0 0.0
    %516 = vmatpush1.msra.mxu0 0.0
    %517 = vmatprep.subr.mxu0 0.0
    %518 = vmatpush1.msra.mxu0 0.0
    %519 = vmatprep.subr.mxu0 0.0
    %520 = vmatpush1.msra.mxu0 0.0
    %521 = vmatprep.subr.mxu0 0.0
    %522 = vmatpush1.msra.mxu0 0.0
    %523 = vmatprep.subr.mxu0 0.0
    %524 = vmatpush1.msra.mxu0 0.0
    %525 = vmatprep.subr.mxu0 0.0
    %526 = vmatpush1.msra.mxu0 0.0
    %527 = vmatprep.subr.mxu0 0.0
    %528 = vmatpush1.msra.mxu0 0.0
    %529 = vmatprep.subr.mxu0 0.0
    %530 = vmatpush1.msra.mxu0 0.0
    %531 = vmatprep.subr.mxu0 0.0
    %532 = vmatpush1.msra.mxu0 0.0
    %533 = vmatprep.subr.mxu0 0.0
    %534 = vmatpush1.msra.mxu0 0.0
    %535 = vmatprep.subr.mxu0 0.0
    %536 = vmatpush1.msra.mxu0 0.0
    %537 = vmatprep.subr.mxu0 0.0
    %538 = vmatpush1.msra.mxu0 0.0
    %539 = vmatprep.subr.mxu0 0.0
    %540 = vmatpush1.msra.mxu0 0.0
    %541 = vmatprep.subr.mxu0 0.0
    %542 = vmatpush1.msra.mxu0 0.0
    %543 = vmatprep.subr.mxu0 0.0
    %544 = vmatpush1.msra.mxu0 0.0
    %545 = vmatprep.subr.mxu0 0.0
    %546 = vmatpush1.msra.mxu0 0.0
    %547 = vmatprep.subr.mxu0 0.0
    %548 = vmatpush1.msra.mxu0 0.0
    %549 = vmatprep.subr.mxu0 0.0
    %550 = vmatpush1.msra.mxu0 0.0
    %551 = vmatprep.subr.mxu0 0.0
    %552 = vmatpush1.msra.mxu0 0.0
    %553 = vmatprep.subr.mxu0 0.0
    %554 = vmatpush1.msra.mxu0 0.0
    %555 = vmatprep.subr.mxu0 0.0
    %556 = vmatpush1.msra.mxu0 0.0
    %557 = vmatprep.subr.mxu0 0.0
    %558 = vmatpush1.msra.mxu0 0.0
    %559 = vmatprep.subr.mxu0 0.0
    %560 = vmatpush1.msra.mxu0 0.0
    %561 = vmatprep.subr.mxu0 0.0
    %562 = vmatpush1.msra.mxu0 0.0
    %563 = vmatprep.subr.mxu0 0.0
    %564 = vmatpush1.msra.mxu0 0.0
    %565 = vmatprep.subr.mxu0 0.0
    %566 = vmatpush1.msra.mxu0 0.0
    %567 = vmatprep.subr.mxu0 0.0
    %568 = vmatpush1.msra.mxu0 0.0
    %569 = vmatprep.mubr.f32.mxu0 0.0
    %570 = vmatmul.mubr.f32.gmra.mrb[0].mxu0 %v503
    %v571 = vpop.f32.mrb[0].mxu0
    %v572 = vadd.f32 0.0, %v571
    %v573 = vpop.f32.mrb[0].mxu0
    %574 = vdwg.mxu0
    %v575 = vadd.f32 %v250, %v572
    %576 = vrot.lane.b32.xlu0 %v490, 32
    %v577 = vpop.permute.xlu0 %576
    %v578 = vsel %vm152, %v577, 0
    %580 = vmatprep.subr.mxu0 0.0
    %581 = vmatpush1.msra.mxu0 %v294
    %582 = vmatprep.subr.mxu0 0.0
    %583 = vmatpush1.msra.mxu0 %v295
    %584 = vmatprep.subr.mxu0 0.0
    %585 = vmatpush1.msra.mxu0 %v296
    %586 = vmatprep.subr.mxu0 0.0
    %587 = vmatpush1.msra.mxu0 %v297
    %588 = vmatprep.subr.mxu0 0.0
    %589 = vmatpush1.msra.mxu0 0.0
    %590 = vmatprep.subr.mxu0 0.0
    %591 = vmatpush1.msra.mxu0 0.0
    %592 = vmatprep.subr.mxu0 0.0
    %593 = vmatpush1.msra.mxu0 0.0
    %594 = vmatprep.subr.mxu0 0.0
    %595 = vmatpush1.msra.mxu0 0.0
    %596 = vmatprep.subr.mxu0 0.0
    %597 = vmatpush1.msra.mxu0 0.0
    %598 = vmatprep.subr.mxu0 0.0
    %599 = vmatpush1.msra.mxu0 0.0
    %600 = vmatprep.subr.mxu0 0.0
    %601 = vmatpush1.msra.mxu0 0.0
    %602 = vmatprep.subr.mxu0 0.0
    %603 = vmatpush1.msra.mxu0 0.0
    %604 = vmatprep.subr.mxu0 0.0
    %605 = vmatpush1.msra.mxu0 0.0
    %606 = vmatprep.subr.mxu0 0.0
    %607 = vmatpush1.msra.mxu0 0.0
    %608 = vmatprep.subr.mxu0 0.0
    %609 = vmatpush1.msra.mxu0 0.0
    %610 = vmatprep.subr.mxu0 0.0
    %611 = vmatpush1.msra.mxu0 0.0
    %612 = vmatprep.subr.mxu0 0.0
    %613 = vmatpush1.msra.mxu0 0.0
    %614 = vmatprep.subr.mxu0 0.0
    %615 = vmatpush1.msra.mxu0 0.0
    %616 = vmatprep.subr.mxu0 0.0
    %617 = vmatpush1.msra.mxu0 0.0
    %618 = vmatprep.subr.mxu0 0.0
    %619 = vmatpush1.msra.mxu0 0.0
    %620 = vmatprep.subr.mxu0 0.0
    %621 = vmatpush1.msra.mxu0 0.0
    %622 = vmatprep.subr.mxu0 0.0
    %623 = vmatpush1.msra.mxu0 0.0
    %624 = vmatprep.subr.mxu0 0.0
    %625 = vmatpush1.msra.mxu0 0.0
    %626 = vmatprep.subr.mxu0 0.0
    %627 = vmatpush1.msra.mxu0 0.0
    %628 = vmatprep.subr.mxu0 0.0
    %629 = vmatpush1.msra.mxu0 0.0
    %630 = vmatprep.subr.mxu0 0.0
    %631 = vmatpush1.msra.mxu0 0.0
    %632 = vmatprep.subr.mxu0 0.0
    %633 = vmatpush1.msra.mxu0 0.0
    %634 = vmatprep.subr.mxu0 0.0
    %635 = vmatpush1.msra.mxu0 0.0
    %636 = vmatprep.subr.mxu0 0.0
    %637 = vmatpush1.msra.mxu0 0.0
    %638 = vmatprep.subr.mxu0 0.0
    %639 = vmatpush1.msra.mxu0 0.0
    %640 = vmatprep.subr.mxu0 0.0
    %641 = vmatpush1.msra.mxu0 0.0
    %642 = vmatprep.subr.mxu0 0.0
    %643 = vmatpush1.msra.mxu0 0.0
    %644 = vmatprep.mubr.f32.mxu0 0.0
    %645 = vmatmul.mubr.f32.gmra.mrb[0].mxu0 %v578
    %v646 = vpop.f32.mrb[0].mxu0
    %v647 = vadd.f32 0.0, %v646
    %v648 = vpop.f32.mrb[0].mxu0
    %649 = vdwg.mxu0
    %v650 = vadd.f32 %v282, %v647
    %v651 = vxor.u32 %v575, 2147483648
    %v652 = vmul.f32 %v651, 1.442695
    %v653 = vpow.pop %v652
    %v654 = vadd.f32 %v653, 1.0
    %v655 = vrcp.pop %v654
    %v656 = vmul.f32 1.0, %v655
    %v657 = vtanh.pop %v575
    %v658 = vmul.f32 %v656, %v460
    %660 = vrot.lane.b32.xlu0 %v657, 64
    %v661 = vpop.permute.xlu0 %660
    %v663 = vmul.f32 %v656, %v661
    %665 = vrot.lane.b32.xlu0 %v663, 32
    %v666 = vpop.permute.xlu0 %665
    %v668 = vadd.f32 %v658, %v666
    %v669 = vtanh.pop %v668
    %671 = vrot.lane.b32.xlu0 %v669, 64
    %v672 = vpop.permute.xlu0 %671
    %v674 = vmul.f32 %v656, %v672
    %v675 = vxor.u32 %v650, 2147483648
    %v676 = vmul.f32 %v675, 1.442695
    %v677 = vpow.pop %v676
    %v678 = vadd.f32 %v677, 1.0
    %v679 = vrcp.pop %v678
    %v680 = vmul.f32 1.0, %v679
    %v681 = vtanh.pop %v650
    %v682 = vmul.f32 %v680, %v484
    %684 = vrot.lane.b32.xlu0 %v681, 64
    %v685 = vpop.permute.xlu0 %684
    %v687 = vmul.f32 %v680, %v685
    %689 = vrot.lane.b32.xlu0 %v687, 32
    %v690 = vpop.permute.xlu0 %689
    %v692 = vadd.f32 %v682, %v690
    %v693 = vtanh.pop %v692
    %695 = vrot.lane.b32.xlu0 %v693, 64
    %v696 = vpop.permute.xlu0 %695
    %v698 = vmul.f32 %v680, %v696
    %700 = vrot.lane.b32.xlu0 %v674, 32
    %v701 = vpop.permute.xlu0 %700
    %s703 = scalar_lea.vmem [#allocation2], 8
    %704 = vst.msk [vmem:[%s703] sm:$0xff] %vm152, %v701
    %706 = vrot.lane.b32.xlu0 %v698, 64
    %v707 = vpop.permute.xlu0 %706
    %s709 = scalar_lea.vmem [#allocation2], 48
    %710 = vst.msk [vmem:[%s709] sm:$0xff] %vm501, %v707
    %v711 = vsel %vm152, %v701, 0
    %713 = vmatprep.subr.mxu0 0.0
    %714 = vmatpush1.msra.mxu0 %v290
    %715 = vmatprep.subr.mxu0 0.0
    %716 = vmatpush1.msra.mxu0 %v291
    %717 = vmatprep.subr.mxu0 0.0
    %718 = vmatpush1.msra.mxu0 %v292
    %719 = vmatprep.subr.mxu0 0.0
    %720 = vmatpush1.msra.mxu0 %v293
    %721 = vmatprep.subr.mxu0 0.0
    %722 = vmatpush1.msra.mxu0 0.0
    %723 = vmatprep.subr.mxu0 0.0
    %724 = vmatpush1.msra.mxu0 0.0
    %725 = vmatprep.subr.mxu0 0.0
    %726 = vmatpush1.msra.mxu0 0.0
    %727 = vmatprep.subr.mxu0 0.0
    %728 = vmatpush1.msra.mxu0 0.0
    %729 = vmatprep.subr.mxu0 0.0
    %730 = vmatpush1.msra.mxu0 0.0
    %731 = vmatprep.subr.mxu0 0.0
    %732 = vmatpush1.msra.mxu0 0.0
    %733 = vmatprep.subr.mxu0 0.0
    %734 = vmatpush1.msra.mxu0 0.0
    %735 = vmatprep.subr.mxu0 0.0
    %736 = vmatpush1.msra.mxu0 0.0
    %737 = vmatprep.subr.mxu0 0.0
    %738 = vmatpush1.msra.mxu0 0.0
    %739 = vmatprep.subr.mxu0 0.0
    %740 = vmatpush1.msra.mxu0 0.0
    %741 = vmatprep.subr.mxu0 0.0
    %742 = vmatpush1.msra.mxu0 0.0
    %743 = vmatprep.subr.mxu0 0.0
    %744 = vmatpush1.msra.mxu0 0.0
    %745 = vmatprep.subr.mxu0 0.0
    %746 = vmatpush1.msra.mxu0 0.0
    %747 = vmatprep.subr.mxu0 0.0
    %748 = vmatpush1.msra.mxu0 0.0
    %749 = vmatprep.subr.mxu0 0.0
    %750 = vmatpush1.msra.mxu0 0.0
    %751 = vmatprep.subr.mxu0 0.0
    %752 = vmatpush1.msra.mxu0 0.0
    %753 = vmatprep.subr.mxu0 0.0
    %754 = vmatpush1.msra.mxu0 0.0
    %755 = vmatprep.subr.mxu0 0.0
    %756 = vmatpush1.msra.mxu0 0.0
    %757 = vmatprep.subr.mxu0 0.0
    %758 = vmatpush1.msra.mxu0 0.0
    %759 = vmatprep.subr.mxu0 0.0
    %760 = vmatpush1.msra.mxu0 0.0
    %761 = vmatprep.subr.mxu0 0.0
    %762 = vmatpush1.msra.mxu0 0.0
    %763 = vmatprep.subr.mxu0 0.0
    %764 = vmatpush1.msra.mxu0 0.0
    %765 = vmatprep.subr.mxu0 0.0
    %766 = vmatpush1.msra.mxu0 0.0
    %767 = vmatprep.subr.mxu0 0.0
    %768 = vmatpush1.msra.mxu0 0.0
    %769 = vmatprep.subr.mxu0 0.0
    %770 = vmatpush1.msra.mxu0 0.0
    %771 = vmatprep.subr.mxu0 0.0
    %772 = vmatpush1.msra.mxu0 0.0
    %773 = vmatprep.subr.mxu0 0.0
    %774 = vmatpush1.msra.mxu0 0.0
    %775 = vmatprep.subr.mxu0 0.0
    %776 = vmatpush1.msra.mxu0 0.0
    %777 = vmatprep.mubr.f32.mxu0 0.0
    %778 = vmatmul.mubr.f32.gmra.mrb[0].mxu0 %v711
    %v779 = vpop.f32.mrb[0].mxu0
    %v780 = vadd.f32 0.0, %v779
    %v781 = vpop.f32.mrb[0].mxu0
    %782 = vdwg.mxu0
    %v783 = vadd.f32 %v256, %v780
    %784 = vrot.lane.b32.xlu0 %v698, 32
    %v785 = vpop.permute.xlu0 %784
    %v786 = vsel %vm152, %v785, 0
    %788 = vmatprep.subr.mxu0 0.0
    %789 = vmatpush1.msra.mxu0 %v294
    %790 = vmatprep.subr.mxu0 0.0
    %791 = vmatpush1.msra.mxu0 %v295
    %792 = vmatprep.subr.mxu0 0.0
    %793 = vmatpush1.msra.mxu0 %v296
    %794 = vmatprep.subr.mxu0 0.0
    %795 = vmatpush1.msra.mxu0 %v297
    %796 = vmatprep.subr.mxu0 0.0
    %797 = vmatpush1.msra.mxu0 0.0
    %798 = vmatprep.subr.mxu0 0.0
    %799 = vmatpush1.msra.mxu0 0.0
    %800 = vmatprep.subr.mxu0 0.0
    %801 = vmatpush1.msra.mxu0 0.0
    %802 = vmatprep.subr.mxu0 0.0
    %803 = vmatpush1.msra.mxu0 0.0
    %804 = vmatprep.subr.mxu0 0.0
    %805 = vmatpush1.msra.mxu0 0.0
    %806 = vmatprep.subr.mxu0 0.0
    %807 = vmatpush1.msra.mxu0 0.0
    %808 = vmatprep.subr.mxu0 0.0
    %809 = vmatpush1.msra.mxu0 0.0
    %810 = vmatprep.subr.mxu0 0.0
    %811 = vmatpush1.msra.mxu0 0.0
    %812 = vmatprep.subr.mxu0 0.0
    %813 = vmatpush1.msra.mxu0 0.0
    %814 = vmatprep.subr.mxu0 0.0
    %815 = vmatpush1.msra.mxu0 0.0
    %816 = vmatprep.subr.mxu0 0.0
    %817 = vmatpush1.msra.mxu0 0.0
    %818 = vmatprep.subr.mxu0 0.0
    %819 = vmatpush1.msra.mxu0 0.0
    %820 = vmatprep.subr.mxu0 0.0
    %821 = vmatpush1.msra.mxu0 0.0
    %822 = vmatprep.subr.mxu0 0.0
    %823 = vmatpush1.msra.mxu0 0.0
    %824 = vmatprep.subr.mxu0 0.0
    %825 = vmatpush1.msra.mxu0 0.0
    %826 = vmatprep.subr.mxu0 0.0
    %827 = vmatpush1.msra.mxu0 0.0
    %828 = vmatprep.subr.mxu0 0.0
    %829 = vmatpush1.msra.mxu0 0.0
    %830 = vmatprep.subr.mxu0 0.0
    %831 = vmatpush1.msra.mxu0 0.0
    %832 = vmatprep.subr.mxu0 0.0
    %833 = vmatpush1.msra.mxu0 0.0
    %834 = vmatprep.subr.mxu0 0.0
    %835 = vmatpush1.msra.mxu0 0.0
    %836 = vmatprep.subr.mxu0 0.0
    %837 = vmatpush1.msra.mxu0 0.0
    %838 = vmatprep.subr.mxu0 0.0
    %839 = vmatpush1.msra.mxu0 0.0
    %840 = vmatprep.subr.mxu0 0.0
    %841 = vmatpush1.msra.mxu0 0.0
    %842 = vmatprep.subr.mxu0 0.0
    %843 = vmatpush1.msra.mxu0 0.0
    %844 = vmatprep.subr.mxu0 0.0
    %845 = vmatpush1.msra.mxu0 0.0
    %846 = vmatprep.subr.mxu0 0.0
    %847 = vmatpush1.msra.mxu0 0.0
    %848 = vmatprep.subr.mxu0 0.0
    %849 = vmatpush1.msra.mxu0 0.0
    %850 = vmatprep.subr.mxu0 0.0
    %851 = vmatpush1.msra.mxu0 0.0
    %852 = vmatprep.mubr.f32.mxu0 0.0
    %853 = vmatmul.mubr.f32.gmra.mrb[0].mxu0 %v786
    %v854 = vpop.f32.mrb[0].mxu0
    %v855 = vadd.f32 0.0, %v854
    %v856 = vpop.f32.mrb[0].mxu0
    %857 = vdwg.mxu0
    %v858 = vadd.f32 %v276, %v855
    %v859 = vxor.u32 %v783, 2147483648
    %v860 = vmul.f32 %v859, 1.442695
    %v861 = vpow.pop %v860
    %v862 = vadd.f32 %v861, 1.0
    %v863 = vrcp.pop %v862
    %v864 = vmul.f32 1.0, %v863
    %v865 = vtanh.pop %v783
    %v866 = vmul.f32 %v864, %v668
    %868 = vrot.lane.b32.xlu0 %v865, 64
    %v869 = vpop.permute.xlu0 %868
    %v871 = vmul.f32 %v864, %v869
    %873 = vrot.lane.b32.xlu0 %v871, 32
    %v874 = vpop.permute.xlu0 %873
    %v876 = vadd.f32 %v866, %v874
    %v877 = vtanh.pop %v876
    %879 = vrot.lane.b32.xlu0 %v877, 64
    %v880 = vpop.permute.xlu0 %879
    %v882 = vmul.f32 %v864, %v880
    %v883 = vxor.u32 %v858, 2147483648
    %v884 = vmul.f32 %v883, 1.442695
    %v885 = vpow.pop %v884
    %v886 = vadd.f32 %v885, 1.0
    %v887 = vrcp.pop %v886
    %v888 = vmul.f32 1.0, %v887
    %v889 = vtanh.pop %v858
    %v890 = vmul.f32 %v888, %v692
    %892 = vrot.lane.b32.xlu0 %v889, 64
    %v893 = vpop.permute.xlu0 %892
    %v895 = vmul.f32 %v888, %v893
    %897 = vrot.lane.b32.xlu0 %v895, 32
    %v898 = vpop.permute.xlu0 %897
    %v900 = vadd.f32 %v890, %v898
    %v901 = vtanh.pop %v900
    %903 = vrot.lane.b32.xlu0 %v901, 64
    %v904 = vpop.permute.xlu0 %903
    %v906 = vmul.f32 %v888, %v904
    %908 = vrot.lane.b32.xlu0 %v882, 32
    %v909 = vpop.permute.xlu0 %908
    %s911 = scalar_lea.vmem [#allocation2], 16
    %912 = vst.msk [vmem:[%s911] sm:$0xff] %vm152, %v909
    %914 = vrot.lane.b32.xlu0 %v906, 64
    %v915 = vpop.permute.xlu0 %914
    %s917 = scalar_lea.vmem [#allocation2], 40
    %918 = vst.msk [vmem:[%s917] sm:$0xff] %vm501, %v915
    %v919 = vsel %vm152, %v909, 0
    %921 = vmatprep.subr.mxu0 0.0
    %922 = vmatpush1.msra.mxu0 %v290
    %923 = vmatprep.subr.mxu0 0.0
    %924 = vmatpush1.msra.mxu0 %v291
    %925 = vmatprep.subr.mxu0 0.0
    %926 = vmatpush1.msra.mxu0 %v292
    %927 = vmatprep.subr.mxu0 0.0
    %928 = vmatpush1.msra.mxu0 %v293
    %929 = vmatprep.subr.mxu0 0.0
    %930 = vmatpush1.msra.mxu0 0.0
    %931 = vmatprep.subr.mxu0 0.0
    %932 = vmatpush1.msra.mxu0 0.0
    %933 = vmatprep.subr.mxu0 0.0
    %934 = vmatpush1.msra.mxu0 0.0
    %935 = vmatprep.subr.mxu0 0.0
    %936 = vmatpush1.msra.mxu0 0.0
    %937 = vmatprep.subr.mxu0 0.0
    %938 = vmatpush1.msra.mxu0 0.0
    %939 = vmatprep.subr.mxu0 0.0
    %940 = vmatpush1.msra.mxu0 0.0
    %941 = vmatprep.subr.mxu0 0.0
    %942 = vmatpush1.msra.mxu0 0.0
    %943 = vmatprep.subr.mxu0 0.0
    %944 = vmatpush1.msra.mxu0 0.0
    %945 = vmatprep.subr.mxu0 0.0
    %946 = vmatpush1.msra.mxu0 0.0
    %947 = vmatprep.subr.mxu0 0.0
    %948 = vmatpush1.msra.mxu0 0.0
    %949 = vmatprep.subr.mxu0 0.0
    %950 = vmatpush1.msra.mxu0 0.0
    %951 = vmatprep.subr.mxu0 0.0
    %952 = vmatpush1.msra.mxu0 0.0
    %953 = vmatprep.subr.mxu0 0.0
    %954 = vmatpush1.msra.mxu0 0.0
    %955 = vmatprep.subr.mxu0 0.0
    %956 = vmatpush1.msra.mxu0 0.0
    %957 = vmatprep.subr.mxu0 0.0
    %958 = vmatpush1.msra.mxu0 0.0
    %959 = vmatprep.subr.mxu0 0.0
    %960 = vmatpush1.msra.mxu0 0.0
    %961 = vmatprep.subr.mxu0 0.0
    %962 = vmatpush1.msra.mxu0 0.0
    %963 = vmatprep.subr.mxu0 0.0
    %964 = vmatpush1.msra.mxu0 0.0
    %965 = vmatprep.subr.mxu0 0.0
    %966 = vmatpush1.msra.mxu0 0.0
    %967 = vmatprep.subr.mxu0 0.0
    %968 = vmatpush1.msra.mxu0 0.0
    %969 = vmatprep.subr.mxu0 0.0
    %970 = vmatpush1.msra.mxu0 0.0
    %971 = vmatprep.subr.mxu0 0.0
    %972 = vmatpush1.msra.mxu0 0.0
    %973 = vmatprep.subr.mxu0 0.0
    %974 = vmatpush1.msra.mxu0 0.0
    %975 = vmatprep.subr.mxu0 0.0
    %976 = vmatpush1.msra.mxu0 0.0
    %977 = vmatprep.subr.mxu0 0.0
    %978 = vmatpush1.msra.mxu0 0.0
    %979 = vmatprep.subr.mxu0 0.0
    %980 = vmatpush1.msra.mxu0 0.0
    %981 = vmatprep.subr.mxu0 0.0
    %982 = vmatpush1.msra.mxu0 0.0
    %983 = vmatprep.subr.mxu0 0.0
    %984 = vmatpush1.msra.mxu0 0.0
    %985 = vmatprep.mubr.f32.mxu0 0.0
    %986 = vmatmul.mubr.f32.gmra.mrb[0].mxu0 %v919
    %v987 = vpop.f32.mrb[0].mxu0
    %v988 = vadd.f32 0.0, %v987
    %v989 = vpop.f32.mrb[0].mxu0
    %990 = vdwg.mxu0
    %v991 = vadd.f32 %v262, %v988
    %992 = vrot.lane.b32.xlu0 %v906, 32
    %v993 = vpop.permute.xlu0 %992
    %v994 = vsel %vm152, %v993, 0
    %996 = vmatprep.subr.mxu0 0.0
    %997 = vmatpush1.msra.mxu0 %v294
    %998 = vmatprep.subr.mxu0 0.0
    %999 = vmatpush1.msra.mxu0 %v295
    %1000 = vmatprep.subr.mxu0 0.0
    %1001 = vmatpush1.msra.mxu0 %v296
    %1002 = vmatprep.subr.mxu0 0.0
    %1003 = vmatpush1.msra.mxu0 %v297
    %1004 = vmatprep.subr.mxu0 0.0
    %1005 = vmatpush1.msra.mxu0 0.0
    %1006 = vmatprep.subr.mxu0 0.0
    %1007 = vmatpush1.msra.mxu0 0.0
    %1008 = vmatprep.subr.mxu0 0.0
    %1009 = vmatpush1.msra.mxu0 0.0
    %1010 = vmatprep.subr.mxu0 0.0
    %1011 = vmatpush1.msra.mxu0 0.0
    %1012 = vmatprep.subr.mxu0 0.0
    %1013 = vmatpush1.msra.mxu0 0.0
    %1014 = vmatprep.subr.mxu0 0.0
    %1015 = vmatpush1.msra.mxu0 0.0
    %1016 = vmatprep.subr.mxu0 0.0
    %1017 = vmatpush1.msra.mxu0 0.0
    %1018 = vmatprep.subr.mxu0 0.0
    %1019 = vmatpush1.msra.mxu0 0.0
    %1020 = vmatprep.subr.mxu0 0.0
    %1021 = vmatpush1.msra.mxu0 0.0
    %1022 = vmatprep.subr.mxu0 0.0
    %1023 = vmatpush1.msra.mxu0 0.0
    %1024 = vmatprep.subr.mxu0 0.0
    %1025 = vmatpush1.msra.mxu0 0.0
    %1026 = vmatprep.subr.mxu0 0.0
    %1027 = vmatpush1.msra.mxu0 0.0
    %1028 = vmatprep.subr.mxu0 0.0
    %1029 = vmatpush1.msra.mxu0 0.0
    %1030 = vmatprep.subr.mxu0 0.0
    %1031 = vmatpush1.msra.mxu0 0.0
    %1032 = vmatprep.subr.mxu0 0.0
    %1033 = vmatpush1.msra.mxu0 0.0
    %1034 = vmatprep.subr.mxu0 0.0
    %1035 = vmatpush1.msra.mxu0 0.0
    %1036 = vmatprep.subr.mxu0 0.0
    %1037 = vmatpush1.msra.mxu0 0.0
    %1038 = vmatprep.subr.mxu0 0.0
    %1039 = vmatpush1.msra.mxu0 0.0
    %1040 = vmatprep.subr.mxu0 0.0
    %1041 = vmatpush1.msra.mxu0 0.0
    %1042 = vmatprep.subr.mxu0 0.0
    %1043 = vmatpush1.msra.mxu0 0.0
    %1044 = vmatprep.subr.mxu0 0.0
    %1045 = vmatpush1.msra.mxu0 0.0
    %1046 = vmatprep.subr.mxu0 0.0
    %1047 = vmatpush1.msra.mxu0 0.0
    %1048 = vmatprep.subr.mxu0 0.0
    %1049 = vmatpush1.msra.mxu0 0.0
    %1050 = vmatprep.subr.mxu0 0.0
    %1051 = vmatpush1.msra.mxu0 0.0
    %1052 = vmatprep.subr.mxu0 0.0
    %1053 = vmatpush1.msra.mxu0 0.0
    %1054 = vmatprep.subr.mxu0 0.0
    %1055 = vmatpush1.msra.mxu0 0.0
    %1056 = vmatprep.subr.mxu0 0.0
    %1057 = vmatpush1.msra.mxu0 0.0
    %1058 = vmatprep.subr.mxu0 0.0
    %1059 = vmatpush1.msra.mxu0 0.0
    %1060 = vmatprep.mubr.f32.mxu0 0.0
    %1061 = vmatmul.mubr.f32.gmra.mrb[0].mxu0 %v994
    %v1062 = vpop.f32.mrb[0].mxu0
    %v1063 = vadd.f32 0.0, %v1062
    %v1064 = vpop.f32.mrb[0].mxu0
    %1065 = vdwg.mxu0
    %v1066 = vadd.f32 %v270, %v1063
    %v1067 = vxor.u32 %v991, 2147483648
    %v1068 = vmul.f32 %v1067, 1.442695
    %v1069 = vpow.pop %v1068
    %v1070 = vadd.f32 %v1069, 1.0
    %v1071 = vrcp.pop %v1070
    %v1072 = vmul.f32 1.0, %v1071
    %v1073 = vtanh.pop %v991
    %v1074 = vmul.f32 %v1072, %v876
    %1076 = vrot.lane.b32.xlu0 %v1073, 64
    %v1077 = vpop.permute.xlu0 %1076
    %v1079 = vmul.f32 %v1072, %v1077
    %1081 = vrot.lane.b32.xlu0 %v1079, 32
    %v1082 = vpop.permute.xlu0 %1081
    %v1084 = vadd.f32 %v1074, %v1082
    %v1085 = vtanh.pop %v1084
    %1087 = vrot.lane.b32.xlu0 %v1085, 64
    %v1088 = vpop.permute.xlu0 %1087
    %v1090 = vmul.f32 %v1072, %v1088
    %v1091 = vxor.u32 %v1066, 2147483648
    %v1092 = vmul.f32 %v1091, 1.442695
    %v1093 = vpow.pop %v1092
    %v1094 = vadd.f32 %v1093, 1.0
    %v1095 = vrcp.pop %v1094
    %v1096 = vmul.f32 1.0, %v1095
    %v1097 = vtanh.pop %v1066
    %v1098 = vmul.f32 %v1096, %v900
    %1100 = vrot.lane.b32.xlu0 %v1097, 64
    %v1101 = vpop.permute.xlu0 %1100
    %v1103 = vmul.f32 %v1096, %v1101
    %1105 = vrot.lane.b32.xlu0 %v1103, 32
    %v1106 = vpop.permute.xlu0 %1105
    %v1108 = vadd.f32 %v1098, %v1106
    %v1109 = vtanh.pop %v1108
    %1111 = vrot.lane.b32.xlu0 %v1109, 64
    %v1112 = vpop.permute.xlu0 %1111
    %v1114 = vmul.f32 %v1096, %v1112
    %1116 = vrot.lane.b32.xlu0 %v1090, 32
    %v1117 = vpop.permute.xlu0 %1116
    %s1119 = scalar_lea.vmem [#allocation2], 24
    %1120 = vst.msk [vmem:[%s1119] sm:$0xff] %vm152, %v1117
    %1122 = vrot.lane.b32.xlu0 %v1114, 64
    %v1123 = vpop.permute.xlu0 %1122
    %s1125 = scalar_lea.vmem [#allocation2], 32
    %1126 = vst.msk [vmem:[%s1125] sm:$0xff] %vm501, %v1123
    %v1127 = vsel %vm152, %v1117, 0
    %1129 = vmatprep.subr.mxu0 0.0
    %1130 = vmatpush1.msra.mxu0 %v290
    %1131 = vmatprep.subr.mxu0 0.0
    %1132 = vmatpush1.msra.mxu0 %v291
    %1133 = vmatprep.subr.mxu0 0.0
    %1134 = vmatpush1.msra.mxu0 %v292
    %1135 = vmatprep.subr.mxu0 0.0
    %1136 = vmatpush1.msra.mxu0 %v293
    %1137 = vmatprep.subr.mxu0 0.0
    %1138 = vmatpush1.msra.mxu0 0.0
    %1139 = vmatprep.subr.mxu0 0.0
    %1140 = vmatpush1.msra.mxu0 0.0
    %1141 = vmatprep.subr.mxu0 0.0
    %1142 = vmatpush1.msra.mxu0 0.0
    %1143 = vmatprep.subr.mxu0 0.0
    %1144 = vmatpush1.msra.mxu0 0.0
    %1145 = vmatprep.subr.mxu0 0.0
    %1146 = vmatpush1.msra.mxu0 0.0
    %1147 = vmatprep.subr.mxu0 0.0
    %1148 = vmatpush1.msra.mxu0 0.0
    %1149 = vmatprep.subr.mxu0 0.0
    %1150 = vmatpush1.msra.mxu0 0.0
    %1151 = vmatprep.subr.mxu0 0.0
    %1152 = vmatpush1.msra.mxu0 0.0
    %1153 = vmatprep.subr.mxu0 0.0
    %1154 = vmatpush1.msra.mxu0 0.0
    %1155 = vmatprep.subr.mxu0 0.0
    %1156 = vmatpush1.msra.mxu0 0.0
    %1157 = vmatprep.subr.mxu0 0.0
    %1158 = vmatpush1.msra.mxu0 0.0
    %1159 = vmatprep.subr.mxu0 0.0
    %1160 = vmatpush1.msra.mxu0 0.0
    %1161 = vmatprep.subr.mxu0 0.0
    %1162 = vmatpush1.msra.mxu0 0.0
    %1163 = vmatprep.subr.mxu0 0.0
    %1164 = vmatpush1.msra.mxu0 0.0
    %1165 = vmatprep.subr.mxu0 0.0
    %1166 = vmatpush1.msra.mxu0 0.0
    %1167 = vmatprep.subr.mxu0 0.0
    %1168 = vmatpush1.msra.mxu0 0.0
    %1169 = vmatprep.subr.mxu0 0.0
    %1170 = vmatpush1.msra.mxu0 0.0
    %1171 = vmatprep.subr.mxu0 0.0
    %1172 = vmatpush1.msra.mxu0 0.0
    %1173 = vmatprep.subr.mxu0 0.0
    %1174 = vmatpush1.msra.mxu0 0.0
    %1175 = vmatprep.subr.mxu0 0.0
    %1176 = vmatpush1.msra.mxu0 0.0
    %1177 = vmatprep.subr.mxu0 0.0
    %1178 = vmatpush1.msra.mxu0 0.0
    %1179 = vmatprep.subr.mxu0 0.0
    %1180 = vmatpush1.msra.mxu0 0.0
    %1181 = vmatprep.subr.mxu0 0.0
    %1182 = vmatpush1.msra.mxu0 0.0
    %1183 = vmatprep.subr.mxu0 0.0
    %1184 = vmatpush1.msra.mxu0 0.0
    %1185 = vmatprep.subr.mxu0 0.0
    %1186 = vmatpush1.msra.mxu0 0.0
    %1187 = vmatprep.subr.mxu0 0.0
    %1188 = vmatpush1.msra.mxu0 0.0
    %1189 = vmatprep.subr.mxu0 0.0
    %1190 = vmatpush1.msra.mxu0 0.0
    %1191 = vmatprep.subr.mxu0 0.0
    %1192 = vmatpush1.msra.mxu0 0.0
    %1193 = vmatprep.mubr.f32.mxu0 0.0
    %1194 = vmatmul.mubr.f32.gmra.mrb[0].mxu0 %v1127
    %v1195 = vpop.f32.mrb[0].mxu0
    %v1196 = vadd.f32 0.0, %v1195
    %v1197 = vpop.f32.mrb[0].mxu0
    %1198 = vdwg.mxu0
    %v1199 = vadd.f32 %v268, %v1196
    %1200 = vrot.lane.b32.xlu0 %v1114, 32
    %v1201 = vpop.permute.xlu0 %1200
    %v1202 = vsel %vm152, %v1201, 0
    %1204 = vmatprep.subr.mxu0 0.0
    %1205 = vmatpush1.msra.mxu0 %v294
    %1206 = vmatprep.subr.mxu0 0.0
    %1207 = vmatpush1.msra.mxu0 %v295
    %1208 = vmatprep.subr.mxu0 0.0
    %1209 = vmatpush1.msra.mxu0 %v296
    %1210 = vmatprep.subr.mxu0 0.0
    %1211 = vmatpush1.msra.mxu0 %v297
    %1212 = vmatprep.subr.mxu0 0.0
    %1213 = vmatpush1.msra.mxu0 0.0
    %1214 = vmatprep.subr.mxu0 0.0
    %1215 = vmatpush1.msra.mxu0 0.0
    %1216 = vmatprep.subr.mxu0 0.0
    %1217 = vmatpush1.msra.mxu0 0.0
    %1218 = vmatprep.subr.mxu0 0.0
    %1219 = vmatpush1.msra.mxu0 0.0
    %1220 = vmatprep.subr.mxu0 0.0
    %1221 = vmatpush1.msra.mxu0 0.0
    %1222 = vmatprep.subr.mxu0 0.0
    %1223 = vmatpush1.msra.mxu0 0.0
    %1224 = vmatprep.subr.mxu0 0.0
    %1225 = vmatpush1.msra.mxu0 0.0
    %1226 = vmatprep.subr.mxu0 0.0
    %1227 = vmatpush1.msra.mxu0 0.0
    %1228 = vmatprep.subr.mxu0 0.0
    %1229 = vmatpush1.msra.mxu0 0.0
    %1230 = vmatprep.subr.mxu0 0.0
    %1231 = vmatpush1.msra.mxu0 0.0
    %1232 = vmatprep.subr.mxu0 0.0
    %1233 = vmatpush1.msra.mxu0 0.0
    %1234 = vmatprep.subr.mxu0 0.0
    %1235 = vmatpush1.msra.mxu0 0.0
    %1236 = vmatprep.subr.mxu0 0.0
    %1237 = vmatpush1.msra.mxu0 0.0
    %1238 = vmatprep.subr.mxu0 0.0
    %1239 = vmatpush1.msra.mxu0 0.0
    %1240 = vmatprep.subr.mxu0 0.0
    %1241 = vmatpush1.msra.mxu0 0.0
    %1242 = vmatprep.subr.mxu0 0.0
    %1243 = vmatpush1.msra.mxu0 0.0
    %1244 = vmatprep.subr.mxu0 0.0
    %1245 = vmatpush1.msra.mxu0 0.0
    %1246 = vmatprep.subr.mxu0 0.0
    %1247 = vmatpush1.msra.mxu0 0.0
    %1248 = vmatprep.subr.mxu0 0.0
    %1249 = vmatpush1.msra.mxu0 0.0
    %1250 = vmatprep.subr.mxu0 0.0
    %1251 = vmatpush1.msra.mxu0 0.0
    %1252 = vmatprep.subr.mxu0 0.0
    %1253 = vmatpush1.msra.mxu0 0.0
    %1254 = vmatprep.subr.mxu0 0.0
    %1255 = vmatpush1.msra.mxu0 0.0
    %1256 = vmatprep.subr.mxu0 0.0
    %1257 = vmatpush1.msra.mxu0 0.0
    %1258 = vmatprep.subr.mxu0 0.0
    %1259 = vmatpush1.msra.mxu0 0.0
    %1260 = vmatprep.subr.mxu0 0.0
    %1261 = vmatpush1.msra.mxu0 0.0
    %1262 = vmatprep.subr.mxu0 0.0
    %1263 = vmatpush1.msra.mxu0 0.0
    %1264 = vmatprep.subr.mxu0 0.0
    %1265 = vmatpush1.msra.mxu0 0.0
    %1266 = vmatprep.subr.mxu0 0.0
    %1267 = vmatpush1.msra.mxu0 0.0
    %1268 = vmatprep.mubr.f32.mxu0 0.0
    %1269 = vmatmul.mubr.f32.gmra.mrb[0].mxu0 %v1202
    %v1270 = vpop.f32.mrb[0].mxu0
    %v1271 = vadd.f32 0.0, %v1270
    %v1272 = vpop.f32.mrb[0].mxu0
    %1273 = vdwg.mxu0
    %v1274 = vadd.f32 %v264, %v1271
    %v1275 = vxor.u32 %v1199, 2147483648
    %v1276 = vmul.f32 %v1275, 1.442695
    %v1277 = vpow.pop %v1276
    %v1278 = vadd.f32 %v1277, 1.0
    %v1279 = vrcp.pop %v1278
    %v1280 = vmul.f32 1.0, %v1279
    %v1281 = vtanh.pop %v1199
    %v1282 = vmul.f32 %v1280, %v1084
    %1284 = vrot.lane.b32.xlu0 %v1281, 64
    %v1285 = vpop.permute.xlu0 %1284
    %v1287 = vmul.f32 %v1280, %v1285
    %1289 = vrot.lane.b32.xlu0 %v1287, 32
    %v1290 = vpop.permute.xlu0 %1289
    %v1292 = vadd.f32 %v1282, %v1290
    %v1293 = vtanh.pop %v1292
    %1295 = vrot.lane.b32.xlu0 %v1293, 64
    %v1296 = vpop.permute.xlu0 %1295
    %v1298 = vmul.f32 %v1280, %v1296
    %v1299 = vxor.u32 %v1274, 2147483648
    %v1300 = vmul.f32 %v1299, 1.442695
    %v1301 = vpow.pop %v1300
    %v1302 = vadd.f32 %v1301, 1.0
    %v1303 = vrcp.pop %v1302
    %v1304 = vmul.f32 1.0, %v1303
    %v1305 = vtanh.pop %v1274
    %v1306 = vmul.f32 %v1304, %v1108
    %1308 = vrot.lane.b32.xlu0 %v1305, 64
    %v1309 = vpop.permute.xlu0 %1308
    %v1311 = vmul.f32 %v1304, %v1309
    %1313 = vrot.lane.b32.xlu0 %v1311, 32
    %v1314 = vpop.permute.xlu0 %1313
    %v1316 = vadd.f32 %v1306, %v1314
    %v1317 = vtanh.pop %v1316
    %1319 = vrot.lane.b32.xlu0 %v1317, 64
    %v1320 = vpop.permute.xlu0 %1319
    %v1322 = vmul.f32 %v1304, %v1320
    %1324 = vrot.lane.b32.xlu0 %v1298, 32
    %v1325 = vpop.permute.xlu0 %1324
    %1327 = vst.msk [vmem:[%s1125] sm:$0xff] %vm152, %v1325
    %1329 = vrot.lane.b32.xlu0 %v1322, 64
    %v1330 = vpop.permute.xlu0 %1329
    %1332 = vst.msk [vmem:[%s1119] sm:$0xff] %vm501, %v1330
    %v1333 = vsel %vm152, %v1325, 0
    %1335 = vmatprep.subr.mxu0 0.0
    %1336 = vmatpush1.msra.mxu0 %v290
    %1337 = vmatprep.subr.mxu0 0.0
    %1338 = vmatpush1.msra.mxu0 %v291
    %1339 = vmatprep.subr.mxu0 0.0
    %1340 = vmatpush1.msra.mxu0 %v292
    %1341 = vmatprep.subr.mxu0 0.0
    %1342 = vmatpush1.msra.mxu0 %v293
    %1343 = vmatprep.subr.mxu0 0.0
    %1344 = vmatpush1.msra.mxu0 0.0
    %1345 = vmatprep.subr.mxu0 0.0
    %1346 = vmatpush1.msra.mxu0 0.0
    %1347 = vmatprep.subr.mxu0 0.0
    %1348 = vmatpush1.msra.mxu0 0.0
    %1349 = vmatprep.subr.mxu0 0.0
    %1350 = vmatpush1.msra.mxu0 0.0
    %1351 = vmatprep.subr.mxu0 0.0
    %1352 = vmatpush1.msra.mxu0 0.0
    %1353 = vmatprep.subr.mxu0 0.0
    %1354 = vmatpush1.msra.mxu0 0.0
    %1355 = vmatprep.subr.mxu0 0.0
    %1356 = vmatpush1.msra.mxu0 0.0
    %1357 = vmatprep.subr.mxu0 0.0
    %1358 = vmatpush1.msra.mxu0 0.0
    %1359 = vmatprep.subr.mxu0 0.0
    %1360 = vmatpush1.msra.mxu0 0.0
    %1361 = vmatprep.subr.mxu0 0.0
    %1362 = vmatpush1.msra.mxu0 0.0
    %1363 = vmatprep.subr.mxu0 0.0
    %1364 = vmatpush1.msra.mxu0 0.0
    %1365 = vmatprep.subr.mxu0 0.0
    %1366 = vmatpush1.msra.mxu0 0.0
    %1367 = vmatprep.subr.mxu0 0.0
    %1368 = vmatpush1.msra.mxu0 0.0
    %1369 = vmatprep.subr.mxu0 0.0
    %1370 = vmatpush1.msra.mxu0 0.0
    %1371 = vmatprep.subr.mxu0 0.0
    %1372 = vmatpush1.msra.mxu0 0.0
    %1373 = vmatprep.subr.mxu0 0.0
    %1374 = vmatpush1.msra.mxu0 0.0
    %1375 = vmatprep.subr.mxu0 0.0
    %1376 = vmatpush1.msra.mxu0 0.0
    %1377 = vmatprep.subr.mxu0 0.0
    %1378 = vmatpush1.msra.mxu0 0.0
    %1379 = vmatprep.subr.mxu0 0.0
    %1380 = vmatpush1.msra.mxu0 0.0
    %1381 = vmatprep.subr.mxu0 0.0
    %1382 = vmatpush1.msra.mxu0 0.0
    %1383 = vmatprep.subr.mxu0 0.0
    %1384 = vmatpush1.msra.mxu0 0.0
    %1385 = vmatprep.subr.mxu0 0.0
    %1386 = vmatpush1.msra.mxu0 0.0
    %1387 = vmatprep.subr.mxu0 0.0
    %1388 = vmatpush1.msra.mxu0 0.0
    %1389 = vmatprep.subr.mxu0 0.0
    %1390 = vmatpush1.msra.mxu0 0.0
    %1391 = vmatprep.subr.mxu0 0.0
    %1392 = vmatpush1.msra.mxu0 0.0
    %1393 = vmatprep.subr.mxu0 0.0
    %1394 = vmatpush1.msra.mxu0 0.0
    %1395 = vmatprep.subr.mxu0 0.0
    %1396 = vmatpush1.msra.mxu0 0.0
    %1397 = vmatprep.subr.mxu0 0.0
    %1398 = vmatpush1.msra.mxu0 0.0
    %1399 = vmatprep.mubr.f32.mxu0 0.0
    %1400 = vmatmul.mubr.f32.gmra.mrb[0].mxu0 %v1333
    %v1401 = vpop.f32.mrb[0].mxu0
    %v1402 = vadd.f32 0.0, %v1401
    %v1403 = vpop.f32.mrb[0].mxu0
    %1404 = vdwg.mxu0
    %v1405 = vadd.f32 %v274, %v1402
    %1406 = vrot.lane.b32.xlu0 %v1322, 32
    %v1407 = vpop.permute.xlu0 %1406
    %v1408 = vsel %vm152, %v1407, 0
    %1410 = vmatprep.subr.mxu0 0.0
    %1411 = vmatpush1.msra.mxu0 %v294
    %1412 = vmatprep.subr.mxu0 0.0
    %1413 = vmatpush1.msra.mxu0 %v295
    %1414 = vmatprep.subr.mxu0 0.0
    %1415 = vmatpush1.msra.mxu0 %v296
    %1416 = vmatprep.subr.mxu0 0.0
    %1417 = vmatpush1.msra.mxu0 %v297
    %1418 = vmatprep.subr.mxu0 0.0
    %1419 = vmatpush1.msra.mxu0 0.0
    %1420 = vmatprep.subr.mxu0 0.0
    %1421 = vmatpush1.msra.mxu0 0.0
    %1422 = vmatprep.subr.mxu0 0.0
    %1423 = vmatpush1.msra.mxu0 0.0
    %1424 = vmatprep.subr.mxu0 0.0
    %1425 = vmatpush1.msra.mxu0 0.0
    %1426 = vmatprep.subr.mxu0 0.0
    %1427 = vmatpush1.msra.mxu0 0.0
    %1428 = vmatprep.subr.mxu0 0.0
    %1429 = vmatpush1.msra.mxu0 0.0
    %1430 = vmatprep.subr.mxu0 0.0
    %1431 = vmatpush1.msra.mxu0 0.0
    %1432 = vmatprep.subr.mxu0 0.0
    %1433 = vmatpush1.msra.mxu0 0.0
    %1434 = vmatprep.subr.mxu0 0.0
    %1435 = vmatpush1.msra.mxu0 0.0
    %1436 = vmatprep.subr.mxu0 0.0
    %1437 = vmatpush1.msra.mxu0 0.0
    %1438 = vmatprep.subr.mxu0 0.0
    %1439 = vmatpush1.msra.mxu0 0.0
    %1440 = vmatprep.subr.mxu0 0.0
    %1441 = vmatpush1.msra.mxu0 0.0
    %1442 = vmatprep.subr.mxu0 0.0
    %1443 = vmatpush1.msra.mxu0 0.0
    %1444 = vmatprep.subr.mxu0 0.0
    %1445 = vmatpush1.msra.mxu0 0.0
    %1446 = vmatprep.subr.mxu0 0.0
    %1447 = vmatpush1.msra.mxu0 0.0
    %1448 = vmatprep.subr.mxu0 0.0
    %1449 = vmatpush1.msra.mxu0 0.0
    %1450 = vmatprep.subr.mxu0 0.0
    %1451 = vmatpush1.msra.mxu0 0.0
    %1452 = vmatprep.subr.mxu0 0.0
    %1453 = vmatpush1.msra.mxu0 0.0
    %1454 = vmatprep.subr.mxu0 0.0
    %1455 = vmatpush1.msra.mxu0 0.0
    %1456 = vmatprep.subr.mxu0 0.0
    %1457 = vmatpush1.msra.mxu0 0.0
    %1458 = vmatprep.subr.mxu0 0.0
    %1459 = vmatpush1.msra.mxu0 0.0
    %1460 = vmatprep.subr.mxu0 0.0
    %1461 = vmatpush1.msra.mxu0 0.0
    %1462 = vmatprep.subr.mxu0 0.0
    %1463 = vmatpush1.msra.mxu0 0.0
    %1464 = vmatprep.subr.mxu0 0.0
    %1465 = vmatpush1.msra.mxu0 0.0
    %1466 = vmatprep.subr.mxu0 0.0
    %1467 = vmatpush1.msra.mxu0 0.0
    %1468 = vmatprep.subr.mxu0 0.0
    %1469 = vmatpush1.msra.mxu0 0.0
    %1470 = vmatprep.subr.mxu0 0.0
    %1471 = vmatpush1.msra.mxu0 0.0
    %1472 = vmatprep.subr.mxu0 0.0
    %1473 = vmatpush1.msra.mxu0 0.0
    %1474 = vmatprep.mubr.f32.mxu0 0.0
    %1475 = vmatmul.mubr.f32.gmra.mrb[0].mxu0 %v1408
    %v1476 = vpop.f32.mrb[0].mxu0
    %v1477 = vadd.f32 0.0, %v1476
    %v1478 = vpop.f32.mrb[0].mxu0
    %1479 = vdwg.mxu0
    %v1480 = vadd.f32 %v258, %v1477
    %v1481 = vxor.u32 %v1405, 2147483648
    %v1482 = vmul.f32 %v1481, 1.442695
    %v1483 = vpow.pop %v1482
    %v1484 = vadd.f32 %v1483, 1.0
    %v1485 = vrcp.pop %v1484
    %v1486 = vmul.f32 1.0, %v1485
    %v1487 = vtanh.pop %v1405
    %v1488 = vmul.f32 %v1486, %v1292
    %1490 = vrot.lane.b32.xlu0 %v1487, 64
    %v1491 = vpop.permute.xlu0 %1490
    %v1493 = vmul.f32 %v1486, %v1491
    %1495 = vrot.lane.b32.xlu0 %v1493, 32
    %v1496 = vpop.permute.xlu0 %1495
    %v1498 = vadd.f32 %v1488, %v1496
    %v1499 = vtanh.pop %v1498
    %1501 = vrot.lane.b32.xlu0 %v1499, 64
    %v1502 = vpop.permute.xlu0 %1501
    %v1504 = vmul.f32 %v1486, %v1502
    %v1505 = vxor.u32 %v1480, 2147483648
    %v1506 = vmul.f32 %v1505, 1.442695
    %v1507 = vpow.pop %v1506
    %v1508 = vadd.f32 %v1507, 1.0
    %v1509 = vrcp.pop %v1508
    %v1510 = vmul.f32 1.0, %v1509
    %v1511 = vtanh.pop %v1480
    %v1512 = vmul.f32 %v1510, %v1316
    %1514 = vrot.lane.b32.xlu0 %v1511, 64
    %v1515 = vpop.permute.xlu0 %1514
    %v1517 = vmul.f32 %v1510, %v1515
    %1519 = vrot.lane.b32.xlu0 %v1517, 32
    %v1520 = vpop.permute.xlu0 %1519
    %v1522 = vadd.f32 %v1512, %v1520
    %v1523 = vtanh.pop %v1522
    %1525 = vrot.lane.b32.xlu0 %v1523, 64
    %v1526 = vpop.permute.xlu0 %1525
    %v1528 = vmul.f32 %v1510, %v1526
    %1530 = vrot.lane.b32.xlu0 %v1504, 32
    %v1531 = vpop.permute.xlu0 %1530
    %1533 = vst.msk [vmem:[%s917] sm:$0xff] %vm152, %v1531
    %1535 = vrot.lane.b32.xlu0 %v1528, 64
    %v1536 = vpop.permute.xlu0 %1535
    %1538 = vst.msk [vmem:[%s911] sm:$0xff] %vm501, %v1536
    %v1539 = vsel %vm152, %v1531, 0
    %1541 = vmatprep.subr.mxu0 0.0
    %1542 = vmatpush1.msra.mxu0 %v290
    %1543 = vmatprep.subr.mxu0 0.0
    %1544 = vmatpush1.msra.mxu0 %v291
    %1545 = vmatprep.subr.mxu0 0.0
    %1546 = vmatpush1.msra.mxu0 %v292
    %1547 = vmatprep.subr.mxu0 0.0
    %1548 = vmatpush1.msra.mxu0 %v293
    %1549 = vmatprep.subr.mxu0 0.0
    %1550 = vmatpush1.msra.mxu0 0.0
    %1551 = vmatprep.subr.mxu0 0.0
    %1552 = vmatpush1.msra.mxu0 0.0
    %1553 = vmatprep.subr.mxu0 0.0
    %1554 = vmatpush1.msra.mxu0 0.0
    %1555 = vmatprep.subr.mxu0 0.0
    %1556 = vmatpush1.msra.mxu0 0.0
    %1557 = vmatprep.subr.mxu0 0.0
    %1558 = vmatpush1.msra.mxu0 0.0
    %1559 = vmatprep.subr.mxu0 0.0
    %1560 = vmatpush1.msra.mxu0 0.0
    %1561 = vmatprep.subr.mxu0 0.0
    %1562 = vmatpush1.msra.mxu0 0.0
    %1563 = vmatprep.subr.mxu0 0.0
    %1564 = vmatpush1.msra.mxu0 0.0
    %1565 = vmatprep.subr.mxu0 0.0
    %1566 = vmatpush1.msra.mxu0 0.0
    %1567 = vmatprep.subr.mxu0 0.0
    %1568 = vmatpush1.msra.mxu0 0.0
    %1569 = vmatprep.subr.mxu0 0.0
    %1570 = vmatpush1.msra.mxu0 0.0
    %1571 = vmatprep.subr.mxu0 0.0
    %1572 = vmatpush1.msra.mxu0 0.0
    %1573 = vmatprep.subr.mxu0 0.0
    %1574 = vmatpush1.msra.mxu0 0.0
    %1575 = vmatprep.subr.mxu0 0.0
    %1576 = vmatpush1.msra.mxu0 0.0
    %1577 = vmatprep.subr.mxu0 0.0
    %1578 = vmatpush1.msra.mxu0 0.0
    %1579 = vmatprep.subr.mxu0 0.0
    %1580 = vmatpush1.msra.mxu0 0.0
    %1581 = vmatprep.subr.mxu0 0.0
    %1582 = vmatpush1.msra.mxu0 0.0
    %1583 = vmatprep.subr.mxu0 0.0
    %1584 = vmatpush1.msra.mxu0 0.0
    %1585 = vmatprep.subr.mxu0 0.0
    %1586 = vmatpush1.msra.mxu0 0.0
    %1587 = vmatprep.subr.mxu0 0.0
    %1588 = vmatpush1.msra.mxu0 0.0
    %1589 = vmatprep.subr.mxu0 0.0
    %1590 = vmatpush1.msra.mxu0 0.0
    %1591 = vmatprep.subr.mxu0 0.0
    %1592 = vmatpush1.msra.mxu0 0.0
    %1593 = vmatprep.subr.mxu0 0.0
    %1594 = vmatpush1.msra.mxu0 0.0
    %1595 = vmatprep.subr.mxu0 0.0
    %1596 = vmatpush1.msra.mxu0 0.0
    %1597 = vmatprep.subr.mxu0 0.0
    %1598 = vmatpush1.msra.mxu0 0.0
    %1599 = vmatprep.subr.mxu0 0.0
    %1600 = vmatpush1.msra.mxu0 0.0
    %1601 = vmatprep.subr.mxu0 0.0
    %1602 = vmatpush1.msra.mxu0 0.0
    %1603 = vmatprep.subr.mxu0 0.0
    %1604 = vmatpush1.msra.mxu0 0.0
    %1605 = vmatprep.mubr.f32.mxu0 0.0
    %1606 = vmatmul.mubr.f32.gmra.mrb[0].mxu0 %v1539
    %v1607 = vpop.f32.mrb[0].mxu0
    %v1608 = vadd.f32 0.0, %v1607
    %v1609 = vpop.f32.mrb[0].mxu0
    %1610 = vdwg.mxu0
    %v1611 = vadd.f32 %v280, %v1608
    %1612 = vrot.lane.b32.xlu0 %v1528, 32
    %v1613 = vpop.permute.xlu0 %1612
    %v1614 = vsel %vm152, %v1613, 0
    %1616 = vmatprep.subr.mxu0 0.0
    %1617 = vmatpush1.msra.mxu0 %v294
    %1618 = vmatprep.subr.mxu0 0.0
    %1619 = vmatpush1.msra.mxu0 %v295
    %1620 = vmatprep.subr.mxu0 0.0
    %1621 = vmatpush1.msra.mxu0 %v296
    %1622 = vmatprep.subr.mxu0 0.0
    %1623 = vmatpush1.msra.mxu0 %v297
    %1624 = vmatprep.subr.mxu0 0.0
    %1625 = vmatpush1.msra.mxu0 0.0
    %1626 = vmatprep.subr.mxu0 0.0
    %1627 = vmatpush1.msra.mxu0 0.0
    %1628 = vmatprep.subr.mxu0 0.0
    %1629 = vmatpush1.msra.mxu0 0.0
    %1630 = vmatprep.subr.mxu0 0.0
    %1631 = vmatpush1.msra.mxu0 0.0
    %1632 = vmatprep.subr.mxu0 0.0
    %1633 = vmatpush1.msra.mxu0 0.0
    %1634 = vmatprep.subr.mxu0 0.0
    %1635 = vmatpush1.msra.mxu0 0.0
    %1636 = vmatprep.subr.mxu0 0.0
    %1637 = vmatpush1.msra.mxu0 0.0
    %1638 = vmatprep.subr.mxu0 0.0
    %1639 = vmatpush1.msra.mxu0 0.0
    %1640 = vmatprep.subr.mxu0 0.0
    %1641 = vmatpush1.msra.mxu0 0.0
    %1642 = vmatprep.subr.mxu0 0.0
    %1643 = vmatpush1.msra.mxu0 0.0
    %1644 = vmatprep.subr.mxu0 0.0
    %1645 = vmatpush1.msra.mxu0 0.0
    %1646 = vmatprep.subr.mxu0 0.0
    %1647 = vmatpush1.msra.mxu0 0.0
    %1648 = vmatprep.subr.mxu0 0.0
    %1649 = vmatpush1.msra.mxu0 0.0
    %1650 = vmatprep.subr.mxu0 0.0
    %1651 = vmatpush1.msra.mxu0 0.0
    %1652 = vmatprep.subr.mxu0 0.0
    %1653 = vmatpush1.msra.mxu0 0.0
    %1654 = vmatprep.subr.mxu0 0.0
    %1655 = vmatpush1.msra.mxu0 0.0
    %1656 = vmatprep.subr.mxu0 0.0
    %1657 = vmatpush1.msra.mxu0 0.0
    %1658 = vmatprep.subr.mxu0 0.0
    %1659 = vmatpush1.msra.mxu0 0.0
    %1660 = vmatprep.subr.mxu0 0.0
    %1661 = vmatpush1.msra.mxu0 0.0
    %1662 = vmatprep.subr.mxu0 0.0
    %1663 = vmatpush1.msra.mxu0 0.0
    %1664 = vmatprep.subr.mxu0 0.0
    %1665 = vmatpush1.msra.mxu0 0.0
    %1666 = vmatprep.subr.mxu0 0.0
    %1667 = vmatpush1.msra.mxu0 0.0
    %1668 = vmatprep.subr.mxu0 0.0
    %1669 = vmatpush1.msra.mxu0 0.0
    %1670 = vmatprep.subr.mxu0 0.0
    %1671 = vmatpush1.msra.mxu0 0.0
    %1672 = vmatprep.subr.mxu0 0.0
    %1673 = vmatpush1.msra.mxu0 0.0
    %1674 = vmatprep.subr.mxu0 0.0
    %1675 = vmatpush1.msra.mxu0 0.0
    %1676 = vmatprep.subr.mxu0 0.0
    %1677 = vmatpush1.msra.mxu0 0.0
    %1678 = vmatprep.subr.mxu0 0.0
    %1679 = vmatpush1.msra.mxu0 0.0
    %1680 = vmatprep.mubr.f32.mxu0 0.0
    %1681 = vmatmul.mubr.f32.gmra.mrb[0].mxu0 %v1614
    %v1682 = vpop.f32.mrb[0].mxu0
    %v1683 = vadd.f32 0.0, %v1682
    %v1684 = vpop.f32.mrb[0].mxu0
    %1685 = vdwg.mxu0
    %v1686 = vadd.f32 %v252, %v1683
    %v1687 = vxor.u32 %v1611, 2147483648
    %v1688 = vmul.f32 %v1687, 1.442695
    %v1689 = vpow.pop %v1688
    %v1690 = vadd.f32 %v1689, 1.0
    %v1691 = vrcp.pop %v1690
    %v1692 = vmul.f32 1.0, %v1691
    %v1693 = vtanh.pop %v1611
    %v1694 = vmul.f32 %v1692, %v1498
    %1696 = vrot.lane.b32.xlu0 %v1693, 64
    %v1697 = vpop.permute.xlu0 %1696
    %v1699 = vmul.f32 %v1692, %v1697
    %1701 = vrot.lane.b32.xlu0 %v1699, 32
    %v1702 = vpop.permute.xlu0 %1701
    %v1704 = vadd.f32 %v1694, %v1702
    %v1705 = vtanh.pop %v1704
    %1707 = vrot.lane.b32.xlu0 %v1705, 64
    %v1708 = vpop.permute.xlu0 %1707
    %v1710 = vmul.f32 %v1692, %v1708
    %v1711 = vxor.u32 %v1686, 2147483648
    %v1712 = vmul.f32 %v1711, 1.442695
    %v1713 = vpow.pop %v1712
    %v1714 = vadd.f32 %v1713, 1.0
    %v1715 = vrcp.pop %v1714
    %v1716 = vmul.f32 1.0, %v1715
    %v1717 = vtanh.pop %v1686
    %v1718 = vmul.f32 %v1716, %v1522
    %1720 = vrot.lane.b32.xlu0 %v1717, 64
    %v1721 = vpop.permute.xlu0 %1720
    %v1723 = vmul.f32 %v1716, %v1721
    %1725 = vrot.lane.b32.xlu0 %v1723, 32
    %v1726 = vpop.permute.xlu0 %1725
    %v1728 = vadd.f32 %v1718, %v1726
    %v1729 = vtanh.pop %v1728
    %1731 = vrot.lane.b32.xlu0 %v1729, 64
    %v1732 = vpop.permute.xlu0 %1731
    %v1734 = vmul.f32 %v1716, %v1732
    %1736 = vrot.lane.b32.xlu0 %v1710, 32
    %v1737 = vpop.permute.xlu0 %1736
    %1739 = vst.msk [vmem:[%s709] sm:$0xff] %vm152, %v1737
    %1741 = vrot.lane.b32.xlu0 %v1734, 64
    %v1742 = vpop.permute.xlu0 %1741
    %1744 = vst.msk [vmem:[%s703] sm:$0xff] %vm501, %v1742
    %v1745 = vsel %vm152, %v1737, 0
    %1747 = vmatprep.subr.mxu0 0.0
    %1748 = vmatpush1.msra.mxu0 %v290
    %1749 = vmatprep.subr.mxu0 0.0
    %1750 = vmatpush1.msra.mxu0 %v291
    %1751 = vmatprep.subr.mxu0 0.0
    %1752 = vmatpush1.msra.mxu0 %v292
    %1753 = vmatprep.subr.mxu0 0.0
    %1754 = vmatpush1.msra.mxu0 %v293
    %1755 = vmatprep.subr.mxu0 0.0
    %1756 = vmatpush1.msra.mxu0 0.0
    %1757 = vmatprep.subr.mxu0 0.0
    %1758 = vmatpush1.msra.mxu0 0.0
    %1759 = vmatprep.subr.mxu0 0.0
    %1760 = vmatpush1.msra.mxu0 0.0
    %1761 = vmatprep.subr.mxu0 0.0
    %1762 = vmatpush1.msra.mxu0 0.0
    %1763 = vmatprep.subr.mxu0 0.0
    %1764 = vmatpush1.msra.mxu0 0.0
    %1765 = vmatprep.subr.mxu0 0.0
    %1766 = vmatpush1.msra.mxu0 0.0
    %1767 = vmatprep.subr.mxu0 0.0
    %1768 = vmatpush1.msra.mxu0 0.0
    %1769 = vmatprep.subr.mxu0 0.0
    %1770 = vmatpush1.msra.mxu0 0.0
    %1771 = vmatprep.subr.mxu0 0.0
    %1772 = vmatpush1.msra.mxu0 0.0
    %1773 = vmatprep.subr.mxu0 0.0
    %1774 = vmatpush1.msra.mxu0 0.0
    %1775 = vmatprep.subr.mxu0 0.0
    %1776 = vmatpush1.msra.mxu0 0.0
    %1777 = vmatprep.subr.mxu0 0.0
    %1778 = vmatpush1.msra.mxu0 0.0
    %1779 = vmatprep.subr.mxu0 0.0
    %1780 = vmatpush1.msra.mxu0 0.0
    %1781 = vmatprep.subr.mxu0 0.0
    %1782 = vmatpush1.msra.mxu0 0.0
    %1783 = vmatprep.subr.mxu0 0.0
    %1784 = vmatpush1.msra.mxu0 0.0
    %1785 = vmatprep.subr.mxu0 0.0
    %1786 = vmatpush1.msra.mxu0 0.0
    %1787 = vmatprep.subr.mxu0 0.0
    %1788 = vmatpush1.msra.mxu0 0.0
    %1789 = vmatprep.subr.mxu0 0.0
    %1790 = vmatpush1.msra.mxu0 0.0
    %1791 = vmatprep.subr.mxu0 0.0
    %1792 = vmatpush1.msra.mxu0 0.0
    %1793 = vmatprep.subr.mxu0 0.0
    %1794 = vmatpush1.msra.mxu0 0.0
    %1795 = vmatprep.subr.mxu0 0.0
    %1796 = vmatpush1.msra.mxu0 0.0
    %1797 = vmatprep.subr.mxu0 0.0
    %1798 = vmatpush1.msra.mxu0 0.0
    %1799 = vmatprep.subr.mxu0 0.0
    %1800 = vmatpush1.msra.mxu0 0.0
    %1801 = vmatprep.subr.mxu0 0.0
    %1802 = vmatpush1.msra.mxu0 0.0
    %1803 = vmatprep.subr.mxu0 0.0
    %1804 = vmatpush1.msra.mxu0 0.0
    %1805 = vmatprep.subr.mxu0 0.0
    %1806 = vmatpush1.msra.mxu0 0.0
    %1807 = vmatprep.subr.mxu0 0.0
    %1808 = vmatpush1.msra.mxu0 0.0
    %1809 = vmatprep.subr.mxu0 0.0
    %1810 = vmatpush1.msra.mxu0 0.0
    %1811 = vmatprep.mubr.f32.mxu0 0.0
    %1812 = vmatmul.mubr.f32.gmra.mrb[0].mxu0 %v1745
    %v1813 = vpop.f32.mrb[0].mxu0
    %v1814 = vadd.f32 0.0, %v1813
    %v1815 = vpop.f32.mrb[0].mxu0
    %1816 = vdwg.mxu0
    %v1817 = vadd.f32 %v286, %v1814
    %1818 = vrot.lane.b32.xlu0 %v1734, 32
    %v1819 = vpop.permute.xlu0 %1818
    %v1820 = vsel %vm152, %v1819, 0
    %1822 = vmatprep.subr.mxu0 0.0
    %1823 = vmatpush1.msra.mxu0 %v294
    %1824 = vmatprep.subr.mxu0 0.0
    %1825 = vmatpush1.msra.mxu0 %v295
    %1826 = vmatprep.subr.mxu0 0.0
    %1827 = vmatpush1.msra.mxu0 %v296
    %1828 = vmatprep.subr.mxu0 0.0
    %1829 = vmatpush1.msra.mxu0 %v297
    %1830 = vmatprep.subr.mxu0 0.0
    %1831 = vmatpush1.msra.mxu0 0.0
    %1832 = vmatprep.subr.mxu0 0.0
    %1833 = vmatpush1.msra.mxu0 0.0
    %1834 = vmatprep.subr.mxu0 0.0
    %1835 = vmatpush1.msra.mxu0 0.0
    %1836 = vmatprep.subr.mxu0 0.0
    %1837 = vmatpush1.msra.mxu0 0.0
    %1838 = vmatprep.subr.mxu0 0.0
    %1839 = vmatpush1.msra.mxu0 0.0
    %1840 = vmatprep.subr.mxu0 0.0
    %1841 = vmatpush1.msra.mxu0 0.0
    %1842 = vmatprep.subr.mxu0 0.0
    %1843 = vmatpush1.msra.mxu0 0.0
    %1844 = vmatprep.subr.mxu0 0.0
    %1845 = vmatpush1.msra.mxu0 0.0
    %1846 = vmatprep.subr.mxu0 0.0
    %1847 = vmatpush1.msra.mxu0 0.0
    %1848 = vmatprep.subr.mxu0 0.0
    %1849 = vmatpush1.msra.mxu0 0.0
    %1850 = vmatprep.subr.mxu0 0.0
    %1851 = vmatpush1.msra.mxu0 0.0
    %1852 = vmatprep.subr.mxu0 0.0
    %1853 = vmatpush1.msra.mxu0 0.0
    %1854 = vmatprep.subr.mxu0 0.0
    %1855 = vmatpush1.msra.mxu0 0.0
    %1856 = vmatprep.subr.mxu0 0.0
    %1857 = vmatpush1.msra.mxu0 0.0
    %1858 = vmatprep.subr.mxu0 0.0
    %1859 = vmatpush1.msra.mxu0 0.0
    %1860 = vmatprep.subr.mxu0 0.0
    %1861 = vmatpush1.msra.mxu0 0.0
    %1862 = vmatprep.subr.mxu0 0.0
    %1863 = vmatpush1.msra.mxu0 0.0
    %1864 = vmatprep.subr.mxu0 0.0
    %1865 = vmatpush1.msra.mxu0 0.0
    %1866 = vmatprep.subr.mxu0 0.0
    %1867 = vmatpush1.msra.mxu0 0.0
    %1868 = vmatprep.subr.mxu0 0.0
    %1869 = vmatpush1.msra.mxu0 0.0
    %1870 = vmatprep.subr.mxu0 0.0
    %1871 = vmatpush1.msra.mxu0 0.0
    %1872 = vmatprep.subr.mxu0 0.0
    %1873 = vmatpush1.msra.mxu0 0.0
    %1874 = vmatprep.subr.mxu0 0.0
    %1875 = vmatpush1.msra.mxu0 0.0
    %1876 = vmatprep.subr.mxu0 0.0
    %1877 = vmatpush1.msra.mxu0 0.0
    %1878 = vmatprep.subr.mxu0 0.0
    %1879 = vmatpush1.msra.mxu0 0.0
    %1880 = vmatprep.subr.mxu0 0.0
    %1881 = vmatpush1.msra.mxu0 0.0
    %1882 = vmatprep.subr.mxu0 0.0
    %1883 = vmatpush1.msra.mxu0 0.0
    %1884 = vmatprep.subr.mxu0 0.0
    %1885 = vmatpush1.msra.mxu0 0.0
    %1886 = vmatprep.mubr.f32.mxu0 0.0
    %1887 = vmatmul.mubr.f32.gmra.mrb[0].mxu0 %v1820
    %v1888 = vpop.f32.mrb[0].mxu0
    %v1889 = vadd.f32 0.0, %v1888
    %v1890 = vpop.f32.mrb[0].mxu0
    %1891 = vdwg.mxu0
    %v1892 = vadd.f32 %v246, %v1889
    %v1893 = vxor.u32 %v1817, 2147483648
    %v1894 = vmul.f32 %v1893, 1.442695
    %v1895 = vpow.pop %v1894
    %v1896 = vadd.f32 %v1895, 1.0
    %v1897 = vrcp.pop %v1896
    %v1898 = vmul.f32 1.0, %v1897
    %v1899 = vtanh.pop %v1817
    %v1900 = vmul.f32 %v1898, %v1704
    %1902 = vrot.lane.b32.xlu0 %v1899, 64
    %v1903 = vpop.permute.xlu0 %1902
    %v1905 = vmul.f32 %v1898, %v1903
    %1907 = vrot.lane.b32.xlu0 %v1905, 32
    %v1908 = vpop.permute.xlu0 %1907
    %v1910 = vadd.f32 %v1900, %v1908
    %v1911 = vtanh.pop %v1910
    %1913 = vrot.lane.b32.xlu0 %v1911, 64
    %v1914 = vpop.permute.xlu0 %1913
    %v1916 = vmul.f32 %v1898, %v1914
    %v1917 = vxor.u32 %v1892, 2147483648
    %v1918 = vmul.f32 %v1917, 1.442695
    %v1919 = vpow.pop %v1918
    %v1920 = vadd.f32 %v1919, 1.0
    %v1921 = vrcp.pop %v1920
    %v1922 = vmul.f32 1.0, %v1921
    %v1923 = vtanh.pop %v1892
    %v1924 = vmul.f32 %v1922, %v1728
    %1926 = vrot.lane.b32.xlu0 %v1923, 64
    %v1927 = vpop.permute.xlu0 %1926
    %v1929 = vmul.f32 %v1922, %v1927
    %1931 = vrot.lane.b32.xlu0 %v1929, 32
    %v1932 = vpop.permute.xlu0 %1931
    %v1934 = vadd.f32 %v1924, %v1932
    %v1935 = vtanh.pop %v1934
    %1937 = vrot.lane.b32.xlu0 %v1935, 64
    %v1938 = vpop.permute.xlu0 %1937
    %v1940 = vmul.f32 %v1922, %v1938
    %1942 = vrot.lane.b32.xlu0 %v1916, 32
    %v1943 = vpop.permute.xlu0 %1942
    %1945 = vst.msk [vmem:[%s500] sm:$0xff] %vm152, %v1943
    %1947 = vrot.lane.b32.xlu0 %v1940, 64
    %v1948 = vpop.permute.xlu0 %1947
    %1950 = vst.msk [vmem:[#allocation2] sm:$0xff] %vm501, %v1948
    %v1951 = vld [vmem:[#allocation2] sm:$0xff]
    %v1952 = vld [vmem:[#allocation2 + $0x8] sm:$0xff]
    %v1953 = vld [vmem:[#allocation2 + $0x10] sm:$0xff]
    %v1954 = vld [vmem:[#allocation2 + $0x18] sm:$0xff]
    %v1955 = vld [vmem:[#allocation2 + $0x20] sm:$0xff]
    %v1956 = vld [vmem:[#allocation2 + $0x28] sm:$0xff]
    %v1957 = vld [vmem:[#allocation2 + $0x30] sm:$0xff]
    %v1958 = vld [vmem:[#allocation2 + $0x38] sm:$0xff]
    %v1959 = vld [vmem:[%s5] sm:$0xff]
    %v1960 = vld [vmem:[%s5 + $0x8] sm:$0xff]
    %v1961 = vld [vmem:[%s5 + $0x10] sm:$0xff]
    %v1962 = vld [vmem:[%s5 + $0x18] sm:$0xff]
    %v1963 = vld [vmem:[%s5 + $0x20] sm:$0xff]
    %v1964 = vld [vmem:[%s5 + $0x28] sm:$0xff]
    %v1965 = vld [vmem:[%s5 + $0x30] sm:$0xff]
    %v1966 = vld [vmem:[%s5 + $0x38] sm:$0xff]
    %v1967 = vld [vmem:[%s5 + $0x40] sm:$0xff]
    %v1968 = vld [vmem:[%s5 + $0x48] sm:$0xff]
    %v1969 = vld [vmem:[%s5 + $0x50] sm:$0xff]
    %v1970 = vld [vmem:[%s5 + $0x58] sm:$0xff]
    %v1971 = vld [vmem:[%s5 + $0x60] sm:$0xff]
    %v1972 = vld [vmem:[%s5 + $0x68] sm:$0xff]
    %v1973 = vld [vmem:[%s5 + $0x70] sm:$0xff]
    %v1974 = vld [vmem:[%s5 + $0x78] sm:$0xff]
    %v1975 = vld [vmem:[%s8] sm:$0x3]
    %v1977 = vlaneseq
    %v1978 = vshrl.u32 %v1977, 7
    %v1979 = vsub.s32 0, %v1978
    %v1980 = vrot.slane %v1975, %v1979
    %v1981 = vlaneseq
    %v1982 = vshrl.u32 %v1981, 7
    %v1983 = vsub.s32 1, %v1982
    %v1984 = vrot.slane %v1975, %v1983
    %vm1987 = vcmask 523264
    %v1989 = vsel %vm1987, %v1951, 0
    %v1992 = vsel %vm1987, %v1952, 0
    %v1995 = vsel %vm1987, %v1953, 0
    %v1998 = vsel %vm1987, %v1954, 0
    %v2001 = vsel %vm1987, %v1955, 0
    %v2004 = vsel %vm1987, %v1956, 0
    %v2007 = vsel %vm1987, %v1957, 0
    %v2010 = vsel %vm1987, %v1958, 0
    %2012 = vmatprep.subr.mxu0 %v1960
    %2013 = vmatpush1.msra.mxu0 %v1959
    %2014 = vmatprep.subr.mxu0 %v1962
    %2015 = vmatpush1.msra.mxu0 %v1961
    %2016 = vmatprep.subr.mxu0 %v1964
    %2017 = vmatpush1.msra.mxu0 %v1963
    %2018 = vmatprep.subr.mxu0 %v1966
    %2019 = vmatpush1.msra.mxu0 %v1965
    %2020 = vmatprep.subr.mxu0 %v1968
    %2021 = vmatpush1.msra.mxu0 %v1967
    %2022 = vmatprep.subr.mxu0 %v1970
    %2023 = vmatpush1.msra.mxu0 %v1969
    %2024 = vmatprep.subr.mxu0 %v1972
    %2025 = vmatpush1.msra.mxu0 %v1971
    %2026 = vmatprep.subr.mxu0 %v1974
    %2027 = vmatpush1.msra.mxu0 %v1973
    %2028 = vmatprep.subr.mxu0 0.0
    %2029 = vmatpush1.msra.mxu0 0.0
    %2030 = vmatprep.subr.mxu0 0.0
    %2031 = vmatpush1.msra.mxu0 0.0
    %2032 = vmatprep.subr.mxu0 0.0
    %2033 = vmatpush1.msra.mxu0 0.0
    %2034 = vmatprep.subr.mxu0 0.0
    %2035 = vmatpush1.msra.mxu0 0.0
    %2036 = vmatprep.subr.mxu0 0.0
    %2037 = vmatpush1.msra.mxu0 0.0
    %2038 = vmatprep.subr.mxu0 0.0
    %2039 = vmatpush1.msra.mxu0 0.0
    %2040 = vmatprep.subr.mxu0 0.0
    %2041 = vmatpush1.msra.mxu0 0.0
    %2042 = vmatprep.subr.mxu0 0.0
    %2043 = vmatpush1.msra.mxu0 0.0
    %2044 = vmatprep.subr.mxu0 0.0
    %2045 = vmatpush1.msra.mxu0 0.0
    %2046 = vmatprep.subr.mxu0 0.0
    %2047 = vmatpush1.msra.mxu0 0.0
    %2048 = vmatprep.subr.mxu0 0.0
    %2049 = vmatpush1.msra.mxu0 0.0
    %2050 = vmatprep.subr.mxu0 0.0
    %2051 = vmatpush1.msra.mxu0 0.0
    %2052 = vmatprep.subr.mxu0 0.0
    %2053 = vmatpush1.msra.mxu0 0.0
    %2054 = vmatprep.subr.mxu0 0.0
    %2055 = vmatpush1.msra.mxu0 0.0
    %2056 = vmatprep.subr.mxu0 0.0
    %2057 = vmatpush1.msra.mxu0 0.0
    %2058 = vmatprep.subr.mxu0 0.0
    %2059 = vmatpush1.msra.mxu0 0.0
    %2060 = vmatprep.subr.mxu0 0.0
    %2061 = vmatpush1.msra.mxu0 0.0
    %2062 = vmatprep.subr.mxu0 0.0
    %2063 = vmatpush1.msra.mxu0 0.0
    %2064 = vmatprep.subr.mxu0 0.0
    %2065 = vmatpush1.msra.mxu0 0.0
    %2066 = vmatprep.subr.mxu0 0.0
    %2067 = vmatpush1.msra.mxu0 0.0
    %2068 = vmatprep.subr.mxu0 0.0
    %2069 = vmatpush1.msra.mxu0 0.0
    %2070 = vmatprep.subr.mxu0 0.0
    %2071 = vmatpush1.msra.mxu0 0.0
    %2072 = vmatprep.subr.mxu0 0.0
    %2073 = vmatpush1.msra.mxu0 0.0
    %2074 = vmatprep.subr.mxu0 0.0
    %2075 = vmatpush1.msra.mxu0 0.0
    %2076 = vmatprep.mubr.f32.mxu0 0.0
    %2077 = vmatmul.mubr.f32.gmra.mrb[0].mxu0 %v1989
    %v2078 = vpop.f32.mrb[0].mxu0
    %v2079 = vadd.f32 %v1980, %v2078
    %v2080 = vpop.f32.mrb[0].mxu0
    %v2081 = vadd.f32 %v1984, %v2080
    %2082 = vmatprep.mubr.f32.mxu0 0.0
    %2083 = vmatmul.mubr.f32.gmra.mrb[0].mxu0 %v1992
    %v2084 = vpop.f32.mrb[0].mxu0
    %v2085 = vadd.f32 %v1980, %v2084
    %v2086 = vpop.f32.mrb[0].mxu0
    %v2087 = vadd.f32 %v1984, %v2086
    %2088 = vmatprep.mubr.f32.mxu0 0.0
    %2089 = vmatmul.mubr.f32.gmra.mrb[0].mxu0 %v1995
    %v2090 = vpop.f32.mrb[0].mxu0
    %v2091 = vadd.f32 %v1980, %v2090
    %v2092 = vpop.f32.mrb[0].mxu0
    %v2093 = vadd.f32 %v1984, %v2092
    %2094 = vmatprep.mubr.f32.mxu0 0.0
    %2095 = vmatmul.mubr.f32.gmra.mrb[0].mxu0 %v1998
    %v2096 = vpop.f32.mrb[0].mxu0
    %v2097 = vadd.f32 %v1980, %v2096
    %v2098 = vpop.f32.mrb[0].mxu0
    %v2099 = vadd.f32 %v1984, %v2098
    %2100 = vmatprep.mubr.f32.mxu0 0.0
    %2101 = vmatmul.mubr.f32.gmra.mrb[0].mxu0 %v2001
    %v2102 = vpop.f32.mrb[0].mxu0
    %v2103 = vadd.f32 %v1980, %v2102
    %v2104 = vpop.f32.mrb[0].mxu0
    %v2105 = vadd.f32 %v1984, %v2104
    %2106 = vmatprep.mubr.f32.mxu0 0.0
    %2107 = vmatmul.mubr.f32.gmra.mrb[0].mxu0 %v2004
    %v2108 = vpop.f32.mrb[0].mxu0
    %v2109 = vadd.f32 %v1980, %v2108
    %v2110 = vpop.f32.mrb[0].mxu0
    %v2111 = vadd.f32 %v1984, %v2110
    %2112 = vmatprep.mubr.f32.mxu0 0.0
    %2113 = vmatmul.mubr.f32.gmra.mrb[0].mxu0 %v2007
    %v2114 = vpop.f32.mrb[0].mxu0
    %v2115 = vadd.f32 %v1980, %v2114
    %v2116 = vpop.f32.mrb[0].mxu0
    %v2117 = vadd.f32 %v1984, %v2116
    %2118 = vmatprep.mubr.f32.mxu0 0.0
    %2119 = vmatmul.mubr.f32.gmra.mrb[0].mxu0 %v2010
    %v2120 = vpop.f32.mrb[0].mxu0
    %v2121 = vadd.f32 %v1980, %v2120
    %v2122 = vpop.f32.mrb[0].mxu0
    %v2123 = vadd.f32 %v1984, %v2122
    %2124 = vdwg.mxu0
    %v2125 = vld [vmem:[%s6] sm:$0xff]
    %v2126 = vld [vmem:[%s6 + $0x8] sm:$0xff]
    %v2127 = vld [vmem:[%s6 + $0x10] sm:$0xff]
    %v2128 = vld [vmem:[%s6 + $0x18] sm:$0xff]
    %v2129 = vld [vmem:[%s7] sm:$0xff]
    %v2130 = vld [vmem:[%s7 + $0x8] sm:$0xff]
    %v2131 = vld [vmem:[%s7 + $0x10] sm:$0xff]
    %v2132 = vld [vmem:[%s7 + $0x18] sm:$0xff]
    %2133 = vmatprep.subr.mxu0 0.0
    %2134 = vmatpush1.msra.mxu0 %v2125
    %2135 = vmatprep.subr.mxu0 0.0
    %2136 = vmatpush1.msra.mxu0 %v2126
    %2137 = vmatprep.subr.mxu0 0.0
    %2138 = vmatpush1.msra.mxu0 %v2127
    %2139 = vmatprep.subr.mxu0 0.0
    %2140 = vmatpush1.msra.mxu0 %v2128
    %2141 = vmatprep.subr.mxu0 0.0
    %2142 = vmatpush1.msra.mxu0 0.0
    %2143 = vmatprep.subr.mxu0 0.0
    %2144 = vmatpush1.msra.mxu0 0.0
    %2145 = vmatprep.subr.mxu0 0.0
    %2146 = vmatpush1.msra.mxu0 0.0
    %2147 = vmatprep.subr.mxu0 0.0
    %2148 = vmatpush1.msra.mxu0 0.0
    %2149 = vmatprep.subr.mxu0 0.0
    %2150 = vmatpush1.msra.mxu0 0.0
    %2151 = vmatprep.subr.mxu0 0.0
    %2152 = vmatpush1.msra.mxu0 0.0
    %2153 = vmatprep.subr.mxu0 0.0
    %2154 = vmatpush1.msra.mxu0 0.0
    %2155 = vmatprep.subr.mxu0 0.0
    %2156 = vmatpush1.msra.mxu0 0.0
    %2157 = vmatprep.subr.mxu0 0.0
    %2158 = vmatpush1.msra.mxu0 0.0
    %2159 = vmatprep.subr.mxu0 0.0
    %2160 = vmatpush1.msra.mxu0 0.0
    %2161 = vmatprep.subr.mxu0 0.0
    %2162 = vmatpush1.msra.mxu0 0.0
    %2163 = vmatprep.subr.mxu0 0.0
    %2164 = vmatpush1.msra.mxu0 0.0
    %2165 = vmatprep.subr.mxu0 0.0
    %2166 = vmatpush1.msra.mxu0 0.0
    %2167 = vmatprep.subr.mxu0 0.0
    %2168 = vmatpush1.msra.mxu0 0.0
    %2169 = vmatprep.subr.mxu0 0.0
    %2170 = vmatpush1.msra.mxu0 0.0
    %2171 = vmatprep.subr.mxu0 0.0
    %2172 = vmatpush1.msra.mxu0 0.0
    %2173 = vmatprep.subr.mxu0 0.0
    %2174 = vmatpush1.msra.mxu0 0.0
    %2175 = vmatprep.subr.mxu0 0.0
    %2176 = vmatpush1.msra.mxu0 0.0
    %2177 = vmatprep.subr.mxu0 0.0
    %2178 = vmatpush1.msra.mxu0 0.0
    %2179 = vmatprep.subr.mxu0 0.0
    %2180 = vmatpush1.msra.mxu0 0.0
    %2181 = vmatprep.subr.mxu0 0.0
    %2182 = vmatpush1.msra.mxu0 0.0
    %2183 = vmatprep.subr.mxu0 0.0
    %2184 = vmatpush1.msra.mxu0 0.0
    %2185 = vmatprep.subr.mxu0 0.0
    %2186 = vmatpush1.msra.mxu0 0.0
    %2187 = vmatprep.subr.mxu0 0.0
    %2188 = vmatpush1.msra.mxu0 0.0
    %2189 = vmatprep.subr.mxu0 0.0
    %2190 = vmatpush1.msra.mxu0 0.0
    %2191 = vmatprep.subr.mxu0 0.0
    %2192 = vmatpush1.msra.mxu0 0.0
    %2193 = vmatprep.subr.mxu0 0.0
    %2194 = vmatpush1.msra.mxu0 0.0
    %2195 = vmatprep.subr.mxu0 0.0
    %2196 = vmatpush1.msra.mxu0 0.0
    %2197 = vmatprep.mubr.f32.mxu0 0.0
    %2198 = vmatmul.mubr.f32.gmra.mrb[0].mxu0 %v299
    %v2199 = vpop.f32.mrb[0].mxu0
    %v2200 = vadd.f32 0.0, %v2199
    %v2201 = vpop.f32.mrb[0].mxu0
    %2202 = vdwg.mxu0
    %v2203 = vadd.f32 %v2079, %v2200
    %2204 = vmatprep.subr.mxu0 0.0
    %2205 = vmatpush1.msra.mxu0 %v2129
    %2206 = vmatprep.subr.mxu0 0.0
    %2207 = vmatpush1.msra.mxu0 %v2130
    %2208 = vmatprep.subr.mxu0 0.0
    %2209 = vmatpush1.msra.mxu0 %v2131
    %2210 = vmatprep.subr.mxu0 0.0
    %2211 = vmatpush1.msra.mxu0 %v2132
    %2212 = vmatprep.subr.mxu0 0.0
    %2213 = vmatpush1.msra.mxu0 0.0
    %2214 = vmatprep.subr.mxu0 0.0
    %2215 = vmatpush1.msra.mxu0 0.0
    %2216 = vmatprep.subr.mxu0 0.0
    %2217 = vmatpush1.msra.mxu0 0.0
    %2218 = vmatprep.subr.mxu0 0.0
    %2219 = vmatpush1.msra.mxu0 0.0
    %2220 = vmatprep.subr.mxu0 0.0
    %2221 = vmatpush1.msra.mxu0 0.0
    %2222 = vmatprep.subr.mxu0 0.0
    %2223 = vmatpush1.msra.mxu0 0.0
    %2224 = vmatprep.subr.mxu0 0.0
    %2225 = vmatpush1.msra.mxu0 0.0
    %2226 = vmatprep.subr.mxu0 0.0
    %2227 = vmatpush1.msra.mxu0 0.0
    %2228 = vmatprep.subr.mxu0 0.0
    %2229 = vmatpush1.msra.mxu0 0.0
    %2230 = vmatprep.subr.mxu0 0.0
    %2231 = vmatpush1.msra.mxu0 0.0
    %2232 = vmatprep.subr.mxu0 0.0
    %2233 = vmatpush1.msra.mxu0 0.0
    %2234 = vmatprep.subr.mxu0 0.0
    %2235 = vmatpush1.msra.mxu0 0.0
    %2236 = vmatprep.subr.mxu0 0.0
    %2237 = vmatpush1.msra.mxu0 0.0
    %2238 = vmatprep.subr.mxu0 0.0
    %2239 = vmatpush1.msra.mxu0 0.0
    %2240 = vmatprep.subr.mxu0 0.0
    %2241 = vmatpush1.msra.mxu0 0.0
    %2242 = vmatprep.subr.mxu0 0.0
    %2243 = vmatpush1.msra.mxu0 0.0
    %2244 = vmatprep.subr.mxu0 0.0
    %2245 = vmatpush1.msra.mxu0 0.0
    %2246 = vmatprep.subr.mxu0 0.0
    %2247 = vmatpush1.msra.mxu0 0.0
    %2248 = vmatprep.subr.mxu0 0.0
    %2249 = vmatpush1.msra.mxu0 0.0
    %2250 = vmatprep.subr.mxu0 0.0
    %2251 = vmatpush1.msra.mxu0 0.0
    %2252 = vmatprep.subr.mxu0 0.0
    %2253 = vmatpush1.msra.mxu0 0.0
    %2254 = vmatprep.subr.mxu0 0.0
    %2255 = vmatpush1.msra.mxu0 0.0
    %2256 = vmatprep.subr.mxu0 0.0
    %2257 = vmatpush1.msra.mxu0 0.0
    %2258 = vmatprep.subr.mxu0 0.0
    %2259 = vmatpush1.msra.mxu0 0.0
    %2260 = vmatprep.subr.mxu0 0.0
    %2261 = vmatpush1.msra.mxu0 0.0
    %2262 = vmatprep.subr.mxu0 0.0
    %2263 = vmatpush1.msra.mxu0 0.0
    %2264 = vmatprep.subr.mxu0 0.0
    %2265 = vmatpush1.msra.mxu0 0.0
    %2266 = vmatprep.subr.mxu0 0.0
    %2267 = vmatpush1.msra.mxu0 0.0
    %2268 = vmatprep.mubr.f32.mxu0 0.0
    %2269 = vmatmul.mubr.f32.gmra.mrb[0].mxu0 %v299
    %v2270 = vpop.f32.mrb[0].mxu0
    %v2271 = vadd.f32 0.0, %v2270
    %v2272 = vpop.f32.mrb[0].mxu0
    %2273 = vdwg.mxu0
    %v2274 = vadd.f32 %v2123, %v2271
    %v2275 = vxor.u32 %v2203, 2147483648
    %v2276 = vmul.f32 %v2275, 1.442695
    %v2277 = vpow.pop %v2276
    %v2278 = vadd.f32 %v2277, 1.0
    %v2279 = vrcp.pop %v2278
    %v2280 = vmul.f32 1.0, %v2279
    %v2281 = vtanh.pop %v2203
    %v2282 = vmul.f32 %v2280, 0.0
    %2284 = vrot.lane.b32.xlu0 %v2281, 64
    %v2285 = vpop.permute.xlu0 %2284
    %v2287 = vmul.f32 %v2280, %v2285
    %2289 = vrot.lane.b32.xlu0 %v2287, 32
    %v2290 = vpop.permute.xlu0 %2289
    %v2292 = vadd.f32 %v2282, %v2290
    %v2293 = vtanh.pop %v2292
    %2295 = vrot.lane.b32.xlu0 %v2293, 64
    %v2296 = vpop.permute.xlu0 %2295
    %v2298 = vmul.f32 %v2280, %v2296
    %v2299 = vxor.u32 %v2274, 2147483648
    %v2300 = vmul.f32 %v2299, 1.442695
    %v2301 = vpow.pop %v2300
    %v2302 = vadd.f32 %v2301, 1.0
    %v2303 = vrcp.pop %v2302
    %v2304 = vmul.f32 1.0, %v2303
    %v2305 = vtanh.pop %v2274
    %v2306 = vmul.f32 %v2304, 0.0
    %2308 = vrot.lane.b32.xlu0 %v2305, 64
    %v2309 = vpop.permute.xlu0 %2308
    %v2311 = vmul.f32 %v2304, %v2309
    %2313 = vrot.lane.b32.xlu0 %v2311, 32
    %v2314 = vpop.permute.xlu0 %2313
    %v2316 = vadd.f32 %v2306, %v2314
    %v2317 = vtanh.pop %v2316
    %2319 = vrot.lane.b32.xlu0 %v2317, 64
    %v2320 = vpop.permute.xlu0 %2319
    %v2322 = vmul.f32 %v2304, %v2320
    %2324 = vrot.lane.b32.xlu0 %v2298, 32
    %v2325 = vpop.permute.xlu0 %2324
    %v2326 = vsel %vm152, %v2325, 0
    %2328 = vmatprep.subr.mxu0 0.0
    %2329 = vmatpush1.msra.mxu0 %v52
    %2330 = vmatprep.subr.mxu0 0.0
    %2331 = vmatpush1.msra.mxu0 %v53
    %2332 = vmatprep.subr.mxu0 0.0
    %2333 = vmatpush1.msra.mxu0 %v54
    %2334 = vmatprep.subr.mxu0 0.0
    %2335 = vmatpush1.msra.mxu0 %v55
    %2336 = vmatprep.subr.mxu0 0.0
    %2337 = vmatpush1.msra.mxu0 0.0
    %2338 = vmatprep.subr.mxu0 0.0
    %2339 = vmatpush1.msra.mxu0 0.0
    %2340 = vmatprep.subr.mxu0 0.0
    %2341 = vmatpush1.msra.mxu0 0.0
    %2342 = vmatprep.subr.mxu0 0.0
    %2343 = vmatpush1.msra.mxu0 0.0
    %2344 = vmatprep.subr.mxu0 0.0
    %2345 = vmatpush1.msra.mxu0 0.0
    %2346 = vmatprep.subr.mxu0 0.0
    %2347 = vmatpush1.msra.mxu0 0.0
    %2348 = vmatprep.subr.mxu0 0.0
    %2349 = vmatpush1.msra.mxu0 0.0
    %2350 = vmatprep.subr.mxu0 0.0
    %2351 = vmatpush1.msra.mxu0 0.0
    %2352 = vmatprep.subr.mxu0 0.0
    %2353 = vmatpush1.msra.mxu0 0.0
    %2354 = vmatprep.subr.mxu0 0.0
    %2355 = vmatpush1.msra.mxu0 0.0
    %2356 = vmatprep.subr.mxu0 0.0
    %2357 = vmatpush1.msra.mxu0 0.0
    %2358 = vmatprep.subr.mxu0 0.0
    %2359 = vmatpush1.msra.mxu0 0.0
    %2360 = vmatprep.subr.mxu0 0.0
    %2361 = vmatpush1.msra.mxu0 0.0
    %2362 = vmatprep.subr.mxu0 0.0
    %2363 = vmatpush1.msra.mxu0 0.0
    %2364 = vmatprep.subr.mxu0 0.0
    %2365 = vmatpush1.msra.mxu0 0.0
    %2366 = vmatprep.subr.mxu0 0.0
    %2367 = vmatpush1.msra.mxu0 0.0
    %2368 = vmatprep.subr.mxu0 0.0
    %2369 = vmatpush1.msra.mxu0 0.0
    %2370 = vmatprep.subr.mxu0 0.0
    %2371 = vmatpush1.msra.mxu0 0.0
    %2372 = vmatprep.subr.mxu0 0.0
    %2373 = vmatpush1.msra.mxu0 0.0
    %2374 = vmatprep.subr.mxu0 0.0
    %2375 = vmatpush1.msra.mxu0 0.0
    %2376 = vmatprep.subr.mxu0 0.0
    %2377 = vmatpush1.msra.mxu0 0.0
    %2378 = vmatprep.subr.mxu0 0.0
    %2379 = vmatpush1.msra.mxu0 0.0
    %2380 = vmatprep.subr.mxu0 0.0
    %2381 = vmatpush1.msra.mxu0 0.0
    %2382 = vmatprep.subr.mxu0 0.0
    %2383 = vmatpush1.msra.mxu0 0.0
    %2384 = vmatprep.subr.mxu0 0.0
    %2385 = vmatpush1.msra.mxu0 0.0
    %2386 = vmatprep.subr.mxu0 0.0
    %2387 = vmatpush1.msra.mxu0 0.0
    %2388 = vmatprep.subr.mxu0 0.0
    %2389 = vmatpush1.msra.mxu0 0.0
    %2390 = vmatprep.subr.mxu0 0.0
    %2391 = vmatpush1.msra.mxu0 0.0
    %2392 = vmatprep.mubr.f32.mxu0 0.0
    %2393 = vmatmul.mubr.f32.gmra.mrb[0].mxu0 %v2326
    %v2394 = vpop.f32.mrb[0].mxu0
    %v2395 = vadd.f32 0.0, %v2394
    %v2396 = vpop.f32.mrb[0].mxu0
    %2397 = vdwg.mxu0
    %v2398 = vadd.f32 %v123, %v2395
    %2400 = vrot.lane.b32.xlu0 %v2322, 32
    %v2401 = vpop.permute.xlu0 %2400
    %v2402 = vsel %vm152, %v2401, 0
    %2404 = vmatprep.subr.mxu0 0.0
    %2405 = vmatpush1.msra.mxu0 %v112
    %2406 = vmatprep.subr.mxu0 0.0
    %2407 = vmatpush1.msra.mxu0 %v113
    %2408 = vmatprep.subr.mxu0 0.0
    %2409 = vmatpush1.msra.mxu0 %v114
    %2410 = vmatprep.subr.mxu0 0.0
    %2411 = vmatpush1.msra.mxu0 %v115
    %2412 = vmatprep.subr.mxu0 0.0
    %2413 = vmatpush1.msra.mxu0 0.0
    %2414 = vmatprep.subr.mxu0 0.0
    %2415 = vmatpush1.msra.mxu0 0.0
    %2416 = vmatprep.subr.mxu0 0.0
    %2417 = vmatpush1.msra.mxu0 0.0
    %2418 = vmatprep.subr.mxu0 0.0
    %2419 = vmatpush1.msra.mxu0 0.0
    %2420 = vmatprep.subr.mxu0 0.0
    %2421 = vmatpush1.msra.mxu0 0.0
    %2422 = vmatprep.subr.mxu0 0.0
    %2423 = vmatpush1.msra.mxu0 0.0
    %2424 = vmatprep.subr.mxu0 0.0
    %2425 = vmatpush1.msra.mxu0 0.0
    %2426 = vmatprep.subr.mxu0 0.0
    %2427 = vmatpush1.msra.mxu0 0.0
    %2428 = vmatprep.subr.mxu0 0.0
    %2429 = vmatpush1.msra.mxu0 0.0
    %2430 = vmatprep.subr.mxu0 0.0
    %2431 = vmatpush1.msra.mxu0 0.0
    %2432 = vmatprep.subr.mxu0 0.0
    %2433 = vmatpush1.msra.mxu0 0.0
    %2434 = vmatprep.subr.mxu0 0.0
    %2435 = vmatpush1.msra.mxu0 0.0
    %2436 = vmatprep.subr.mxu0 0.0
    %2437 = vmatpush1.msra.mxu0 0.0
    %2438 = vmatprep.subr.mxu0 0.0
    %2439 = vmatpush1.msra.mxu0 0.0
    %2440 = vmatprep.subr.mxu0 0.0
    %2441 = vmatpush1.msra.mxu0 0.0
    %2442 = vmatprep.subr.mxu0 0.0
    %2443 = vmatpush1.msra.mxu0 0.0
    %2444 = vmatprep.subr.mxu0 0.0
    %2445 = vmatpush1.msra.mxu0 0.0
    %2446 = vmatprep.subr.mxu0 0.0
    %2447 = vmatpush1.msra.mxu0 0.0
    %2448 = vmatprep.subr.mxu0 0.0
    %2449 = vmatpush1.msra.mxu0 0.0
    %2450 = vmatprep.subr.mxu0 0.0
    %2451 = vmatpush1.msra.mxu0 0.0
    %2452 = vmatprep.subr.mxu0 0.0
    %2453 = vmatpush1.msra.mxu0 0.0
    %2454 = vmatprep.subr.mxu0 0.0
    %2455 = vmatpush1.msra.mxu0 0.0
    %2456 = vmatprep.subr.mxu0 0.0
    %2457 = vmatpush1.msra.mxu0 0.0
    %2458 = vmatprep.subr.mxu0 0.0
    %2459 = vmatpush1.msra.mxu0 0.0
    %2460 = vmatprep.subr.mxu0 0.0
    %2461 = vmatpush1.msra.mxu0 0.0
    %2462 = vmatprep.subr.mxu0 0.0
    %2463 = vmatpush1.msra.mxu0 0.0
    %2464 = vmatprep.subr.mxu0 0.0
    %2465 = vmatpush1.msra.mxu0 0.0
    %2466 = vmatprep.subr.mxu0 0.0
    %2467 = vmatpush1.msra.mxu0 0.0
    %2468 = vmatprep.mubr.f32.mxu0 0.0
    %2469 = vmatmul.mubr.f32.gmra.mrb[0].mxu0 %v2402
    %v2470 = vpop.f32.mrb[0].mxu0
    %v2471 = vadd.f32 0.0, %v2470
    %v2472 = vpop.f32.mrb[0].mxu0
    %2473 = vdwg.mxu0
    %v2474 = vadd.f32 %v2398, %v2471
    %2475 = vmatprep.subr.mxu0 0.0
    %2476 = vmatpush1.msra.mxu0 %v2125
    %2477 = vmatprep.subr.mxu0 0.0
    %2478 = vmatpush1.msra.mxu0 %v2126
    %2479 = vmatprep.subr.mxu0 0.0
    %2480 = vmatpush1.msra.mxu0 %v2127
    %2481 = vmatprep.subr.mxu0 0.0
    %2482 = vmatpush1.msra.mxu0 %v2128
    %2483 = vmatprep.subr.mxu0 0.0
    %2484 = vmatpush1.msra.mxu0 0.0
    %2485 = vmatprep.subr.mxu0 0.0
    %2486 = vmatpush1.msra.mxu0 0.0
    %2487 = vmatprep.subr.mxu0 0.0
    %2488 = vmatpush1.msra.mxu0 0.0
    %2489 = vmatprep.subr.mxu0 0.0
    %2490 = vmatpush1.msra.mxu0 0.0
    %2491 = vmatprep.subr.mxu0 0.0
    %2492 = vmatpush1.msra.mxu0 0.0
    %2493 = vmatprep.subr.mxu0 0.0
    %2494 = vmatpush1.msra.mxu0 0.0
    %2495 = vmatprep.subr.mxu0 0.0
    %2496 = vmatpush1.msra.mxu0 0.0
    %2497 = vmatprep.subr.mxu0 0.0
    %2498 = vmatpush1.msra.mxu0 0.0
    %2499 = vmatprep.subr.mxu0 0.0
    %2500 = vmatpush1.msra.mxu0 0.0
    %2501 = vmatprep.subr.mxu0 0.0
    %2502 = vmatpush1.msra.mxu0 0.0
    %2503 = vmatprep.subr.mxu0 0.0
    %2504 = vmatpush1.msra.mxu0 0.0
    %2505 = vmatprep.subr.mxu0 0.0
    %2506 = vmatpush1.msra.mxu0 0.0
    %2507 = vmatprep.subr.mxu0 0.0
    %2508 = vmatpush1.msra.mxu0 0.0
    %2509 = vmatprep.subr.mxu0 0.0
    %2510 = vmatpush1.msra.mxu0 0.0
    %2511 = vmatprep.subr.mxu0 0.0
    %2512 = vmatpush1.msra.mxu0 0.0
    %2513 = vmatprep.subr.mxu0 0.0
    %2514 = vmatpush1.msra.mxu0 0.0
    %2515 = vmatprep.subr.mxu0 0.0
    %2516 = vmatpush1.msra.mxu0 0.0
    %2517 = vmatprep.subr.mxu0 0.0
    %2518 = vmatpush1.msra.mxu0 0.0
    %2519 = vmatprep.subr.mxu0 0.0
    %2520 = vmatpush1.msra.mxu0 0.0
    %2521 = vmatprep.subr.mxu0 0.0
    %2522 = vmatpush1.msra.mxu0 0.0
    %2523 = vmatprep.subr.mxu0 0.0
    %2524 = vmatpush1.msra.mxu0 0.0
    %2525 = vmatprep.subr.mxu0 0.0
    %2526 = vmatpush1.msra.mxu0 0.0
    %2527 = vmatprep.subr.mxu0 0.0
    %2528 = vmatpush1.msra.mxu0 0.0
    %2529 = vmatprep.subr.mxu0 0.0
    %2530 = vmatpush1.msra.mxu0 0.0
    %2531 = vmatprep.subr.mxu0 0.0
    %2532 = vmatpush1.msra.mxu0 0.0
    %2533 = vmatprep.subr.mxu0 0.0
    %2534 = vmatpush1.msra.mxu0 0.0
    %2535 = vmatprep.subr.mxu0 0.0
    %2536 = vmatpush1.msra.mxu0 0.0
    %2537 = vmatprep.subr.mxu0 0.0
    %2538 = vmatpush1.msra.mxu0 0.0
    %2539 = vmatprep.mubr.f32.mxu0 0.0
    %2540 = vmatmul.mubr.f32.gmra.mrb[0].mxu0 %v2326
    %v2541 = vpop.f32.mrb[0].mxu0
    %v2542 = vadd.f32 0.0, %v2541
    %v2543 = vpop.f32.mrb[0].mxu0
    %2544 = vdwg.mxu0
    %v2545 = vadd.f32 %v2085, %v2542
    %2546 = vmatprep.subr.mxu0 0.0
    %2547 = vmatpush1.msra.mxu0 %v2129
    %2548 = vmatprep.subr.mxu0 0.0
    %2549 = vmatpush1.msra.mxu0 %v2130
    %2550 = vmatprep.subr.mxu0 0.0
    %2551 = vmatpush1.msra.mxu0 %v2131
    %2552 = vmatprep.subr.mxu0 0.0
    %2553 = vmatpush1.msra.mxu0 %v2132
    %2554 = vmatprep.subr.mxu0 0.0
    %2555 = vmatpush1.msra.mxu0 0.0
    %2556 = vmatprep.subr.mxu0 0.0
    %2557 = vmatpush1.msra.mxu0 0.0
    %2558 = vmatprep.subr.mxu0 0.0
    %2559 = vmatpush1.msra.mxu0 0.0
    %2560 = vmatprep.subr.mxu0 0.0
    %2561 = vmatpush1.msra.mxu0 0.0
    %2562 = vmatprep.subr.mxu0 0.0
    %2563 = vmatpush1.msra.mxu0 0.0
    %2564 = vmatprep.subr.mxu0 0.0
    %2565 = vmatpush1.msra.mxu0 0.0
    %2566 = vmatprep.subr.mxu0 0.0
    %2567 = vmatpush1.msra.mxu0 0.0
    %2568 = vmatprep.subr.mxu0 0.0
    %2569 = vmatpush1.msra.mxu0 0.0
    %2570 = vmatprep.subr.mxu0 0.0
    %2571 = vmatpush1.msra.mxu0 0.0
    %2572 = vmatprep.subr.mxu0 0.0
    %2573 = vmatpush1.msra.mxu0 0.0
    %2574 = vmatprep.subr.mxu0 0.0
    %2575 = vmatpush1.msra.mxu0 0.0
    %2576 = vmatprep.subr.mxu0 0.0
    %2577 = vmatpush1.msra.mxu0 0.0
    %2578 = vmatprep.subr.mxu0 0.0
    %2579 = vmatpush1.msra.mxu0 0.0
    %2580 = vmatprep.subr.mxu0 0.0
    %2581 = vmatpush1.msra.mxu0 0.0
    %2582 = vmatprep.subr.mxu0 0.0
    %2583 = vmatpush1.msra.mxu0 0.0
    %2584 = vmatprep.subr.mxu0 0.0
    %2585 = vmatpush1.msra.mxu0 0.0
    %2586 = vmatprep.subr.mxu0 0.0
    %2587 = vmatpush1.msra.mxu0 0.0
    %2588 = vmatprep.subr.mxu0 0.0
    %2589 = vmatpush1.msra.mxu0 0.0
    %2590 = vmatprep.subr.mxu0 0.0
    %2591 = vmatpush1.msra.mxu0 0.0
    %2592 = vmatprep.subr.mxu0 0.0
    %2593 = vmatpush1.msra.mxu0 0.0
    %2594 = vmatprep.subr.mxu0 0.0
    %2595 = vmatpush1.msra.mxu0 0.0
    %2596 = vmatprep.subr.mxu0 0.0
    %2597 = vmatpush1.msra.mxu0 0.0
    %2598 = vmatprep.subr.mxu0 0.0
    %2599 = vmatpush1.msra.mxu0 0.0
    %2600 = vmatprep.subr.mxu0 0.0
    %2601 = vmatpush1.msra.mxu0 0.0
    %2602 = vmatprep.subr.mxu0 0.0
    %2603 = vmatpush1.msra.mxu0 0.0
    %2604 = vmatprep.subr.mxu0 0.0
    %2605 = vmatpush1.msra.mxu0 0.0
    %2606 = vmatprep.subr.mxu0 0.0
    %2607 = vmatpush1.msra.mxu0 0.0
    %2608 = vmatprep.subr.mxu0 0.0
    %2609 = vmatpush1.msra.mxu0 0.0
    %2610 = vmatprep.mubr.f32.mxu0 0.0
    %2611 = vmatmul.mubr.f32.gmra.mrb[0].mxu0 %v2402
    %v2612 = vpop.f32.mrb[0].mxu0
    %v2613 = vadd.f32 0.0, %v2612
    %v2614 = vpop.f32.mrb[0].mxu0
    %2615 = vdwg.mxu0
    %v2616 = vadd.f32 %v2117, %v2613
    %v2617 = vxor.u32 %v2545, 2147483648
    %v2618 = vmul.f32 %v2617, 1.442695
    %v2619 = vpow.pop %v2618
    %v2620 = vadd.f32 %v2619, 1.0
    %v2621 = vrcp.pop %v2620
    %v2622 = vmul.f32 1.0, %v2621
    %v2623 = vtanh.pop %v2545
    %v2624 = vmul.f32 %v2622, %v2292
    %2626 = vrot.lane.b32.xlu0 %v2623, 64
    %v2627 = vpop.permute.xlu0 %2626
    %v2629 = vmul.f32 %v2622, %v2627
    %2631 = vrot.lane.b32.xlu0 %v2629, 32
    %v2632 = vpop.permute.xlu0 %2631
    %v2634 = vadd.f32 %v2624, %v2632
    %v2635 = vtanh.pop %v2634
    %2637 = vrot.lane.b32.xlu0 %v2635, 64
    %v2638 = vpop.permute.xlu0 %2637
    %v2640 = vmul.f32 %v2622, %v2638
    %v2641 = vxor.u32 %v2616, 2147483648
    %v2642 = vmul.f32 %v2641, 1.442695
    %v2643 = vpow.pop %v2642
    %v2644 = vadd.f32 %v2643, 1.0
    %v2645 = vrcp.pop %v2644
    %v2646 = vmul.f32 1.0, %v2645
    %v2647 = vtanh.pop %v2616
    %v2648 = vmul.f32 %v2646, %v2316
    %2650 = vrot.lane.b32.xlu0 %v2647, 64
    %v2651 = vpop.permute.xlu0 %2650
    %v2653 = vmul.f32 %v2646, %v2651
    %2655 = vrot.lane.b32.xlu0 %v2653, 32
    %v2656 = vpop.permute.xlu0 %2655
    %v2658 = vadd.f32 %v2648, %v2656
    %v2659 = vtanh.pop %v2658
    %2661 = vrot.lane.b32.xlu0 %v2659, 64
    %v2662 = vpop.permute.xlu0 %2661
    %v2664 = vmul.f32 %v2646, %v2662
    %2666 = vrot.lane.b32.xlu0 %v2640, 32
    %v2667 = vpop.permute.xlu0 %2666
    %v2668 = vsel %vm152, %v2667, 0
    %2670 = vmatprep.subr.mxu0 0.0
    %2671 = vmatpush1.msra.mxu0 %v60
    %2672 = vmatprep.subr.mxu0 0.0
    %2673 = vmatpush1.msra.mxu0 %v61
    %2674 = vmatprep.subr.mxu0 0.0
    %2675 = vmatpush1.msra.mxu0 %v62
    %2676 = vmatprep.subr.mxu0 0.0
    %2677 = vmatpush1.msra.mxu0 %v63
    %2678 = vmatprep.subr.mxu0 0.0
    %2679 = vmatpush1.msra.mxu0 0.0
    %2680 = vmatprep.subr.mxu0 0.0
    %2681 = vmatpush1.msra.mxu0 0.0
    %2682 = vmatprep.subr.mxu0 0.0
    %2683 = vmatpush1.msra.mxu0 0.0
    %2684 = vmatprep.subr.mxu0 0.0
    %2685 = vmatpush1.msra.mxu0 0.0
    %2686 = vmatprep.subr.mxu0 0.0
    %2687 = vmatpush1.msra.mxu0 0.0
    %2688 = vmatprep.subr.mxu0 0.0
    %2689 = vmatpush1.msra.mxu0 0.0
    %2690 = vmatprep.subr.mxu0 0.0
    %2691 = vmatpush1.msra.mxu0 0.0
    %2692 = vmatprep.subr.mxu0 0.0
    %2693 = vmatpush1.msra.mxu0 0.0
    %2694 = vmatprep.subr.mxu0 0.0
    %2695 = vmatpush1.msra.mxu0 0.0
    %2696 = vmatprep.subr.mxu0 0.0
    %2697 = vmatpush1.msra.mxu0 0.0
    %2698 = vmatprep.subr.mxu0 0.0
    %2699 = vmatpush1.msra.mxu0 0.0
    %2700 = vmatprep.subr.mxu0 0.0
    %2701 = vmatpush1.msra.mxu0 0.0
    %2702 = vmatprep.subr.mxu0 0.0
    %2703 = vmatpush1.msra.mxu0 0.0
    %2704 = vmatprep.subr.mxu0 0.0
    %2705 = vmatpush1.msra.mxu0 0.0
    %2706 = vmatprep.subr.mxu0 0.0
    %2707 = vmatpush1.msra.mxu0 0.0
    %2708 = vmatprep.subr.mxu0 0.0
    %2709 = vmatpush1.msra.mxu0 0.0
    %2710 = vmatprep.subr.mxu0 0.0
    %2711 = vmatpush1.msra.mxu0 0.0
    %2712 = vmatprep.subr.mxu0 0.0
    %2713 = vmatpush1.msra.mxu0 0.0
    %2714 = vmatprep.subr.mxu0 0.0
    %2715 = vmatpush1.msra.mxu0 0.0
    %2716 = vmatprep.subr.mxu0 0.0
    %2717 = vmatpush1.msra.mxu0 0.0
    %2718 = vmatprep.subr.mxu0 0.0
    %2719 = vmatpush1.msra.mxu0 0.0
    %2720 = vmatprep.subr.mxu0 0.0
    %2721 = vmatpush1.msra.mxu0 0.0
    %2722 = vmatprep.subr.mxu0 0.0
    %2723 = vmatpush1.msra.mxu0 0.0
    %2724 = vmatprep.subr.mxu0 0.0
    %2725 = vmatpush1.msra.mxu0 0.0
    %2726 = vmatprep.subr.mxu0 0.0
    %2727 = vmatpush1.msra.mxu0 0.0
    %2728 = vmatprep.subr.mxu0 0.0
    %2729 = vmatpush1.msra.mxu0 0.0
    %2730 = vmatprep.subr.mxu0 0.0
    %2731 = vmatpush1.msra.mxu0 0.0
    %2732 = vmatprep.subr.mxu0 0.0
    %2733 = vmatpush1.msra.mxu0 0.0
    %2734 = vmatprep.mubr.f32.mxu0 0.0
    %2735 = vmatmul.mubr.f32.gmra.mrb[0].mxu0 %v2668
    %v2736 = vpop.f32.mrb[0].mxu0
    %v2737 = vadd.f32 0.0, %v2736
    %v2738 = vpop.f32.mrb[0].mxu0
    %2739 = vdwg.mxu0
    %v2740 = vadd.f32 %v2474, %v2737
    %2742 = vrot.lane.b32.xlu0 %v2664, 32
    %v2743 = vpop.permute.xlu0 %2742
    %v2744 = vsel %vm152, %v2743, 0
    %2746 = vmatprep.subr.mxu0 0.0
    %2747 = vmatpush1.msra.mxu0 %v104
    %2748 = vmatprep.subr.mxu0 0.0
    %2749 = vmatpush1.msra.mxu0 %v105
    %2750 = vmatprep.subr.mxu0 0.0
    %2751 = vmatpush1.msra.mxu0 %v106
    %2752 = vmatprep.subr.mxu0 0.0
    %2753 = vmatpush1.msra.mxu0 %v107
    %2754 = vmatprep.subr.mxu0 0.0
    %2755 = vmatpush1.msra.mxu0 0.0
    %2756 = vmatprep.subr.mxu0 0.0
    %2757 = vmatpush1.msra.mxu0 0.0
    %2758 = vmatprep.subr.mxu0 0.0
    %2759 = vmatpush1.msra.mxu0 0.0
    %2760 = vmatprep.subr.mxu0 0.0
    %2761 = vmatpush1.msra.mxu0 0.0
    %2762 = vmatprep.subr.mxu0 0.0
    %2763 = vmatpush1.msra.mxu0 0.0
    %2764 = vmatprep.subr.mxu0 0.0
    %2765 = vmatpush1.msra.mxu0 0.0
    %2766 = vmatprep.subr.mxu0 0.0
    %2767 = vmatpush1.msra.mxu0 0.0
    %2768 = vmatprep.subr.mxu0 0.0
    %2769 = vmatpush1.msra.mxu0 0.0
    %2770 = vmatprep.subr.mxu0 0.0
    %2771 = vmatpush1.msra.mxu0 0.0
    %2772 = vmatprep.subr.mxu0 0.0
    %2773 = vmatpush1.msra.mxu0 0.0
    %2774 = vmatprep.subr.mxu0 0.0
    %2775 = vmatpush1.msra.mxu0 0.0
    %2776 = vmatprep.subr.mxu0 0.0
    %2777 = vmatpush1.msra.mxu0 0.0
    %2778 = vmatprep.subr.mxu0 0.0
    %2779 = vmatpush1.msra.mxu0 0.0
    %2780 = vmatprep.subr.mxu0 0.0
    %2781 = vmatpush1.msra.mxu0 0.0
    %2782 = vmatprep.subr.mxu0 0.0
    %2783 = vmatpush1.msra.mxu0 0.0
    %2784 = vmatprep.subr.mxu0 0.0
    %2785 = vmatpush1.msra.mxu0 0.0
    %2786 = vmatprep.subr.mxu0 0.0
    %2787 = vmatpush1.msra.mxu0 0.0
    %2788 = vmatprep.subr.mxu0 0.0
    %2789 = vmatpush1.msra.mxu0 0.0
    %2790 = vmatprep.subr.mxu0 0.0
    %2791 = vmatpush1.msra.mxu0 0.0
    %2792 = vmatprep.subr.mxu0 0.0
    %2793 = vmatpush1.msra.mxu0 0.0
    %2794 = vmatprep.subr.mxu0 0.0
    %2795 = vmatpush1.msra.mxu0 0.0
    %2796 = vmatprep.subr.mxu0 0.0
    %2797 = vmatpush1.msra.mxu0 0.0
    %2798 = vmatprep.subr.mxu0 0.0
    %2799 = vmatpush1.msra.mxu0 0.0
    %2800 = vmatprep.subr.mxu0 0.0
    %2801 = vmatpush1.msra.mxu0 0.0
    %2802 = vmatprep.subr.mxu0 0.0
    %2803 = vmatpush1.msra.mxu0 0.0
    %2804 = vmatprep.subr.mxu0 0.0
    %2805 = vmatpush1.msra.mxu0 0.0
    %2806 = vmatprep.subr.mxu0 0.0
    %2807 = vmatpush1.msra.mxu0 0.0
    %2808 = vmatprep.subr.mxu0 0.0
    %2809 = vmatpush1.msra.mxu0 0.0
    %2810 = vmatprep.mubr.f32.mxu0 0.0
    %2811 = vmatmul.mubr.f32.gmra.mrb[0].mxu0 %v2744
    %v2812 = vpop.f32.mrb[0].mxu0
    %v2813 = vadd.f32 0.0, %v2812
    %v2814 = vpop.f32.mrb[0].mxu0
    %2815 = vdwg.mxu0
    %v2816 = vadd.f32 %v2740, %v2813
    %2817 = vmatprep.subr.mxu0 0.0
    %2818 = vmatpush1.msra.mxu0 %v2125
    %2819 = vmatprep.subr.mxu0 0.0
    %2820 = vmatpush1.msra.mxu0 %v2126
    %2821 = vmatprep.subr.mxu0 0.0
    %2822 = vmatpush1.msra.mxu0 %v2127
    %2823 = vmatprep.subr.mxu0 0.0
    %2824 = vmatpush1.msra.mxu0 %v2128
    %2825 = vmatprep.subr.mxu0 0.0
    %2826 = vmatpush1.msra.mxu0 0.0
    %2827 = vmatprep.subr.mxu0 0.0
    %2828 = vmatpush1.msra.mxu0 0.0
    %2829 = vmatprep.subr.mxu0 0.0
    %2830 = vmatpush1.msra.mxu0 0.0
    %2831 = vmatprep.subr.mxu0 0.0
    %2832 = vmatpush1.msra.mxu0 0.0
    %2833 = vmatprep.subr.mxu0 0.0
    %2834 = vmatpush1.msra.mxu0 0.0
    %2835 = vmatprep.subr.mxu0 0.0
    %2836 = vmatpush1.msra.mxu0 0.0
    %2837 = vmatprep.subr.mxu0 0.0
    %2838 = vmatpush1.msra.mxu0 0.0
    %2839 = vmatprep.subr.mxu0 0.0
    %2840 = vmatpush1.msra.mxu0 0.0
    %2841 = vmatprep.subr.mxu0 0.0
    %2842 = vmatpush1.msra.mxu0 0.0
    %2843 = vmatprep.subr.mxu0 0.0
    %2844 = vmatpush1.msra.mxu0 0.0
    %2845 = vmatprep.subr.mxu0 0.0
    %2846 = vmatpush1.msra.mxu0 0.0
    %2847 = vmatprep.subr.mxu0 0.0
    %2848 = vmatpush1.msra.mxu0 0.0
    %2849 = vmatprep.subr.mxu0 0.0
    %2850 = vmatpush1.msra.mxu0 0.0
    %2851 = vmatprep.subr.mxu0 0.0
    %2852 = vmatpush1.msra.mxu0 0.0
    %2853 = vmatprep.subr.mxu0 0.0
    %2854 = vmatpush1.msra.mxu0 0.0
    %2855 = vmatprep.subr.mxu0 0.0
    %2856 = vmatpush1.msra.mxu0 0.0
    %2857 = vmatprep.subr.mxu0 0.0
    %2858 = vmatpush1.msra.mxu0 0.0
    %2859 = vmatprep.subr.mxu0 0.0
    %2860 = vmatpush1.msra.mxu0 0.0
    %2861 = vmatprep.subr.mxu0 0.0
    %2862 = vmatpush1.msra.mxu0 0.0
    %2863 = vmatprep.subr.mxu0 0.0
    %2864 = vmatpush1.msra.mxu0 0.0
    %2865 = vmatprep.subr.mxu0 0.0
    %2866 = vmatpush1.msra.mxu0 0.0
    %2867 = vmatprep.subr.mxu0 0.0
    %2868 = vmatpush1.msra.mxu0 0.0
    %2869 = vmatprep.subr.mxu0 0.0
    %2870 = vmatpush1.msra.mxu0 0.0
    %2871 = vmatprep.subr.mxu0 0.0
    %2872 = vmatpush1.msra.mxu0 0.0
    %2873 = vmatprep.subr.mxu0 0.0
    %2874 = vmatpush1.msra.mxu0 0.0
    %2875 = vmatprep.subr.mxu0 0.0
    %2876 = vmatpush1.msra.mxu0 0.0
    %2877 = vmatprep.subr.mxu0 0.0
    %2878 = vmatpush1.msra.mxu0 0.0
    %2879 = vmatprep.subr.mxu0 0.0
    %2880 = vmatpush1.msra.mxu0 0.0
    %2881 = vmatprep.mubr.f32.mxu0 0.0
    %2882 = vmatmul.mubr.f32.gmra.mrb[0].mxu0 %v2668
    %v2883 = vpop.f32.mrb[0].mxu0
    %v2884 = vadd.f32 0.0, %v2883
    %v2885 = vpop.f32.mrb[0].mxu0
    %2886 = vdwg.mxu0
    %v2887 = vadd.f32 %v2091, %v2884
    %2888 = vmatprep.subr.mxu0 0.0
    %2889 = vmatpush1.msra.mxu0 %v2129
    %2890 = vmatprep.subr.mxu0 0.0
    %2891 = vmatpush1.msra.mxu0 %v2130
    %2892 = vmatprep.subr.mxu0 0.0
    %2893 = vmatpush1.msra.mxu0 %v2131
    %2894 = vmatprep.subr.mxu0 0.0
    %2895 = vmatpush1.msra.mxu0 %v2132
    %2896 = vmatprep.subr.mxu0 0.0
    %2897 = vmatpush1.msra.mxu0 0.0
    %2898 = vmatprep.subr.mxu0 0.0
    %2899 = vmatpush1.msra.mxu0 0.0
    %2900 = vmatprep.subr.mxu0 0.0
    %2901 = vmatpush1.msra.mxu0 0.0
    %2902 = vmatprep.subr.mxu0 0.0
    %2903 = vmatpush1.msra.mxu0 0.0
    %2904 = vmatprep.subr.mxu0 0.0
    %2905 = vmatpush1.msra.mxu0 0.0
    %2906 = vmatprep.subr.mxu0 0.0
    %2907 = vmatpush1.msra.mxu0 0.0
    %2908 = vmatprep.subr.mxu0 0.0
    %2909 = vmatpush1.msra.mxu0 0.0
    %2910 = vmatprep.subr.mxu0 0.0
    %2911 = vmatpush1.msra.mxu0 0.0
    %2912 = vmatprep.subr.mxu0 0.0
    %2913 = vmatpush1.msra.mxu0 0.0
    %2914 = vmatprep.subr.mxu0 0.0
    %2915 = vmatpush1.msra.mxu0 0.0
    %2916 = vmatprep.subr.mxu0 0.0
    %2917 = vmatpush1.msra.mxu0 0.0
    %2918 = vmatprep.subr.mxu0 0.0
    %2919 = vmatpush1.msra.mxu0 0.0
    %2920 = vmatprep.subr.mxu0 0.0
    %2921 = vmatpush1.msra.mxu0 0.0
    %2922 = vmatprep.subr.mxu0 0.0
    %2923 = vmatpush1.msra.mxu0 0.0
    %2924 = vmatprep.subr.mxu0 0.0
    %2925 = vmatpush1.msra.mxu0 0.0
    %2926 = vmatprep.subr.mxu0 0.0
    %2927 = vmatpush1.msra.mxu0 0.0
    %2928 = vmatprep.subr.mxu0 0.0
    %2929 = vmatpush1.msra.mxu0 0.0
    %2930 = vmatprep.subr.mxu0 0.0
    %2931 = vmatpush1.msra.mxu0 0.0
    %2932 = vmatprep.subr.mxu0 0.0
    %2933 = vmatpush1.msra.mxu0 0.0
    %2934 = vmatprep.subr.mxu0 0.0
    %2935 = vmatpush1.msra.mxu0 0.0
    %2936 = vmatprep.subr.mxu0 0.0
    %2937 = vmatpush1.msra.mxu0 0.0
    %2938 = vmatprep.subr.mxu0 0.0
    %2939 = vmatpush1.msra.mxu0 0.0
    %2940 = vmatprep.subr.mxu0 0.0
    %2941 = vmatpush1.msra.mxu0 0.0
    %2942 = vmatprep.subr.mxu0 0.0
    %2943 = vmatpush1.msra.mxu0 0.0
    %2944 = vmatprep.subr.mxu0 0.0
    %2945 = vmatpush1.msra.mxu0 0.0
    %2946 = vmatprep.subr.mxu0 0.0
    %2947 = vmatpush1.msra.mxu0 0.0
    %2948 = vmatprep.subr.mxu0 0.0
    %2949 = vmatpush1.msra.mxu0 0.0
    %2950 = vmatprep.subr.mxu0 0.0
    %2951 = vmatpush1.msra.mxu0 0.0
    %2952 = vmatprep.mubr.f32.mxu0 0.0
    %2953 = vmatmul.mubr.f32.gmra.mrb[0].mxu0 %v2744
    %v2954 = vpop.f32.mrb[0].mxu0
    %v2955 = vadd.f32 0.0, %v2954
    %v2956 = vpop.f32.mrb[0].mxu0
    %2957 = vdwg.mxu0
    %v2958 = vadd.f32 %v2111, %v2955
    %v2959 = vxor.u32 %v2887, 2147483648
    %v2960 = vmul.f32 %v2959, 1.442695
    %v2961 = vpow.pop %v2960
    %v2962 = vadd.f32 %v2961, 1.0
    %v2963 = vrcp.pop %v2962
    %v2964 = vmul.f32 1.0, %v2963
    %v2965 = vtanh.pop %v2887
    %v2966 = vmul.f32 %v2964, %v2634
    %2968 = vrot.lane.b32.xlu0 %v2965, 64
    %v2969 = vpop.permute.xlu0 %2968
    %v2971 = vmul.f32 %v2964, %v2969
    %2973 = vrot.lane.b32.xlu0 %v2971, 32
    %v2974 = vpop.permute.xlu0 %2973
    %v2976 = vadd.f32 %v2966, %v2974
    %v2977 = vtanh.pop %v2976
    %2979 = vrot.lane.b32.xlu0 %v2977, 64
    %v2980 = vpop.permute.xlu0 %2979
    %v2982 = vmul.f32 %v2964, %v2980
    %v2983 = vxor.u32 %v2958, 2147483648
    %v2984 = vmul.f32 %v2983, 1.442695
    %v2985 = vpow.pop %v2984
    %v2986 = vadd.f32 %v2985, 1.0
    %v2987 = vrcp.pop %v2986
    %v2988 = vmul.f32 1.0, %v2987
    %v2989 = vtanh.pop %v2958
    %v2990 = vmul.f32 %v2988, %v2658
    %2992 = vrot.lane.b32.xlu0 %v2989, 64
    %v2993 = vpop.permute.xlu0 %2992
    %v2995 = vmul.f32 %v2988, %v2993
    %2997 = vrot.lane.b32.xlu0 %v2995, 32
    %v2998 = vpop.permute.xlu0 %2997
    %v3000 = vadd.f32 %v2990, %v2998
    %v3001 = vtanh.pop %v3000
    %3003 = vrot.lane.b32.xlu0 %v3001, 64
    %v3004 = vpop.permute.xlu0 %3003
    %v3006 = vmul.f32 %v2988, %v3004
    %3008 = vrot.lane.b32.xlu0 %v2982, 32
    %v3009 = vpop.permute.xlu0 %3008
    %v3010 = vsel %vm152, %v3009, 0
    %3012 = vmatprep.subr.mxu0 0.0
    %3013 = vmatpush1.msra.mxu0 %v68
    %3014 = vmatprep.subr.mxu0 0.0
    %3015 = vmatpush1.msra.mxu0 %v69
    %3016 = vmatprep.subr.mxu0 0.0
    %3017 = vmatpush1.msra.mxu0 %v70
    %3018 = vmatprep.subr.mxu0 0.0
    %3019 = vmatpush1.msra.mxu0 %v71
    %3020 = vmatprep.subr.mxu0 0.0
    %3021 = vmatpush1.msra.mxu0 0.0
    %3022 = vmatprep.subr.mxu0 0.0
    %3023 = vmatpush1.msra.mxu0 0.0
    %3024 = vmatprep.subr.mxu0 0.0
    %3025 = vmatpush1.msra.mxu0 0.0
    %3026 = vmatprep.subr.mxu0 0.0
    %3027 = vmatpush1.msra.mxu0 0.0
    %3028 = vmatprep.subr.mxu0 0.0
    %3029 = vmatpush1.msra.mxu0 0.0
    %3030 = vmatprep.subr.mxu0 0.0
    %3031 = vmatpush1.msra.mxu0 0.0
    %3032 = vmatprep.subr.mxu0 0.0
    %3033 = vmatpush1.msra.mxu0 0.0
    %3034 = vmatprep.subr.mxu0 0.0
    %3035 = vmatpush1.msra.mxu0 0.0
    %3036 = vmatprep.subr.mxu0 0.0
    %3037 = vmatpush1.msra.mxu0 0.0
    %3038 = vmatprep.subr.mxu0 0.0
    %3039 = vmatpush1.msra.mxu0 0.0
    %3040 = vmatprep.subr.mxu0 0.0
    %3041 = vmatpush1.msra.mxu0 0.0
    %3042 = vmatprep.subr.mxu0 0.0
    %3043 = vmatpush1.msra.mxu0 0.0
    %3044 = vmatprep.subr.mxu0 0.0
    %3045 = vmatpush1.msra.mxu0 0.0
    %3046 = vmatprep.subr.mxu0 0.0
    %3047 = vmatpush1.msra.mxu0 0.0
    %3048 = vmatprep.subr.mxu0 0.0
    %3049 = vmatpush1.msra.mxu0 0.0
    %3050 = vmatprep.subr.mxu0 0.0
    %3051 = vmatpush1.msra.mxu0 0.0
    %3052 = vmatprep.subr.mxu0 0.0
    %3053 = vmatpush1.msra.mxu0 0.0
    %3054 = vmatprep.subr.mxu0 0.0
    %3055 = vmatpush1.msra.mxu0 0.0
    %3056 = vmatprep.subr.mxu0 0.0
    %3057 = vmatpush1.msra.mxu0 0.0
    %3058 = vmatprep.subr.mxu0 0.0
    %3059 = vmatpush1.msra.mxu0 0.0
    %3060 = vmatprep.subr.mxu0 0.0
    %3061 = vmatpush1.msra.mxu0 0.0
    %3062 = vmatprep.subr.mxu0 0.0
    %3063 = vmatpush1.msra.mxu0 0.0
    %3064 = vmatprep.subr.mxu0 0.0
    %3065 = vmatpush1.msra.mxu0 0.0
    %3066 = vmatprep.subr.mxu0 0.0
    %3067 = vmatpush1.msra.mxu0 0.0
    %3068 = vmatprep.subr.mxu0 0.0
    %3069 = vmatpush1.msra.mxu0 0.0
    %3070 = vmatprep.subr.mxu0 0.0
    %3071 = vmatpush1.msra.mxu0 0.0
    %3072 = vmatprep.subr.mxu0 0.0
    %3073 = vmatpush1.msra.mxu0 0.0
    %3074 = vmatprep.subr.mxu0 0.0
    %3075 = vmatpush1.msra.mxu0 0.0
    %3076 = vmatprep.mubr.f32.mxu0 0.0
    %3077 = vmatmul.mubr.f32.gmra.mrb[0].mxu0 %v3010
    %v3078 = vpop.f32.mrb[0].mxu0
    %v3079 = vadd.f32 0.0, %v3078
    %v3080 = vpop.f32.mrb[0].mxu0
    %3081 = vdwg.mxu0
    %v3082 = vadd.f32 %v2816, %v3079
    %3084 = vrot.lane.b32.xlu0 %v3006, 32
    %v3085 = vpop.permute.xlu0 %3084
    %v3086 = vsel %vm152, %v3085, 0
    %3088 = vmatprep.subr.mxu0 0.0
    %3089 = vmatpush1.msra.mxu0 %v96
    %3090 = vmatprep.subr.mxu0 0.0
    %3091 = vmatpush1.msra.mxu0 %v97
    %3092 = vmatprep.subr.mxu0 0.0
    %3093 = vmatpush1.msra.mxu0 %v98
    %3094 = vmatprep.subr.mxu0 0.0
    %3095 = vmatpush1.msra.mxu0 %v99
    %3096 = vmatprep.subr.mxu0 0.0
    %3097 = vmatpush1.msra.mxu0 0.0
    %3098 = vmatprep.subr.mxu0 0.0
    %3099 = vmatpush1.msra.mxu0 0.0
    %3100 = vmatprep.subr.mxu0 0.0
    %3101 = vmatpush1.msra.mxu0 0.0
    %3102 = vmatprep.subr.mxu0 0.0
    %3103 = vmatpush1.msra.mxu0 0.0
    %3104 = vmatprep.subr.mxu0 0.0
    %3105 = vmatpush1.msra.mxu0 0.0
    %3106 = vmatprep.subr.mxu0 0.0
    %3107 = vmatpush1.msra.mxu0 0.0
    %3108 = vmatprep.subr.mxu0 0.0
    %3109 = vmatpush1.msra.mxu0 0.0
    %3110 = vmatprep.subr.mxu0 0.0
    %3111 = vmatpush1.msra.mxu0 0.0
    %3112 = vmatprep.subr.mxu0 0.0
    %3113 = vmatpush1.msra.mxu0 0.0
    %3114 = vmatprep.subr.mxu0 0.0
    %3115 = vmatpush1.msra.mxu0 0.0
    %3116 = vmatprep.subr.mxu0 0.0
    %3117 = vmatpush1.msra.mxu0 0.0
    %3118 = vmatprep.subr.mxu0 0.0
    %3119 = vmatpush1.msra.mxu0 0.0
    %3120 = vmatprep.subr.mxu0 0.0
    %3121 = vmatpush1.msra.mxu0 0.0
    %3122 = vmatprep.subr.mxu0 0.0
    %3123 = vmatpush1.msra.mxu0 0.0
    %3124 = vmatprep.subr.mxu0 0.0
    %3125 = vmatpush1.msra.mxu0 0.0
    %3126 = vmatprep.subr.mxu0 0.0
    %3127 = vmatpush1.msra.mxu0 0.0
    %3128 = vmatprep.subr.mxu0 0.0
    %3129 = vmatpush1.msra.mxu0 0.0
    %3130 = vmatprep.subr.mxu0 0.0
    %3131 = vmatpush1.msra.mxu0 0.0
    %3132 = vmatprep.subr.mxu0 0.0
    %3133 = vmatpush1.msra.mxu0 0.0
    %3134 = vmatprep.subr.mxu0 0.0
    %3135 = vmatpush1.msra.mxu0 0.0
    %3136 = vmatprep.subr.mxu0 0.0
    %3137 = vmatpush1.msra.mxu0 0.0
    %3138 = vmatprep.subr.mxu0 0.0
    %3139 = vmatpush1.msra.mxu0 0.0
    %3140 = vmatprep.subr.mxu0 0.0
    %3141 = vmatpush1.msra.mxu0 0.0
    %3142 = vmatprep.subr.mxu0 0.0
    %3143 = vmatpush1.msra.mxu0 0.0
    %3144 = vmatprep.subr.mxu0 0.0
    %3145 = vmatpush1.msra.mxu0 0.0
    %3146 = vmatprep.subr.mxu0 0.0
    %3147 = vmatpush1.msra.mxu0 0.0
    %3148 = vmatprep.subr.mxu0 0.0
    %3149 = vmatpush1.msra.mxu0 0.0
    %3150 = vmatprep.subr.mxu0 0.0
    %3151 = vmatpush1.msra.mxu0 0.0
    %3152 = vmatprep.mubr.f32.mxu0 0.0
    %3153 = vmatmul.mubr.f32.gmra.mrb[0].mxu0 %v3086
    %v3154 = vpop.f32.mrb[0].mxu0
    %v3155 = vadd.f32 0.0, %v3154
    %v3156 = vpop.f32.mrb[0].mxu0
    %3157 = vdwg.mxu0
    %v3158 = vadd.f32 %v3082, %v3155
    %3159 = vmatprep.subr.mxu0 0.0
    %3160 = vmatpush1.msra.mxu0 %v2125
    %3161 = vmatprep.subr.mxu0 0.0
    %3162 = vmatpush1.msra.mxu0 %v2126
    %3163 = vmatprep.subr.mxu0 0.0
    %3164 = vmatpush1.msra.mxu0 %v2127
    %3165 = vmatprep.subr.mxu0 0.0
    %3166 = vmatpush1.msra.mxu0 %v2128
    %3167 = vmatprep.subr.mxu0 0.0
    %3168 = vmatpush1.msra.mxu0 0.0
    %3169 = vmatprep.subr.mxu0 0.0
    %3170 = vmatpush1.msra.mxu0 0.0
    %3171 = vmatprep.subr.mxu0 0.0
    %3172 = vmatpush1.msra.mxu0 0.0
    %3173 = vmatprep.subr.mxu0 0.0
    %3174 = vmatpush1.msra.mxu0 0.0
    %3175 = vmatprep.subr.mxu0 0.0
    %3176 = vmatpush1.msra.mxu0 0.0
    %3177 = vmatprep.subr.mxu0 0.0
    %3178 = vmatpush1.msra.mxu0 0.0
    %3179 = vmatprep.subr.mxu0 0.0
    %3180 = vmatpush1.msra.mxu0 0.0
    %3181 = vmatprep.subr.mxu0 0.0
    %3182 = vmatpush1.msra.mxu0 0.0
    %3183 = vmatprep.subr.mxu0 0.0
    %3184 = vmatpush1.msra.mxu0 0.0
    %3185 = vmatprep.subr.mxu0 0.0
    %3186 = vmatpush1.msra.mxu0 0.0
    %3187 = vmatprep.subr.mxu0 0.0
    %3188 = vmatpush1.msra.mxu0 0.0
    %3189 = vmatprep.subr.mxu0 0.0
    %3190 = vmatpush1.msra.mxu0 0.0
    %3191 = vmatprep.subr.mxu0 0.0
    %3192 = vmatpush1.msra.mxu0 0.0
    %3193 = vmatprep.subr.mxu0 0.0
    %3194 = vmatpush1.msra.mxu0 0.0
    %3195 = vmatprep.subr.mxu0 0.0
    %3196 = vmatpush1.msra.mxu0 0.0
    %3197 = vmatprep.subr.mxu0 0.0
    %3198 = vmatpush1.msra.mxu0 0.0
    %3199 = vmatprep.subr.mxu0 0.0
    %3200 = vmatpush1.msra.mxu0 0.0
    %3201 = vmatprep.subr.mxu0 0.0
    %3202 = vmatpush1.msra.mxu0 0.0
    %3203 = vmatprep.subr.mxu0 0.0
    %3204 = vmatpush1.msra.mxu0 0.0
    %3205 = vmatprep.subr.mxu0 0.0
    %3206 = vmatpush1.msra.mxu0 0.0
    %3207 = vmatprep.subr.mxu0 0.0
    %3208 = vmatpush1.msra.mxu0 0.0
    %3209 = vmatprep.subr.mxu0 0.0
    %3210 = vmatpush1.msra.mxu0 0.0
    %3211 = vmatprep.subr.mxu0 0.0
    %3212 = vmatpush1.msra.mxu0 0.0
    %3213 = vmatprep.subr.mxu0 0.0
    %3214 = vmatpush1.msra.mxu0 0.0
    %3215 = vmatprep.subr.mxu0 0.0
    %3216 = vmatpush1.msra.mxu0 0.0
    %3217 = vmatprep.subr.mxu0 0.0
    %3218 = vmatpush1.msra.mxu0 0.0
    %3219 = vmatprep.subr.mxu0 0.0
    %3220 = vmatpush1.msra.mxu0 0.0
    %3221 = vmatprep.subr.mxu0 0.0
    %3222 = vmatpush1.msra.mxu0 0.0
    %3223 = vmatprep.mubr.f32.mxu0 0.0
    %3224 = vmatmul.mubr.f32.gmra.mrb[0].mxu0 %v3010
    %v3225 = vpop.f32.mrb[0].mxu0
    %v3226 = vadd.f32 0.0, %v3225
    %v3227 = vpop.f32.mrb[0].mxu0
    %3228 = vdwg.mxu0
    %v3229 = vadd.f32 %v2097, %v3226
    %3230 = vmatprep.subr.mxu0 0.0
    %3231 = vmatpush1.msra.mxu0 %v2129
    %3232 = vmatprep.subr.mxu0 0.0
    %3233 = vmatpush1.msra.mxu0 %v2130
    %3234 = vmatprep.subr.mxu0 0.0
    %3235 = vmatpush1.msra.mxu0 %v2131
    %3236 = vmatprep.subr.mxu0 0.0
    %3237 = vmatpush1.msra.mxu0 %v2132
    %3238 = vmatprep.subr.mxu0 0.0
    %3239 = vmatpush1.msra.mxu0 0.0
    %3240 = vmatprep.subr.mxu0 0.0
    %3241 = vmatpush1.msra.mxu0 0.0
    %3242 = vmatprep.subr.mxu0 0.0
    %3243 = vmatpush1.msra.mxu0 0.0
    %3244 = vmatprep.subr.mxu0 0.0
    %3245 = vmatpush1.msra.mxu0 0.0
    %3246 = vmatprep.subr.mxu0 0.0
    %3247 = vmatpush1.msra.mxu0 0.0
    %3248 = vmatprep.subr.mxu0 0.0
    %3249 = vmatpush1.msra.mxu0 0.0
    %3250 = vmatprep.subr.mxu0 0.0
    %3251 = vmatpush1.msra.mxu0 0.0
    %3252 = vmatprep.subr.mxu0 0.0
    %3253 = vmatpush1.msra.mxu0 0.0
    %3254 = vmatprep.subr.mxu0 0.0
    %3255 = vmatpush1.msra.mxu0 0.0
    %3256 = vmatprep.subr.mxu0 0.0
    %3257 = vmatpush1.msra.mxu0 0.0
    %3258 = vmatprep.subr.mxu0 0.0
    %3259 = vmatpush1.msra.mxu0 0.0
    %3260 = vmatprep.subr.mxu0 0.0
    %3261 = vmatpush1.msra.mxu0 0.0
    %3262 = vmatprep.subr.mxu0 0.0
    %3263 = vmatpush1.msra.mxu0 0.0
    %3264 = vmatprep.subr.mxu0 0.0
    %3265 = vmatpush1.msra.mxu0 0.0
    %3266 = vmatprep.subr.mxu0 0.0
    %3267 = vmatpush1.msra.mxu0 0.0
    %3268 = vmatprep.subr.mxu0 0.0
    %3269 = vmatpush1.msra.mxu0 0.0
    %3270 = vmatprep.subr.mxu0 0.0
    %3271 = vmatpush1.msra.mxu0 0.0
    %3272 = vmatprep.subr.mxu0 0.0
    %3273 = vmatpush1.msra.mxu0 0.0
    %3274 = vmatprep.subr.mxu0 0.0
    %3275 = vmatpush1.msra.mxu0 0.0
    %3276 = vmatprep.subr.mxu0 0.0
    %3277 = vmatpush1.msra.mxu0 0.0
    %3278 = vmatprep.subr.mxu0 0.0
    %3279 = vmatpush1.msra.mxu0 0.0
    %3280 = vmatprep.subr.mxu0 0.0
    %3281 = vmatpush1.msra.mxu0 0.0
    %3282 = vmatprep.subr.mxu0 0.0
    %3283 = vmatpush1.msra.mxu0 0.0
    %3284 = vmatprep.subr.mxu0 0.0
    %3285 = vmatpush1.msra.mxu0 0.0
    %3286 = vmatprep.subr.mxu0 0.0
    %3287 = vmatpush1.msra.mxu0 0.0
    %3288 = vmatprep.subr.mxu0 0.0
    %3289 = vmatpush1.msra.mxu0 0.0
    %3290 = vmatprep.subr.mxu0 0.0
    %3291 = vmatpush1.msra.mxu0 0.0
    %3292 = vmatprep.subr.mxu0 0.0
    %3293 = vmatpush1.msra.mxu0 0.0
    %3294 = vmatprep.mubr.f32.mxu0 0.0
    %3295 = vmatmul.mubr.f32.gmra.mrb[0].mxu0 %v3086
    %v3296 = vpop.f32.mrb[0].mxu0
    %v3297 = vadd.f32 0.0, %v3296
    %v3298 = vpop.f32.mrb[0].mxu0
    %3299 = vdwg.mxu0
    %v3300 = vadd.f32 %v2105, %v3297
    %v3301 = vxor.u32 %v3229, 2147483648
    %v3302 = vmul.f32 %v3301, 1.442695
    %v3303 = vpow.pop %v3302
    %v3304 = vadd.f32 %v3303, 1.0
    %v3305 = vrcp.pop %v3304
    %v3306 = vmul.f32 1.0, %v3305
    %v3307 = vtanh.pop %v3229
    %v3308 = vmul.f32 %v3306, %v2976
    %3310 = vrot.lane.b32.xlu0 %v3307, 64
    %v3311 = vpop.permute.xlu0 %3310
    %v3313 = vmul.f32 %v3306, %v3311
    %3315 = vrot.lane.b32.xlu0 %v3313, 32
    %v3316 = vpop.permute.xlu0 %3315
    %v3318 = vadd.f32 %v3308, %v3316
    %v3319 = vtanh.pop %v3318
    %3321 = vrot.lane.b32.xlu0 %v3319, 64
    %v3322 = vpop.permute.xlu0 %3321
    %v3324 = vmul.f32 %v3306, %v3322
    %v3325 = vxor.u32 %v3300, 2147483648
    %v3326 = vmul.f32 %v3325, 1.442695
    %v3327 = vpow.pop %v3326
    %v3328 = vadd.f32 %v3327, 1.0
    %v3329 = vrcp.pop %v3328
    %v3330 = vmul.f32 1.0, %v3329
    %v3331 = vtanh.pop %v3300
    %v3332 = vmul.f32 %v3330, %v3000
    %3334 = vrot.lane.b32.xlu0 %v3331, 64
    %v3335 = vpop.permute.xlu0 %3334
    %v3337 = vmul.f32 %v3330, %v3335
    %3339 = vrot.lane.b32.xlu0 %v3337, 32
    %v3340 = vpop.permute.xlu0 %3339
    %v3342 = vadd.f32 %v3332, %v3340
    %v3343 = vtanh.pop %v3342
    %3345 = vrot.lane.b32.xlu0 %v3343, 64
    %v3346 = vpop.permute.xlu0 %3345
    %v3348 = vmul.f32 %v3330, %v3346
    %3350 = vrot.lane.b32.xlu0 %v3324, 32
    %v3351 = vpop.permute.xlu0 %3350
    %v3352 = vsel %vm152, %v3351, 0
    %3354 = vmatprep.subr.mxu0 0.0
    %3355 = vmatpush1.msra.mxu0 %v76
    %3356 = vmatprep.subr.mxu0 0.0
    %3357 = vmatpush1.msra.mxu0 %v77
    %3358 = vmatprep.subr.mxu0 0.0
    %3359 = vmatpush1.msra.mxu0 %v78
    %3360 = vmatprep.subr.mxu0 0.0
    %3361 = vmatpush1.msra.mxu0 %v79
    %3362 = vmatprep.subr.mxu0 0.0
    %3363 = vmatpush1.msra.mxu0 0.0
    %3364 = vmatprep.subr.mxu0 0.0
    %3365 = vmatpush1.msra.mxu0 0.0
    %3366 = vmatprep.subr.mxu0 0.0
    %3367 = vmatpush1.msra.mxu0 0.0
    %3368 = vmatprep.subr.mxu0 0.0
    %3369 = vmatpush1.msra.mxu0 0.0
    %3370 = vmatprep.subr.mxu0 0.0
    %3371 = vmatpush1.msra.mxu0 0.0
    %3372 = vmatprep.subr.mxu0 0.0
    %3373 = vmatpush1.msra.mxu0 0.0
    %3374 = vmatprep.subr.mxu0 0.0
    %3375 = vmatpush1.msra.mxu0 0.0
    %3376 = vmatprep.subr.mxu0 0.0
    %3377 = vmatpush1.msra.mxu0 0.0
    %3378 = vmatprep.subr.mxu0 0.0
    %3379 = vmatpush1.msra.mxu0 0.0
    %3380 = vmatprep.subr.mxu0 0.0
    %3381 = vmatpush1.msra.mxu0 0.0
    %3382 = vmatprep.subr.mxu0 0.0
    %3383 = vmatpush1.msra.mxu0 0.0
    %3384 = vmatprep.subr.mxu0 0.0
    %3385 = vmatpush1.msra.mxu0 0.0
    %3386 = vmatprep.subr.mxu0 0.0
    %3387 = vmatpush1.msra.mxu0 0.0
    %3388 = vmatprep.subr.mxu0 0.0
    %3389 = vmatpush1.msra.mxu0 0.0
    %3390 = vmatprep.subr.mxu0 0.0
    %3391 = vmatpush1.msra.mxu0 0.0
    %3392 = vmatprep.subr.mxu0 0.0
    %3393 = vmatpush1.msra.mxu0 0.0
    %3394 = vmatprep.subr.mxu0 0.0
    %3395 = vmatpush1.msra.mxu0 0.0
    %3396 = vmatprep.subr.mxu0 0.0
    %3397 = vmatpush1.msra.mxu0 0.0
    %3398 = vmatprep.subr.mxu0 0.0
    %3399 = vmatpush1.msra.mxu0 0.0
    %3400 = vmatprep.subr.mxu0 0.0
    %3401 = vmatpush1.msra.mxu0 0.0
    %3402 = vmatprep.subr.mxu0 0.0
    %3403 = vmatpush1.msra.mxu0 0.0
    %3404 = vmatprep.subr.mxu0 0.0
    %3405 = vmatpush1.msra.mxu0 0.0
    %3406 = vmatprep.subr.mxu0 0.0
    %3407 = vmatpush1.msra.mxu0 0.0
    %3408 = vmatprep.subr.mxu0 0.0
    %3409 = vmatpush1.msra.mxu0 0.0
    %3410 = vmatprep.subr.mxu0 0.0
    %3411 = vmatpush1.msra.mxu0 0.0
    %3412 = vmatprep.subr.mxu0 0.0
    %3413 = vmatpush1.msra.mxu0 0.0
    %3414 = vmatprep.subr.mxu0 0.0
    %3415 = vmatpush1.msra.mxu0 0.0
    %3416 = vmatprep.subr.mxu0 0.0
    %3417 = vmatpush1.msra.mxu0 0.0
    %3418 = vmatprep.mubr.f32.mxu0 0.0
    %3419 = vmatmul.mubr.f32.gmra.mrb[0].mxu0 %v3352
    %v3420 = vpop.f32.mrb[0].mxu0
    %v3421 = vadd.f32 0.0, %v3420
    %v3422 = vpop.f32.mrb[0].mxu0
    %3423 = vdwg.mxu0
    %v3424 = vadd.f32 %v3158, %v3421
    %3426 = vrot.lane.b32.xlu0 %v3348, 32
    %v3427 = vpop.permute.xlu0 %3426
    %v3428 = vsel %vm152, %v3427, 0
    %3430 = vmatprep.subr.mxu0 0.0
    %3431 = vmatpush1.msra.mxu0 %v88
    %3432 = vmatprep.subr.mxu0 0.0
    %3433 = vmatpush1.msra.mxu0 %v89
    %3434 = vmatprep.subr.mxu0 0.0
    %3435 = vmatpush1.msra.mxu0 %v90
    %3436 = vmatprep.subr.mxu0 0.0
    %3437 = vmatpush1.msra.mxu0 %v91
    %3438 = vmatprep.subr.mxu0 0.0
    %3439 = vmatpush1.msra.mxu0 0.0
    %3440 = vmatprep.subr.mxu0 0.0
    %3441 = vmatpush1.msra.mxu0 0.0
    %3442 = vmatprep.subr.mxu0 0.0
    %3443 = vmatpush1.msra.mxu0 0.0
    %3444 = vmatprep.subr.mxu0 0.0
    %3445 = vmatpush1.msra.mxu0 0.0
    %3446 = vmatprep.subr.mxu0 0.0
    %3447 = vmatpush1.msra.mxu0 0.0
    %3448 = vmatprep.subr.mxu0 0.0
    %3449 = vmatpush1.msra.mxu0 0.0
    %3450 = vmatprep.subr.mxu0 0.0
    %3451 = vmatpush1.msra.mxu0 0.0
    %3452 = vmatprep.subr.mxu0 0.0
    %3453 = vmatpush1.msra.mxu0 0.0
    %3454 = vmatprep.subr.mxu0 0.0
    %3455 = vmatpush1.msra.mxu0 0.0
    %3456 = vmatprep.subr.mxu0 0.0
    %3457 = vmatpush1.msra.mxu0 0.0
    %3458 = vmatprep.subr.mxu0 0.0
    %3459 = vmatpush1.msra.mxu0 0.0
    %3460 = vmatprep.subr.mxu0 0.0
    %3461 = vmatpush1.msra.mxu0 0.0
    %3462 = vmatprep.subr.mxu0 0.0
    %3463 = vmatpush1.msra.mxu0 0.0
    %3464 = vmatprep.subr.mxu0 0.0
    %3465 = vmatpush1.msra.mxu0 0.0
    %3466 = vmatprep.subr.mxu0 0.0
    %3467 = vmatpush1.msra.mxu0 0.0
    %3468 = vmatprep.subr.mxu0 0.0
    %3469 = vmatpush1.msra.mxu0 0.0
    %3470 = vmatprep.subr.mxu0 0.0
    %3471 = vmatpush1.msra.mxu0 0.0
    %3472 = vmatprep.subr.mxu0 0.0
    %3473 = vmatpush1.msra.mxu0 0.0
    %3474 = vmatprep.subr.mxu0 0.0
    %3475 = vmatpush1.msra.mxu0 0.0
    %3476 = vmatprep.subr.mxu0 0.0
    %3477 = vmatpush1.msra.mxu0 0.0
    %3478 = vmatprep.subr.mxu0 0.0
    %3479 = vmatpush1.msra.mxu0 0.0
    %3480 = vmatprep.subr.mxu0 0.0
    %3481 = vmatpush1.msra.mxu0 0.0
    %3482 = vmatprep.subr.mxu0 0.0
    %3483 = vmatpush1.msra.mxu0 0.0
    %3484 = vmatprep.subr.mxu0 0.0
    %3485 = vmatpush1.msra.mxu0 0.0
    %3486 = vmatprep.subr.mxu0 0.0
    %3487 = vmatpush1.msra.mxu0 0.0
    %3488 = vmatprep.subr.mxu0 0.0
    %3489 = vmatpush1.msra.mxu0 0.0
    %3490 = vmatprep.subr.mxu0 0.0
    %3491 = vmatpush1.msra.mxu0 0.0
    %3492 = vmatprep.subr.mxu0 0.0
    %3493 = vmatpush1.msra.mxu0 0.0
    %3494 = vmatprep.mubr.f32.mxu0 0.0
    %3495 = vmatmul.mubr.f32.gmra.mrb[0].mxu0 %v3428
    %v3496 = vpop.f32.mrb[0].mxu0
    %v3497 = vadd.f32 0.0, %v3496
    %v3498 = vpop.f32.mrb[0].mxu0
    %3499 = vdwg.mxu0
    %v3500 = vadd.f32 %v3424, %v3497
    %3501 = vmatprep.subr.mxu0 0.0
    %3502 = vmatpush1.msra.mxu0 %v2125
    %3503 = vmatprep.subr.mxu0 0.0
    %3504 = vmatpush1.msra.mxu0 %v2126
    %3505 = vmatprep.subr.mxu0 0.0
    %3506 = vmatpush1.msra.mxu0 %v2127
    %3507 = vmatprep.subr.mxu0 0.0
    %3508 = vmatpush1.msra.mxu0 %v2128
    %3509 = vmatprep.subr.mxu0 0.0
    %3510 = vmatpush1.msra.mxu0 0.0
    %3511 = vmatprep.subr.mxu0 0.0
    %3512 = vmatpush1.msra.mxu0 0.0
    %3513 = vmatprep.subr.mxu0 0.0
    %3514 = vmatpush1.msra.mxu0 0.0
    %3515 = vmatprep.subr.mxu0 0.0
    %3516 = vmatpush1.msra.mxu0 0.0
    %3517 = vmatprep.subr.mxu0 0.0
    %3518 = vmatpush1.msra.mxu0 0.0
    %3519 = vmatprep.subr.mxu0 0.0
    %3520 = vmatpush1.msra.mxu0 0.0
    %3521 = vmatprep.subr.mxu0 0.0
    %3522 = vmatpush1.msra.mxu0 0.0
    %3523 = vmatprep.subr.mxu0 0.0
    %3524 = vmatpush1.msra.mxu0 0.0
    %3525 = vmatprep.subr.mxu0 0.0
    %3526 = vmatpush1.msra.mxu0 0.0
    %3527 = vmatprep.subr.mxu0 0.0
    %3528 = vmatpush1.msra.mxu0 0.0
    %3529 = vmatprep.subr.mxu0 0.0
    %3530 = vmatpush1.msra.mxu0 0.0
    %3531 = vmatprep.subr.mxu0 0.0
    %3532 = vmatpush1.msra.mxu0 0.0
    %3533 = vmatprep.subr.mxu0 0.0
    %3534 = vmatpush1.msra.mxu0 0.0
    %3535 = vmatprep.subr.mxu0 0.0
    %3536 = vmatpush1.msra.mxu0 0.0
    %3537 = vmatprep.subr.mxu0 0.0
    %3538 = vmatpush1.msra.mxu0 0.0
    %3539 = vmatprep.subr.mxu0 0.0
    %3540 = vmatpush1.msra.mxu0 0.0
    %3541 = vmatprep.subr.mxu0 0.0
    %3542 = vmatpush1.msra.mxu0 0.0
    %3543 = vmatprep.subr.mxu0 0.0
    %3544 = vmatpush1.msra.mxu0 0.0
    %3545 = vmatprep.subr.mxu0 0.0
    %3546 = vmatpush1.msra.mxu0 0.0
    %3547 = vmatprep.subr.mxu0 0.0
    %3548 = vmatpush1.msra.mxu0 0.0
    %3549 = vmatprep.subr.mxu0 0.0
    %3550 = vmatpush1.msra.mxu0 0.0
    %3551 = vmatprep.subr.mxu0 0.0
    %3552 = vmatpush1.msra.mxu0 0.0
    %3553 = vmatprep.subr.mxu0 0.0
    %3554 = vmatpush1.msra.mxu0 0.0
    %3555 = vmatprep.subr.mxu0 0.0
    %3556 = vmatpush1.msra.mxu0 0.0
    %3557 = vmatprep.subr.mxu0 0.0
    %3558 = vmatpush1.msra.mxu0 0.0
    %3559 = vmatprep.subr.mxu0 0.0
    %3560 = vmatpush1.msra.mxu0 0.0
    %3561 = vmatprep.subr.mxu0 0.0
    %3562 = vmatpush1.msra.mxu0 0.0
    %3563 = vmatprep.subr.mxu0 0.0
    %3564 = vmatpush1.msra.mxu0 0.0
    %3565 = vmatprep.mubr.f32.mxu0 0.0
    %3566 = vmatmul.mubr.f32.gmra.mrb[0].mxu0 %v3352
    %v3567 = vpop.f32.mrb[0].mxu0
    %v3568 = vadd.f32 0.0, %v3567
    %v3569 = vpop.f32.mrb[0].mxu0
    %3570 = vdwg.mxu0
    %v3571 = vadd.f32 %v2103, %v3568
    %3572 = vmatprep.subr.mxu0 0.0
    %3573 = vmatpush1.msra.mxu0 %v2129
    %3574 = vmatprep.subr.mxu0 0.0
    %3575 = vmatpush1.msra.mxu0 %v2130
    %3576 = vmatprep.subr.mxu0 0.0
    %3577 = vmatpush1.msra.mxu0 %v2131
    %3578 = vmatprep.subr.mxu0 0.0
    %3579 = vmatpush1.msra.mxu0 %v2132
    %3580 = vmatprep.subr.mxu0 0.0
    %3581 = vmatpush1.msra.mxu0 0.0
    %3582 = vmatprep.subr.mxu0 0.0
    %3583 = vmatpush1.msra.mxu0 0.0
    %3584 = vmatprep.subr.mxu0 0.0
    %3585 = vmatpush1.msra.mxu0 0.0
    %3586 = vmatprep.subr.mxu0 0.0
    %3587 = vmatpush1.msra.mxu0 0.0
    %3588 = vmatprep.subr.mxu0 0.0
    %3589 = vmatpush1.msra.mxu0 0.0
    %3590 = vmatprep.subr.mxu0 0.0
    %3591 = vmatpush1.msra.mxu0 0.0
    %3592 = vmatprep.subr.mxu0 0.0
    %3593 = vmatpush1.msra.mxu0 0.0
    %3594 = vmatprep.subr.mxu0 0.0
    %3595 = vmatpush1.msra.mxu0 0.0
    %3596 = vmatprep.subr.mxu0 0.0
    %3597 = vmatpush1.msra.mxu0 0.0
    %3598 = vmatprep.subr.mxu0 0.0
    %3599 = vmatpush1.msra.mxu0 0.0
    %3600 = vmatprep.subr.mxu0 0.0
    %3601 = vmatpush1.msra.mxu0 0.0
    %3602 = vmatprep.subr.mxu0 0.0
    %3603 = vmatpush1.msra.mxu0 0.0
    %3604 = vmatprep.subr.mxu0 0.0
    %3605 = vmatpush1.msra.mxu0 0.0
    %3606 = vmatprep.subr.mxu0 0.0
    %3607 = vmatpush1.msra.mxu0 0.0
    %3608 = vmatprep.subr.mxu0 0.0
    %3609 = vmatpush1.msra.mxu0 0.0
    %3610 = vmatprep.subr.mxu0 0.0
    %3611 = vmatpush1.msra.mxu0 0.0
    %3612 = vmatprep.subr.mxu0 0.0
    %3613 = vmatpush1.msra.mxu0 0.0
    %3614 = vmatprep.subr.mxu0 0.0
    %3615 = vmatpush1.msra.mxu0 0.0
    %3616 = vmatprep.subr.mxu0 0.0
    %3617 = vmatpush1.msra.mxu0 0.0
    %3618 = vmatprep.subr.mxu0 0.0
    %3619 = vmatpush1.msra.mxu0 0.0
    %3620 = vmatprep.subr.mxu0 0.0
    %3621 = vmatpush1.msra.mxu0 0.0
    %3622 = vmatprep.subr.mxu0 0.0
    %3623 = vmatpush1.msra.mxu0 0.0
    %3624 = vmatprep.subr.mxu0 0.0
    %3625 = vmatpush1.msra.mxu0 0.0
    %3626 = vmatprep.subr.mxu0 0.0
    %3627 = vmatpush1.msra.mxu0 0.0
    %3628 = vmatprep.subr.mxu0 0.0
    %3629 = vmatpush1.msra.mxu0 0.0
    %3630 = vmatprep.subr.mxu0 0.0
    %3631 = vmatpush1.msra.mxu0 0.0
    %3632 = vmatprep.subr.mxu0 0.0
    %3633 = vmatpush1.msra.mxu0 0.0
    %3634 = vmatprep.subr.mxu0 0.0
    %3635 = vmatpush1.msra.mxu0 0.0
    %3636 = vmatprep.mubr.f32.mxu0 0.0
    %3637 = vmatmul.mubr.f32.gmra.mrb[0].mxu0 %v3428
    %v3638 = vpop.f32.mrb[0].mxu0
    %v3639 = vadd.f32 0.0, %v3638
    %v3640 = vpop.f32.mrb[0].mxu0
    %3641 = vdwg.mxu0
    %v3642 = vadd.f32 %v2099, %v3639
    %v3643 = vxor.u32 %v3571, 2147483648
    %v3644 = vmul.f32 %v3643, 1.442695
    %v3645 = vpow.pop %v3644
    %v3646 = vadd.f32 %v3645, 1.0
    %v3647 = vrcp.pop %v3646
    %v3648 = vmul.f32 1.0, %v3647
    %v3649 = vtanh.pop %v3571
    %v3650 = vmul.f32 %v3648, %v3318
    %3652 = vrot.lane.b32.xlu0 %v3649, 64
    %v3653 = vpop.permute.xlu0 %3652
    %v3655 = vmul.f32 %v3648, %v3653
    %3657 = vrot.lane.b32.xlu0 %v3655, 32
    %v3658 = vpop.permute.xlu0 %3657
    %v3660 = vadd.f32 %v3650, %v3658
    %v3661 = vtanh.pop %v3660
    %3663 = vrot.lane.b32.xlu0 %v3661, 64
    %v3664 = vpop.permute.xlu0 %3663
    %v3666 = vmul.f32 %v3648, %v3664
    %v3667 = vxor.u32 %v3642, 2147483648
    %v3668 = vmul.f32 %v3667, 1.442695
    %v3669 = vpow.pop %v3668
    %v3670 = vadd.f32 %v3669, 1.0
    %v3671 = vrcp.pop %v3670
    %v3672 = vmul.f32 1.0, %v3671
    %v3673 = vtanh.pop %v3642
    %v3674 = vmul.f32 %v3672, %v3342
    %3676 = vrot.lane.b32.xlu0 %v3673, 64
    %v3677 = vpop.permute.xlu0 %3676
    %v3679 = vmul.f32 %v3672, %v3677
    %3681 = vrot.lane.b32.xlu0 %v3679, 32
    %v3682 = vpop.permute.xlu0 %3681
    %v3684 = vadd.f32 %v3674, %v3682
    %v3685 = vtanh.pop %v3684
    %3687 = vrot.lane.b32.xlu0 %v3685, 64
    %v3688 = vpop.permute.xlu0 %3687
    %v3690 = vmul.f32 %v3672, %v3688
    %3692 = vrot.lane.b32.xlu0 %v3666, 32
    %v3693 = vpop.permute.xlu0 %3692
    %v3694 = vsel %vm152, %v3693, 0
    %3696 = vmatprep.subr.mxu0 0.0
    %3697 = vmatpush1.msra.mxu0 %v84
    %3698 = vmatprep.subr.mxu0 0.0
    %3699 = vmatpush1.msra.mxu0 %v85
    %3700 = vmatprep.subr.mxu0 0.0
    %3701 = vmatpush1.msra.mxu0 %v86
    %3702 = vmatprep.subr.mxu0 0.0
    %3703 = vmatpush1.msra.mxu0 %v87
    %3704 = vmatprep.subr.mxu0 0.0
    %3705 = vmatpush1.msra.mxu0 0.0
    %3706 = vmatprep.subr.mxu0 0.0
    %3707 = vmatpush1.msra.mxu0 0.0
    %3708 = vmatprep.subr.mxu0 0.0
    %3709 = vmatpush1.msra.mxu0 0.0
    %3710 = vmatprep.subr.mxu0 0.0
    %3711 = vmatpush1.msra.mxu0 0.0
    %3712 = vmatprep.subr.mxu0 0.0
    %3713 = vmatpush1.msra.mxu0 0.0
    %3714 = vmatprep.subr.mxu0 0.0
    %3715 = vmatpush1.msra.mxu0 0.0
    %3716 = vmatprep.subr.mxu0 0.0
    %3717 = vmatpush1.msra.mxu0 0.0
    %3718 = vmatprep.subr.mxu0 0.0
    %3719 = vmatpush1.msra.mxu0 0.0
    %3720 = vmatprep.subr.mxu0 0.0
    %3721 = vmatpush1.msra.mxu0 0.0
    %3722 = vmatprep.subr.mxu0 0.0
    %3723 = vmatpush1.msra.mxu0 0.0
    %3724 = vmatprep.subr.mxu0 0.0
    %3725 = vmatpush1.msra.mxu0 0.0
    %3726 = vmatprep.subr.mxu0 0.0
    %3727 = vmatpush1.msra.mxu0 0.0
    %3728 = vmatprep.subr.mxu0 0.0
    %3729 = vmatpush1.msra.mxu0 0.0
    %3730 = vmatprep.subr.mxu0 0.0
    %3731 = vmatpush1.msra.mxu0 0.0
    %3732 = vmatprep.subr.mxu0 0.0
    %3733 = vmatpush1.msra.mxu0 0.0
    %3734 = vmatprep.subr.mxu0 0.0
    %3735 = vmatpush1.msra.mxu0 0.0
    %3736 = vmatprep.subr.mxu0 0.0
    %3737 = vmatpush1.msra.mxu0 0.0
    %3738 = vmatprep.subr.mxu0 0.0
    %3739 = vmatpush1.msra.mxu0 0.0
    %3740 = vmatprep.subr.mxu0 0.0
    %3741 = vmatpush1.msra.mxu0 0.0
    %3742 = vmatprep.subr.mxu0 0.0
    %3743 = vmatpush1.msra.mxu0 0.0
    %3744 = vmatprep.subr.mxu0 0.0
    %3745 = vmatpush1.msra.mxu0 0.0
    %3746 = vmatprep.subr.mxu0 0.0
    %3747 = vmatpush1.msra.mxu0 0.0
    %3748 = vmatprep.subr.mxu0 0.0
    %3749 = vmatpush1.msra.mxu0 0.0
    %3750 = vmatprep.subr.mxu0 0.0
    %3751 = vmatpush1.msra.mxu0 0.0
    %3752 = vmatprep.subr.mxu0 0.0
    %3753 = vmatpush1.msra.mxu0 0.0
    %3754 = vmatprep.subr.mxu0 0.0
    %3755 = vmatpush1.msra.mxu0 0.0
    %3756 = vmatprep.subr.mxu0 0.0
    %3757 = vmatpush1.msra.mxu0 0.0
    %3758 = vmatprep.subr.mxu0 0.0
    %3759 = vmatpush1.msra.mxu0 0.0
    %3760 = vmatprep.mubr.f32.mxu0 0.0
    %3761 = vmatmul.mubr.f32.gmra.mrb[0].mxu0 %v3694
    %v3762 = vpop.f32.mrb[0].mxu0
    %v3763 = vadd.f32 0.0, %v3762
    %v3764 = vpop.f32.mrb[0].mxu0
    %3765 = vdwg.mxu0
    %v3766 = vadd.f32 %v3500, %v3763
    %3768 = vrot.lane.b32.xlu0 %v3690, 32
    %v3769 = vpop.permute.xlu0 %3768
    %v3770 = vsel %vm152, %v3769, 0
    %3772 = vmatprep.subr.mxu0 0.0
    %3773 = vmatpush1.msra.mxu0 %v80
    %3774 = vmatprep.subr.mxu0 0.0
    %3775 = vmatpush1.msra.mxu0 %v81
    %3776 = vmatprep.subr.mxu0 0.0
    %3777 = vmatpush1.msra.mxu0 %v82
    %3778 = vmatprep.subr.mxu0 0.0
    %3779 = vmatpush1.msra.mxu0 %v83
    %3780 = vmatprep.subr.mxu0 0.0
    %3781 = vmatpush1.msra.mxu0 0.0
    %3782 = vmatprep.subr.mxu0 0.0
    %3783 = vmatpush1.msra.mxu0 0.0
    %3784 = vmatprep.subr.mxu0 0.0
    %3785 = vmatpush1.msra.mxu0 0.0
    %3786 = vmatprep.subr.mxu0 0.0
    %3787 = vmatpush1.msra.mxu0 0.0
    %3788 = vmatprep.subr.mxu0 0.0
    %3789 = vmatpush1.msra.mxu0 0.0
    %3790 = vmatprep.subr.mxu0 0.0
    %3791 = vmatpush1.msra.mxu0 0.0
    %3792 = vmatprep.subr.mxu0 0.0
    %3793 = vmatpush1.msra.mxu0 0.0
    %3794 = vmatprep.subr.mxu0 0.0
    %3795 = vmatpush1.msra.mxu0 0.0
    %3796 = vmatprep.subr.mxu0 0.0
    %3797 = vmatpush1.msra.mxu0 0.0
    %3798 = vmatprep.subr.mxu0 0.0
    %3799 = vmatpush1.msra.mxu0 0.0
    %3800 = vmatprep.subr.mxu0 0.0
    %3801 = vmatpush1.msra.mxu0 0.0
    %3802 = vmatprep.subr.mxu0 0.0
    %3803 = vmatpush1.msra.mxu0 0.0
    %3804 = vmatprep.subr.mxu0 0.0
    %3805 = vmatpush1.msra.mxu0 0.0
    %3806 = vmatprep.subr.mxu0 0.0
    %3807 = vmatpush1.msra.mxu0 0.0
    %3808 = vmatprep.subr.mxu0 0.0
    %3809 = vmatpush1.msra.mxu0 0.0
    %3810 = vmatprep.subr.mxu0 0.0
    %3811 = vmatpush1.msra.mxu0 0.0
    %3812 = vmatprep.subr.mxu0 0.0
    %3813 = vmatpush1.msra.mxu0 0.0
    %3814 = vmatprep.subr.mxu0 0.0
    %3815 = vmatpush1.msra.mxu0 0.0
    %3816 = vmatprep.subr.mxu0 0.0
    %3817 = vmatpush1.msra.mxu0 0.0
    %3818 = vmatprep.subr.mxu0 0.0
    %3819 = vmatpush1.msra.mxu0 0.0
    %3820 = vmatprep.subr.mxu0 0.0
    %3821 = vmatpush1.msra.mxu0 0.0
    %3822 = vmatprep.subr.mxu0 0.0
    %3823 = vmatpush1.msra.mxu0 0.0
    %3824 = vmatprep.subr.mxu0 0.0
    %3825 = vmatpush1.msra.mxu0 0.0
    %3826 = vmatprep.subr.mxu0 0.0
    %3827 = vmatpush1.msra.mxu0 0.0
    %3828 = vmatprep.subr.mxu0 0.0
    %3829 = vmatpush1.msra.mxu0 0.0
    %3830 = vmatprep.subr.mxu0 0.0
    %3831 = vmatpush1.msra.mxu0 0.0
    %3832 = vmatprep.subr.mxu0 0.0
    %3833 = vmatpush1.msra.mxu0 0.0
    %3834 = vmatprep.subr.mxu0 0.0
    %3835 = vmatpush1.msra.mxu0 0.0
    %3836 = vmatprep.mubr.f32.mxu0 0.0
    %3837 = vmatmul.mubr.f32.gmra.mrb[0].mxu0 %v3770
    %v3838 = vpop.f32.mrb[0].mxu0
    %v3839 = vadd.f32 0.0, %v3838
    %v3840 = vpop.f32.mrb[0].mxu0
    %3841 = vdwg.mxu0
    %v3842 = vadd.f32 %v3766, %v3839
    %3843 = vmatprep.subr.mxu0 0.0
    %3844 = vmatpush1.msra.mxu0 %v2125
    %3845 = vmatprep.subr.mxu0 0.0
    %3846 = vmatpush1.msra.mxu0 %v2126
    %3847 = vmatprep.subr.mxu0 0.0
    %3848 = vmatpush1.msra.mxu0 %v2127
    %3849 = vmatprep.subr.mxu0 0.0
    %3850 = vmatpush1.msra.mxu0 %v2128
    %3851 = vmatprep.subr.mxu0 0.0
    %3852 = vmatpush1.msra.mxu0 0.0
    %3853 = vmatprep.subr.mxu0 0.0
    %3854 = vmatpush1.msra.mxu0 0.0
    %3855 = vmatprep.subr.mxu0 0.0
    %3856 = vmatpush1.msra.mxu0 0.0
    %3857 = vmatprep.subr.mxu0 0.0
    %3858 = vmatpush1.msra.mxu0 0.0
    %3859 = vmatprep.subr.mxu0 0.0
    %3860 = vmatpush1.msra.mxu0 0.0
    %3861 = vmatprep.subr.mxu0 0.0
    %3862 = vmatpush1.msra.mxu0 0.0
    %3863 = vmatprep.subr.mxu0 0.0
    %3864 = vmatpush1.msra.mxu0 0.0
    %3865 = vmatprep.subr.mxu0 0.0
    %3866 = vmatpush1.msra.mxu0 0.0
    %3867 = vmatprep.subr.mxu0 0.0
    %3868 = vmatpush1.msra.mxu0 0.0
    %3869 = vmatprep.subr.mxu0 0.0
    %3870 = vmatpush1.msra.mxu0 0.0
    %3871 = vmatprep.subr.mxu0 0.0
    %3872 = vmatpush1.msra.mxu0 0.0
    %3873 = vmatprep.subr.mxu0 0.0
    %3874 = vmatpush1.msra.mxu0 0.0
    %3875 = vmatprep.subr.mxu0 0.0
    %3876 = vmatpush1.msra.mxu0 0.0
    %3877 = vmatprep.subr.mxu0 0.0
    %3878 = vmatpush1.msra.mxu0 0.0
    %3879 = vmatprep.subr.mxu0 0.0
    %3880 = vmatpush1.msra.mxu0 0.0
    %3881 = vmatprep.subr.mxu0 0.0
    %3882 = vmatpush1.msra.mxu0 0.0
    %3883 = vmatprep.subr.mxu0 0.0
    %3884 = vmatpush1.msra.mxu0 0.0
    %3885 = vmatprep.subr.mxu0 0.0
    %3886 = vmatpush1.msra.mxu0 0.0
    %3887 = vmatprep.subr.mxu0 0.0
    %3888 = vmatpush1.msra.mxu0 0.0
    %3889 = vmatprep.subr.mxu0 0.0
    %3890 = vmatpush1.msra.mxu0 0.0
    %3891 = vmatprep.subr.mxu0 0.0
    %3892 = vmatpush1.msra.mxu0 0.0
    %3893 = vmatprep.subr.mxu0 0.0
    %3894 = vmatpush1.msra.mxu0 0.0
    %3895 = vmatprep.subr.mxu0 0.0
    %3896 = vmatpush1.msra.mxu0 0.0
    %3897 = vmatprep.subr.mxu0 0.0
    %3898 = vmatpush1.msra.mxu0 0.0
    %3899 = vmatprep.subr.mxu0 0.0
    %3900 = vmatpush1.msra.mxu0 0.0
    %3901 = vmatprep.subr.mxu0 0.0
    %3902 = vmatpush1.msra.mxu0 0.0
    %3903 = vmatprep.subr.mxu0 0.0
    %3904 = vmatpush1.msra.mxu0 0.0
    %3905 = vmatprep.subr.mxu0 0.0
    %3906 = vmatpush1.msra.mxu0 0.0
    %3907 = vmatprep.mubr.f32.mxu0 0.0
    %3908 = vmatmul.mubr.f32.gmra.mrb[0].mxu0 %v3694
    %v3909 = vpop.f32.mrb[0].mxu0
    %v3910 = vadd.f32 0.0, %v3909
    %v3911 = vpop.f32.mrb[0].mxu0
    %3912 = vdwg.mxu0
    %v3913 = vadd.f32 %v2109, %v3910
    %3914 = vmatprep.subr.mxu0 0.0
    %3915 = vmatpush1.msra.mxu0 %v2129
    %3916 = vmatprep.subr.mxu0 0.0
    %3917 = vmatpush1.msra.mxu0 %v2130
    %3918 = vmatprep.subr.mxu0 0.0
    %3919 = vmatpush1.msra.mxu0 %v2131
    %3920 = vmatprep.subr.mxu0 0.0
    %3921 = vmatpush1.msra.mxu0 %v2132
    %3922 = vmatprep.subr.mxu0 0.0
    %3923 = vmatpush1.msra.mxu0 0.0
    %3924 = vmatprep.subr.mxu0 0.0
    %3925 = vmatpush1.msra.mxu0 0.0
    %3926 = vmatprep.subr.mxu0 0.0
    %3927 = vmatpush1.msra.mxu0 0.0
    %3928 = vmatprep.subr.mxu0 0.0
    %3929 = vmatpush1.msra.mxu0 0.0
    %3930 = vmatprep.subr.mxu0 0.0
    %3931 = vmatpush1.msra.mxu0 0.0
    %3932 = vmatprep.subr.mxu0 0.0
    %3933 = vmatpush1.msra.mxu0 0.0
    %3934 = vmatprep.subr.mxu0 0.0
    %3935 = vmatpush1.msra.mxu0 0.0
    %3936 = vmatprep.subr.mxu0 0.0
    %3937 = vmatpush1.msra.mxu0 0.0
    %3938 = vmatprep.subr.mxu0 0.0
    %3939 = vmatpush1.msra.mxu0 0.0
    %3940 = vmatprep.subr.mxu0 0.0
    %3941 = vmatpush1.msra.mxu0 0.0
    %3942 = vmatprep.subr.mxu0 0.0
    %3943 = vmatpush1.msra.mxu0 0.0
    %3944 = vmatprep.subr.mxu0 0.0
    %3945 = vmatpush1.msra.mxu0 0.0
    %3946 = vmatprep.subr.mxu0 0.0
    %3947 = vmatpush1.msra.mxu0 0.0
    %3948 = vmatprep.subr.mxu0 0.0
    %3949 = vmatpush1.msra.mxu0 0.0
    %3950 = vmatprep.subr.mxu0 0.0
    %3951 = vmatpush1.msra.mxu0 0.0
    %3952 = vmatprep.subr.mxu0 0.0
    %3953 = vmatpush1.msra.mxu0 0.0
    %3954 = vmatprep.subr.mxu0 0.0
    %3955 = vmatpush1.msra.mxu0 0.0
    %3956 = vmatprep.subr.mxu0 0.0
    %3957 = vmatpush1.msra.mxu0 0.0
    %3958 = vmatprep.subr.mxu0 0.0
    %3959 = vmatpush1.msra.mxu0 0.0
    %3960 = vmatprep.subr.mxu0 0.0
    %3961 = vmatpush1.msra.mxu0 0.0
    %3962 = vmatprep.subr.mxu0 0.0
    %3963 = vmatpush1.msra.mxu0 0.0
    %3964 = vmatprep.subr.mxu0 0.0
    %3965 = vmatpush1.msra.mxu0 0.0
    %3966 = vmatprep.subr.mxu0 0.0
    %3967 = vmatpush1.msra.mxu0 0.0
    %3968 = vmatprep.subr.mxu0 0.0
    %3969 = vmatpush1.msra.mxu0 0.0
    %3970 = vmatprep.subr.mxu0 0.0
    %3971 = vmatpush1.msra.mxu0 0.0
    %3972 = vmatprep.subr.mxu0 0.0
    %3973 = vmatpush1.msra.mxu0 0.0
    %3974 = vmatprep.subr.mxu0 0.0
    %3975 = vmatpush1.msra.mxu0 0.0
    %3976 = vmatprep.subr.mxu0 0.0
    %3977 = vmatpush1.msra.mxu0 0.0
    %3978 = vmatprep.mubr.f32.mxu0 0.0
    %3979 = vmatmul.mubr.f32.gmra.mrb[0].mxu0 %v3770
    %v3980 = vpop.f32.mrb[0].mxu0
    %v3981 = vadd.f32 0.0, %v3980
    %v3982 = vpop.f32.mrb[0].mxu0
    %3983 = vdwg.mxu0
    %v3984 = vadd.f32 %v2093, %v3981
    %v3985 = vxor.u32 %v3913, 2147483648
    %v3986 = vmul.f32 %v3985, 1.442695
    %v3987 = vpow.pop %v3986
    %v3988 = vadd.f32 %v3987, 1.0
    %v3989 = vrcp.pop %v3988
    %v3990 = vmul.f32 1.0, %v3989
    %v3991 = vtanh.pop %v3913
    %v3992 = vmul.f32 %v3990, %v3660
    %3994 = vrot.lane.b32.xlu0 %v3991, 64
    %v3995 = vpop.permute.xlu0 %3994
    %v3997 = vmul.f32 %v3990, %v3995
    %3999 = vrot.lane.b32.xlu0 %v3997, 32
    %v4000 = vpop.permute.xlu0 %3999
    %v4002 = vadd.f32 %v3992, %v4000
    %v4003 = vtanh.pop %v4002
    %4005 = vrot.lane.b32.xlu0 %v4003, 64
    %v4006 = vpop.permute.xlu0 %4005
    %v4008 = vmul.f32 %v3990, %v4006
    %v4009 = vxor.u32 %v3984, 2147483648
    %v4010 = vmul.f32 %v4009, 1.442695
    %v4011 = vpow.pop %v4010
    %v4012 = vadd.f32 %v4011, 1.0
    %v4013 = vrcp.pop %v4012
    %v4014 = vmul.f32 1.0, %v4013
    %v4015 = vtanh.pop %v3984
    %v4016 = vmul.f32 %v4014, %v3684
    %4018 = vrot.lane.b32.xlu0 %v4015, 64
    %v4019 = vpop.permute.xlu0 %4018
    %v4021 = vmul.f32 %v4014, %v4019
    %4023 = vrot.lane.b32.xlu0 %v4021, 32
    %v4024 = vpop.permute.xlu0 %4023
    %v4026 = vadd.f32 %v4016, %v4024
    %v4027 = vtanh.pop %v4026
    %4029 = vrot.lane.b32.xlu0 %v4027, 64
    %v4030 = vpop.permute.xlu0 %4029
    %v4032 = vmul.f32 %v4014, %v4030
    %4034 = vrot.lane.b32.xlu0 %v4008, 32
    %v4035 = vpop.permute.xlu0 %4034
    %v4036 = vsel %vm152, %v4035, 0
    %4038 = vmatprep.subr.mxu0 0.0
    %4039 = vmatpush1.msra.mxu0 %v92
    %4040 = vmatprep.subr.mxu0 0.0
    %4041 = vmatpush1.msra.mxu0 %v93
    %4042 = vmatprep.subr.mxu0 0.0
    %4043 = vmatpush1.msra.mxu0 %v94
    %4044 = vmatprep.subr.mxu0 0.0
    %4045 = vmatpush1.msra.mxu0 %v95
    %4046 = vmatprep.subr.mxu0 0.0
    %4047 = vmatpush1.msra.mxu0 0.0
    %4048 = vmatprep.subr.mxu0 0.0
    %4049 = vmatpush1.msra.mxu0 0.0
    %4050 = vmatprep.subr.mxu0 0.0
    %4051 = vmatpush1.msra.mxu0 0.0
    %4052 = vmatprep.subr.mxu0 0.0
    %4053 = vmatpush1.msra.mxu0 0.0
    %4054 = vmatprep.subr.mxu0 0.0
    %4055 = vmatpush1.msra.mxu0 0.0
    %4056 = vmatprep.subr.mxu0 0.0
    %4057 = vmatpush1.msra.mxu0 0.0
    %4058 = vmatprep.subr.mxu0 0.0
    %4059 = vmatpush1.msra.mxu0 0.0
    %4060 = vmatprep.subr.mxu0 0.0
    %4061 = vmatpush1.msra.mxu0 0.0
    %4062 = vmatprep.subr.mxu0 0.0
    %4063 = vmatpush1.msra.mxu0 0.0
    %4064 = vmatprep.subr.mxu0 0.0
    %4065 = vmatpush1.msra.mxu0 0.0
    %4066 = vmatprep.subr.mxu0 0.0
    %4067 = vmatpush1.msra.mxu0 0.0
    %4068 = vmatprep.subr.mxu0 0.0
    %4069 = vmatpush1.msra.mxu0 0.0
    %4070 = vmatprep.subr.mxu0 0.0
    %4071 = vmatpush1.msra.mxu0 0.0
    %4072 = vmatprep.subr.mxu0 0.0
    %4073 = vmatpush1.msra.mxu0 0.0
    %4074 = vmatprep.subr.mxu0 0.0
    %4075 = vmatpush1.msra.mxu0 0.0
    %4076 = vmatprep.subr.mxu0 0.0
    %4077 = vmatpush1.msra.mxu0 0.0
    %4078 = vmatprep.subr.mxu0 0.0
    %4079 = vmatpush1.msra.mxu0 0.0
    %4080 = vmatprep.subr.mxu0 0.0
    %4081 = vmatpush1.msra.mxu0 0.0
    %4082 = vmatprep.subr.mxu0 0.0
    %4083 = vmatpush1.msra.mxu0 0.0
    %4084 = vmatprep.subr.mxu0 0.0
    %4085 = vmatpush1.msra.mxu0 0.0
    %4086 = vmatprep.subr.mxu0 0.0
    %4087 = vmatpush1.msra.mxu0 0.0
    %4088 = vmatprep.subr.mxu0 0.0
    %4089 = vmatpush1.msra.mxu0 0.0
    %4090 = vmatprep.subr.mxu0 0.0
    %4091 = vmatpush1.msra.mxu0 0.0
    %4092 = vmatprep.subr.mxu0 0.0
    %4093 = vmatpush1.msra.mxu0 0.0
    %4094 = vmatprep.subr.mxu0 0.0
    %4095 = vmatpush1.msra.mxu0 0.0
    %4096 = vmatprep.subr.mxu0 0.0
    %4097 = vmatpush1.msra.mxu0 0.0
    %4098 = vmatprep.subr.mxu0 0.0
    %4099 = vmatpush1.msra.mxu0 0.0
    %4100 = vmatprep.subr.mxu0 0.0
    %4101 = vmatpush1.msra.mxu0 0.0
    %4102 = vmatprep.mubr.f32.mxu0 0.0
    %4103 = vmatmul.mubr.f32.gmra.mrb[0].mxu0 %v4036
    %v4104 = vpop.f32.mrb[0].mxu0
    %v4105 = vadd.f32 0.0, %v4104
    %v4106 = vpop.f32.mrb[0].mxu0
    %4107 = vdwg.mxu0
    %v4108 = vadd.f32 %v3842, %v4105
    %4110 = vrot.lane.b32.xlu0 %v4032, 32
    %v4111 = vpop.permute.xlu0 %4110
    %v4112 = vsel %vm152, %v4111, 0
    %4114 = vmatprep.subr.mxu0 0.0
    %4115 = vmatpush1.msra.mxu0 %v72
    %4116 = vmatprep.subr.mxu0 0.0
    %4117 = vmatpush1.msra.mxu0 %v73
    %4118 = vmatprep.subr.mxu0 0.0
    %4119 = vmatpush1.msra.mxu0 %v74
    %4120 = vmatprep.subr.mxu0 0.0
    %4121 = vmatpush1.msra.mxu0 %v75
    %4122 = vmatprep.subr.mxu0 0.0
    %4123 = vmatpush1.msra.mxu0 0.0
    %4124 = vmatprep.subr.mxu0 0.0
    %4125 = vmatpush1.msra.mxu0 0.0
    %4126 = vmatprep.subr.mxu0 0.0
    %4127 = vmatpush1.msra.mxu0 0.0
    %4128 = vmatprep.subr.mxu0 0.0
    %4129 = vmatpush1.msra.mxu0 0.0
    %4130 = vmatprep.subr.mxu0 0.0
    %4131 = vmatpush1.msra.mxu0 0.0
    %4132 = vmatprep.subr.mxu0 0.0
    %4133 = vmatpush1.msra.mxu0 0.0
    %4134 = vmatprep.subr.mxu0 0.0
    %4135 = vmatpush1.msra.mxu0 0.0
    %4136 = vmatprep.subr.mxu0 0.0
    %4137 = vmatpush1.msra.mxu0 0.0
    %4138 = vmatprep.subr.mxu0 0.0
    %4139 = vmatpush1.msra.mxu0 0.0
    %4140 = vmatprep.subr.mxu0 0.0
    %4141 = vmatpush1.msra.mxu0 0.0
    %4142 = vmatprep.subr.mxu0 0.0
    %4143 = vmatpush1.msra.mxu0 0.0
    %4144 = vmatprep.subr.mxu0 0.0
    %4145 = vmatpush1.msra.mxu0 0.0
    %4146 = vmatprep.subr.mxu0 0.0
    %4147 = vmatpush1.msra.mxu0 0.0
    %4148 = vmatprep.subr.mxu0 0.0
    %4149 = vmatpush1.msra.mxu0 0.0
    %4150 = vmatprep.subr.mxu0 0.0
    %4151 = vmatpush1.msra.mxu0 0.0
    %4152 = vmatprep.subr.mxu0 0.0
    %4153 = vmatpush1.msra.mxu0 0.0
    %4154 = vmatprep.subr.mxu0 0.0
    %4155 = vmatpush1.msra.mxu0 0.0
    %4156 = vmatprep.subr.mxu0 0.0
    %4157 = vmatpush1.msra.mxu0 0.0
    %4158 = vmatprep.subr.mxu0 0.0
    %4159 = vmatpush1.msra.mxu0 0.0
    %4160 = vmatprep.subr.mxu0 0.0
    %4161 = vmatpush1.msra.mxu0 0.0
    %4162 = vmatprep.subr.mxu0 0.0
    %4163 = vmatpush1.msra.mxu0 0.0
    %4164 = vmatprep.subr.mxu0 0.0
    %4165 = vmatpush1.msra.mxu0 0.0
    %4166 = vmatprep.subr.mxu0 0.0
    %4167 = vmatpush1.msra.mxu0 0.0
    %4168 = vmatprep.subr.mxu0 0.0
    %4169 = vmatpush1.msra.mxu0 0.0
    %4170 = vmatprep.subr.mxu0 0.0
    %4171 = vmatpush1.msra.mxu0 0.0
    %4172 = vmatprep.subr.mxu0 0.0
    %4173 = vmatpush1.msra.mxu0 0.0
    %4174 = vmatprep.subr.mxu0 0.0
    %4175 = vmatpush1.msra.mxu0 0.0
    %4176 = vmatprep.subr.mxu0 0.0
    %4177 = vmatpush1.msra.mxu0 0.0
    %4178 = vmatprep.mubr.f32.mxu0 0.0
    %4179 = vmatmul.mubr.f32.gmra.mrb[0].mxu0 %v4112
    %v4180 = vpop.f32.mrb[0].mxu0
    %v4181 = vadd.f32 0.0, %v4180
    %v4182 = vpop.f32.mrb[0].mxu0
    %4183 = vdwg.mxu0
    %v4184 = vadd.f32 %v4108, %v4181
    %4185 = vmatprep.subr.mxu0 0.0
    %4186 = vmatpush1.msra.mxu0 %v2125
    %4187 = vmatprep.subr.mxu0 0.0
    %4188 = vmatpush1.msra.mxu0 %v2126
    %4189 = vmatprep.subr.mxu0 0.0
    %4190 = vmatpush1.msra.mxu0 %v2127
    %4191 = vmatprep.subr.mxu0 0.0
    %4192 = vmatpush1.msra.mxu0 %v2128
    %4193 = vmatprep.subr.mxu0 0.0
    %4194 = vmatpush1.msra.mxu0 0.0
    %4195 = vmatprep.subr.mxu0 0.0
    %4196 = vmatpush1.msra.mxu0 0.0
    %4197 = vmatprep.subr.mxu0 0.0
    %4198 = vmatpush1.msra.mxu0 0.0
    %4199 = vmatprep.subr.mxu0 0.0
    %4200 = vmatpush1.msra.mxu0 0.0
    %4201 = vmatprep.subr.mxu0 0.0
    %4202 = vmatpush1.msra.mxu0 0.0
    %4203 = vmatprep.subr.mxu0 0.0
    %4204 = vmatpush1.msra.mxu0 0.0
    %4205 = vmatprep.subr.mxu0 0.0
    %4206 = vmatpush1.msra.mxu0 0.0
    %4207 = vmatprep.subr.mxu0 0.0
    %4208 = vmatpush1.msra.mxu0 0.0
    %4209 = vmatprep.subr.mxu0 0.0
    %4210 = vmatpush1.msra.mxu0 0.0
    %4211 = vmatprep.subr.mxu0 0.0
    %4212 = vmatpush1.msra.mxu0 0.0
    %4213 = vmatprep.subr.mxu0 0.0
    %4214 = vmatpush1.msra.mxu0 0.0
    %4215 = vmatprep.subr.mxu0 0.0
    %4216 = vmatpush1.msra.mxu0 0.0
    %4217 = vmatprep.subr.mxu0 0.0
    %4218 = vmatpush1.msra.mxu0 0.0
    %4219 = vmatprep.subr.mxu0 0.0
    %4220 = vmatpush1.msra.mxu0 0.0
    %4221 = vmatprep.subr.mxu0 0.0
    %4222 = vmatpush1.msra.mxu0 0.0
    %4223 = vmatprep.subr.mxu0 0.0
    %4224 = vmatpush1.msra.mxu0 0.0
    %4225 = vmatprep.subr.mxu0 0.0
    %4226 = vmatpush1.msra.mxu0 0.0
    %4227 = vmatprep.subr.mxu0 0.0
    %4228 = vmatpush1.msra.mxu0 0.0
    %4229 = vmatprep.subr.mxu0 0.0
    %4230 = vmatpush1.msra.mxu0 0.0
    %4231 = vmatprep.subr.mxu0 0.0
    %4232 = vmatpush1.msra.mxu0 0.0
    %4233 = vmatprep.subr.mxu0 0.0
    %4234 = vmatpush1.msra.mxu0 0.0
    %4235 = vmatprep.subr.mxu0 0.0
    %4236 = vmatpush1.msra.mxu0 0.0
    %4237 = vmatprep.subr.mxu0 0.0
    %4238 = vmatpush1.msra.mxu0 0.0
    %4239 = vmatprep.subr.mxu0 0.0
    %4240 = vmatpush1.msra.mxu0 0.0
    %4241 = vmatprep.subr.mxu0 0.0
    %4242 = vmatpush1.msra.mxu0 0.0
    %4243 = vmatprep.subr.mxu0 0.0
    %4244 = vmatpush1.msra.mxu0 0.0
    %4245 = vmatprep.subr.mxu0 0.0
    %4246 = vmatpush1.msra.mxu0 0.0
    %4247 = vmatprep.subr.mxu0 0.0
    %4248 = vmatpush1.msra.mxu0 0.0
    %4249 = vmatprep.mubr.f32.mxu0 0.0
    %4250 = vmatmul.mubr.f32.gmra.mrb[0].mxu0 %v4036
    %v4251 = vpop.f32.mrb[0].mxu0
    %v4252 = vadd.f32 0.0, %v4251
    %v4253 = vpop.f32.mrb[0].mxu0
    %4254 = vdwg.mxu0
    %v4255 = vadd.f32 %v2115, %v4252
    %4256 = vmatprep.subr.mxu0 0.0
    %4257 = vmatpush1.msra.mxu0 %v2129
    %4258 = vmatprep.subr.mxu0 0.0
    %4259 = vmatpush1.msra.mxu0 %v2130
    %4260 = vmatprep.subr.mxu0 0.0
    %4261 = vmatpush1.msra.mxu0 %v2131
    %4262 = vmatprep.subr.mxu0 0.0
    %4263 = vmatpush1.msra.mxu0 %v2132
    %4264 = vmatprep.subr.mxu0 0.0
    %4265 = vmatpush1.msra.mxu0 0.0
    %4266 = vmatprep.subr.mxu0 0.0
    %4267 = vmatpush1.msra.mxu0 0.0
    %4268 = vmatprep.subr.mxu0 0.0
    %4269 = vmatpush1.msra.mxu0 0.0
    %4270 = vmatprep.subr.mxu0 0.0
    %4271 = vmatpush1.msra.mxu0 0.0
    %4272 = vmatprep.subr.mxu0 0.0
    %4273 = vmatpush1.msra.mxu0 0.0
    %4274 = vmatprep.subr.mxu0 0.0
    %4275 = vmatpush1.msra.mxu0 0.0
    %4276 = vmatprep.subr.mxu0 0.0
    %4277 = vmatpush1.msra.mxu0 0.0
    %4278 = vmatprep.subr.mxu0 0.0
    %4279 = vmatpush1.msra.mxu0 0.0
    %4280 = vmatprep.subr.mxu0 0.0
    %4281 = vmatpush1.msra.mxu0 0.0
    %4282 = vmatprep.subr.mxu0 0.0
    %4283 = vmatpush1.msra.mxu0 0.0
    %4284 = vmatprep.subr.mxu0 0.0
    %4285 = vmatpush1.msra.mxu0 0.0
    %4286 = vmatprep.subr.mxu0 0.0
    %4287 = vmatpush1.msra.mxu0 0.0
    %4288 = vmatprep.subr.mxu0 0.0
    %4289 = vmatpush1.msra.mxu0 0.0
    %4290 = vmatprep.subr.mxu0 0.0
    %4291 = vmatpush1.msra.mxu0 0.0
    %4292 = vmatprep.subr.mxu0 0.0
    %4293 = vmatpush1.msra.mxu0 0.0
    %4294 = vmatprep.subr.mxu0 0.0
    %4295 = vmatpush1.msra.mxu0 0.0
    %4296 = vmatprep.subr.mxu0 0.0
    %4297 = vmatpush1.msra.mxu0 0.0
    %4298 = vmatprep.subr.mxu0 0.0
    %4299 = vmatpush1.msra.mxu0 0.0
    %4300 = vmatprep.subr.mxu0 0.0
    %4301 = vmatpush1.msra.mxu0 0.0
    %4302 = vmatprep.subr.mxu0 0.0
    %4303 = vmatpush1.msra.mxu0 0.0
    %4304 = vmatprep.subr.mxu0 0.0
    %4305 = vmatpush1.msra.mxu0 0.0
    %4306 = vmatprep.subr.mxu0 0.0
    %4307 = vmatpush1.msra.mxu0 0.0
    %4308 = vmatprep.subr.mxu0 0.0
    %4309 = vmatpush1.msra.mxu0 0.0
    %4310 = vmatprep.subr.mxu0 0.0
    %4311 = vmatpush1.msra.mxu0 0.0
    %4312 = vmatprep.subr.mxu0 0.0
    %4313 = vmatpush1.msra.mxu0 0.0
    %4314 = vmatprep.subr.mxu0 0.0
    %4315 = vmatpush1.msra.mxu0 0.0
    %4316 = vmatprep.subr.mxu0 0.0
    %4317 = vmatpush1.msra.mxu0 0.0
    %4318 = vmatprep.subr.mxu0 0.0
    %4319 = vmatpush1.msra.mxu0 0.0
    %4320 = vmatprep.mubr.f32.mxu0 0.0
    %4321 = vmatmul.mubr.f32.gmra.mrb[0].mxu0 %v4112
    %v4322 = vpop.f32.mrb[0].mxu0
    %v4323 = vadd.f32 0.0, %v4322
    %v4324 = vpop.f32.mrb[0].mxu0
    %4325 = vdwg.mxu0
    %v4326 = vadd.f32 %v2087, %v4323
    %v4327 = vxor.u32 %v4255, 2147483648
    %v4328 = vmul.f32 %v4327, 1.442695
    %v4329 = vpow.pop %v4328
    %v4330 = vadd.f32 %v4329, 1.0
    %v4331 = vrcp.pop %v4330
    %v4332 = vmul.f32 1.0, %v4331
    %v4333 = vtanh.pop %v4255
    %v4334 = vmul.f32 %v4332, %v4002
    %4336 = vrot.lane.b32.xlu0 %v4333, 64
    %v4337 = vpop.permute.xlu0 %4336
    %v4339 = vmul.f32 %v4332, %v4337
    %4341 = vrot.lane.b32.xlu0 %v4339, 32
    %v4342 = vpop.permute.xlu0 %4341
    %v4344 = vadd.f32 %v4334, %v4342
    %v4345 = vtanh.pop %v4344
    %4347 = vrot.lane.b32.xlu0 %v4345, 64
    %v4348 = vpop.permute.xlu0 %4347
    %v4350 = vmul.f32 %v4332, %v4348
    %v4351 = vxor.u32 %v4326, 2147483648
    %v4352 = vmul.f32 %v4351, 1.442695
    %v4353 = vpow.pop %v4352
    %v4354 = vadd.f32 %v4353, 1.0
    %v4355 = vrcp.pop %v4354
    %v4356 = vmul.f32 1.0, %v4355
    %v4357 = vtanh.pop %v4326
    %v4358 = vmul.f32 %v4356, %v4026
    %4360 = vrot.lane.b32.xlu0 %v4357, 64
    %v4361 = vpop.permute.xlu0 %4360
    %v4363 = vmul.f32 %v4356, %v4361
    %4365 = vrot.lane.b32.xlu0 %v4363, 32
    %v4366 = vpop.permute.xlu0 %4365
    %v4368 = vadd.f32 %v4358, %v4366
    %v4369 = vtanh.pop %v4368
    %4371 = vrot.lane.b32.xlu0 %v4369, 64
    %v4372 = vpop.permute.xlu0 %4371
    %v4374 = vmul.f32 %v4356, %v4372
    %4376 = vrot.lane.b32.xlu0 %v4350, 32
    %v4377 = vpop.permute.xlu0 %4376
    %v4378 = vsel %vm152, %v4377, 0
    %4380 = vmatprep.subr.mxu0 0.0
    %4381 = vmatpush1.msra.mxu0 %v100
    %4382 = vmatprep.subr.mxu0 0.0
    %4383 = vmatpush1.msra.mxu0 %v101
    %4384 = vmatprep.subr.mxu0 0.0
    %4385 = vmatpush1.msra.mxu0 %v102
    %4386 = vmatprep.subr.mxu0 0.0
    %4387 = vmatpush1.msra.mxu0 %v103
    %4388 = vmatprep.subr.mxu0 0.0
    %4389 = vmatpush1.msra.mxu0 0.0
    %4390 = vmatprep.subr.mxu0 0.0
    %4391 = vmatpush1.msra.mxu0 0.0
    %4392 = vmatprep.subr.mxu0 0.0
    %4393 = vmatpush1.msra.mxu0 0.0
    %4394 = vmatprep.subr.mxu0 0.0
    %4395 = vmatpush1.msra.mxu0 0.0
    %4396 = vmatprep.subr.mxu0 0.0
    %4397 = vmatpush1.msra.mxu0 0.0
    %4398 = vmatprep.subr.mxu0 0.0
    %4399 = vmatpush1.msra.mxu0 0.0
    %4400 = vmatprep.subr.mxu0 0.0
    %4401 = vmatpush1.msra.mxu0 0.0
    %4402 = vmatprep.subr.mxu0 0.0
    %4403 = vmatpush1.msra.mxu0 0.0
    %4404 = vmatprep.subr.mxu0 0.0
    %4405 = vmatpush1.msra.mxu0 0.0
    %4406 = vmatprep.subr.mxu0 0.0
    %4407 = vmatpush1.msra.mxu0 0.0
    %4408 = vmatprep.subr.mxu0 0.0
    %4409 = vmatpush1.msra.mxu0 0.0
    %4410 = vmatprep.subr.mxu0 0.0
    %4411 = vmatpush1.msra.mxu0 0.0
    %4412 = vmatprep.subr.mxu0 0.0
    %4413 = vmatpush1.msra.mxu0 0.0
    %4414 = vmatprep.subr.mxu0 0.0
    %4415 = vmatpush1.msra.mxu0 0.0
    %4416 = vmatprep.subr.mxu0 0.0
    %4417 = vmatpush1.msra.mxu0 0.0
    %4418 = vmatprep.subr.mxu0 0.0
    %4419 = vmatpush1.msra.mxu0 0.0
    %4420 = vmatprep.subr.mxu0 0.0
    %4421 = vmatpush1.msra.mxu0 0.0
    %4422 = vmatprep.subr.mxu0 0.0
    %4423 = vmatpush1.msra.mxu0 0.0
    %4424 = vmatprep.subr.mxu0 0.0
    %4425 = vmatpush1.msra.mxu0 0.0
    %4426 = vmatprep.subr.mxu0 0.0
    %4427 = vmatpush1.msra.mxu0 0.0
    %4428 = vmatprep.subr.mxu0 0.0
    %4429 = vmatpush1.msra.mxu0 0.0
    %4430 = vmatprep.subr.mxu0 0.0
    %4431 = vmatpush1.msra.mxu0 0.0
    %4432 = vmatprep.subr.mxu0 0.0
    %4433 = vmatpush1.msra.mxu0 0.0
    %4434 = vmatprep.subr.mxu0 0.0
    %4435 = vmatpush1.msra.mxu0 0.0
    %4436 = vmatprep.subr.mxu0 0.0
    %4437 = vmatpush1.msra.mxu0 0.0
    %4438 = vmatprep.subr.mxu0 0.0
    %4439 = vmatpush1.msra.mxu0 0.0
    %4440 = vmatprep.subr.mxu0 0.0
    %4441 = vmatpush1.msra.mxu0 0.0
    %4442 = vmatprep.subr.mxu0 0.0
    %4443 = vmatpush1.msra.mxu0 0.0
    %4444 = vmatprep.mubr.f32.mxu0 0.0
    %4445 = vmatmul.mubr.f32.gmra.mrb[0].mxu0 %v4378
    %v4446 = vpop.f32.mrb[0].mxu0
    %v4447 = vadd.f32 0.0, %v4446
    %v4448 = vpop.f32.mrb[0].mxu0
    %4449 = vdwg.mxu0
    %v4450 = vadd.f32 %v4184, %v4447
    %4452 = vrot.lane.b32.xlu0 %v4374, 32
    %v4453 = vpop.permute.xlu0 %4452
    %v4454 = vsel %vm152, %v4453, 0
    %4456 = vmatprep.subr.mxu0 0.0
    %4457 = vmatpush1.msra.mxu0 %v64
    %4458 = vmatprep.subr.mxu0 0.0
    %4459 = vmatpush1.msra.mxu0 %v65
    %4460 = vmatprep.subr.mxu0 0.0
    %4461 = vmatpush1.msra.mxu0 %v66
    %4462 = vmatprep.subr.mxu0 0.0
    %4463 = vmatpush1.msra.mxu0 %v67
    %4464 = vmatprep.subr.mxu0 0.0
    %4465 = vmatpush1.msra.mxu0 0.0
    %4466 = vmatprep.subr.mxu0 0.0
    %4467 = vmatpush1.msra.mxu0 0.0
    %4468 = vmatprep.subr.mxu0 0.0
    %4469 = vmatpush1.msra.mxu0 0.0
    %4470 = vmatprep.subr.mxu0 0.0
    %4471 = vmatpush1.msra.mxu0 0.0
    %4472 = vmatprep.subr.mxu0 0.0
    %4473 = vmatpush1.msra.mxu0 0.0
    %4474 = vmatprep.subr.mxu0 0.0
    %4475 = vmatpush1.msra.mxu0 0.0
    %4476 = vmatprep.subr.mxu0 0.0
    %4477 = vmatpush1.msra.mxu0 0.0
    %4478 = vmatprep.subr.mxu0 0.0
    %4479 = vmatpush1.msra.mxu0 0.0
    %4480 = vmatprep.subr.mxu0 0.0
    %4481 = vmatpush1.msra.mxu0 0.0
    %4482 = vmatprep.subr.mxu0 0.0
    %4483 = vmatpush1.msra.mxu0 0.0
    %4484 = vmatprep.subr.mxu0 0.0
    %4485 = vmatpush1.msra.mxu0 0.0
    %4486 = vmatprep.subr.mxu0 0.0
    %4487 = vmatpush1.msra.mxu0 0.0
    %4488 = vmatprep.subr.mxu0 0.0
    %4489 = vmatpush1.msra.mxu0 0.0
    %4490 = vmatprep.subr.mxu0 0.0
    %4491 = vmatpush1.msra.mxu0 0.0
    %4492 = vmatprep.subr.mxu0 0.0
    %4493 = vmatpush1.msra.mxu0 0.0
    %4494 = vmatprep.subr.mxu0 0.0
    %4495 = vmatpush1.msra.mxu0 0.0
    %4496 = vmatprep.subr.mxu0 0.0
    %4497 = vmatpush1.msra.mxu0 0.0
    %4498 = vmatprep.subr.mxu0 0.0
    %4499 = vmatpush1.msra.mxu0 0.0
    %4500 = vmatprep.subr.mxu0 0.0
    %4501 = vmatpush1.msra.mxu0 0.0
    %4502 = vmatprep.subr.mxu0 0.0
    %4503 = vmatpush1.msra.mxu0 0.0
    %4504 = vmatprep.subr.mxu0 0.0
    %4505 = vmatpush1.msra.mxu0 0.0
    %4506 = vmatprep.subr.mxu0 0.0
    %4507 = vmatpush1.msra.mxu0 0.0
    %4508 = vmatprep.subr.mxu0 0.0
    %4509 = vmatpush1.msra.mxu0 0.0
    %4510 = vmatprep.subr.mxu0 0.0
    %4511 = vmatpush1.msra.mxu0 0.0
    %4512 = vmatprep.subr.mxu0 0.0
    %4513 = vmatpush1.msra.mxu0 0.0
    %4514 = vmatprep.subr.mxu0 0.0
    %4515 = vmatpush1.msra.mxu0 0.0
    %4516 = vmatprep.subr.mxu0 0.0
    %4517 = vmatpush1.msra.mxu0 0.0
    %4518 = vmatprep.subr.mxu0 0.0
    %4519 = vmatpush1.msra.mxu0 0.0
    %4520 = vmatprep.mubr.f32.mxu0 0.0
    %4521 = vmatmul.mubr.f32.gmra.mrb[0].mxu0 %v4454
    %v4522 = vpop.f32.mrb[0].mxu0
    %v4523 = vadd.f32 0.0, %v4522
    %v4524 = vpop.f32.mrb[0].mxu0
    %4525 = vdwg.mxu0
    %v4526 = vadd.f32 %v4450, %v4523
    %4527 = vmatprep.subr.mxu0 0.0
    %4528 = vmatpush1.msra.mxu0 %v2125
    %4529 = vmatprep.subr.mxu0 0.0
    %4530 = vmatpush1.msra.mxu0 %v2126
    %4531 = vmatprep.subr.mxu0 0.0
    %4532 = vmatpush1.msra.mxu0 %v2127
    %4533 = vmatprep.subr.mxu0 0.0
    %4534 = vmatpush1.msra.mxu0 %v2128
    %4535 = vmatprep.subr.mxu0 0.0
    %4536 = vmatpush1.msra.mxu0 0.0
    %4537 = vmatprep.subr.mxu0 0.0
    %4538 = vmatpush1.msra.mxu0 0.0
    %4539 = vmatprep.subr.mxu0 0.0
    %4540 = vmatpush1.msra.mxu0 0.0
    %4541 = vmatprep.subr.mxu0 0.0
    %4542 = vmatpush1.msra.mxu0 0.0
    %4543 = vmatprep.subr.mxu0 0.0
    %4544 = vmatpush1.msra.mxu0 0.0
    %4545 = vmatprep.subr.mxu0 0.0
    %4546 = vmatpush1.msra.mxu0 0.0
    %4547 = vmatprep.subr.mxu0 0.0
    %4548 = vmatpush1.msra.mxu0 0.0
    %4549 = vmatprep.subr.mxu0 0.0
    %4550 = vmatpush1.msra.mxu0 0.0
    %4551 = vmatprep.subr.mxu0 0.0
    %4552 = vmatpush1.msra.mxu0 0.0
    %4553 = vmatprep.subr.mxu0 0.0
    %4554 = vmatpush1.msra.mxu0 0.0
    %4555 = vmatprep.subr.mxu0 0.0
    %4556 = vmatpush1.msra.mxu0 0.0
    %4557 = vmatprep.subr.mxu0 0.0
    %4558 = vmatpush1.msra.mxu0 0.0
    %4559 = vmatprep.subr.mxu0 0.0
    %4560 = vmatpush1.msra.mxu0 0.0
    %4561 = vmatprep.subr.mxu0 0.0
    %4562 = vmatpush1.msra.mxu0 0.0
    %4563 = vmatprep.subr.mxu0 0.0
    %4564 = vmatpush1.msra.mxu0 0.0
    %4565 = vmatprep.subr.mxu0 0.0
    %4566 = vmatpush1.msra.mxu0 0.0
    %4567 = vmatprep.subr.mxu0 0.0
    %4568 = vmatpush1.msra.mxu0 0.0
    %4569 = vmatprep.subr.mxu0 0.0
    %4570 = vmatpush1.msra.mxu0 0.0
    %4571 = vmatprep.subr.mxu0 0.0
    %4572 = vmatpush1.msra.mxu0 0.0
    %4573 = vmatprep.subr.mxu0 0.0
    %4574 = vmatpush1.msra.mxu0 0.0
    %4575 = vmatprep.subr.mxu0 0.0
    %4576 = vmatpush1.msra.mxu0 0.0
    %4577 = vmatprep.subr.mxu0 0.0
    %4578 = vmatpush1.msra.mxu0 0.0
    %4579 = vmatprep.subr.mxu0 0.0
    %4580 = vmatpush1.msra.mxu0 0.0
    %4581 = vmatprep.subr.mxu0 0.0
    %4582 = vmatpush1.msra.mxu0 0.0
    %4583 = vmatprep.subr.mxu0 0.0
    %4584 = vmatpush1.msra.mxu0 0.0
    %4585 = vmatprep.subr.mxu0 0.0
    %4586 = vmatpush1.msra.mxu0 0.0
    %4587 = vmatprep.subr.mxu0 0.0
    %4588 = vmatpush1.msra.mxu0 0.0
    %4589 = vmatprep.subr.mxu0 0.0
    %4590 = vmatpush1.msra.mxu0 0.0
    %4591 = vmatprep.mubr.f32.mxu0 0.0
    %4592 = vmatmul.mubr.f32.gmra.mrb[0].mxu0 %v4378
    %v4593 = vpop.f32.mrb[0].mxu0
    %v4594 = vadd.f32 0.0, %v4593
    %v4595 = vpop.f32.mrb[0].mxu0
    %4596 = vdwg.mxu0
    %v4597 = vadd.f32 %v2121, %v4594
    %4598 = vmatprep.subr.mxu0 0.0
    %4599 = vmatpush1.msra.mxu0 %v2129
    %4600 = vmatprep.subr.mxu0 0.0
    %4601 = vmatpush1.msra.mxu0 %v2130
    %4602 = vmatprep.subr.mxu0 0.0
    %4603 = vmatpush1.msra.mxu0 %v2131
    %4604 = vmatprep.subr.mxu0 0.0
    %4605 = vmatpush1.msra.mxu0 %v2132
    %4606 = vmatprep.subr.mxu0 0.0
    %4607 = vmatpush1.msra.mxu0 0.0
    %4608 = vmatprep.subr.mxu0 0.0
    %4609 = vmatpush1.msra.mxu0 0.0
    %4610 = vmatprep.subr.mxu0 0.0
    %4611 = vmatpush1.msra.mxu0 0.0
    %4612 = vmatprep.subr.mxu0 0.0
    %4613 = vmatpush1.msra.mxu0 0.0
    %4614 = vmatprep.subr.mxu0 0.0
    %4615 = vmatpush1.msra.mxu0 0.0
    %4616 = vmatprep.subr.mxu0 0.0
    %4617 = vmatpush1.msra.mxu0 0.0
    %4618 = vmatprep.subr.mxu0 0.0
    %4619 = vmatpush1.msra.mxu0 0.0
    %4620 = vmatprep.subr.mxu0 0.0
    %4621 = vmatpush1.msra.mxu0 0.0
    %4622 = vmatprep.subr.mxu0 0.0
    %4623 = vmatpush1.msra.mxu0 0.0
    %4624 = vmatprep.subr.mxu0 0.0
    %4625 = vmatpush1.msra.mxu0 0.0
    %4626 = vmatprep.subr.mxu0 0.0
    %4627 = vmatpush1.msra.mxu0 0.0
    %4628 = vmatprep.subr.mxu0 0.0
    %4629 = vmatpush1.msra.mxu0 0.0
    %4630 = vmatprep.subr.mxu0 0.0
    %4631 = vmatpush1.msra.mxu0 0.0
    %4632 = vmatprep.subr.mxu0 0.0
    %4633 = vmatpush1.msra.mxu0 0.0
    %4634 = vmatprep.subr.mxu0 0.0
    %4635 = vmatpush1.msra.mxu0 0.0
    %4636 = vmatprep.subr.mxu0 0.0
    %4637 = vmatpush1.msra.mxu0 0.0
    %4638 = vmatprep.subr.mxu0 0.0
    %4639 = vmatpush1.msra.mxu0 0.0
    %4640 = vmatprep.subr.mxu0 0.0
    %4641 = vmatpush1.msra.mxu0 0.0
    %4642 = vmatprep.subr.mxu0 0.0
    %4643 = vmatpush1.msra.mxu0 0.0
    %4644 = vmatprep.subr.mxu0 0.0
    %4645 = vmatpush1.msra.mxu0 0.0
    %4646 = vmatprep.subr.mxu0 0.0
    %4647 = vmatpush1.msra.mxu0 0.0
    %4648 = vmatprep.subr.mxu0 0.0
    %4649 = vmatpush1.msra.mxu0 0.0
    %4650 = vmatprep.subr.mxu0 0.0
    %4651 = vmatpush1.msra.mxu0 0.0
    %4652 = vmatprep.subr.mxu0 0.0
    %4653 = vmatpush1.msra.mxu0 0.0
    %4654 = vmatprep.subr.mxu0 0.0
    %4655 = vmatpush1.msra.mxu0 0.0
    %4656 = vmatprep.subr.mxu0 0.0
    %4657 = vmatpush1.msra.mxu0 0.0
    %4658 = vmatprep.subr.mxu0 0.0
    %4659 = vmatpush1.msra.mxu0 0.0
    %4660 = vmatprep.subr.mxu0 0.0
    %4661 = vmatpush1.msra.mxu0 0.0
    %4662 = vmatprep.mubr.f32.mxu0 0.0
    %4663 = vmatmul.mubr.f32.gmra.mrb[0].mxu0 %v4454
    %v4664 = vpop.f32.mrb[0].mxu0
    %v4665 = vadd.f32 0.0, %v4664
    %v4666 = vpop.f32.mrb[0].mxu0
    %4667 = vdwg.mxu0
    %v4668 = vadd.f32 %v2081, %v4665
    %v4669 = vxor.u32 %v4597, 2147483648
    %v4670 = vmul.f32 %v4669, 1.442695
    %v4671 = vpow.pop %v4670
    %v4672 = vadd.f32 %v4671, 1.0
    %v4673 = vrcp.pop %v4672
    %v4674 = vmul.f32 1.0, %v4673
    %v4675 = vtanh.pop %v4597
    %v4676 = vmul.f32 %v4674, %v4344
    %4678 = vrot.lane.b32.xlu0 %v4675, 64
    %v4679 = vpop.permute.xlu0 %4678
    %v4681 = vmul.f32 %v4674, %v4679
    %4683 = vrot.lane.b32.xlu0 %v4681, 32
    %v4684 = vpop.permute.xlu0 %4683
    %v4686 = vadd.f32 %v4676, %v4684
    %v4687 = vtanh.pop %v4686
    %4689 = vrot.lane.b32.xlu0 %v4687, 64
    %v4690 = vpop.permute.xlu0 %4689
    %v4692 = vmul.f32 %v4674, %v4690
    %v4693 = vxor.u32 %v4668, 2147483648
    %v4694 = vmul.f32 %v4693, 1.442695
    %v4695 = vpow.pop %v4694
    %v4696 = vadd.f32 %v4695, 1.0
    %v4697 = vrcp.pop %v4696
    %v4698 = vmul.f32 1.0, %v4697
    %v4699 = vtanh.pop %v4668
    %v4700 = vmul.f32 %v4698, %v4368
    %4702 = vrot.lane.b32.xlu0 %v4699, 64
    %v4703 = vpop.permute.xlu0 %4702
    %v4705 = vmul.f32 %v4698, %v4703
    %4707 = vrot.lane.b32.xlu0 %v4705, 32
    %v4708 = vpop.permute.xlu0 %4707
    %v4710 = vadd.f32 %v4700, %v4708
    %v4711 = vtanh.pop %v4710
    %4713 = vrot.lane.b32.xlu0 %v4711, 64
    %v4714 = vpop.permute.xlu0 %4713
    %v4716 = vmul.f32 %v4698, %v4714
    %4718 = vrot.lane.b32.xlu0 %v4692, 32
    %v4719 = vpop.permute.xlu0 %4718
    %v4720 = vsel %vm152, %v4719, 0
    %4722 = vmatprep.subr.mxu0 0.0
    %4723 = vmatpush1.msra.mxu0 %v108
    %4724 = vmatprep.subr.mxu0 0.0
    %4725 = vmatpush1.msra.mxu0 %v109
    %4726 = vmatprep.subr.mxu0 0.0
    %4727 = vmatpush1.msra.mxu0 %v110
    %4728 = vmatprep.subr.mxu0 0.0
    %4729 = vmatpush1.msra.mxu0 %v111
    %4730 = vmatprep.subr.mxu0 0.0
    %4731 = vmatpush1.msra.mxu0 0.0
    %4732 = vmatprep.subr.mxu0 0.0
    %4733 = vmatpush1.msra.mxu0 0.0
    %4734 = vmatprep.subr.mxu0 0.0
    %4735 = vmatpush1.msra.mxu0 0.0
    %4736 = vmatprep.subr.mxu0 0.0
    %4737 = vmatpush1.msra.mxu0 0.0
    %4738 = vmatprep.subr.mxu0 0.0
    %4739 = vmatpush1.msra.mxu0 0.0
    %4740 = vmatprep.subr.mxu0 0.0
    %4741 = vmatpush1.msra.mxu0 0.0
    %4742 = vmatprep.subr.mxu0 0.0
    %4743 = vmatpush1.msra.mxu0 0.0
    %4744 = vmatprep.subr.mxu0 0.0
    %4745 = vmatpush1.msra.mxu0 0.0
    %4746 = vmatprep.subr.mxu0 0.0
    %4747 = vmatpush1.msra.mxu0 0.0
    %4748 = vmatprep.subr.mxu0 0.0
    %4749 = vmatpush1.msra.mxu0 0.0
    %4750 = vmatprep.subr.mxu0 0.0
    %4751 = vmatpush1.msra.mxu0 0.0
    %4752 = vmatprep.subr.mxu0 0.0
    %4753 = vmatpush1.msra.mxu0 0.0
    %4754 = vmatprep.subr.mxu0 0.0
    %4755 = vmatpush1.msra.mxu0 0.0
    %4756 = vmatprep.subr.mxu0 0.0
    %4757 = vmatpush1.msra.mxu0 0.0
    %4758 = vmatprep.subr.mxu0 0.0
    %4759 = vmatpush1.msra.mxu0 0.0
    %4760 = vmatprep.subr.mxu0 0.0
    %4761 = vmatpush1.msra.mxu0 0.0
    %4762 = vmatprep.subr.mxu0 0.0
    %4763 = vmatpush1.msra.mxu0 0.0
    %4764 = vmatprep.subr.mxu0 0.0
    %4765 = vmatpush1.msra.mxu0 0.0
    %4766 = vmatprep.subr.mxu0 0.0
    %4767 = vmatpush1.msra.mxu0 0.0
    %4768 = vmatprep.subr.mxu0 0.0
    %4769 = vmatpush1.msra.mxu0 0.0
    %4770 = vmatprep.subr.mxu0 0.0
    %4771 = vmatpush1.msra.mxu0 0.0
    %4772 = vmatprep.subr.mxu0 0.0
    %4773 = vmatpush1.msra.mxu0 0.0
    %4774 = vmatprep.subr.mxu0 0.0
    %4775 = vmatpush1.msra.mxu0 0.0
    %4776 = vmatprep.subr.mxu0 0.0
    %4777 = vmatpush1.msra.mxu0 0.0
    %4778 = vmatprep.subr.mxu0 0.0
    %4779 = vmatpush1.msra.mxu0 0.0
    %4780 = vmatprep.subr.mxu0 0.0
    %4781 = vmatpush1.msra.mxu0 0.0
    %4782 = vmatprep.subr.mxu0 0.0
    %4783 = vmatpush1.msra.mxu0 0.0
    %4784 = vmatprep.subr.mxu0 0.0
    %4785 = vmatpush1.msra.mxu0 0.0
    %4786 = vmatprep.mubr.f32.mxu0 0.0
    %4787 = vmatmul.mubr.f32.gmra.mrb[0].mxu0 %v4720
    %v4788 = vpop.f32.mrb[0].mxu0
    %v4789 = vadd.f32 0.0, %v4788
    %v4790 = vpop.f32.mrb[0].mxu0
    %4791 = vdwg.mxu0
    %v4792 = vadd.f32 %v4526, %v4789
    %4794 = vrot.lane.b32.xlu0 %v4716, 32
    %v4795 = vpop.permute.xlu0 %4794
    %v4796 = vsel %vm152, %v4795, 0
    %4798 = vmatprep.subr.mxu0 0.0
    %4799 = vmatpush1.msra.mxu0 %v56
    %4800 = vmatprep.subr.mxu0 0.0
    %4801 = vmatpush1.msra.mxu0 %v57
    %4802 = vmatprep.subr.mxu0 0.0
    %4803 = vmatpush1.msra.mxu0 %v58
    %4804 = vmatprep.subr.mxu0 0.0
    %4805 = vmatpush1.msra.mxu0 %v59
    %4806 = vmatprep.subr.mxu0 0.0
    %4807 = vmatpush1.msra.mxu0 0.0
    %4808 = vmatprep.subr.mxu0 0.0
    %4809 = vmatpush1.msra.mxu0 0.0
    %4810 = vmatprep.subr.mxu0 0.0
    %4811 = vmatpush1.msra.mxu0 0.0
    %4812 = vmatprep.subr.mxu0 0.0
    %4813 = vmatpush1.msra.mxu0 0.0
    %4814 = vmatprep.subr.mxu0 0.0
    %4815 = vmatpush1.msra.mxu0 0.0
    %4816 = vmatprep.subr.mxu0 0.0
    %4817 = vmatpush1.msra.mxu0 0.0
    %4818 = vmatprep.subr.mxu0 0.0
    %4819 = vmatpush1.msra.mxu0 0.0
    %4820 = vmatprep.subr.mxu0 0.0
    %4821 = vmatpush1.msra.mxu0 0.0
    %4822 = vmatprep.subr.mxu0 0.0
    %4823 = vmatpush1.msra.mxu0 0.0
    %4824 = vmatprep.subr.mxu0 0.0
    %4825 = vmatpush1.msra.mxu0 0.0
    %4826 = vmatprep.subr.mxu0 0.0
    %4827 = vmatpush1.msra.mxu0 0.0
    %4828 = vmatprep.subr.mxu0 0.0
    %4829 = vmatpush1.msra.mxu0 0.0
    %4830 = vmatprep.subr.mxu0 0.0
    %4831 = vmatpush1.msra.mxu0 0.0
    %4832 = vmatprep.subr.mxu0 0.0
    %4833 = vmatpush1.msra.mxu0 0.0
    %4834 = vmatprep.subr.mxu0 0.0
    %4835 = vmatpush1.msra.mxu0 0.0
    %4836 = vmatprep.subr.mxu0 0.0
    %4837 = vmatpush1.msra.mxu0 0.0
    %4838 = vmatprep.subr.mxu0 0.0
    %4839 = vmatpush1.msra.mxu0 0.0
    %4840 = vmatprep.subr.mxu0 0.0
    %4841 = vmatpush1.msra.mxu0 0.0
    %4842 = vmatprep.subr.mxu0 0.0
    %4843 = vmatpush1.msra.mxu0 0.0
    %4844 = vmatprep.subr.mxu0 0.0
    %4845 = vmatpush1.msra.mxu0 0.0
    %4846 = vmatprep.subr.mxu0 0.0
    %4847 = vmatpush1.msra.mxu0 0.0
    %4848 = vmatprep.subr.mxu0 0.0
    %4849 = vmatpush1.msra.mxu0 0.0
    %4850 = vmatprep.subr.mxu0 0.0
    %4851 = vmatpush1.msra.mxu0 0.0
    %4852 = vmatprep.subr.mxu0 0.0
    %4853 = vmatpush1.msra.mxu0 0.0
    %4854 = vmatprep.subr.mxu0 0.0
    %4855 = vmatpush1.msra.mxu0 0.0
    %4856 = vmatprep.subr.mxu0 0.0
    %4857 = vmatpush1.msra.mxu0 0.0
    %4858 = vmatprep.subr.mxu0 0.0
    %4859 = vmatpush1.msra.mxu0 0.0
    %4860 = vmatprep.subr.mxu0 0.0
    %4861 = vmatpush1.msra.mxu0 0.0
    %4862 = vmatprep.mubr.f32.mxu0 0.0
    %4863 = vmatmul.mubr.f32.gmra.mrb[0].mxu0 %v4796
    %v4864 = vpop.f32.mrb[0].mxu0
    %v4865 = vadd.f32 0.0, %v4864
    %v4866 = vpop.f32.mrb[0].mxu0
    %4867 = vdwg.mxu0
    %v4868 = vadd.f32 %v4792, %v4865
    %4869 = vst [vmem:[%s11] sm:$0xff] %v4868
    // Predicated region
    $region50: #{forward_pallas.1} parent=1 // pred_check
      _
    $region51: #{forward_pallas.1} parent=1 // pred_check_branch
      %4871 = sbr.rel (0) target = $region53
    $region52: #{forward_pallas.1} parent=1 // pred_region
      _
    $region53: #{forward_pallas.1} parent=1 // pred_fallthru
      _
    // Predicated region
    $region54: #{forward_pallas.1} parent=1 // pred_check
      _
    $region55: #{forward_pallas.1} parent=1 // pred_check_branch
      %4873 = sbr.rel (0) target = $region57
    $region56: #{forward_pallas.1} parent=1 // pred_region
      _
    $region57: #{forward_pallas.1} parent=1 // pred_fallthru
      _
    %4874 = vsyncpa [#allocation4], 1

</llo_original>
